<compile_context>
chip_gen: v7x
topology: tpu7x:2x2x1
jax: 0.10.0
libtpu: 0.0.40
codegen_flags: <defaults>
</compile_context>

<pallas_src>
import functools
import math

import jax
import jax.numpy as jnp
from jax.experimental import pallas as pl
from jax.experimental.pallas import tpu as pltpu

# ---------------- config ----------------
HEADS = 8
DIM_HEAD = 64
FF_MULT = 4
CONV_EXPANSION = 2
CONV_KERNEL = 31
CONV_PAD = 16                 # kernel//2 (=15) rounded up to a sublane multiple of 8
LN_EPS = 1e-5
NEG_INF = -1e30

# rows of the packed (17, D) per-layer vector bundle (LN gains/biases + D-wide GEMM biases)
VD_LN_FF1_G, VD_LN_FF1_B, VD_FF1_B2 = 0, 1, 2
VD_LN_SA_G, VD_LN_SA_B, VD_SA_BO = 3, 4, 5
VD_LN_CA_G, VD_LN_CA_B, VD_CA_BO = 6, 7, 8
VD_CONV_LN_G, VD_CONV_LN_B, VD_CONV_B2 = 9, 10, 11
VD_LN_FF2_G, VD_LN_FF2_B, VD_FF2_B2 = 12, 13, 14
VD_LN_POST_G, VD_LN_POST_B = 15, 16
NUM_VD = 17

LAYER_WEIGHT_NAMES = (
    'vec_d', 'vec_ffh', 'vec_e',
    'ff1_w1', 'ff1_w2', 'sa_wqkv', 'sa_wo', 'ca_wq', 'ca_wkv', 'ca_wo',
    'conv_w1a', 'conv_w1b', 'conv_dw', 'conv_w2', 'ff2_w1', 'ff2_w2',
)


# ---------------- Buffered(1) probe (single-buffer resident weights, with fallback) ------
_SINGLE_BUFFER_CACHE = None


def _probe_single_buffer_weights():
    """Compile+run a tiny kernel using pipeline_mode=pl.Buffered(1); fall back if rejected."""
    try:
        def _copy(w_ref, o_ref):
            o_ref[...] = w_ref[...]

        spec = pl.BlockSpec((8, 128), lambda i: (0, 0), pipeline_mode=pl.Buffered(1))
        fn = pl.pallas_call(
            _copy,
            out_shape=jax.ShapeDtypeStruct((8, 128), jnp.float32),
            grid=(2,),
            in_specs=[spec],
            out_specs=pl.BlockSpec((8, 128), lambda i: (0, 0)))
        jax.block_until_ready(fn(jnp.ones((8, 128), jnp.float32)))
        return True
    except Exception:
        return False


def _weights_single_buffered():
    global _SINGLE_BUFFER_CACHE
    if _SINGLE_BUFFER_CACHE is None:
        _SINGLE_BUFFER_CACHE = _probe_single_buffer_weights()
    return _SINGLE_BUFFER_CACHE


# ---------------- fused per-layer kernel ----------------
def conformer_layer_kernel(
        x_ref, ctx_ref, fm_ref, lm_ref,
        vec_d, vec_ffh, vec_e,
        ff1_w1, ff1_w2, sa_wqkv, sa_wo, ca_wq, ca_wkv, ca_wo,
        conv_w1a, conv_w1b, conv_dw, conv_w2, ff2_w1, ff2_w2,
        o_ref, attn_scr, conv_scr,
        *, heads, dim_head, ksize):
    f32 = jnp.float32
    bf16 = jnp.bfloat16
    inner = heads * dim_head

    x = x_ref[0].astype(f32)            # (S, D)
    ctx = ctx_ref[0].astype(f32)        # (T, D)
    fm_bias = fm_ref[0]                 # (1, S) additive key bias: 0 keep / -1e30 drop
    lm_bias = lm_ref[0]                 # (1, T)
    S = x.shape[0]
    E = conv_scr.shape[1]

    def vd(i):                          # packed (1, D) vector params
        return vec_d[i:i + 1, :]

    def ln(v, gi, bi):                  # f32 LayerNorm
        mu = jnp.mean(v, axis=-1, keepdims=True)
        var = jnp.mean((v - mu) ** 2, axis=-1, keepdims=True)
        return (v - mu) * jax.lax.rsqrt(var + LN_EPS) * vd(gi) + vd(bi)

    def ffn(v, w1, b1, w2, b2):         # bf16 GEMMs, f32 accumulate + Swish
        h = jnp.dot(v.astype(bf16), w1[...], preferred_element_type=f32) + b1
        h = h * jax.nn.sigmoid(h)
        return jnp.dot(h.astype(bf16), w2[...], preferred_element_type=f32) + b2

    def mha(q_full, k_full, v_full, key_bias, wo, bo):
        # Heads in pairs: every attn_scr store is a full lane-aligned (S, 128) slab.
        # Scores via dot_general in A@B^T form (MXU-native, no XLU transpose).
        # Softmax scale is pre-folded into the Q projection at init.
        for h0 in range(0, heads, 2):
            pair = []
            for hh in (h0, h0 + 1):
                lo = hh * dim_head
                qh = q_full[:, lo:lo + dim_head].astype(bf16)
                kh = k_full[:, lo:lo + dim_head].astype(bf16)
                vh = v_full[:, lo:lo + dim_head].astype(bf16)
                s = jax.lax.dot_general(qh, kh, (((1,), (1,)), ((), ())),
                                        preferred_element_type=f32) + key_bias
                s = s - jnp.max(s, axis=-1, keepdims=True)
                p = jnp.exp(s)
                p = p * pl.reciprocal(jnp.sum(p, axis=-1, keepdims=True), approx=True)
                pair.append(jnp.dot(p.astype(bf16), vh, preferred_element_type=f32))
            lo = h0 * dim_head
            attn_scr[:, lo:lo + 2 * dim_head] = (
                jnp.concatenate(pair, axis=1).astype(attn_scr.dtype))
        return jnp.dot(attn_scr[...], wo[...], preferred_element_type=f32) + bo

    # ---- half-step feed-forward 1 (LN + FFN + residual fused) ----
    x = x + 0.5 * ffn(ln(x, VD_LN_FF1_G, VD_LN_FF1_B),
                      ff1_w1, vec_ffh[0:1, :], ff1_w2, vd(VD_FF1_B2))

    # ---- self-attention (single fused bf16 QKV GEMM) ----
    h = ln(x, VD_LN_SA_G, VD_LN_SA_B)
    qkv = jnp.dot(h.astype(bf16), sa_wqkv[...], preferred_element_type=f32)   # (S, 3*inner)
    x = x + mha(qkv[:, :inner], qkv[:, inner:2 * inner], qkv[:, 2 * inner:],
                fm_bias, sa_wo, vd(VD_SA_BO))

    # ---- cross-attention over token context (fused bf16 KV GEMM) ----
    h = ln(x, VD_LN_CA_G, VD_LN_CA_B)
    q = jnp.dot(h.astype(bf16), ca_wq[...], preferred_element_type=f32)        # (S, inner)
    kv = jnp.dot(ctx.astype(bf16), ca_wkv[...], preferred_element_type=f32)    # (T, 2*inner)
    x = x + mha(q, kv[:, :inner], kv[:, inner:], lm_bias, ca_wo, vd(VD_CA_BO))

    # ---- convolution module (all in VMEM) ----
    h = ln(x, VD_CONV_LN_G, VD_CONV_LN_B)
    ha = jnp.dot(h.astype(bf16), conv_w1a[...], preferred_element_type=f32) + vec_e[0:1, :]
    hb = jnp.dot(h.astype(bf16), conv_w1b[...], preferred_element_type=f32) + vec_e[1:2, :]
    hc = ha * jax.nn.sigmoid(hb)                       # GLU (weights pre-split), f32

    pad = CONV_PAD
    # Zero ONLY the padding rows; the middle S rows are fully overwritten below.
    conv_scr[0:pad, :] = jnp.zeros((pad, E), f32)
    conv_scr[pad + S:pad + S + pad, :] = jnp.zeros((pad, E), f32)
    conv_scr[pad:pad + S, :] = hc                      # sublane-aligned (pad=16) hot store
    hp = conv_scr[...]                                 # (S + 2*pad, E)
    rows = hp.shape[0]
    dw = conv_dw[...].astype(f32)                      # (K, E), loaded once
    base = pad - ksize // 2                            # = 1
    acc = jnp.zeros(hc.shape, f32)
    for k in range(ksize):                             # 31 static taps, unrolled
        # rotate tap row (base+k) to row 0 on the XLU; FMA on the VPU
        shifted = pltpu.roll(hp, shift=rows - (base + k), axis=0)
        acc = acc + shifted[:S, :] * dw[k:k + 1, :]
    # TODO(synk): BatchNorm1d between depthwise conv and Swish is identity (eval/init stats).
    acc = acc * jax.nn.sigmoid(acc)                    # Swish
    x = x + jnp.dot(acc.astype(bf16), conv_w2[...], preferred_element_type=f32) + vd(VD_CONV_B2)

    # ---- half-step feed-forward 2 ----
    x = x + 0.5 * ffn(ln(x, VD_LN_FF2_G, VD_LN_FF2_B),
                      ff2_w1, vec_ffh[1:2, :], ff2_w2, vd(VD_FF2_B2))

    # ---- post LayerNorm ----
    o_ref[0] = ln(x, VD_LN_POST_G, VD_LN_POST_B).astype(o_ref.dtype)


# ---------------- pallas_call wrapper ----------------
def conformer_layer(x, ctx, fm_bias, lm_bias, p, *, heads=HEADS, dim_head=DIM_HEAD):
    B, S, D = x.shape
    T = ctx.shape[1]
    K, E = p['conv_dw'].shape
    ffh = p['ff1_w1'].shape[1]
    inner = heads * dim_head
    assert heads % 2 == 0, "paired-head attention needs an even head count"
    assert K % 2 == 1 and K // 2 <= CONV_PAD

    weights = [p[name] for name in LAYER_WEIGHT_NAMES]
    single_buf = _weights_single_buffered()

    def const_spec(shape):
        zeros = (0,) * len(shape)
        if single_buf:
            return pl.BlockSpec(shape, lambda b: zeros, pipeline_mode=pl.Buffered(1))
        return pl.BlockSpec(shape, lambda b: zeros)

    w_specs = [const_spec(w.shape) for w in weights]

    # VMEM budget: resident weights (x1 if single-buffered, else x2), double-buffered I/O
    # blocks, scratches, and an estimate of the live f32 intermediates, capped to the chip.
    w_bytes = sum(int(w.size) * w.dtype.itemsize for w in weights)
    if not single_buf:
        w_bytes *= 2
    io_bytes = 2 * 4 * (2 * S * D + T * D + S + T)
    scr_bytes = 2 * S * inner + 4 * (S + 2 * CONV_PAD) * E
    live_bytes = 4 * (S * 3 * inner + S * ffh + 3 * S * max(S, T) + 3 * S * E + 6 * S * D)
    need = w_bytes + io_bytes + scr_bytes + live_bytes + (4 << 20)
    try:
        cap = int(pltpu.get_tpu_info().vmem_capacity_bytes * 0.7)   # ~44 MiB on v7x
    except Exception:
        cap = 40 << 20
    vmem_limit = int(min(max(need, 8 << 20), cap))

    kern = functools.partial(conformer_layer_kernel,
                             heads=heads, dim_head=dim_head, ksize=K)
    return pl.pallas_call(
        kern,
        out_shape=jax.ShapeDtypeStruct((B, S, D), x.dtype),
        grid=(B,),
        in_specs=[pl.BlockSpec((1, S, D), lambda b: (b, 0, 0)),
                  pl.BlockSpec((1, T, D), lambda b: (b, 0, 0)),
                  pl.BlockSpec((1, 1, S), lambda b: (b, 0, 0)),
                  pl.BlockSpec((1, 1, T), lambda b: (b, 0, 0))] + w_specs,
        out_specs=pl.BlockSpec((1, S, D), lambda b: (b, 0, 0)),
        scratch_shapes=[pltpu.VMEM((S, inner), jnp.bfloat16),          # per-head ctx (bf16)
                        pltpu.VMEM((S + 2 * CONV_PAD, E), jnp.float32)],  # padded conv buf
        compiler_params=pltpu.CompilerParams(
            dimension_semantics=("parallel",),   # batch rows shard across v7x's 2 TCs
            vmem_limit_bytes=vmem_limit),
    )(x, ctx, fm_bias, lm_bias, *weights)


# ---------------- model glue ----------------
def conformer_cross_attn_encoder(params, x_sbd, token_tbd=None, frame_mask=None,
                                 label_mask=None):
    S, B, D = x_sbd.shape
    x = jnp.transpose(x_sbd, (1, 0, 2))                      # (B, S, D)
    # Positional-encoding add left to XLA (fuses with the transpose); dropout is identity.
    # TODO(synk): maxlen=300 buffer limits S, same as the PyTorch module.
    x = x + params['pos_embedding'][None, :S, :]

    ctx = x if token_tbd is None else jnp.transpose(token_tbd, (1, 0, 2))
    T = ctx.shape[1]
    if frame_mask is None:
        frame_mask = jnp.ones((B, S), jnp.float32)
    if label_mask is None:
        label_mask = jnp.ones((B, T), jnp.float32)
    # Masks -> additive key biases (0 keep, -1e30 drop), computed once per forward.
    fm_bias = jnp.where(frame_mask > 0.5, 0.0, NEG_INF).astype(jnp.float32).reshape(B, 1, S)
    lm_bias = jnp.where(label_mask > 0.5, 0.0, NEG_INF).astype(jnp.float32).reshape(B, 1, T)

    for p in params['layers']:
        x = conformer_layer(x, ctx, fm_bias, lm_bias, p)
    return jnp.transpose(x, (1, 0, 2))                       # (S, B, D)


# ---------------- parameter init ----------------
def make_pos_embedding(emb_size, maxlen=300):
    den = jnp.exp(-jnp.arange(0, emb_size, 2, dtype=jnp.float32) * math.log(10000.0) / emb_size)
    pos = jnp.arange(0, maxlen, dtype=jnp.float32).reshape(maxlen, 1)
    pe = jnp.zeros((maxlen, emb_size), jnp.float32)
    pe = pe.at[:, 0::2].set(jnp.sin(pos * den))
    pe = pe.at[:, 1::2].set(jnp.cos(pos * den))
    return pe


def init_params(key, dim, num_layer, heads=HEADS, dim_head=DIM_HEAD,
                ff_mult=FF_MULT, conv_expansion=CONV_EXPANSION, conv_kernel=CONV_KERNEL):
    inner = heads * dim_head
    ffh = dim * ff_mult
    ce = dim * conv_expansion
    q_scale = 1.0 / math.sqrt(dim_head)

    def nrm(k, shape):
        return 0.02 * jax.random.normal(k, shape, jnp.float32)

    def bf(a):
        return a.astype(jnp.bfloat16)        # GEMM weights live in bf16 (MXU-native)

    layers = []
    for _ in range(num_layer):
        keys = jax.random.split(key, 14)
        key = keys[0]

        # Packed small params: LN gains = 1, everything else (biases) = 0.
        vec_d = jnp.zeros((NUM_VD, dim), jnp.float32)
        for gi in (VD_LN_FF1_G, VD_LN_SA_G, VD_LN_CA_G,
                   VD_CONV_LN_G, VD_LN_FF2_G, VD_LN_POST_G):
            vec_d = vec_d.at[gi].set(1.0)

        # Fold the 1/sqrt(dim_head) softmax scale into the Q projections.
        sa_wqkv = nrm(keys[3], (dim, 3 * inner))
        sa_wqkv = sa_wqkv.at[:, :inner].multiply(q_scale)
        ca_wq = nrm(keys[5], (dim, inner)) * q_scale

        layers.append(dict(
            vec_d=vec_d,
            vec_ffh=jnp.zeros((2, ffh), jnp.float32),      # ff1_b1, ff2_b1
            vec_e=jnp.zeros((2, ce), jnp.float32),         # conv_b1a, conv_b1b
            ff1_w1=bf(nrm(keys[1], (dim, ffh))), ff1_w2=bf(nrm(keys[2], (ffh, dim))),
            sa_wqkv=bf(sa_wqkv), sa_wo=bf(nrm(keys[4], (inner, dim))),
            ca_wq=bf(ca_wq), ca_wkv=bf(nrm(keys[6], (dim, 2 * inner))),
            ca_wo=bf(nrm(keys[7], (inner, dim))),
            conv_w1a=bf(nrm(keys[8], (dim, ce))),          # GLU value half
            conv_w1b=bf(nrm(keys[9], (dim, ce))),          # GLU gate half
            conv_dw=nrm(keys[10], (conv_kernel, ce)),      # depthwise taps stay f32 (VPU)
            conv_w2=bf(nrm(keys[11], (ce, dim))),
            ff2_w1=bf(nrm(keys[12], (dim, ffh))), ff2_w2=bf(nrm(keys[13], (ffh, dim))),
        ))
    return {'pos_embedding': make_pos_embedding(dim), 'layers': layers}


# ---------------- main ----------------
if __name__ == "__main__":
    key = jax.random.PRNGKey(0)
    D, S, B, T = 32, 16, 2, 8
    num_layer = 2

    k1, k2, k3 = jax.random.split(key, 3)
    params = init_params(k1, D, num_layer)
    x = jax.random.normal(k2, (S, B, D), jnp.float32)        # (seq, batch, dim)
    token = jax.random.normal(k3, (T, B, D), jnp.float32)    # (tok_len, batch, dim)
    frame_mask = jnp.ones((B, S), jnp.float32).at[1, S - 2:].set(0.0)
    label_mask = jnp.ones((B, T), jnp.float32).at[1, T - 3:].set(0.0)

    fwd = jax.jit(conformer_cross_attn_encoder)
    out = jax.block_until_ready(fwd(params, x, token, frame_mask, label_mask))
    assert out.shape == (S, B, D)
    assert bool(jnp.all(jnp.isfinite(out)))
    print("KERNEL_OK")
</pallas_src>

<mosaic_0001>
module attributes {stable_mosaic.version = 11 : i64} {
  func.func @conformer_layer_kernel(%arg0: i32, %arg1: memref<1x16x32xf32, #tpu.memory_space<vmem>>, %arg2: memref<1x8x32xf32, #tpu.memory_space<vmem>>, %arg3: memref<1x1x16xf32, #tpu.memory_space<vmem>>, %arg4: memref<1x1x8xf32, #tpu.memory_space<vmem>>, %arg5: memref<17x32xf32, #tpu.memory_space<vmem>>, %arg6: memref<2x128xf32, #tpu.memory_space<vmem>>, %arg7: memref<2x64xf32, #tpu.memory_space<vmem>>, %arg8: memref<32x128xbf16, #tpu.memory_space<vmem>>, %arg9: memref<128x32xbf16, #tpu.memory_space<vmem>>, %arg10: memref<32x1536xbf16, #tpu.memory_space<vmem>>, %arg11: memref<512x32xbf16, #tpu.memory_space<vmem>>, %arg12: memref<32x512xbf16, #tpu.memory_space<vmem>>, %arg13: memref<32x1024xbf16, #tpu.memory_space<vmem>>, %arg14: memref<512x32xbf16, #tpu.memory_space<vmem>>, %arg15: memref<32x64xbf16, #tpu.memory_space<vmem>>, %arg16: memref<32x64xbf16, #tpu.memory_space<vmem>>, %arg17: memref<31x64xf32, #tpu.memory_space<vmem>>, %arg18: memref<64x32xbf16, #tpu.memory_space<vmem>>, %arg19: memref<32x128xbf16, #tpu.memory_space<vmem>>, %arg20: memref<128x32xbf16, #tpu.memory_space<vmem>>, %arg21: memref<1x16x32xf32, #tpu.memory_space<vmem>>, %arg22: memref<16x512xbf16, #tpu.memory_space<vmem>>, %arg23: memref<48x64xf32, #tpu.memory_space<vmem>>) attributes {dimension_semantics = [#tpu.dimension_semantics<parallel>], iteration_bounds = array<i64: 2>, scalar_prefetch = 0 : i64, scratch_operands = 2 : i64, tpu.core_type = #tpu.core_type<tc>, window_params = [{transform_indices = @transform_0, window_bounds = array<i64: 1, 16, 32>}, {transform_indices = @transform_1, window_bounds = array<i64: 1, 8, 32>}, {transform_indices = @transform_2, window_bounds = array<i64: 1, 1, 16>}, {transform_indices = @transform_3, window_bounds = array<i64: 1, 1, 8>}, {pipeline_mode = #tpu.pipeline_mode<synchronous>, transform_indices = @transform_4, window_bounds = array<i64: 17, 32>}, {pipeline_mode = #tpu.pipeline_mode<synchronous>, transform_indices = @transform_5, window_bounds = array<i64: 2, 128>}, {pipeline_mode = #tpu.pipeline_mode<synchronous>, transform_indices = @transform_6, window_bounds = array<i64: 2, 64>}, {pipeline_mode = #tpu.pipeline_mode<synchronous>, transform_indices = @transform_7, window_bounds = array<i64: 32, 128>}, {pipeline_mode = #tpu.pipeline_mode<synchronous>, transform_indices = @transform_8, window_bounds = array<i64: 128, 32>}, {pipeline_mode = #tpu.pipeline_mode<synchronous>, transform_indices = @transform_9, window_bounds = array<i64: 32, 1536>}, {pipeline_mode = #tpu.pipeline_mode<synchronous>, transform_indices = @transform_10, window_bounds = array<i64: 512, 32>}, {pipeline_mode = #tpu.pipeline_mode<synchronous>, transform_indices = @transform_11, window_bounds = array<i64: 32, 512>}, {pipeline_mode = #tpu.pipeline_mode<synchronous>, transform_indices = @transform_12, window_bounds = array<i64: 32, 1024>}, {pipeline_mode = #tpu.pipeline_mode<synchronous>, transform_indices = @transform_13, window_bounds = array<i64: 512, 32>}, {pipeline_mode = #tpu.pipeline_mode<synchronous>, transform_indices = @transform_14, window_bounds = array<i64: 32, 64>}, {pipeline_mode = #tpu.pipeline_mode<synchronous>, transform_indices = @transform_15, window_bounds = array<i64: 32, 64>}, {pipeline_mode = #tpu.pipeline_mode<synchronous>, transform_indices = @transform_16, window_bounds = array<i64: 31, 64>}, {pipeline_mode = #tpu.pipeline_mode<synchronous>, transform_indices = @transform_17, window_bounds = array<i64: 64, 32>}, {pipeline_mode = #tpu.pipeline_mode<synchronous>, transform_indices = @transform_18, window_bounds = array<i64: 32, 128>}, {pipeline_mode = #tpu.pipeline_mode<synchronous>, transform_indices = @transform_19, window_bounds = array<i64: 128, 32>}, {transform_indices = @transform_20, window_bounds = array<i64: 1, 16, 32>}]} {
    %c0 = arith.constant 0 : index
    %c0_0 = arith.constant 0 : index
    %c0_1 = arith.constant 0 : index
    %0 = vector.load %arg1[%c0, %c0_0, %c0_1] : memref<1x16x32xf32, #tpu.memory_space<vmem>>, vector<1x16x32xf32>
    %1 = vector.shape_cast %0 : vector<1x16x32xf32> to vector<16x32xf32>
    %c0_2 = arith.constant 0 : index
    %c0_3 = arith.constant 0 : index
    %c0_4 = arith.constant 0 : index
    %2 = vector.load %arg2[%c0_2, %c0_3, %c0_4] : memref<1x8x32xf32, #tpu.memory_space<vmem>>, vector<1x8x32xf32>
    %3 = vector.shape_cast %2 : vector<1x8x32xf32> to vector<8x32xf32>
    %c0_5 = arith.constant 0 : index
    %c0_6 = arith.constant 0 : index
    %c0_7 = arith.constant 0 : index
    %4 = vector.load %arg3[%c0_5, %c0_6, %c0_7] : memref<1x1x16xf32, #tpu.memory_space<vmem>>, vector<1x1x16xf32>
    %5 = vector.shape_cast %4 : vector<1x1x16xf32> to vector<1x16xf32>
    %c0_8 = arith.constant 0 : index
    %c0_9 = arith.constant 0 : index
    %c0_10 = arith.constant 0 : index
    %6 = vector.load %arg4[%c0_8, %c0_9, %c0_10] : memref<1x1x8xf32, #tpu.memory_space<vmem>>, vector<1x1x8xf32>
    %7 = vector.shape_cast %6 : vector<1x1x8xf32> to vector<1x8xf32>
    %cst = arith.constant dense<0.000000e+00> : vector<16xf32>
    %8 = vector.multi_reduction <add>, %1, %cst [1] : vector<16x32xf32> to vector<16xf32>
    %9 = vector.shape_cast %8 : vector<16xf32> to vector<16x1xf32>
    %cst_11 = arith.constant 3.200000e+01 : f32
    %10 = vector.broadcast %cst_11 : f32 to vector<16x1xf32>
    %11 = arith.divf %9, %10 : vector<16x1xf32>
    %12 = vector.broadcast %11 : vector<16x1xf32> to vector<16x32xf32>
    %13 = arith.subf %1, %12 : vector<16x32xf32>
    %14 = arith.mulf %13, %13 : vector<16x32xf32>
    %cst_12 = arith.constant dense<0.000000e+00> : vector<16xf32>
    %15 = vector.multi_reduction <add>, %14, %cst_12 [1] : vector<16x32xf32> to vector<16xf32>
    %16 = vector.shape_cast %15 : vector<16xf32> to vector<16x1xf32>
    %cst_13 = arith.constant 3.200000e+01 : f32
    %17 = vector.broadcast %cst_13 : f32 to vector<16x1xf32>
    %18 = arith.divf %16, %17 : vector<16x1xf32>
    %19 = vector.broadcast %11 : vector<16x1xf32> to vector<16x32xf32>
    %20 = arith.subf %1, %19 : vector<16x32xf32>
    %cst_14 = arith.constant 9.99999974E-6 : f32
    %21 = vector.broadcast %cst_14 : f32 to vector<16x1xf32>
    %22 = arith.addf %18, %21 : vector<16x1xf32>
    %23 = math.rsqrt %22 : vector<16x1xf32>
    %24 = vector.broadcast %23 : vector<16x1xf32> to vector<16x32xf32>
    %25 = arith.mulf %20, %24 : vector<16x32xf32>
    %c0_15 = arith.constant 0 : index
    %c0_16 = arith.constant 0 : index
    %26 = vector.load %arg5[%c0_15, %c0_16] : memref<17x32xf32, #tpu.memory_space<vmem>>, vector<1x32xf32>
    %27 = vector.broadcast %26 : vector<1x32xf32> to vector<16x32xf32>
    %28 = arith.mulf %25, %27 : vector<16x32xf32>
    %c1 = arith.constant 1 : index
    %c0_17 = arith.constant 0 : index
    %29 = vector.load %arg5[%c1, %c0_17] : memref<17x32xf32, #tpu.memory_space<vmem>>, vector<1x32xf32>
    %30 = vector.broadcast %29 : vector<1x32xf32> to vector<16x32xf32>
    %31 = arith.addf %28, %30 : vector<16x32xf32>
    %c0_18 = arith.constant 0 : index
    %c0_19 = arith.constant 0 : index
    %32 = vector.load %arg6[%c0_18, %c0_19] : memref<2x128xf32, #tpu.memory_space<vmem>>, vector<1x128xf32>
    %c2 = arith.constant 2 : index
    %c0_20 = arith.constant 0 : index
    %33 = vector.load %arg5[%c2, %c0_20] : memref<17x32xf32, #tpu.memory_space<vmem>>, vector<1x32xf32>
    %34 = arith.truncf %31 : vector<16x32xf32> to vector<16x32xbf16>
    %c0_21 = arith.constant 0 : index
    %c0_22 = arith.constant 0 : index
    %35 = vector.load %arg8[%c0_21, %c0_22] : memref<32x128xbf16, #tpu.memory_space<vmem>>, vector<32x128xbf16>
    %cst_23 = arith.constant dense<0.000000e+00> : vector<16x128xf32>
    %36 = tpu.matmul %34, %35, %cst_23 {dimension_numbers = #tpu.dot_dimension_numbers<[1], [0], [0], [1], [0, 0, 1, 1], [], []>} : vector<16x32xbf16>, vector<32x128xbf16>, vector<16x128xf32> -> vector<16x128xf32>
    %37 = vector.broadcast %32 : vector<1x128xf32> to vector<16x128xf32>
    %38 = arith.addf %36, %37 : vector<16x128xf32>
    %39 = arith.negf %38 : vector<16x128xf32>
    %40 = math.exp %39 : vector<16x128xf32>
    %cst_24 = arith.constant 1.000000e+00 : f32
    %41 = vector.broadcast %cst_24 : f32 to vector<16x128xf32>
    %42 = arith.addf %41, %40 : vector<16x128xf32>
    %43 = arith.divf %41, %42 : vector<16x128xf32>
    %44 = arith.mulf %38, %43 : vector<16x128xf32>
    %45 = arith.truncf %44 : vector<16x128xf32> to vector<16x128xbf16>
    %c0_25 = arith.constant 0 : index
    %c0_26 = arith.constant 0 : index
    %46 = vector.load %arg9[%c0_25, %c0_26] : memref<128x32xbf16, #tpu.memory_space<vmem>>, vector<128x32xbf16>
    %cst_27 = arith.constant dense<0.000000e+00> : vector<16x32xf32>
    %47 = tpu.matmul %45, %46, %cst_27 {dimension_numbers = #tpu.dot_dimension_numbers<[1], [0], [0], [1], [0, 0, 1, 1], [], []>} : vector<16x128xbf16>, vector<128x32xbf16>, vector<16x32xf32> -> vector<16x32xf32>
    %48 = vector.broadcast %33 : vector<1x32xf32> to vector<16x32xf32>
    %49 = arith.addf %47, %48 : vector<16x32xf32>
    %cst_28 = arith.constant 5.000000e-01 : f32
    %50 = vector.broadcast %cst_28 : f32 to vector<16x32xf32>
    %51 = arith.mulf %50, %49 : vector<16x32xf32>
    %52 = arith.addf %1, %51 : vector<16x32xf32>
    %cst_29 = arith.constant dense<0.000000e+00> : vector<16xf32>
    %53 = vector.multi_reduction <add>, %52, %cst_29 [1] : vector<16x32xf32> to vector<16xf32>
    %54 = vector.shape_cast %53 : vector<16xf32> to vector<16x1xf32>
    %cst_30 = arith.constant 3.200000e+01 : f32
    %55 = vector.broadcast %cst_30 : f32 to vector<16x1xf32>
    %56 = arith.divf %54, %55 : vector<16x1xf32>
    %57 = vector.broadcast %56 : vector<16x1xf32> to vector<16x32xf32>
    %58 = arith.subf %52, %57 : vector<16x32xf32>
    %59 = arith.mulf %58, %58 : vector<16x32xf32>
    %cst_31 = arith.constant dense<0.000000e+00> : vector<16xf32>
    %60 = vector.multi_reduction <add>, %59, %cst_31 [1] : vector<16x32xf32> to vector<16xf32>
    %61 = vector.shape_cast %60 : vector<16xf32> to vector<16x1xf32>
    %cst_32 = arith.constant 3.200000e+01 : f32
    %62 = vector.broadcast %cst_32 : f32 to vector<16x1xf32>
    %63 = arith.divf %61, %62 : vector<16x1xf32>
    %64 = vector.broadcast %56 : vector<16x1xf32> to vector<16x32xf32>
    %65 = arith.subf %52, %64 : vector<16x32xf32>
    %cst_33 = arith.constant 9.99999974E-6 : f32
    %66 = vector.broadcast %cst_33 : f32 to vector<16x1xf32>
    %67 = arith.addf %63, %66 : vector<16x1xf32>
    %68 = math.rsqrt %67 : vector<16x1xf32>
    %69 = vector.broadcast %68 : vector<16x1xf32> to vector<16x32xf32>
    %70 = arith.mulf %65, %69 : vector<16x32xf32>
    %c3 = arith.constant 3 : index
    %c0_34 = arith.constant 0 : index
    %71 = vector.load %arg5[%c3, %c0_34] : memref<17x32xf32, #tpu.memory_space<vmem>>, vector<1x32xf32>
    %72 = vector.broadcast %71 : vector<1x32xf32> to vector<16x32xf32>
    %73 = arith.mulf %70, %72 : vector<16x32xf32>
    %c4 = arith.constant 4 : index
    %c0_35 = arith.constant 0 : index
    %74 = vector.load %arg5[%c4, %c0_35] : memref<17x32xf32, #tpu.memory_space<vmem>>, vector<1x32xf32>
    %75 = vector.broadcast %74 : vector<1x32xf32> to vector<16x32xf32>
    %76 = arith.addf %73, %75 : vector<16x32xf32>
    %77 = arith.truncf %76 : vector<16x32xf32> to vector<16x32xbf16>
    %c0_36 = arith.constant 0 : index
    %c0_37 = arith.constant 0 : index
    %78 = vector.load %arg10[%c0_36, %c0_37] : memref<32x1536xbf16, #tpu.memory_space<vmem>>, vector<32x1536xbf16>
    %cst_38 = arith.constant dense<0.000000e+00> : vector<16x1536xf32>
    %79 = tpu.matmul %77, %78, %cst_38 {dimension_numbers = #tpu.dot_dimension_numbers<[1], [0], [0], [1], [0, 0, 1, 1], [], []>} : vector<16x32xbf16>, vector<32x1536xbf16>, vector<16x1536xf32> -> vector<16x1536xf32>
    %80 = vector.extract_strided_slice %79 {offsets = [0, 0], sizes = [16, 512], strides = [1, 1]} : vector<16x1536xf32> to vector<16x512xf32>
    %81 = vector.extract_strided_slice %79 {offsets = [0, 512], sizes = [16, 512], strides = [1, 1]} : vector<16x1536xf32> to vector<16x512xf32>
    %82 = vector.extract_strided_slice %79 {offsets = [0, 1024], sizes = [16, 512], strides = [1, 1]} : vector<16x1536xf32> to vector<16x512xf32>
    %c5 = arith.constant 5 : index
    %c0_39 = arith.constant 0 : index
    %83 = vector.load %arg5[%c5, %c0_39] : memref<17x32xf32, #tpu.memory_space<vmem>>, vector<1x32xf32>
    %84 = vector.extract_strided_slice %80 {offsets = [0, 0], sizes = [16, 64], strides = [1, 1]} : vector<16x512xf32> to vector<16x64xf32>
    %85 = arith.truncf %84 : vector<16x64xf32> to vector<16x64xbf16>
    %86 = vector.extract_strided_slice %81 {offsets = [0, 0], sizes = [16, 64], strides = [1, 1]} : vector<16x512xf32> to vector<16x64xf32>
    %87 = arith.truncf %86 : vector<16x64xf32> to vector<16x64xbf16>
    %88 = vector.extract_strided_slice %82 {offsets = [0, 0], sizes = [16, 64], strides = [1, 1]} : vector<16x512xf32> to vector<16x64xf32>
    %89 = arith.truncf %88 : vector<16x64xf32> to vector<16x64xbf16>
    %cst_40 = arith.constant dense<0.000000e+00> : vector<16x16xf32>
    %90 = tpu.matmul %85, %87, %cst_40 {dimension_numbers = #tpu.dot_dimension_numbers<[1], [1], [0], [0], [0, 0, 1, 0], [], []>} : vector<16x64xbf16>, vector<16x64xbf16>, vector<16x16xf32> -> vector<16x16xf32>
    %91 = vector.broadcast %5 : vector<1x16xf32> to vector<16x16xf32>
    %92 = arith.addf %90, %91 : vector<16x16xf32>
    %cst_41 = arith.constant dense<0xFF800000> : vector<16xf32>
    %93 = vector.multi_reduction <maximumf>, %92, %cst_41 [1] : vector<16x16xf32> to vector<16xf32>
    %94 = vector.shape_cast %93 : vector<16xf32> to vector<16x1xf32>
    %95 = vector.broadcast %94 : vector<16x1xf32> to vector<16x16xf32>
    %96 = arith.subf %92, %95 : vector<16x16xf32>
    %97 = math.exp %96 : vector<16x16xf32>
    %cst_42 = arith.constant dense<0.000000e+00> : vector<16xf32>
    %98 = vector.multi_reduction <add>, %97, %cst_42 [1] : vector<16x16xf32> to vector<16xf32>
    %99 = vector.shape_cast %98 : vector<16xf32> to vector<16x1xf32>
    %100 = tpu.reciprocal %99 {approx = true} : vector<16x1xf32> -> vector<16x1xf32>
    %101 = vector.broadcast %100 : vector<16x1xf32> to vector<16x16xf32>
    %102 = arith.mulf %97, %101 : vector<16x16xf32>
    %103 = arith.truncf %102 : vector<16x16xf32> to vector<16x16xbf16>
    %cst_43 = arith.constant dense<0.000000e+00> : vector<16x64xf32>
    %104 = tpu.matmul %103, %89, %cst_43 {dimension_numbers = #tpu.dot_dimension_numbers<[1], [0], [0], [1], [0, 0, 1, 1], [], []>} : vector<16x16xbf16>, vector<16x64xbf16>, vector<16x64xf32> -> vector<16x64xf32>
    %105 = vector.extract_strided_slice %80 {offsets = [0, 64], sizes = [16, 64], strides = [1, 1]} : vector<16x512xf32> to vector<16x64xf32>
    %106 = arith.truncf %105 : vector<16x64xf32> to vector<16x64xbf16>
    %107 = vector.extract_strided_slice %81 {offsets = [0, 64], sizes = [16, 64], strides = [1, 1]} : vector<16x512xf32> to vector<16x64xf32>
    %108 = arith.truncf %107 : vector<16x64xf32> to vector<16x64xbf16>
    %109 = vector.extract_strided_slice %82 {offsets = [0, 64], sizes = [16, 64], strides = [1, 1]} : vector<16x512xf32> to vector<16x64xf32>
    %110 = arith.truncf %109 : vector<16x64xf32> to vector<16x64xbf16>
    %cst_44 = arith.constant dense<0.000000e+00> : vector<16x16xf32>
    %111 = tpu.matmul %106, %108, %cst_44 {dimension_numbers = #tpu.dot_dimension_numbers<[1], [1], [0], [0], [0, 0, 1, 0], [], []>} : vector<16x64xbf16>, vector<16x64xbf16>, vector<16x16xf32> -> vector<16x16xf32>
    %112 = vector.broadcast %5 : vector<1x16xf32> to vector<16x16xf32>
    %113 = arith.addf %111, %112 : vector<16x16xf32>
    %cst_45 = arith.constant dense<0xFF800000> : vector<16xf32>
    %114 = vector.multi_reduction <maximumf>, %113, %cst_45 [1] : vector<16x16xf32> to vector<16xf32>
    %115 = vector.shape_cast %114 : vector<16xf32> to vector<16x1xf32>
    %116 = vector.broadcast %115 : vector<16x1xf32> to vector<16x16xf32>
    %117 = arith.subf %113, %116 : vector<16x16xf32>
    %118 = math.exp %117 : vector<16x16xf32>
    %cst_46 = arith.constant dense<0.000000e+00> : vector<16xf32>
    %119 = vector.multi_reduction <add>, %118, %cst_46 [1] : vector<16x16xf32> to vector<16xf32>
    %120 = vector.shape_cast %119 : vector<16xf32> to vector<16x1xf32>
    %121 = tpu.reciprocal %120 {approx = true} : vector<16x1xf32> -> vector<16x1xf32>
    %122 = vector.broadcast %121 : vector<16x1xf32> to vector<16x16xf32>
    %123 = arith.mulf %118, %122 : vector<16x16xf32>
    %124 = arith.truncf %123 : vector<16x16xf32> to vector<16x16xbf16>
    %cst_47 = arith.constant dense<0.000000e+00> : vector<16x64xf32>
    %125 = tpu.matmul %124, %110, %cst_47 {dimension_numbers = #tpu.dot_dimension_numbers<[1], [0], [0], [1], [0, 0, 1, 1], [], []>} : vector<16x16xbf16>, vector<16x64xbf16>, vector<16x64xf32> -> vector<16x64xf32>
    %126 = tpu.concatenate %104, %125 in 1 : vector<16x64xf32>, vector<16x64xf32> -> vector<16x128xf32>
    %127 = arith.truncf %126 : vector<16x128xf32> to vector<16x128xbf16>
    %c0_48 = arith.constant 0 : index
    %c0_49 = arith.constant 0 : index
    %128 = vector.load %arg22[%c0_48, %c0_49] : memref<16x512xbf16, #tpu.memory_space<vmem>>, vector<16x128xbf16>
    tpu.vector_store %arg22[%c0_48, %c0_49], %127 {strides = array<i32>} : memref<16x512xbf16, #tpu.memory_space<vmem>>, vector<16x128xbf16>,
    %129 = vector.extract_strided_slice %80 {offsets = [0, 128], sizes = [16, 64], strides = [1, 1]} : vector<16x512xf32> to vector<16x64xf32>
    %130 = arith.truncf %129 : vector<16x64xf32> to vector<16x64xbf16>
    %131 = vector.extract_strided_slice %81 {offsets = [0, 128], sizes = [16, 64], strides = [1, 1]} : vector<16x512xf32> to vector<16x64xf32>
    %132 = arith.truncf %131 : vector<16x64xf32> to vector<16x64xbf16>
    %133 = vector.extract_strided_slice %82 {offsets = [0, 128], sizes = [16, 64], strides = [1, 1]} : vector<16x512xf32> to vector<16x64xf32>
    %134 = arith.truncf %133 : vector<16x64xf32> to vector<16x64xbf16>
    %cst_50 = arith.constant dense<0.000000e+00> : vector<16x16xf32>
    %135 = tpu.matmul %130, %132, %cst_50 {dimension_numbers = #tpu.dot_dimension_numbers<[1], [1], [0], [0], [0, 0, 1, 0], [], []>} : vector<16x64xbf16>, vector<16x64xbf16>, vector<16x16xf32> -> vector<16x16xf32>
    %136 = vector.broadcast %5 : vector<1x16xf32> to vector<16x16xf32>
    %137 = arith.addf %135, %136 : vector<16x16xf32>
    %cst_51 = arith.constant dense<0xFF800000> : vector<16xf32>
    %138 = vector.multi_reduction <maximumf>, %137, %cst_51 [1] : vector<16x16xf32> to vector<16xf32>
    %139 = vector.shape_cast %138 : vector<16xf32> to vector<16x1xf32>
    %140 = vector.broadcast %139 : vector<16x1xf32> to vector<16x16xf32>
    %141 = arith.subf %137, %140 : vector<16x16xf32>
    %142 = math.exp %141 : vector<16x16xf32>
    %cst_52 = arith.constant dense<0.000000e+00> : vector<16xf32>
    %143 = vector.multi_reduction <add>, %142, %cst_52 [1] : vector<16x16xf32> to vector<16xf32>
    %144 = vector.shape_cast %143 : vector<16xf32> to vector<16x1xf32>
    %145 = tpu.reciprocal %144 {approx = true} : vector<16x1xf32> -> vector<16x1xf32>
    %146 = vector.broadcast %145 : vector<16x1xf32> to vector<16x16xf32>
    %147 = arith.mulf %142, %146 : vector<16x16xf32>
    %148 = arith.truncf %147 : vector<16x16xf32> to vector<16x16xbf16>
    %cst_53 = arith.constant dense<0.000000e+00> : vector<16x64xf32>
    %149 = tpu.matmul %148, %134, %cst_53 {dimension_numbers = #tpu.dot_dimension_numbers<[1], [0], [0], [1], [0, 0, 1, 1], [], []>} : vector<16x16xbf16>, vector<16x64xbf16>, vector<16x64xf32> -> vector<16x64xf32>
    %150 = vector.extract_strided_slice %80 {offsets = [0, 192], sizes = [16, 64], strides = [1, 1]} : vector<16x512xf32> to vector<16x64xf32>
    %151 = arith.truncf %150 : vector<16x64xf32> to vector<16x64xbf16>
    %152 = vector.extract_strided_slice %81 {offsets = [0, 192], sizes = [16, 64], strides = [1, 1]} : vector<16x512xf32> to vector<16x64xf32>
    %153 = arith.truncf %152 : vector<16x64xf32> to vector<16x64xbf16>
    %154 = vector.extract_strided_slice %82 {offsets = [0, 192], sizes = [16, 64], strides = [1, 1]} : vector<16x512xf32> to vector<16x64xf32>
    %155 = arith.truncf %154 : vector<16x64xf32> to vector<16x64xbf16>
    %cst_54 = arith.constant dense<0.000000e+00> : vector<16x16xf32>
    %156 = tpu.matmul %151, %153, %cst_54 {dimension_numbers = #tpu.dot_dimension_numbers<[1], [1], [0], [0], [0, 0, 1, 0], [], []>} : vector<16x64xbf16>, vector<16x64xbf16>, vector<16x16xf32> -> vector<16x16xf32>
    %157 = vector.broadcast %5 : vector<1x16xf32> to vector<16x16xf32>
    %158 = arith.addf %156, %157 : vector<16x16xf32>
    %cst_55 = arith.constant dense<0xFF800000> : vector<16xf32>
    %159 = vector.multi_reduction <maximumf>, %158, %cst_55 [1] : vector<16x16xf32> to vector<16xf32>
    %160 = vector.shape_cast %159 : vector<16xf32> to vector<16x1xf32>
    %161 = vector.broadcast %160 : vector<16x1xf32> to vector<16x16xf32>
    %162 = arith.subf %158, %161 : vector<16x16xf32>
    %163 = math.exp %162 : vector<16x16xf32>
    %cst_56 = arith.constant dense<0.000000e+00> : vector<16xf32>
    %164 = vector.multi_reduction <add>, %163, %cst_56 [1] : vector<16x16xf32> to vector<16xf32>
    %165 = vector.shape_cast %164 : vector<16xf32> to vector<16x1xf32>
    %166 = tpu.reciprocal %165 {approx = true} : vector<16x1xf32> -> vector<16x1xf32>
    %167 = vector.broadcast %166 : vector<16x1xf32> to vector<16x16xf32>
    %168 = arith.mulf %163, %167 : vector<16x16xf32>
    %169 = arith.truncf %168 : vector<16x16xf32> to vector<16x16xbf16>
    %cst_57 = arith.constant dense<0.000000e+00> : vector<16x64xf32>
    %170 = tpu.matmul %169, %155, %cst_57 {dimension_numbers = #tpu.dot_dimension_numbers<[1], [0], [0], [1], [0, 0, 1, 1], [], []>} : vector<16x16xbf16>, vector<16x64xbf16>, vector<16x64xf32> -> vector<16x64xf32>
    %171 = tpu.concatenate %149, %170 in 1 : vector<16x64xf32>, vector<16x64xf32> -> vector<16x128xf32>
    %172 = arith.truncf %171 : vector<16x128xf32> to vector<16x128xbf16>
    %c0_58 = arith.constant 0 : index
    %c128 = arith.constant 128 : index
    %173 = vector.load %arg22[%c0_58, %c128] : memref<16x512xbf16, #tpu.memory_space<vmem>>, vector<16x128xbf16>
    tpu.vector_store %arg22[%c0_58, %c128], %172 {strides = array<i32>} : memref<16x512xbf16, #tpu.memory_space<vmem>>, vector<16x128xbf16>,
    %174 = vector.extract_strided_slice %80 {offsets = [0, 256], sizes = [16, 64], strides = [1, 1]} : vector<16x512xf32> to vector<16x64xf32>
    %175 = arith.truncf %174 : vector<16x64xf32> to vector<16x64xbf16>
    %176 = vector.extract_strided_slice %81 {offsets = [0, 256], sizes = [16, 64], strides = [1, 1]} : vector<16x512xf32> to vector<16x64xf32>
    %177 = arith.truncf %176 : vector<16x64xf32> to vector<16x64xbf16>
    %178 = vector.extract_strided_slice %82 {offsets = [0, 256], sizes = [16, 64], strides = [1, 1]} : vector<16x512xf32> to vector<16x64xf32>
    %179 = arith.truncf %178 : vector<16x64xf32> to vector<16x64xbf16>
    %cst_59 = arith.constant dense<0.000000e+00> : vector<16x16xf32>
    %180 = tpu.matmul %175, %177, %cst_59 {dimension_numbers = #tpu.dot_dimension_numbers<[1], [1], [0], [0], [0, 0, 1, 0], [], []>} : vector<16x64xbf16>, vector<16x64xbf16>, vector<16x16xf32> -> vector<16x16xf32>
    %181 = vector.broadcast %5 : vector<1x16xf32> to vector<16x16xf32>
    %182 = arith.addf %180, %181 : vector<16x16xf32>
    %cst_60 = arith.constant dense<0xFF800000> : vector<16xf32>
    %183 = vector.multi_reduction <maximumf>, %182, %cst_60 [1] : vector<16x16xf32> to vector<16xf32>
    %184 = vector.shape_cast %183 : vector<16xf32> to vector<16x1xf32>
    %185 = vector.broadcast %184 : vector<16x1xf32> to vector<16x16xf32>
    %186 = arith.subf %182, %185 : vector<16x16xf32>
    %187 = math.exp %186 : vector<16x16xf32>
    %cst_61 = arith.constant dense<0.000000e+00> : vector<16xf32>
    %188 = vector.multi_reduction <add>, %187, %cst_61 [1] : vector<16x16xf32> to vector<16xf32>
    %189 = vector.shape_cast %188 : vector<16xf32> to vector<16x1xf32>
    %190 = tpu.reciprocal %189 {approx = true} : vector<16x1xf32> -> vector<16x1xf32>
    %191 = vector.broadcast %190 : vector<16x1xf32> to vector<16x16xf32>
    %192 = arith.mulf %187, %191 : vector<16x16xf32>
    %193 = arith.truncf %192 : vector<16x16xf32> to vector<16x16xbf16>
    %cst_62 = arith.constant dense<0.000000e+00> : vector<16x64xf32>
    %194 = tpu.matmul %193, %179, %cst_62 {dimension_numbers = #tpu.dot_dimension_numbers<[1], [0], [0], [1], [0, 0, 1, 1], [], []>} : vector<16x16xbf16>, vector<16x64xbf16>, vector<16x64xf32> -> vector<16x64xf32>
    %195 = vector.extract_strided_slice %80 {offsets = [0, 320], sizes = [16, 64], strides = [1, 1]} : vector<16x512xf32> to vector<16x64xf32>
    %196 = arith.truncf %195 : vector<16x64xf32> to vector<16x64xbf16>
    %197 = vector.extract_strided_slice %81 {offsets = [0, 320], sizes = [16, 64], strides = [1, 1]} : vector<16x512xf32> to vector<16x64xf32>
    %198 = arith.truncf %197 : vector<16x64xf32> to vector<16x64xbf16>
    %199 = vector.extract_strided_slice %82 {offsets = [0, 320], sizes = [16, 64], strides = [1, 1]} : vector<16x512xf32> to vector<16x64xf32>
    %200 = arith.truncf %199 : vector<16x64xf32> to vector<16x64xbf16>
    %cst_63 = arith.constant dense<0.000000e+00> : vector<16x16xf32>
    %201 = tpu.matmul %196, %198, %cst_63 {dimension_numbers = #tpu.dot_dimension_numbers<[1], [1], [0], [0], [0, 0, 1, 0], [], []>} : vector<16x64xbf16>, vector<16x64xbf16>, vector<16x16xf32> -> vector<16x16xf32>
    %202 = vector.broadcast %5 : vector<1x16xf32> to vector<16x16xf32>
    %203 = arith.addf %201, %202 : vector<16x16xf32>
    %cst_64 = arith.constant dense<0xFF800000> : vector<16xf32>
    %204 = vector.multi_reduction <maximumf>, %203, %cst_64 [1] : vector<16x16xf32> to vector<16xf32>
    %205 = vector.shape_cast %204 : vector<16xf32> to vector<16x1xf32>
    %206 = vector.broadcast %205 : vector<16x1xf32> to vector<16x16xf32>
    %207 = arith.subf %203, %206 : vector<16x16xf32>
    %208 = math.exp %207 : vector<16x16xf32>
    %cst_65 = arith.constant dense<0.000000e+00> : vector<16xf32>
    %209 = vector.multi_reduction <add>, %208, %cst_65 [1] : vector<16x16xf32> to vector<16xf32>
    %210 = vector.shape_cast %209 : vector<16xf32> to vector<16x1xf32>
    %211 = tpu.reciprocal %210 {approx = true} : vector<16x1xf32> -> vector<16x1xf32>
    %212 = vector.broadcast %211 : vector<16x1xf32> to vector<16x16xf32>
    %213 = arith.mulf %208, %212 : vector<16x16xf32>
    %214 = arith.truncf %213 : vector<16x16xf32> to vector<16x16xbf16>
    %cst_66 = arith.constant dense<0.000000e+00> : vector<16x64xf32>
    %215 = tpu.matmul %214, %200, %cst_66 {dimension_numbers = #tpu.dot_dimension_numbers<[1], [0], [0], [1], [0, 0, 1, 1], [], []>} : vector<16x16xbf16>, vector<16x64xbf16>, vector<16x64xf32> -> vector<16x64xf32>
    %216 = tpu.concatenate %194, %215 in 1 : vector<16x64xf32>, vector<16x64xf32> -> vector<16x128xf32>
    %217 = arith.truncf %216 : vector<16x128xf32> to vector<16x128xbf16>
    %c0_67 = arith.constant 0 : index
    %c256 = arith.constant 256 : index
    %218 = vector.load %arg22[%c0_67, %c256] : memref<16x512xbf16, #tpu.memory_space<vmem>>, vector<16x128xbf16>
    tpu.vector_store %arg22[%c0_67, %c256], %217 {strides = array<i32>} : memref<16x512xbf16, #tpu.memory_space<vmem>>, vector<16x128xbf16>,
    %219 = vector.extract_strided_slice %80 {offsets = [0, 384], sizes = [16, 64], strides = [1, 1]} : vector<16x512xf32> to vector<16x64xf32>
    %220 = arith.truncf %219 : vector<16x64xf32> to vector<16x64xbf16>
    %221 = vector.extract_strided_slice %81 {offsets = [0, 384], sizes = [16, 64], strides = [1, 1]} : vector<16x512xf32> to vector<16x64xf32>
    %222 = arith.truncf %221 : vector<16x64xf32> to vector<16x64xbf16>
    %223 = vector.extract_strided_slice %82 {offsets = [0, 384], sizes = [16, 64], strides = [1, 1]} : vector<16x512xf32> to vector<16x64xf32>
    %224 = arith.truncf %223 : vector<16x64xf32> to vector<16x64xbf16>
    %cst_68 = arith.constant dense<0.000000e+00> : vector<16x16xf32>
    %225 = tpu.matmul %220, %222, %cst_68 {dimension_numbers = #tpu.dot_dimension_numbers<[1], [1], [0], [0], [0, 0, 1, 0], [], []>} : vector<16x64xbf16>, vector<16x64xbf16>, vector<16x16xf32> -> vector<16x16xf32>
    %226 = vector.broadcast %5 : vector<1x16xf32> to vector<16x16xf32>
    %227 = arith.addf %225, %226 : vector<16x16xf32>
    %cst_69 = arith.constant dense<0xFF800000> : vector<16xf32>
    %228 = vector.multi_reduction <maximumf>, %227, %cst_69 [1] : vector<16x16xf32> to vector<16xf32>
    %229 = vector.shape_cast %228 : vector<16xf32> to vector<16x1xf32>
    %230 = vector.broadcast %229 : vector<16x1xf32> to vector<16x16xf32>
    %231 = arith.subf %227, %230 : vector<16x16xf32>
    %232 = math.exp %231 : vector<16x16xf32>
    %cst_70 = arith.constant dense<0.000000e+00> : vector<16xf32>
    %233 = vector.multi_reduction <add>, %232, %cst_70 [1] : vector<16x16xf32> to vector<16xf32>
    %234 = vector.shape_cast %233 : vector<16xf32> to vector<16x1xf32>
    %235 = tpu.reciprocal %234 {approx = true} : vector<16x1xf32> -> vector<16x1xf32>
    %236 = vector.broadcast %235 : vector<16x1xf32> to vector<16x16xf32>
    %237 = arith.mulf %232, %236 : vector<16x16xf32>
    %238 = arith.truncf %237 : vector<16x16xf32> to vector<16x16xbf16>
    %cst_71 = arith.constant dense<0.000000e+00> : vector<16x64xf32>
    %239 = tpu.matmul %238, %224, %cst_71 {dimension_numbers = #tpu.dot_dimension_numbers<[1], [0], [0], [1], [0, 0, 1, 1], [], []>} : vector<16x16xbf16>, vector<16x64xbf16>, vector<16x64xf32> -> vector<16x64xf32>
    %240 = vector.extract_strided_slice %80 {offsets = [0, 448], sizes = [16, 64], strides = [1, 1]} : vector<16x512xf32> to vector<16x64xf32>
    %241 = arith.truncf %240 : vector<16x64xf32> to vector<16x64xbf16>
    %242 = vector.extract_strided_slice %81 {offsets = [0, 448], sizes = [16, 64], strides = [1, 1]} : vector<16x512xf32> to vector<16x64xf32>
    %243 = arith.truncf %242 : vector<16x64xf32> to vector<16x64xbf16>
    %244 = vector.extract_strided_slice %82 {offsets = [0, 448], sizes = [16, 64], strides = [1, 1]} : vector<16x512xf32> to vector<16x64xf32>
    %245 = arith.truncf %244 : vector<16x64xf32> to vector<16x64xbf16>
    %cst_72 = arith.constant dense<0.000000e+00> : vector<16x16xf32>
    %246 = tpu.matmul %241, %243, %cst_72 {dimension_numbers = #tpu.dot_dimension_numbers<[1], [1], [0], [0], [0, 0, 1, 0], [], []>} : vector<16x64xbf16>, vector<16x64xbf16>, vector<16x16xf32> -> vector<16x16xf32>
    %247 = vector.broadcast %5 : vector<1x16xf32> to vector<16x16xf32>
    %248 = arith.addf %246, %247 : vector<16x16xf32>
    %cst_73 = arith.constant dense<0xFF800000> : vector<16xf32>
    %249 = vector.multi_reduction <maximumf>, %248, %cst_73 [1] : vector<16x16xf32> to vector<16xf32>
    %250 = vector.shape_cast %249 : vector<16xf32> to vector<16x1xf32>
    %251 = vector.broadcast %250 : vector<16x1xf32> to vector<16x16xf32>
    %252 = arith.subf %248, %251 : vector<16x16xf32>
    %253 = math.exp %252 : vector<16x16xf32>
    %cst_74 = arith.constant dense<0.000000e+00> : vector<16xf32>
    %254 = vector.multi_reduction <add>, %253, %cst_74 [1] : vector<16x16xf32> to vector<16xf32>
    %255 = vector.shape_cast %254 : vector<16xf32> to vector<16x1xf32>
    %256 = tpu.reciprocal %255 {approx = true} : vector<16x1xf32> -> vector<16x1xf32>
    %257 = vector.broadcast %256 : vector<16x1xf32> to vector<16x16xf32>
    %258 = arith.mulf %253, %257 : vector<16x16xf32>
    %259 = arith.truncf %258 : vector<16x16xf32> to vector<16x16xbf16>
    %cst_75 = arith.constant dense<0.000000e+00> : vector<16x64xf32>
    %260 = tpu.matmul %259, %245, %cst_75 {dimension_numbers = #tpu.dot_dimension_numbers<[1], [0], [0], [1], [0, 0, 1, 1], [], []>} : vector<16x16xbf16>, vector<16x64xbf16>, vector<16x64xf32> -> vector<16x64xf32>
    %261 = tpu.concatenate %239, %260 in 1 : vector<16x64xf32>, vector<16x64xf32> -> vector<16x128xf32>
    %262 = arith.truncf %261 : vector<16x128xf32> to vector<16x128xbf16>
    %c0_76 = arith.constant 0 : index
    %c384 = arith.constant 384 : index
    %263 = vector.load %arg22[%c0_76, %c384] : memref<16x512xbf16, #tpu.memory_space<vmem>>, vector<16x128xbf16>
    tpu.vector_store %arg22[%c0_76, %c384], %262 {strides = array<i32>} : memref<16x512xbf16, #tpu.memory_space<vmem>>, vector<16x128xbf16>,
    %c0_77 = arith.constant 0 : index
    %c0_78 = arith.constant 0 : index
    %264 = vector.load %arg22[%c0_77, %c0_78] : memref<16x512xbf16, #tpu.memory_space<vmem>>, vector<16x512xbf16>
    %c0_79 = arith.constant 0 : index
    %c0_80 = arith.constant 0 : index
    %265 = vector.load %arg11[%c0_79, %c0_80] : memref<512x32xbf16, #tpu.memory_space<vmem>>, vector<512x32xbf16>
    %cst_81 = arith.constant dense<0.000000e+00> : vector<16x32xf32>
    %266 = tpu.matmul %264, %265, %cst_81 {dimension_numbers = #tpu.dot_dimension_numbers<[1], [0], [0], [1], [0, 0, 1, 1], [], []>} : vector<16x512xbf16>, vector<512x32xbf16>, vector<16x32xf32> -> vector<16x32xf32>
    %267 = vector.broadcast %83 : vector<1x32xf32> to vector<16x32xf32>
    %268 = arith.addf %266, %267 : vector<16x32xf32>
    %269 = arith.addf %52, %268 : vector<16x32xf32>
    %cst_82 = arith.constant dense<0.000000e+00> : vector<16xf32>
    %270 = vector.multi_reduction <add>, %269, %cst_82 [1] : vector<16x32xf32> to vector<16xf32>
    %271 = vector.shape_cast %270 : vector<16xf32> to vector<16x1xf32>
    %cst_83 = arith.constant 3.200000e+01 : f32
    %272 = vector.broadcast %cst_83 : f32 to vector<16x1xf32>
    %273 = arith.divf %271, %272 : vector<16x1xf32>
    %274 = vector.broadcast %273 : vector<16x1xf32> to vector<16x32xf32>
    %275 = arith.subf %269, %274 : vector<16x32xf32>
    %276 = arith.mulf %275, %275 : vector<16x32xf32>
    %cst_84 = arith.constant dense<0.000000e+00> : vector<16xf32>
    %277 = vector.multi_reduction <add>, %276, %cst_84 [1] : vector<16x32xf32> to vector<16xf32>
    %278 = vector.shape_cast %277 : vector<16xf32> to vector<16x1xf32>
    %cst_85 = arith.constant 3.200000e+01 : f32
    %279 = vector.broadcast %cst_85 : f32 to vector<16x1xf32>
    %280 = arith.divf %278, %279 : vector<16x1xf32>
    %281 = vector.broadcast %273 : vector<16x1xf32> to vector<16x32xf32>
    %282 = arith.subf %269, %281 : vector<16x32xf32>
    %cst_86 = arith.constant 9.99999974E-6 : f32
    %283 = vector.broadcast %cst_86 : f32 to vector<16x1xf32>
    %284 = arith.addf %280, %283 : vector<16x1xf32>
    %285 = math.rsqrt %284 : vector<16x1xf32>
    %286 = vector.broadcast %285 : vector<16x1xf32> to vector<16x32xf32>
    %287 = arith.mulf %282, %286 : vector<16x32xf32>
    %c6 = arith.constant 6 : index
    %c0_87 = arith.constant 0 : index
    %288 = vector.load %arg5[%c6, %c0_87] : memref<17x32xf32, #tpu.memory_space<vmem>>, vector<1x32xf32>
    %289 = vector.broadcast %288 : vector<1x32xf32> to vector<16x32xf32>
    %290 = arith.mulf %287, %289 : vector<16x32xf32>
    %c7 = arith.constant 7 : index
    %c0_88 = arith.constant 0 : index
    %291 = vector.load %arg5[%c7, %c0_88] : memref<17x32xf32, #tpu.memory_space<vmem>>, vector<1x32xf32>
    %292 = vector.broadcast %291 : vector<1x32xf32> to vector<16x32xf32>
    %293 = arith.addf %290, %292 : vector<16x32xf32>
    %294 = arith.truncf %293 : vector<16x32xf32> to vector<16x32xbf16>
    %c0_89 = arith.constant 0 : index
    %c0_90 = arith.constant 0 : index
    %295 = vector.load %arg12[%c0_89, %c0_90] : memref<32x512xbf16, #tpu.memory_space<vmem>>, vector<32x512xbf16>
    %cst_91 = arith.constant dense<0.000000e+00> : vector<16x512xf32>
    %296 = tpu.matmul %294, %295, %cst_91 {dimension_numbers = #tpu.dot_dimension_numbers<[1], [0], [0], [1], [0, 0, 1, 1], [], []>} : vector<16x32xbf16>, vector<32x512xbf16>, vector<16x512xf32> -> vector<16x512xf32>
    %297 = arith.truncf %3 : vector<8x32xf32> to vector<8x32xbf16>
    %c0_92 = arith.constant 0 : index
    %c0_93 = arith.constant 0 : index
    %298 = vector.load %arg13[%c0_92, %c0_93] : memref<32x1024xbf16, #tpu.memory_space<vmem>>, vector<32x1024xbf16>
    %cst_94 = arith.constant dense<0.000000e+00> : vector<8x1024xf32>
    %299 = tpu.matmul %297, %298, %cst_94 {dimension_numbers = #tpu.dot_dimension_numbers<[1], [0], [0], [1], [0, 0, 1, 1], [], []>} : vector<8x32xbf16>, vector<32x1024xbf16>, vector<8x1024xf32> -> vector<8x1024xf32>
    %300 = vector.extract_strided_slice %299 {offsets = [0, 0], sizes = [8, 512], strides = [1, 1]} : vector<8x1024xf32> to vector<8x512xf32>
    %301 = vector.extract_strided_slice %299 {offsets = [0, 512], sizes = [8, 512], strides = [1, 1]} : vector<8x1024xf32> to vector<8x512xf32>
    %c8 = arith.constant 8 : index
    %c0_95 = arith.constant 0 : index
    %302 = vector.load %arg5[%c8, %c0_95] : memref<17x32xf32, #tpu.memory_space<vmem>>, vector<1x32xf32>
    %303 = vector.extract_strided_slice %296 {offsets = [0, 0], sizes = [16, 64], strides = [1, 1]} : vector<16x512xf32> to vector<16x64xf32>
    %304 = arith.truncf %303 : vector<16x64xf32> to vector<16x64xbf16>
    %305 = vector.extract_strided_slice %300 {offsets = [0, 0], sizes = [8, 64], strides = [1, 1]} : vector<8x512xf32> to vector<8x64xf32>
    %306 = arith.truncf %305 : vector<8x64xf32> to vector<8x64xbf16>
    %307 = vector.extract_strided_slice %301 {offsets = [0, 0], sizes = [8, 64], strides = [1, 1]} : vector<8x512xf32> to vector<8x64xf32>
    %308 = arith.truncf %307 : vector<8x64xf32> to vector<8x64xbf16>
    %cst_96 = arith.constant dense<0.000000e+00> : vector<16x8xf32>
    %309 = tpu.matmul %304, %306, %cst_96 {dimension_numbers = #tpu.dot_dimension_numbers<[1], [1], [0], [0], [0, 0, 1, 0], [], []>} : vector<16x64xbf16>, vector<8x64xbf16>, vector<16x8xf32> -> vector<16x8xf32>
    %310 = vector.broadcast %7 : vector<1x8xf32> to vector<16x8xf32>
    %311 = arith.addf %309, %310 : vector<16x8xf32>
    %cst_97 = arith.constant dense<0xFF800000> : vector<16xf32>
    %312 = vector.multi_reduction <maximumf>, %311, %cst_97 [1] : vector<16x8xf32> to vector<16xf32>
    %313 = vector.shape_cast %312 : vector<16xf32> to vector<16x1xf32>
    %314 = vector.broadcast %313 : vector<16x1xf32> to vector<16x8xf32>
    %315 = arith.subf %311, %314 : vector<16x8xf32>
    %316 = math.exp %315 : vector<16x8xf32>
    %cst_98 = arith.constant dense<0.000000e+00> : vector<16xf32>
    %317 = vector.multi_reduction <add>, %316, %cst_98 [1] : vector<16x8xf32> to vector<16xf32>
    %318 = vector.shape_cast %317 : vector<16xf32> to vector<16x1xf32>
    %319 = tpu.reciprocal %318 {approx = true} : vector<16x1xf32> -> vector<16x1xf32>
    %320 = vector.broadcast %319 : vector<16x1xf32> to vector<16x8xf32>
    %321 = arith.mulf %316, %320 : vector<16x8xf32>
    %322 = arith.truncf %321 : vector<16x8xf32> to vector<16x8xbf16>
    %cst_99 = arith.constant dense<0.000000e+00> : vector<16x64xf32>
    %323 = tpu.matmul %322, %308, %cst_99 {dimension_numbers = #tpu.dot_dimension_numbers<[1], [0], [0], [1], [0, 0, 1, 1], [], []>} : vector<16x8xbf16>, vector<8x64xbf16>, vector<16x64xf32> -> vector<16x64xf32>
    %324 = vector.extract_strided_slice %296 {offsets = [0, 64], sizes = [16, 64], strides = [1, 1]} : vector<16x512xf32> to vector<16x64xf32>
    %325 = arith.truncf %324 : vector<16x64xf32> to vector<16x64xbf16>
    %326 = vector.extract_strided_slice %300 {offsets = [0, 64], sizes = [8, 64], strides = [1, 1]} : vector<8x512xf32> to vector<8x64xf32>
    %327 = arith.truncf %326 : vector<8x64xf32> to vector<8x64xbf16>
    %328 = vector.extract_strided_slice %301 {offsets = [0, 64], sizes = [8, 64], strides = [1, 1]} : vector<8x512xf32> to vector<8x64xf32>
    %329 = arith.truncf %328 : vector<8x64xf32> to vector<8x64xbf16>
    %cst_100 = arith.constant dense<0.000000e+00> : vector<16x8xf32>
    %330 = tpu.matmul %325, %327, %cst_100 {dimension_numbers = #tpu.dot_dimension_numbers<[1], [1], [0], [0], [0, 0, 1, 0], [], []>} : vector<16x64xbf16>, vector<8x64xbf16>, vector<16x8xf32> -> vector<16x8xf32>
    %331 = vector.broadcast %7 : vector<1x8xf32> to vector<16x8xf32>
    %332 = arith.addf %330, %331 : vector<16x8xf32>
    %cst_101 = arith.constant dense<0xFF800000> : vector<16xf32>
    %333 = vector.multi_reduction <maximumf>, %332, %cst_101 [1] : vector<16x8xf32> to vector<16xf32>
    %334 = vector.shape_cast %333 : vector<16xf32> to vector<16x1xf32>
    %335 = vector.broadcast %334 : vector<16x1xf32> to vector<16x8xf32>
    %336 = arith.subf %332, %335 : vector<16x8xf32>
    %337 = math.exp %336 : vector<16x8xf32>
    %cst_102 = arith.constant dense<0.000000e+00> : vector<16xf32>
    %338 = vector.multi_reduction <add>, %337, %cst_102 [1] : vector<16x8xf32> to vector<16xf32>
    %339 = vector.shape_cast %338 : vector<16xf32> to vector<16x1xf32>
    %340 = tpu.reciprocal %339 {approx = true} : vector<16x1xf32> -> vector<16x1xf32>
    %341 = vector.broadcast %340 : vector<16x1xf32> to vector<16x8xf32>
    %342 = arith.mulf %337, %341 : vector<16x8xf32>
    %343 = arith.truncf %342 : vector<16x8xf32> to vector<16x8xbf16>
    %cst_103 = arith.constant dense<0.000000e+00> : vector<16x64xf32>
    %344 = tpu.matmul %343, %329, %cst_103 {dimension_numbers = #tpu.dot_dimension_numbers<[1], [0], [0], [1], [0, 0, 1, 1], [], []>} : vector<16x8xbf16>, vector<8x64xbf16>, vector<16x64xf32> -> vector<16x64xf32>
    %345 = tpu.concatenate %323, %344 in 1 : vector<16x64xf32>, vector<16x64xf32> -> vector<16x128xf32>
    %346 = arith.truncf %345 : vector<16x128xf32> to vector<16x128xbf16>
    %c0_104 = arith.constant 0 : index
    %c0_105 = arith.constant 0 : index
    %347 = vector.load %arg22[%c0_104, %c0_105] : memref<16x512xbf16, #tpu.memory_space<vmem>>, vector<16x128xbf16>
    tpu.vector_store %arg22[%c0_104, %c0_105], %346 {strides = array<i32>} : memref<16x512xbf16, #tpu.memory_space<vmem>>, vector<16x128xbf16>,
    %348 = vector.extract_strided_slice %296 {offsets = [0, 128], sizes = [16, 64], strides = [1, 1]} : vector<16x512xf32> to vector<16x64xf32>
    %349 = arith.truncf %348 : vector<16x64xf32> to vector<16x64xbf16>
    %350 = vector.extract_strided_slice %300 {offsets = [0, 128], sizes = [8, 64], strides = [1, 1]} : vector<8x512xf32> to vector<8x64xf32>
    %351 = arith.truncf %350 : vector<8x64xf32> to vector<8x64xbf16>
    %352 = vector.extract_strided_slice %301 {offsets = [0, 128], sizes = [8, 64], strides = [1, 1]} : vector<8x512xf32> to vector<8x64xf32>
    %353 = arith.truncf %352 : vector<8x64xf32> to vector<8x64xbf16>
    %cst_106 = arith.constant dense<0.000000e+00> : vector<16x8xf32>
    %354 = tpu.matmul %349, %351, %cst_106 {dimension_numbers = #tpu.dot_dimension_numbers<[1], [1], [0], [0], [0, 0, 1, 0], [], []>} : vector<16x64xbf16>, vector<8x64xbf16>, vector<16x8xf32> -> vector<16x8xf32>
    %355 = vector.broadcast %7 : vector<1x8xf32> to vector<16x8xf32>
    %356 = arith.addf %354, %355 : vector<16x8xf32>
    %cst_107 = arith.constant dense<0xFF800000> : vector<16xf32>
    %357 = vector.multi_reduction <maximumf>, %356, %cst_107 [1] : vector<16x8xf32> to vector<16xf32>
    %358 = vector.shape_cast %357 : vector<16xf32> to vector<16x1xf32>
    %359 = vector.broadcast %358 : vector<16x1xf32> to vector<16x8xf32>
    %360 = arith.subf %356, %359 : vector<16x8xf32>
    %361 = math.exp %360 : vector<16x8xf32>
    %cst_108 = arith.constant dense<0.000000e+00> : vector<16xf32>
    %362 = vector.multi_reduction <add>, %361, %cst_108 [1] : vector<16x8xf32> to vector<16xf32>
    %363 = vector.shape_cast %362 : vector<16xf32> to vector<16x1xf32>
    %364 = tpu.reciprocal %363 {approx = true} : vector<16x1xf32> -> vector<16x1xf32>
    %365 = vector.broadcast %364 : vector<16x1xf32> to vector<16x8xf32>
    %366 = arith.mulf %361, %365 : vector<16x8xf32>
    %367 = arith.truncf %366 : vector<16x8xf32> to vector<16x8xbf16>
    %cst_109 = arith.constant dense<0.000000e+00> : vector<16x64xf32>
    %368 = tpu.matmul %367, %353, %cst_109 {dimension_numbers = #tpu.dot_dimension_numbers<[1], [0], [0], [1], [0, 0, 1, 1], [], []>} : vector<16x8xbf16>, vector<8x64xbf16>, vector<16x64xf32> -> vector<16x64xf32>
    %369 = vector.extract_strided_slice %296 {offsets = [0, 192], sizes = [16, 64], strides = [1, 1]} : vector<16x512xf32> to vector<16x64xf32>
    %370 = arith.truncf %369 : vector<16x64xf32> to vector<16x64xbf16>
    %371 = vector.extract_strided_slice %300 {offsets = [0, 192], sizes = [8, 64], strides = [1, 1]} : vector<8x512xf32> to vector<8x64xf32>
    %372 = arith.truncf %371 : vector<8x64xf32> to vector<8x64xbf16>
    %373 = vector.extract_strided_slice %301 {offsets = [0, 192], sizes = [8, 64], strides = [1, 1]} : vector<8x512xf32> to vector<8x64xf32>
    %374 = arith.truncf %373 : vector<8x64xf32> to vector<8x64xbf16>
    %cst_110 = arith.constant dense<0.000000e+00> : vector<16x8xf32>
    %375 = tpu.matmul %370, %372, %cst_110 {dimension_numbers = #tpu.dot_dimension_numbers<[1], [1], [0], [0], [0, 0, 1, 0], [], []>} : vector<16x64xbf16>, vector<8x64xbf16>, vector<16x8xf32> -> vector<16x8xf32>
    %376 = vector.broadcast %7 : vector<1x8xf32> to vector<16x8xf32>
    %377 = arith.addf %375, %376 : vector<16x8xf32>
    %cst_111 = arith.constant dense<0xFF800000> : vector<16xf32>
    %378 = vector.multi_reduction <maximumf>, %377, %cst_111 [1] : vector<16x8xf32> to vector<16xf32>
    %379 = vector.shape_cast %378 : vector<16xf32> to vector<16x1xf32>
    %380 = vector.broadcast %379 : vector<16x1xf32> to vector<16x8xf32>
    %381 = arith.subf %377, %380 : vector<16x8xf32>
    %382 = math.exp %381 : vector<16x8xf32>
    %cst_112 = arith.constant dense<0.000000e+00> : vector<16xf32>
    %383 = vector.multi_reduction <add>, %382, %cst_112 [1] : vector<16x8xf32> to vector<16xf32>
    %384 = vector.shape_cast %383 : vector<16xf32> to vector<16x1xf32>
    %385 = tpu.reciprocal %384 {approx = true} : vector<16x1xf32> -> vector<16x1xf32>
    %386 = vector.broadcast %385 : vector<16x1xf32> to vector<16x8xf32>
    %387 = arith.mulf %382, %386 : vector<16x8xf32>
    %388 = arith.truncf %387 : vector<16x8xf32> to vector<16x8xbf16>
    %cst_113 = arith.constant dense<0.000000e+00> : vector<16x64xf32>
    %389 = tpu.matmul %388, %374, %cst_113 {dimension_numbers = #tpu.dot_dimension_numbers<[1], [0], [0], [1], [0, 0, 1, 1], [], []>} : vector<16x8xbf16>, vector<8x64xbf16>, vector<16x64xf32> -> vector<16x64xf32>
    %390 = tpu.concatenate %368, %389 in 1 : vector<16x64xf32>, vector<16x64xf32> -> vector<16x128xf32>
    %391 = arith.truncf %390 : vector<16x128xf32> to vector<16x128xbf16>
    %c0_114 = arith.constant 0 : index
    %c128_115 = arith.constant 128 : index
    %392 = vector.load %arg22[%c0_114, %c128_115] : memref<16x512xbf16, #tpu.memory_space<vmem>>, vector<16x128xbf16>
    tpu.vector_store %arg22[%c0_114, %c128_115], %391 {strides = array<i32>} : memref<16x512xbf16, #tpu.memory_space<vmem>>, vector<16x128xbf16>,
    %393 = vector.extract_strided_slice %296 {offsets = [0, 256], sizes = [16, 64], strides = [1, 1]} : vector<16x512xf32> to vector<16x64xf32>
    %394 = arith.truncf %393 : vector<16x64xf32> to vector<16x64xbf16>
    %395 = vector.extract_strided_slice %300 {offsets = [0, 256], sizes = [8, 64], strides = [1, 1]} : vector<8x512xf32> to vector<8x64xf32>
    %396 = arith.truncf %395 : vector<8x64xf32> to vector<8x64xbf16>
    %397 = vector.extract_strided_slice %301 {offsets = [0, 256], sizes = [8, 64], strides = [1, 1]} : vector<8x512xf32> to vector<8x64xf32>
    %398 = arith.truncf %397 : vector<8x64xf32> to vector<8x64xbf16>
    %cst_116 = arith.constant dense<0.000000e+00> : vector<16x8xf32>
    %399 = tpu.matmul %394, %396, %cst_116 {dimension_numbers = #tpu.dot_dimension_numbers<[1], [1], [0], [0], [0, 0, 1, 0], [], []>} : vector<16x64xbf16>, vector<8x64xbf16>, vector<16x8xf32> -> vector<16x8xf32>
    %400 = vector.broadcast %7 : vector<1x8xf32> to vector<16x8xf32>
    %401 = arith.addf %399, %400 : vector<16x8xf32>
    %cst_117 = arith.constant dense<0xFF800000> : vector<16xf32>
    %402 = vector.multi_reduction <maximumf>, %401, %cst_117 [1] : vector<16x8xf32> to vector<16xf32>
    %403 = vector.shape_cast %402 : vector<16xf32> to vector<16x1xf32>
    %404 = vector.broadcast %403 : vector<16x1xf32> to vector<16x8xf32>
    %405 = arith.subf %401, %404 : vector<16x8xf32>
    %406 = math.exp %405 : vector<16x8xf32>
    %cst_118 = arith.constant dense<0.000000e+00> : vector<16xf32>
    %407 = vector.multi_reduction <add>, %406, %cst_118 [1] : vector<16x8xf32> to vector<16xf32>
    %408 = vector.shape_cast %407 : vector<16xf32> to vector<16x1xf32>
    %409 = tpu.reciprocal %408 {approx = true} : vector<16x1xf32> -> vector<16x1xf32>
    %410 = vector.broadcast %409 : vector<16x1xf32> to vector<16x8xf32>
    %411 = arith.mulf %406, %410 : vector<16x8xf32>
    %412 = arith.truncf %411 : vector<16x8xf32> to vector<16x8xbf16>
    %cst_119 = arith.constant dense<0.000000e+00> : vector<16x64xf32>
    %413 = tpu.matmul %412, %398, %cst_119 {dimension_numbers = #tpu.dot_dimension_numbers<[1], [0], [0], [1], [0, 0, 1, 1], [], []>} : vector<16x8xbf16>, vector<8x64xbf16>, vector<16x64xf32> -> vector<16x64xf32>
    %414 = vector.extract_strided_slice %296 {offsets = [0, 320], sizes = [16, 64], strides = [1, 1]} : vector<16x512xf32> to vector<16x64xf32>
    %415 = arith.truncf %414 : vector<16x64xf32> to vector<16x64xbf16>
    %416 = vector.extract_strided_slice %300 {offsets = [0, 320], sizes = [8, 64], strides = [1, 1]} : vector<8x512xf32> to vector<8x64xf32>
    %417 = arith.truncf %416 : vector<8x64xf32> to vector<8x64xbf16>
    %418 = vector.extract_strided_slice %301 {offsets = [0, 320], sizes = [8, 64], strides = [1, 1]} : vector<8x512xf32> to vector<8x64xf32>
    %419 = arith.truncf %418 : vector<8x64xf32> to vector<8x64xbf16>
    %cst_120 = arith.constant dense<0.000000e+00> : vector<16x8xf32>
    %420 = tpu.matmul %415, %417, %cst_120 {dimension_numbers = #tpu.dot_dimension_numbers<[1], [1], [0], [0], [0, 0, 1, 0], [], []>} : vector<16x64xbf16>, vector<8x64xbf16>, vector<16x8xf32> -> vector<16x8xf32>
    %421 = vector.broadcast %7 : vector<1x8xf32> to vector<16x8xf32>
    %422 = arith.addf %420, %421 : vector<16x8xf32>
    %cst_121 = arith.constant dense<0xFF800000> : vector<16xf32>
    %423 = vector.multi_reduction <maximumf>, %422, %cst_121 [1] : vector<16x8xf32> to vector<16xf32>
    %424 = vector.shape_cast %423 : vector<16xf32> to vector<16x1xf32>
    %425 = vector.broadcast %424 : vector<16x1xf32> to vector<16x8xf32>
    %426 = arith.subf %422, %425 : vector<16x8xf32>
    %427 = math.exp %426 : vector<16x8xf32>
    %cst_122 = arith.constant dense<0.000000e+00> : vector<16xf32>
    %428 = vector.multi_reduction <add>, %427, %cst_122 [1] : vector<16x8xf32> to vector<16xf32>
    %429 = vector.shape_cast %428 : vector<16xf32> to vector<16x1xf32>
    %430 = tpu.reciprocal %429 {approx = true} : vector<16x1xf32> -> vector<16x1xf32>
    %431 = vector.broadcast %430 : vector<16x1xf32> to vector<16x8xf32>
    %432 = arith.mulf %427, %431 : vector<16x8xf32>
    %433 = arith.truncf %432 : vector<16x8xf32> to vector<16x8xbf16>
    %cst_123 = arith.constant dense<0.000000e+00> : vector<16x64xf32>
    %434 = tpu.matmul %433, %419, %cst_123 {dimension_numbers = #tpu.dot_dimension_numbers<[1], [0], [0], [1], [0, 0, 1, 1], [], []>} : vector<16x8xbf16>, vector<8x64xbf16>, vector<16x64xf32> -> vector<16x64xf32>
    %435 = tpu.concatenate %413, %434 in 1 : vector<16x64xf32>, vector<16x64xf32> -> vector<16x128xf32>
    %436 = arith.truncf %435 : vector<16x128xf32> to vector<16x128xbf16>
    %c0_124 = arith.constant 0 : index
    %c256_125 = arith.constant 256 : index
    %437 = vector.load %arg22[%c0_124, %c256_125] : memref<16x512xbf16, #tpu.memory_space<vmem>>, vector<16x128xbf16>
    tpu.vector_store %arg22[%c0_124, %c256_125], %436 {strides = array<i32>} : memref<16x512xbf16, #tpu.memory_space<vmem>>, vector<16x128xbf16>,
    %438 = vector.extract_strided_slice %296 {offsets = [0, 384], sizes = [16, 64], strides = [1, 1]} : vector<16x512xf32> to vector<16x64xf32>
    %439 = arith.truncf %438 : vector<16x64xf32> to vector<16x64xbf16>
    %440 = vector.extract_strided_slice %300 {offsets = [0, 384], sizes = [8, 64], strides = [1, 1]} : vector<8x512xf32> to vector<8x64xf32>
    %441 = arith.truncf %440 : vector<8x64xf32> to vector<8x64xbf16>
    %442 = vector.extract_strided_slice %301 {offsets = [0, 384], sizes = [8, 64], strides = [1, 1]} : vector<8x512xf32> to vector<8x64xf32>
    %443 = arith.truncf %442 : vector<8x64xf32> to vector<8x64xbf16>
    %cst_126 = arith.constant dense<0.000000e+00> : vector<16x8xf32>
    %444 = tpu.matmul %439, %441, %cst_126 {dimension_numbers = #tpu.dot_dimension_numbers<[1], [1], [0], [0], [0, 0, 1, 0], [], []>} : vector<16x64xbf16>, vector<8x64xbf16>, vector<16x8xf32> -> vector<16x8xf32>
    %445 = vector.broadcast %7 : vector<1x8xf32> to vector<16x8xf32>
    %446 = arith.addf %444, %445 : vector<16x8xf32>
    %cst_127 = arith.constant dense<0xFF800000> : vector<16xf32>
    %447 = vector.multi_reduction <maximumf>, %446, %cst_127 [1] : vector<16x8xf32> to vector<16xf32>
    %448 = vector.shape_cast %447 : vector<16xf32> to vector<16x1xf32>
    %449 = vector.broadcast %448 : vector<16x1xf32> to vector<16x8xf32>
    %450 = arith.subf %446, %449 : vector<16x8xf32>
    %451 = math.exp %450 : vector<16x8xf32>
    %cst_128 = arith.constant dense<0.000000e+00> : vector<16xf32>
    %452 = vector.multi_reduction <add>, %451, %cst_128 [1] : vector<16x8xf32> to vector<16xf32>
    %453 = vector.shape_cast %452 : vector<16xf32> to vector<16x1xf32>
    %454 = tpu.reciprocal %453 {approx = true} : vector<16x1xf32> -> vector<16x1xf32>
    %455 = vector.broadcast %454 : vector<16x1xf32> to vector<16x8xf32>
    %456 = arith.mulf %451, %455 : vector<16x8xf32>
    %457 = arith.truncf %456 : vector<16x8xf32> to vector<16x8xbf16>
    %cst_129 = arith.constant dense<0.000000e+00> : vector<16x64xf32>
    %458 = tpu.matmul %457, %443, %cst_129 {dimension_numbers = #tpu.dot_dimension_numbers<[1], [0], [0], [1], [0, 0, 1, 1], [], []>} : vector<16x8xbf16>, vector<8x64xbf16>, vector<16x64xf32> -> vector<16x64xf32>
    %459 = vector.extract_strided_slice %296 {offsets = [0, 448], sizes = [16, 64], strides = [1, 1]} : vector<16x512xf32> to vector<16x64xf32>
    %460 = arith.truncf %459 : vector<16x64xf32> to vector<16x64xbf16>
    %461 = vector.extract_strided_slice %300 {offsets = [0, 448], sizes = [8, 64], strides = [1, 1]} : vector<8x512xf32> to vector<8x64xf32>
    %462 = arith.truncf %461 : vector<8x64xf32> to vector<8x64xbf16>
    %463 = vector.extract_strided_slice %301 {offsets = [0, 448], sizes = [8, 64], strides = [1, 1]} : vector<8x512xf32> to vector<8x64xf32>
    %464 = arith.truncf %463 : vector<8x64xf32> to vector<8x64xbf16>
    %cst_130 = arith.constant dense<0.000000e+00> : vector<16x8xf32>
    %465 = tpu.matmul %460, %462, %cst_130 {dimension_numbers = #tpu.dot_dimension_numbers<[1], [1], [0], [0], [0, 0, 1, 0], [], []>} : vector<16x64xbf16>, vector<8x64xbf16>, vector<16x8xf32> -> vector<16x8xf32>
    %466 = vector.broadcast %7 : vector<1x8xf32> to vector<16x8xf32>
    %467 = arith.addf %465, %466 : vector<16x8xf32>
    %cst_131 = arith.constant dense<0xFF800000> : vector<16xf32>
    %468 = vector.multi_reduction <maximumf>, %467, %cst_131 [1] : vector<16x8xf32> to vector<16xf32>
    %469 = vector.shape_cast %468 : vector<16xf32> to vector<16x1xf32>
    %470 = vector.broadcast %469 : vector<16x1xf32> to vector<16x8xf32>
    %471 = arith.subf %467, %470 : vector<16x8xf32>
    %472 = math.exp %471 : vector<16x8xf32>
    %cst_132 = arith.constant dense<0.000000e+00> : vector<16xf32>
    %473 = vector.multi_reduction <add>, %472, %cst_132 [1] : vector<16x8xf32> to vector<16xf32>
    %474 = vector.shape_cast %473 : vector<16xf32> to vector<16x1xf32>
    %475 = tpu.reciprocal %474 {approx = true} : vector<16x1xf32> -> vector<16x1xf32>
    %476 = vector.broadcast %475 : vector<16x1xf32> to vector<16x8xf32>
    %477 = arith.mulf %472, %476 : vector<16x8xf32>
    %478 = arith.truncf %477 : vector<16x8xf32> to vector<16x8xbf16>
    %cst_133 = arith.constant dense<0.000000e+00> : vector<16x64xf32>
    %479 = tpu.matmul %478, %464, %cst_133 {dimension_numbers = #tpu.dot_dimension_numbers<[1], [0], [0], [1], [0, 0, 1, 1], [], []>} : vector<16x8xbf16>, vector<8x64xbf16>, vector<16x64xf32> -> vector<16x64xf32>
    %480 = tpu.concatenate %458, %479 in 1 : vector<16x64xf32>, vector<16x64xf32> -> vector<16x128xf32>
    %481 = arith.truncf %480 : vector<16x128xf32> to vector<16x128xbf16>
    %c0_134 = arith.constant 0 : index
    %c384_135 = arith.constant 384 : index
    %482 = vector.load %arg22[%c0_134, %c384_135] : memref<16x512xbf16, #tpu.memory_space<vmem>>, vector<16x128xbf16>
    tpu.vector_store %arg22[%c0_134, %c384_135], %481 {strides = array<i32>} : memref<16x512xbf16, #tpu.memory_space<vmem>>, vector<16x128xbf16>,
    %c0_136 = arith.constant 0 : index
    %c0_137 = arith.constant 0 : index
    %483 = vector.load %arg22[%c0_136, %c0_137] : memref<16x512xbf16, #tpu.memory_space<vmem>>, vector<16x512xbf16>
    %c0_138 = arith.constant 0 : index
    %c0_139 = arith.constant 0 : index
    %484 = vector.load %arg14[%c0_138, %c0_139] : memref<512x32xbf16, #tpu.memory_space<vmem>>, vector<512x32xbf16>
    %cst_140 = arith.constant dense<0.000000e+00> : vector<16x32xf32>
    %485 = tpu.matmul %483, %484, %cst_140 {dimension_numbers = #tpu.dot_dimension_numbers<[1], [0], [0], [1], [0, 0, 1, 1], [], []>} : vector<16x512xbf16>, vector<512x32xbf16>, vector<16x32xf32> -> vector<16x32xf32>
    %486 = vector.broadcast %302 : vector<1x32xf32> to vector<16x32xf32>
    %487 = arith.addf %485, %486 : vector<16x32xf32>
    %488 = arith.addf %269, %487 : vector<16x32xf32>
    %cst_141 = arith.constant dense<0.000000e+00> : vector<16xf32>
    %489 = vector.multi_reduction <add>, %488, %cst_141 [1] : vector<16x32xf32> to vector<16xf32>
    %490 = vector.shape_cast %489 : vector<16xf32> to vector<16x1xf32>
    %cst_142 = arith.constant 3.200000e+01 : f32
    %491 = vector.broadcast %cst_142 : f32 to vector<16x1xf32>
    %492 = arith.divf %490, %491 : vector<16x1xf32>
    %493 = vector.broadcast %492 : vector<16x1xf32> to vector<16x32xf32>
    %494 = arith.subf %488, %493 : vector<16x32xf32>
    %495 = arith.mulf %494, %494 : vector<16x32xf32>
    %cst_143 = arith.constant dense<0.000000e+00> : vector<16xf32>
    %496 = vector.multi_reduction <add>, %495, %cst_143 [1] : vector<16x32xf32> to vector<16xf32>
    %497 = vector.shape_cast %496 : vector<16xf32> to vector<16x1xf32>
    %cst_144 = arith.constant 3.200000e+01 : f32
    %498 = vector.broadcast %cst_144 : f32 to vector<16x1xf32>
    %499 = arith.divf %497, %498 : vector<16x1xf32>
    %500 = vector.broadcast %492 : vector<16x1xf32> to vector<16x32xf32>
    %501 = arith.subf %488, %500 : vector<16x32xf32>
    %cst_145 = arith.constant 9.99999974E-6 : f32
    %502 = vector.broadcast %cst_145 : f32 to vector<16x1xf32>
    %503 = arith.addf %499, %502 : vector<16x1xf32>
    %504 = math.rsqrt %503 : vector<16x1xf32>
    %505 = vector.broadcast %504 : vector<16x1xf32> to vector<16x32xf32>
    %506 = arith.mulf %501, %505 : vector<16x32xf32>
    %c9 = arith.constant 9 : index
    %c0_146 = arith.constant 0 : index
    %507 = vector.load %arg5[%c9, %c0_146] : memref<17x32xf32, #tpu.memory_space<vmem>>, vector<1x32xf32>
    %508 = vector.broadcast %507 : vector<1x32xf32> to vector<16x32xf32>
    %509 = arith.mulf %506, %508 : vector<16x32xf32>
    %c10 = arith.constant 10 : index
    %c0_147 = arith.constant 0 : index
    %510 = vector.load %arg5[%c10, %c0_147] : memref<17x32xf32, #tpu.memory_space<vmem>>, vector<1x32xf32>
    %511 = vector.broadcast %510 : vector<1x32xf32> to vector<16x32xf32>
    %512 = arith.addf %509, %511 : vector<16x32xf32>
    %513 = arith.truncf %512 : vector<16x32xf32> to vector<16x32xbf16>
    %c0_148 = arith.constant 0 : index
    %c0_149 = arith.constant 0 : index
    %514 = vector.load %arg15[%c0_148, %c0_149] : memref<32x64xbf16, #tpu.memory_space<vmem>>, vector<32x64xbf16>
    %cst_150 = arith.constant dense<0.000000e+00> : vector<16x64xf32>
    %515 = tpu.matmul %513, %514, %cst_150 {dimension_numbers = #tpu.dot_dimension_numbers<[1], [0], [0], [1], [0, 0, 1, 1], [], []>} : vector<16x32xbf16>, vector<32x64xbf16>, vector<16x64xf32> -> vector<16x64xf32>
    %c0_151 = arith.constant 0 : index
    %c0_152 = arith.constant 0 : index
    %516 = vector.load %arg7[%c0_151, %c0_152] : memref<2x64xf32, #tpu.memory_space<vmem>>, vector<1x64xf32>
    %517 = vector.broadcast %516 : vector<1x64xf32> to vector<16x64xf32>
    %518 = arith.addf %515, %517 : vector<16x64xf32>
    %519 = arith.truncf %512 : vector<16x32xf32> to vector<16x32xbf16>
    %c0_153 = arith.constant 0 : index
    %c0_154 = arith.constant 0 : index
    %520 = vector.load %arg16[%c0_153, %c0_154] : memref<32x64xbf16, #tpu.memory_space<vmem>>, vector<32x64xbf16>
    %cst_155 = arith.constant dense<0.000000e+00> : vector<16x64xf32>
    %521 = tpu.matmul %519, %520, %cst_155 {dimension_numbers = #tpu.dot_dimension_numbers<[1], [0], [0], [1], [0, 0, 1, 1], [], []>} : vector<16x32xbf16>, vector<32x64xbf16>, vector<16x64xf32> -> vector<16x64xf32>
    %c1_156 = arith.constant 1 : index
    %c0_157 = arith.constant 0 : index
    %522 = vector.load %arg7[%c1_156, %c0_157] : memref<2x64xf32, #tpu.memory_space<vmem>>, vector<1x64xf32>
    %523 = vector.broadcast %522 : vector<1x64xf32> to vector<16x64xf32>
    %524 = arith.addf %521, %523 : vector<16x64xf32>
    %525 = arith.negf %524 : vector<16x64xf32>
    %526 = math.exp %525 : vector<16x64xf32>
    %cst_158 = arith.constant 1.000000e+00 : f32
    %527 = vector.broadcast %cst_158 : f32 to vector<16x64xf32>
    %528 = arith.addf %527, %526 : vector<16x64xf32>
    %529 = arith.divf %527, %528 : vector<16x64xf32>
    %530 = arith.mulf %518, %529 : vector<16x64xf32>
    %cst_159 = arith.constant 0.000000e+00 : f32
    %531 = vector.broadcast %cst_159 : f32 to vector<16x64xf32>
    %c0_160 = arith.constant 0 : index
    %c0_161 = arith.constant 0 : index
    %532 = vector.load %arg23[%c0_160, %c0_161] : memref<48x64xf32, #tpu.memory_space<vmem>>, vector<16x64xf32>
    tpu.vector_store %arg23[%c0_160, %c0_161], %531 {strides = array<i32>} : memref<48x64xf32, #tpu.memory_space<vmem>>, vector<16x64xf32>,
    %cst_162 = arith.constant 0.000000e+00 : f32
    %533 = vector.broadcast %cst_162 : f32 to vector<16x64xf32>
    %c32 = arith.constant 32 : index
    %c0_163 = arith.constant 0 : index
    %534 = vector.load %arg23[%c32, %c0_163] : memref<48x64xf32, #tpu.memory_space<vmem>>, vector<16x64xf32>
    tpu.vector_store %arg23[%c32, %c0_163], %533 {strides = array<i32>} : memref<48x64xf32, #tpu.memory_space<vmem>>, vector<16x64xf32>,
    %c16 = arith.constant 16 : index
    %c0_164 = arith.constant 0 : index
    %535 = vector.load %arg23[%c16, %c0_164] : memref<48x64xf32, #tpu.memory_space<vmem>>, vector<16x64xf32>
    tpu.vector_store %arg23[%c16, %c0_164], %530 {strides = array<i32>} : memref<48x64xf32, #tpu.memory_space<vmem>>, vector<16x64xf32>,
    %c0_165 = arith.constant 0 : index
    %c0_166 = arith.constant 0 : index
    %536 = vector.load %arg23[%c0_165, %c0_166] : memref<48x64xf32, #tpu.memory_space<vmem>>, vector<48x64xf32>
    %c0_167 = arith.constant 0 : index
    %c0_168 = arith.constant 0 : index
    %537 = vector.load %arg17[%c0_167, %c0_168] : memref<31x64xf32, #tpu.memory_space<vmem>>, vector<31x64xf32>
    %cst_169 = arith.constant 0.000000e+00 : f32
    %538 = vector.broadcast %cst_169 : f32 to vector<16x64xf32>
    %c47_i32 = arith.constant 47 : i32
    %539 = tpu.dynamic_rotate %536 by %c47_i32 dim 0 : vector<48x64xf32>, i32 -> vector<48x64xf32>
    %540 = vector.extract_strided_slice %539 {offsets = [0, 0], sizes = [16, 64], strides = [1, 1]} : vector<48x64xf32> to vector<16x64xf32>
    %541 = vector.extract_strided_slice %537 {offsets = [0, 0], sizes = [1, 64], strides = [1, 1]} : vector<31x64xf32> to vector<1x64xf32>
    %542 = vector.broadcast %541 : vector<1x64xf32> to vector<16x64xf32>
    %543 = arith.mulf %540, %542 : vector<16x64xf32>
    %544 = arith.addf %538, %543 : vector<16x64xf32>
    %c46_i32 = arith.constant 46 : i32
    %545 = tpu.dynamic_rotate %536 by %c46_i32 dim 0 : vector<48x64xf32>, i32 -> vector<48x64xf32>
    %546 = vector.extract_strided_slice %545 {offsets = [0, 0], sizes = [16, 64], strides = [1, 1]} : vector<48x64xf32> to vector<16x64xf32>
    %547 = vector.extract_strided_slice %537 {offsets = [1, 0], sizes = [1, 64], strides = [1, 1]} : vector<31x64xf32> to vector<1x64xf32>
    %548 = vector.broadcast %547 : vector<1x64xf32> to vector<16x64xf32>
    %549 = arith.mulf %546, %548 : vector<16x64xf32>
    %550 = arith.addf %544, %549 : vector<16x64xf32>
    %c45_i32 = arith.constant 45 : i32
    %551 = tpu.dynamic_rotate %536 by %c45_i32 dim 0 : vector<48x64xf32>, i32 -> vector<48x64xf32>
    %552 = vector.extract_strided_slice %551 {offsets = [0, 0], sizes = [16, 64], strides = [1, 1]} : vector<48x64xf32> to vector<16x64xf32>
    %553 = vector.extract_strided_slice %537 {offsets = [2, 0], sizes = [1, 64], strides = [1, 1]} : vector<31x64xf32> to vector<1x64xf32>
    %554 = vector.broadcast %553 : vector<1x64xf32> to vector<16x64xf32>
    %555 = arith.mulf %552, %554 : vector<16x64xf32>
    %556 = arith.addf %550, %555 : vector<16x64xf32>
    %c44_i32 = arith.constant 44 : i32
    %557 = tpu.dynamic_rotate %536 by %c44_i32 dim 0 : vector<48x64xf32>, i32 -> vector<48x64xf32>
    %558 = vector.extract_strided_slice %557 {offsets = [0, 0], sizes = [16, 64], strides = [1, 1]} : vector<48x64xf32> to vector<16x64xf32>
    %559 = vector.extract_strided_slice %537 {offsets = [3, 0], sizes = [1, 64], strides = [1, 1]} : vector<31x64xf32> to vector<1x64xf32>
    %560 = vector.broadcast %559 : vector<1x64xf32> to vector<16x64xf32>
    %561 = arith.mulf %558, %560 : vector<16x64xf32>
    %562 = arith.addf %556, %561 : vector<16x64xf32>
    %c43_i32 = arith.constant 43 : i32
    %563 = tpu.dynamic_rotate %536 by %c43_i32 dim 0 : vector<48x64xf32>, i32 -> vector<48x64xf32>
    %564 = vector.extract_strided_slice %563 {offsets = [0, 0], sizes = [16, 64], strides = [1, 1]} : vector<48x64xf32> to vector<16x64xf32>
    %565 = vector.extract_strided_slice %537 {offsets = [4, 0], sizes = [1, 64], strides = [1, 1]} : vector<31x64xf32> to vector<1x64xf32>
    %566 = vector.broadcast %565 : vector<1x64xf32> to vector<16x64xf32>
    %567 = arith.mulf %564, %566 : vector<16x64xf32>
    %568 = arith.addf %562, %567 : vector<16x64xf32>
    %c42_i32 = arith.constant 42 : i32
    %569 = tpu.dynamic_rotate %536 by %c42_i32 dim 0 : vector<48x64xf32>, i32 -> vector<48x64xf32>
    %570 = vector.extract_strided_slice %569 {offsets = [0, 0], sizes = [16, 64], strides = [1, 1]} : vector<48x64xf32> to vector<16x64xf32>
    %571 = vector.extract_strided_slice %537 {offsets = [5, 0], sizes = [1, 64], strides = [1, 1]} : vector<31x64xf32> to vector<1x64xf32>
    %572 = vector.broadcast %571 : vector<1x64xf32> to vector<16x64xf32>
    %573 = arith.mulf %570, %572 : vector<16x64xf32>
    %574 = arith.addf %568, %573 : vector<16x64xf32>
    %c41_i32 = arith.constant 41 : i32
    %575 = tpu.dynamic_rotate %536 by %c41_i32 dim 0 : vector<48x64xf32>, i32 -> vector<48x64xf32>
    %576 = vector.extract_strided_slice %575 {offsets = [0, 0], sizes = [16, 64], strides = [1, 1]} : vector<48x64xf32> to vector<16x64xf32>
    %577 = vector.extract_strided_slice %537 {offsets = [6, 0], sizes = [1, 64], strides = [1, 1]} : vector<31x64xf32> to vector<1x64xf32>
    %578 = vector.broadcast %577 : vector<1x64xf32> to vector<16x64xf32>
    %579 = arith.mulf %576, %578 : vector<16x64xf32>
    %580 = arith.addf %574, %579 : vector<16x64xf32>
    %c40_i32 = arith.constant 40 : i32
    %581 = tpu.dynamic_rotate %536 by %c40_i32 dim 0 : vector<48x64xf32>, i32 -> vector<48x64xf32>
    %582 = vector.extract_strided_slice %581 {offsets = [0, 0], sizes = [16, 64], strides = [1, 1]} : vector<48x64xf32> to vector<16x64xf32>
    %583 = vector.extract_strided_slice %537 {offsets = [7, 0], sizes = [1, 64], strides = [1, 1]} : vector<31x64xf32> to vector<1x64xf32>
    %584 = vector.broadcast %583 : vector<1x64xf32> to vector<16x64xf32>
    %585 = arith.mulf %582, %584 : vector<16x64xf32>
    %586 = arith.addf %580, %585 : vector<16x64xf32>
    %c39_i32 = arith.constant 39 : i32
    %587 = tpu.dynamic_rotate %536 by %c39_i32 dim 0 : vector<48x64xf32>, i32 -> vector<48x64xf32>
    %588 = vector.extract_strided_slice %587 {offsets = [0, 0], sizes = [16, 64], strides = [1, 1]} : vector<48x64xf32> to vector<16x64xf32>
    %589 = vector.extract_strided_slice %537 {offsets = [8, 0], sizes = [1, 64], strides = [1, 1]} : vector<31x64xf32> to vector<1x64xf32>
    %590 = vector.broadcast %589 : vector<1x64xf32> to vector<16x64xf32>
    %591 = arith.mulf %588, %590 : vector<16x64xf32>
    %592 = arith.addf %586, %591 : vector<16x64xf32>
    %c38_i32 = arith.constant 38 : i32
    %593 = tpu.dynamic_rotate %536 by %c38_i32 dim 0 : vector<48x64xf32>, i32 -> vector<48x64xf32>
    %594 = vector.extract_strided_slice %593 {offsets = [0, 0], sizes = [16, 64], strides = [1, 1]} : vector<48x64xf32> to vector<16x64xf32>
    %595 = vector.extract_strided_slice %537 {offsets = [9, 0], sizes = [1, 64], strides = [1, 1]} : vector<31x64xf32> to vector<1x64xf32>
    %596 = vector.broadcast %595 : vector<1x64xf32> to vector<16x64xf32>
    %597 = arith.mulf %594, %596 : vector<16x64xf32>
    %598 = arith.addf %592, %597 : vector<16x64xf32>
    %c37_i32 = arith.constant 37 : i32
    %599 = tpu.dynamic_rotate %536 by %c37_i32 dim 0 : vector<48x64xf32>, i32 -> vector<48x64xf32>
    %600 = vector.extract_strided_slice %599 {offsets = [0, 0], sizes = [16, 64], strides = [1, 1]} : vector<48x64xf32> to vector<16x64xf32>
    %601 = vector.extract_strided_slice %537 {offsets = [10, 0], sizes = [1, 64], strides = [1, 1]} : vector<31x64xf32> to vector<1x64xf32>
    %602 = vector.broadcast %601 : vector<1x64xf32> to vector<16x64xf32>
    %603 = arith.mulf %600, %602 : vector<16x64xf32>
    %604 = arith.addf %598, %603 : vector<16x64xf32>
    %c36_i32 = arith.constant 36 : i32
    %605 = tpu.dynamic_rotate %536 by %c36_i32 dim 0 : vector<48x64xf32>, i32 -> vector<48x64xf32>
    %606 = vector.extract_strided_slice %605 {offsets = [0, 0], sizes = [16, 64], strides = [1, 1]} : vector<48x64xf32> to vector<16x64xf32>
    %607 = vector.extract_strided_slice %537 {offsets = [11, 0], sizes = [1, 64], strides = [1, 1]} : vector<31x64xf32> to vector<1x64xf32>
    %608 = vector.broadcast %607 : vector<1x64xf32> to vector<16x64xf32>
    %609 = arith.mulf %606, %608 : vector<16x64xf32>
    %610 = arith.addf %604, %609 : vector<16x64xf32>
    %c35_i32 = arith.constant 35 : i32
    %611 = tpu.dynamic_rotate %536 by %c35_i32 dim 0 : vector<48x64xf32>, i32 -> vector<48x64xf32>
    %612 = vector.extract_strided_slice %611 {offsets = [0, 0], sizes = [16, 64], strides = [1, 1]} : vector<48x64xf32> to vector<16x64xf32>
    %613 = vector.extract_strided_slice %537 {offsets = [12, 0], sizes = [1, 64], strides = [1, 1]} : vector<31x64xf32> to vector<1x64xf32>
    %614 = vector.broadcast %613 : vector<1x64xf32> to vector<16x64xf32>
    %615 = arith.mulf %612, %614 : vector<16x64xf32>
    %616 = arith.addf %610, %615 : vector<16x64xf32>
    %c34_i32 = arith.constant 34 : i32
    %617 = tpu.dynamic_rotate %536 by %c34_i32 dim 0 : vector<48x64xf32>, i32 -> vector<48x64xf32>
    %618 = vector.extract_strided_slice %617 {offsets = [0, 0], sizes = [16, 64], strides = [1, 1]} : vector<48x64xf32> to vector<16x64xf32>
    %619 = vector.extract_strided_slice %537 {offsets = [13, 0], sizes = [1, 64], strides = [1, 1]} : vector<31x64xf32> to vector<1x64xf32>
    %620 = vector.broadcast %619 : vector<1x64xf32> to vector<16x64xf32>
    %621 = arith.mulf %618, %620 : vector<16x64xf32>
    %622 = arith.addf %616, %621 : vector<16x64xf32>
    %c33_i32 = arith.constant 33 : i32
    %623 = tpu.dynamic_rotate %536 by %c33_i32 dim 0 : vector<48x64xf32>, i32 -> vector<48x64xf32>
    %624 = vector.extract_strided_slice %623 {offsets = [0, 0], sizes = [16, 64], strides = [1, 1]} : vector<48x64xf32> to vector<16x64xf32>
    %625 = vector.extract_strided_slice %537 {offsets = [14, 0], sizes = [1, 64], strides = [1, 1]} : vector<31x64xf32> to vector<1x64xf32>
    %626 = vector.broadcast %625 : vector<1x64xf32> to vector<16x64xf32>
    %627 = arith.mulf %624, %626 : vector<16x64xf32>
    %628 = arith.addf %622, %627 : vector<16x64xf32>
    %c32_i32 = arith.constant 32 : i32
    %629 = tpu.dynamic_rotate %536 by %c32_i32 dim 0 : vector<48x64xf32>, i32 -> vector<48x64xf32>
    %630 = vector.extract_strided_slice %629 {offsets = [0, 0], sizes = [16, 64], strides = [1, 1]} : vector<48x64xf32> to vector<16x64xf32>
    %631 = vector.extract_strided_slice %537 {offsets = [15, 0], sizes = [1, 64], strides = [1, 1]} : vector<31x64xf32> to vector<1x64xf32>
    %632 = vector.broadcast %631 : vector<1x64xf32> to vector<16x64xf32>
    %633 = arith.mulf %630, %632 : vector<16x64xf32>
    %634 = arith.addf %628, %633 : vector<16x64xf32>
    %c31_i32 = arith.constant 31 : i32
    %635 = tpu.dynamic_rotate %536 by %c31_i32 dim 0 : vector<48x64xf32>, i32 -> vector<48x64xf32>
    %636 = vector.extract_strided_slice %635 {offsets = [0, 0], sizes = [16, 64], strides = [1, 1]} : vector<48x64xf32> to vector<16x64xf32>
    %637 = vector.extract_strided_slice %537 {offsets = [16, 0], sizes = [1, 64], strides = [1, 1]} : vector<31x64xf32> to vector<1x64xf32>
    %638 = vector.broadcast %637 : vector<1x64xf32> to vector<16x64xf32>
    %639 = arith.mulf %636, %638 : vector<16x64xf32>
    %640 = arith.addf %634, %639 : vector<16x64xf32>
    %c30_i32 = arith.constant 30 : i32
    %641 = tpu.dynamic_rotate %536 by %c30_i32 dim 0 : vector<48x64xf32>, i32 -> vector<48x64xf32>
    %642 = vector.extract_strided_slice %641 {offsets = [0, 0], sizes = [16, 64], strides = [1, 1]} : vector<48x64xf32> to vector<16x64xf32>
    %643 = vector.extract_strided_slice %537 {offsets = [17, 0], sizes = [1, 64], strides = [1, 1]} : vector<31x64xf32> to vector<1x64xf32>
    %644 = vector.broadcast %643 : vector<1x64xf32> to vector<16x64xf32>
    %645 = arith.mulf %642, %644 : vector<16x64xf32>
    %646 = arith.addf %640, %645 : vector<16x64xf32>
    %c29_i32 = arith.constant 29 : i32
    %647 = tpu.dynamic_rotate %536 by %c29_i32 dim 0 : vector<48x64xf32>, i32 -> vector<48x64xf32>
    %648 = vector.extract_strided_slice %647 {offsets = [0, 0], sizes = [16, 64], strides = [1, 1]} : vector<48x64xf32> to vector<16x64xf32>
    %649 = vector.extract_strided_slice %537 {offsets = [18, 0], sizes = [1, 64], strides = [1, 1]} : vector<31x64xf32> to vector<1x64xf32>
    %650 = vector.broadcast %649 : vector<1x64xf32> to vector<16x64xf32>
    %651 = arith.mulf %648, %650 : vector<16x64xf32>
    %652 = arith.addf %646, %651 : vector<16x64xf32>
    %c28_i32 = arith.constant 28 : i32
    %653 = tpu.dynamic_rotate %536 by %c28_i32 dim 0 : vector<48x64xf32>, i32 -> vector<48x64xf32>
    %654 = vector.extract_strided_slice %653 {offsets = [0, 0], sizes = [16, 64], strides = [1, 1]} : vector<48x64xf32> to vector<16x64xf32>
    %655 = vector.extract_strided_slice %537 {offsets = [19, 0], sizes = [1, 64], strides = [1, 1]} : vector<31x64xf32> to vector<1x64xf32>
    %656 = vector.broadcast %655 : vector<1x64xf32> to vector<16x64xf32>
    %657 = arith.mulf %654, %656 : vector<16x64xf32>
    %658 = arith.addf %652, %657 : vector<16x64xf32>
    %c27_i32 = arith.constant 27 : i32
    %659 = tpu.dynamic_rotate %536 by %c27_i32 dim 0 : vector<48x64xf32>, i32 -> vector<48x64xf32>
    %660 = vector.extract_strided_slice %659 {offsets = [0, 0], sizes = [16, 64], strides = [1, 1]} : vector<48x64xf32> to vector<16x64xf32>
    %661 = vector.extract_strided_slice %537 {offsets = [20, 0], sizes = [1, 64], strides = [1, 1]} : vector<31x64xf32> to vector<1x64xf32>
    %662 = vector.broadcast %661 : vector<1x64xf32> to vector<16x64xf32>
    %663 = arith.mulf %660, %662 : vector<16x64xf32>
    %664 = arith.addf %658, %663 : vector<16x64xf32>
    %c26_i32 = arith.constant 26 : i32
    %665 = tpu.dynamic_rotate %536 by %c26_i32 dim 0 : vector<48x64xf32>, i32 -> vector<48x64xf32>
    %666 = vector.extract_strided_slice %665 {offsets = [0, 0], sizes = [16, 64], strides = [1, 1]} : vector<48x64xf32> to vector<16x64xf32>
    %667 = vector.extract_strided_slice %537 {offsets = [21, 0], sizes = [1, 64], strides = [1, 1]} : vector<31x64xf32> to vector<1x64xf32>
    %668 = vector.broadcast %667 : vector<1x64xf32> to vector<16x64xf32>
    %669 = arith.mulf %666, %668 : vector<16x64xf32>
    %670 = arith.addf %664, %669 : vector<16x64xf32>
    %c25_i32 = arith.constant 25 : i32
    %671 = tpu.dynamic_rotate %536 by %c25_i32 dim 0 : vector<48x64xf32>, i32 -> vector<48x64xf32>
    %672 = vector.extract_strided_slice %671 {offsets = [0, 0], sizes = [16, 64], strides = [1, 1]} : vector<48x64xf32> to vector<16x64xf32>
    %673 = vector.extract_strided_slice %537 {offsets = [22, 0], sizes = [1, 64], strides = [1, 1]} : vector<31x64xf32> to vector<1x64xf32>
    %674 = vector.broadcast %673 : vector<1x64xf32> to vector<16x64xf32>
    %675 = arith.mulf %672, %674 : vector<16x64xf32>
    %676 = arith.addf %670, %675 : vector<16x64xf32>
    %c24_i32 = arith.constant 24 : i32
    %677 = tpu.dynamic_rotate %536 by %c24_i32 dim 0 : vector<48x64xf32>, i32 -> vector<48x64xf32>
    %678 = vector.extract_strided_slice %677 {offsets = [0, 0], sizes = [16, 64], strides = [1, 1]} : vector<48x64xf32> to vector<16x64xf32>
    %679 = vector.extract_strided_slice %537 {offsets = [23, 0], sizes = [1, 64], strides = [1, 1]} : vector<31x64xf32> to vector<1x64xf32>
    %680 = vector.broadcast %679 : vector<1x64xf32> to vector<16x64xf32>
    %681 = arith.mulf %678, %680 : vector<16x64xf32>
    %682 = arith.addf %676, %681 : vector<16x64xf32>
    %c23_i32 = arith.constant 23 : i32
    %683 = tpu.dynamic_rotate %536 by %c23_i32 dim 0 : vector<48x64xf32>, i32 -> vector<48x64xf32>
    %684 = vector.extract_strided_slice %683 {offsets = [0, 0], sizes = [16, 64], strides = [1, 1]} : vector<48x64xf32> to vector<16x64xf32>
    %685 = vector.extract_strided_slice %537 {offsets = [24, 0], sizes = [1, 64], strides = [1, 1]} : vector<31x64xf32> to vector<1x64xf32>
    %686 = vector.broadcast %685 : vector<1x64xf32> to vector<16x64xf32>
    %687 = arith.mulf %684, %686 : vector<16x64xf32>
    %688 = arith.addf %682, %687 : vector<16x64xf32>
    %c22_i32 = arith.constant 22 : i32
    %689 = tpu.dynamic_rotate %536 by %c22_i32 dim 0 : vector<48x64xf32>, i32 -> vector<48x64xf32>
    %690 = vector.extract_strided_slice %689 {offsets = [0, 0], sizes = [16, 64], strides = [1, 1]} : vector<48x64xf32> to vector<16x64xf32>
    %691 = vector.extract_strided_slice %537 {offsets = [25, 0], sizes = [1, 64], strides = [1, 1]} : vector<31x64xf32> to vector<1x64xf32>
    %692 = vector.broadcast %691 : vector<1x64xf32> to vector<16x64xf32>
    %693 = arith.mulf %690, %692 : vector<16x64xf32>
    %694 = arith.addf %688, %693 : vector<16x64xf32>
    %c21_i32 = arith.constant 21 : i32
    %695 = tpu.dynamic_rotate %536 by %c21_i32 dim 0 : vector<48x64xf32>, i32 -> vector<48x64xf32>
    %696 = vector.extract_strided_slice %695 {offsets = [0, 0], sizes = [16, 64], strides = [1, 1]} : vector<48x64xf32> to vector<16x64xf32>
    %697 = vector.extract_strided_slice %537 {offsets = [26, 0], sizes = [1, 64], strides = [1, 1]} : vector<31x64xf32> to vector<1x64xf32>
    %698 = vector.broadcast %697 : vector<1x64xf32> to vector<16x64xf32>
    %699 = arith.mulf %696, %698 : vector<16x64xf32>
    %700 = arith.addf %694, %699 : vector<16x64xf32>
    %c20_i32 = arith.constant 20 : i32
    %701 = tpu.dynamic_rotate %536 by %c20_i32 dim 0 : vector<48x64xf32>, i32 -> vector<48x64xf32>
    %702 = vector.extract_strided_slice %701 {offsets = [0, 0], sizes = [16, 64], strides = [1, 1]} : vector<48x64xf32> to vector<16x64xf32>
    %703 = vector.extract_strided_slice %537 {offsets = [27, 0], sizes = [1, 64], strides = [1, 1]} : vector<31x64xf32> to vector<1x64xf32>
    %704 = vector.broadcast %703 : vector<1x64xf32> to vector<16x64xf32>
    %705 = arith.mulf %702, %704 : vector<16x64xf32>
    %706 = arith.addf %700, %705 : vector<16x64xf32>
    %c19_i32 = arith.constant 19 : i32
    %707 = tpu.dynamic_rotate %536 by %c19_i32 dim 0 : vector<48x64xf32>, i32 -> vector<48x64xf32>
    %708 = vector.extract_strided_slice %707 {offsets = [0, 0], sizes = [16, 64], strides = [1, 1]} : vector<48x64xf32> to vector<16x64xf32>
    %709 = vector.extract_strided_slice %537 {offsets = [28, 0], sizes = [1, 64], strides = [1, 1]} : vector<31x64xf32> to vector<1x64xf32>
    %710 = vector.broadcast %709 : vector<1x64xf32> to vector<16x64xf32>
    %711 = arith.mulf %708, %710 : vector<16x64xf32>
    %712 = arith.addf %706, %711 : vector<16x64xf32>
    %c18_i32 = arith.constant 18 : i32
    %713 = tpu.dynamic_rotate %536 by %c18_i32 dim 0 : vector<48x64xf32>, i32 -> vector<48x64xf32>
    %714 = vector.extract_strided_slice %713 {offsets = [0, 0], sizes = [16, 64], strides = [1, 1]} : vector<48x64xf32> to vector<16x64xf32>
    %715 = vector.extract_strided_slice %537 {offsets = [29, 0], sizes = [1, 64], strides = [1, 1]} : vector<31x64xf32> to vector<1x64xf32>
    %716 = vector.broadcast %715 : vector<1x64xf32> to vector<16x64xf32>
    %717 = arith.mulf %714, %716 : vector<16x64xf32>
    %718 = arith.addf %712, %717 : vector<16x64xf32>
    %c17_i32 = arith.constant 17 : i32
    %719 = tpu.dynamic_rotate %536 by %c17_i32 dim 0 : vector<48x64xf32>, i32 -> vector<48x64xf32>
    %720 = vector.extract_strided_slice %719 {offsets = [0, 0], sizes = [16, 64], strides = [1, 1]} : vector<48x64xf32> to vector<16x64xf32>
    %721 = vector.extract_strided_slice %537 {offsets = [30, 0], sizes = [1, 64], strides = [1, 1]} : vector<31x64xf32> to vector<1x64xf32>
    %722 = vector.broadcast %721 : vector<1x64xf32> to vector<16x64xf32>
    %723 = arith.mulf %720, %722 : vector<16x64xf32>
    %724 = arith.addf %718, %723 : vector<16x64xf32>
    %725 = arith.negf %724 : vector<16x64xf32>
    %726 = math.exp %725 : vector<16x64xf32>
    %cst_170 = arith.constant 1.000000e+00 : f32
    %727 = vector.broadcast %cst_170 : f32 to vector<16x64xf32>
    %728 = arith.addf %727, %726 : vector<16x64xf32>
    %729 = arith.divf %727, %728 : vector<16x64xf32>
    %730 = arith.mulf %724, %729 : vector<16x64xf32>
    %731 = arith.truncf %730 : vector<16x64xf32> to vector<16x64xbf16>
    %c0_171 = arith.constant 0 : index
    %c0_172 = arith.constant 0 : index
    %732 = vector.load %arg18[%c0_171, %c0_172] : memref<64x32xbf16, #tpu.memory_space<vmem>>, vector<64x32xbf16>
    %cst_173 = arith.constant dense<0.000000e+00> : vector<16x32xf32>
    %733 = tpu.matmul %731, %732, %cst_173 {dimension_numbers = #tpu.dot_dimension_numbers<[1], [0], [0], [1], [0, 0, 1, 1], [], []>} : vector<16x64xbf16>, vector<64x32xbf16>, vector<16x32xf32> -> vector<16x32xf32>
    %734 = arith.addf %488, %733 : vector<16x32xf32>
    %c11 = arith.constant 11 : index
    %c0_174 = arith.constant 0 : index
    %735 = vector.load %arg5[%c11, %c0_174] : memref<17x32xf32, #tpu.memory_space<vmem>>, vector<1x32xf32>
    %736 = vector.broadcast %735 : vector<1x32xf32> to vector<16x32xf32>
    %737 = arith.addf %734, %736 : vector<16x32xf32>
    %cst_175 = arith.constant dense<0.000000e+00> : vector<16xf32>
    %738 = vector.multi_reduction <add>, %737, %cst_175 [1] : vector<16x32xf32> to vector<16xf32>
    %739 = vector.shape_cast %738 : vector<16xf32> to vector<16x1xf32>
    %cst_176 = arith.constant 3.200000e+01 : f32
    %740 = vector.broadcast %cst_176 : f32 to vector<16x1xf32>
    %741 = arith.divf %739, %740 : vector<16x1xf32>
    %742 = vector.broadcast %741 : vector<16x1xf32> to vector<16x32xf32>
    %743 = arith.subf %737, %742 : vector<16x32xf32>
    %744 = arith.mulf %743, %743 : vector<16x32xf32>
    %cst_177 = arith.constant dense<0.000000e+00> : vector<16xf32>
    %745 = vector.multi_reduction <add>, %744, %cst_177 [1] : vector<16x32xf32> to vector<16xf32>
    %746 = vector.shape_cast %745 : vector<16xf32> to vector<16x1xf32>
    %cst_178 = arith.constant 3.200000e+01 : f32
    %747 = vector.broadcast %cst_178 : f32 to vector<16x1xf32>
    %748 = arith.divf %746, %747 : vector<16x1xf32>
    %749 = vector.broadcast %741 : vector<16x1xf32> to vector<16x32xf32>
    %750 = arith.subf %737, %749 : vector<16x32xf32>
    %cst_179 = arith.constant 9.99999974E-6 : f32
    %751 = vector.broadcast %cst_179 : f32 to vector<16x1xf32>
    %752 = arith.addf %748, %751 : vector<16x1xf32>
    %753 = math.rsqrt %752 : vector<16x1xf32>
    %754 = vector.broadcast %753 : vector<16x1xf32> to vector<16x32xf32>
    %755 = arith.mulf %750, %754 : vector<16x32xf32>
    %c12 = arith.constant 12 : index
    %c0_180 = arith.constant 0 : index
    %756 = vector.load %arg5[%c12, %c0_180] : memref<17x32xf32, #tpu.memory_space<vmem>>, vector<1x32xf32>
    %757 = vector.broadcast %756 : vector<1x32xf32> to vector<16x32xf32>
    %758 = arith.mulf %755, %757 : vector<16x32xf32>
    %c13 = arith.constant 13 : index
    %c0_181 = arith.constant 0 : index
    %759 = vector.load %arg5[%c13, %c0_181] : memref<17x32xf32, #tpu.memory_space<vmem>>, vector<1x32xf32>
    %760 = vector.broadcast %759 : vector<1x32xf32> to vector<16x32xf32>
    %761 = arith.addf %758, %760 : vector<16x32xf32>
    %c1_182 = arith.constant 1 : index
    %c0_183 = arith.constant 0 : index
    %762 = vector.load %arg6[%c1_182, %c0_183] : memref<2x128xf32, #tpu.memory_space<vmem>>, vector<1x128xf32>
    %c14 = arith.constant 14 : index
    %c0_184 = arith.constant 0 : index
    %763 = vector.load %arg5[%c14, %c0_184] : memref<17x32xf32, #tpu.memory_space<vmem>>, vector<1x32xf32>
    %764 = arith.truncf %761 : vector<16x32xf32> to vector<16x32xbf16>
    %c0_185 = arith.constant 0 : index
    %c0_186 = arith.constant 0 : index
    %765 = vector.load %arg19[%c0_185, %c0_186] : memref<32x128xbf16, #tpu.memory_space<vmem>>, vector<32x128xbf16>
    %cst_187 = arith.constant dense<0.000000e+00> : vector<16x128xf32>
    %766 = tpu.matmul %764, %765, %cst_187 {dimension_numbers = #tpu.dot_dimension_numbers<[1], [0], [0], [1], [0, 0, 1, 1], [], []>} : vector<16x32xbf16>, vector<32x128xbf16>, vector<16x128xf32> -> vector<16x128xf32>
    %767 = vector.broadcast %762 : vector<1x128xf32> to vector<16x128xf32>
    %768 = arith.addf %766, %767 : vector<16x128xf32>
    %769 = arith.negf %768 : vector<16x128xf32>
    %770 = math.exp %769 : vector<16x128xf32>
    %cst_188 = arith.constant 1.000000e+00 : f32
    %771 = vector.broadcast %cst_188 : f32 to vector<16x128xf32>
    %772 = arith.addf %771, %770 : vector<16x128xf32>
    %773 = arith.divf %771, %772 : vector<16x128xf32>
    %774 = arith.mulf %768, %773 : vector<16x128xf32>
    %775 = arith.truncf %774 : vector<16x128xf32> to vector<16x128xbf16>
    %c0_189 = arith.constant 0 : index
    %c0_190 = arith.constant 0 : index
    %776 = vector.load %arg20[%c0_189, %c0_190] : memref<128x32xbf16, #tpu.memory_space<vmem>>, vector<128x32xbf16>
    %cst_191 = arith.constant dense<0.000000e+00> : vector<16x32xf32>
    %777 = tpu.matmul %775, %776, %cst_191 {dimension_numbers = #tpu.dot_dimension_numbers<[1], [0], [0], [1], [0, 0, 1, 1], [], []>} : vector<16x128xbf16>, vector<128x32xbf16>, vector<16x32xf32> -> vector<16x32xf32>
    %778 = vector.broadcast %763 : vector<1x32xf32> to vector<16x32xf32>
    %779 = arith.addf %777, %778 : vector<16x32xf32>
    %cst_192 = arith.constant 5.000000e-01 : f32
    %780 = vector.broadcast %cst_192 : f32 to vector<16x32xf32>
    %781 = arith.mulf %780, %779 : vector<16x32xf32>
    %782 = arith.addf %737, %781 : vector<16x32xf32>
    %cst_193 = arith.constant dense<0.000000e+00> : vector<16xf32>
    %783 = vector.multi_reduction <add>, %782, %cst_193 [1] : vector<16x32xf32> to vector<16xf32>
    %784 = vector.shape_cast %783 : vector<16xf32> to vector<16x1xf32>
    %cst_194 = arith.constant 3.200000e+01 : f32
    %785 = vector.broadcast %cst_194 : f32 to vector<16x1xf32>
    %786 = arith.divf %784, %785 : vector<16x1xf32>
    %787 = vector.broadcast %786 : vector<16x1xf32> to vector<16x32xf32>
    %788 = arith.subf %782, %787 : vector<16x32xf32>
    %789 = arith.mulf %788, %788 : vector<16x32xf32>
    %cst_195 = arith.constant dense<0.000000e+00> : vector<16xf32>
    %790 = vector.multi_reduction <add>, %789, %cst_195 [1] : vector<16x32xf32> to vector<16xf32>
    %791 = vector.shape_cast %790 : vector<16xf32> to vector<16x1xf32>
    %cst_196 = arith.constant 3.200000e+01 : f32
    %792 = vector.broadcast %cst_196 : f32 to vector<16x1xf32>
    %793 = arith.divf %791, %792 : vector<16x1xf32>
    %794 = vector.broadcast %786 : vector<16x1xf32> to vector<16x32xf32>
    %795 = arith.subf %782, %794 : vector<16x32xf32>
    %cst_197 = arith.constant 9.99999974E-6 : f32
    %796 = vector.broadcast %cst_197 : f32 to vector<16x1xf32>
    %797 = arith.addf %793, %796 : vector<16x1xf32>
    %798 = math.rsqrt %797 : vector<16x1xf32>
    %799 = vector.broadcast %798 : vector<16x1xf32> to vector<16x32xf32>
    %800 = arith.mulf %795, %799 : vector<16x32xf32>
    %c15 = arith.constant 15 : index
    %c0_198 = arith.constant 0 : index
    %801 = vector.load %arg5[%c15, %c0_198] : memref<17x32xf32, #tpu.memory_space<vmem>>, vector<1x32xf32>
    %802 = vector.broadcast %801 : vector<1x32xf32> to vector<16x32xf32>
    %803 = arith.mulf %800, %802 : vector<16x32xf32>
    %c16_199 = arith.constant 16 : index
    %c0_200 = arith.constant 0 : index
    %804 = vector.load %arg5[%c16_199, %c0_200] : memref<17x32xf32, #tpu.memory_space<vmem>>, vector<1x32xf32>
    %805 = vector.broadcast %804 : vector<1x32xf32> to vector<16x32xf32>
    %806 = arith.addf %803, %805 : vector<16x32xf32>
    %c0_201 = arith.constant 0 : index
    %c0_202 = arith.constant 0 : index
    %c0_203 = arith.constant 0 : index
    %807 = vector.load %arg21[%c0_201, %c0_202, %c0_203] : memref<1x16x32xf32, #tpu.memory_space<vmem>>, vector<1x16x32xf32>
    %808 = vector.shape_cast %807 : vector<1x16x32xf32> to vector<16x32xf32>
    %809 = vector.shape_cast %806 : vector<16x32xf32> to vector<1x16x32xf32>
    tpu.vector_store %arg21[%c0_201, %c0_202, %c0_203], %809 {strides = array<i32>} : memref<1x16x32xf32, #tpu.memory_space<vmem>>, vector<1x16x32xf32>,
    return
  }
  func.func @transform_0(%arg0: i32) -> (i32, i32, i32) {
    %c0_i32 = arith.constant 0 : i32
    %c0_i32_0 = arith.constant 0 : i32
    %c0_i32_1 = arith.constant 0 : i32
    return %arg0, %c0_i32, %c0_i32_0 : i32, i32, i32
  }
  func.func @transform_1(%arg0: i32) -> (i32, i32, i32) {
    %c0_i32 = arith.constant 0 : i32
    %c0_i32_0 = arith.constant 0 : i32
    %c0_i32_1 = arith.constant 0 : i32
    return %arg0, %c0_i32, %c0_i32_0 : i32, i32, i32
  }
  func.func @transform_2(%arg0: i32) -> (i32, i32, i32) {
    %c0_i32 = arith.constant 0 : i32
    %c0_i32_0 = arith.constant 0 : i32
    %c0_i32_1 = arith.constant 0 : i32
    return %arg0, %c0_i32, %c0_i32_0 : i32, i32, i32
  }
  func.func @transform_3(%arg0: i32) -> (i32, i32, i32) {
    %c0_i32 = arith.constant 0 : i32
    %c0_i32_0 = arith.constant 0 : i32
    %c0_i32_1 = arith.constant 0 : i32
    return %arg0, %c0_i32, %c0_i32_0 : i32, i32, i32
  }
  func.func @transform_4(%arg0: i32) -> (i32, i32) {
    %c0_i32 = arith.constant 0 : i32
    %c0_i32_0 = arith.constant 0 : i32
    %c0_i32_1 = arith.constant 0 : i32
    return %c0_i32, %c0_i32_0 : i32, i32
  }
  func.func @transform_5(%arg0: i32) -> (i32, i32) {
    %c0_i32 = arith.constant 0 : i32
    %c0_i32_0 = arith.constant 0 : i32
    %c0_i32_1 = arith.constant 0 : i32
    return %c0_i32, %c0_i32_0 : i32, i32
  }
  func.func @transform_6(%arg0: i32) -> (i32, i32) {
    %c0_i32 = arith.constant 0 : i32
    %c0_i32_0 = arith.constant 0 : i32
    %c0_i32_1 = arith.constant 0 : i32
    return %c0_i32, %c0_i32_0 : i32, i32
  }
  func.func @transform_7(%arg0: i32) -> (i32, i32) {
    %c0_i32 = arith.constant 0 : i32
    %c0_i32_0 = arith.constant 0 : i32
    %c0_i32_1 = arith.constant 0 : i32
    return %c0_i32, %c0_i32_0 : i32, i32
  }
  func.func @transform_8(%arg0: i32) -> (i32, i32) {
    %c0_i32 = arith.constant 0 : i32
    %c0_i32_0 = arith.constant 0 : i32
    %c0_i32_1 = arith.constant 0 : i32
    return %c0_i32, %c0_i32_0 : i32, i32
  }
  func.func @transform_9(%arg0: i32) -> (i32, i32) {
    %c0_i32 = arith.constant 0 : i32
    %c0_i32_0 = arith.constant 0 : i32
    %c0_i32_1 = arith.constant 0 : i32
    return %c0_i32, %c0_i32_0 : i32, i32
  }
  func.func @transform_10(%arg0: i32) -> (i32, i32) {
    %c0_i32 = arith.constant 0 : i32
    %c0_i32_0 = arith.constant 0 : i32
    %c0_i32_1 = arith.constant 0 : i32
    return %c0_i32, %c0_i32_0 : i32, i32
  }
  func.func @transform_11(%arg0: i32) -> (i32, i32) {
    %c0_i32 = arith.constant 0 : i32
    %c0_i32_0 = arith.constant 0 : i32
    %c0_i32_1 = arith.constant 0 : i32
    return %c0_i32, %c0_i32_0 : i32, i32
  }
  func.func @transform_12(%arg0: i32) -> (i32, i32) {
    %c0_i32 = arith.constant 0 : i32
    %c0_i32_0 = arith.constant 0 : i32
    %c0_i32_1 = arith.constant 0 : i32
    return %c0_i32, %c0_i32_0 : i32, i32
  }
  func.func @transform_13(%arg0: i32) -> (i32, i32) {
    %c0_i32 = arith.constant 0 : i32
    %c0_i32_0 = arith.constant 0 : i32
    %c0_i32_1 = arith.constant 0 : i32
    return %c0_i32, %c0_i32_0 : i32, i32
  }
  func.func @transform_14(%arg0: i32) -> (i32, i32) {
    %c0_i32 = arith.constant 0 : i32
    %c0_i32_0 = arith.constant 0 : i32
    %c0_i32_1 = arith.constant 0 : i32
    return %c0_i32, %c0_i32_0 : i32, i32
  }
  func.func @transform_15(%arg0: i32) -> (i32, i32) {
    %c0_i32 = arith.constant 0 : i32
    %c0_i32_0 = arith.constant 0 : i32
    %c0_i32_1 = arith.constant 0 : i32
    return %c0_i32, %c0_i32_0 : i32, i32
  }
  func.func @transform_16(%arg0: i32) -> (i32, i32) {
    %c0_i32 = arith.constant 0 : i32
    %c0_i32_0 = arith.constant 0 : i32
    %c0_i32_1 = arith.constant 0 : i32
    return %c0_i32, %c0_i32_0 : i32, i32
  }
  func.func @transform_17(%arg0: i32) -> (i32, i32) {
    %c0_i32 = arith.constant 0 : i32
    %c0_i32_0 = arith.constant 0 : i32
    %c0_i32_1 = arith.constant 0 : i32
    return %c0_i32, %c0_i32_0 : i32, i32
  }
  func.func @transform_18(%arg0: i32) -> (i32, i32) {
    %c0_i32 = arith.constant 0 : i32
    %c0_i32_0 = arith.constant 0 : i32
    %c0_i32_1 = arith.constant 0 : i32
    return %c0_i32, %c0_i32_0 : i32, i32
  }
  func.func @transform_19(%arg0: i32) -> (i32, i32) {
    %c0_i32 = arith.constant 0 : i32
    %c0_i32_0 = arith.constant 0 : i32
    %c0_i32_1 = arith.constant 0 : i32
    return %c0_i32, %c0_i32_0 : i32, i32
  }
  func.func @transform_20(%arg0: i32) -> (i32, i32, i32) {
    %c0_i32 = arith.constant 0 : i32
    %c0_i32_0 = arith.constant 0 : i32
    %c0_i32_1 = arith.constant 0 : i32
    return %arg0, %c0_i32, %c0_i32_0 : i32, i32, i32
  }
}

</mosaic_0001>

<llo_original>
// kernel: conformer_cross_attn_encoder.2
$region0: #{conformer_cross_attn_encoder.2}
  #allocation0 [shape = 'u32[]', space=smem, size = 0x4, offset = 0x4, fixed_abs, tag = 'smem constant byte address 0x4 - core index']
  #allocation1 [shape = 'u32[144,128]{1,0:T(1,128)}', space=vmem, size = 0x12000, scoped, tag = 'internal scratch']
  #allocation2 [shape = 'bf16[16,512]{1,0:T(16,128)(2,1)}', space=vmem, size = 0x4000, scoped, tag = 'scratch operand']
  #allocation3 [shape = 'f32[48,64]{1,0:T(8,128)}', space=vmem, size = 0x6000, scoped, tag = 'scratch operand']
  %s0 = inlined_call_operand.vmem [shape: f32[2,16,32], index: 0, kind: input, shape index: {}]
  %s1 = inlined_call_operand.vmem [shape: f32[2,8,32], index: 1, kind: input, shape index: {}]
  %s2 = inlined_call_operand.vmem [shape: f32[2,1,16], index: 2, kind: input, shape index: {}]
  %s3 = inlined_call_operand.vmem [shape: f32[2,1,8], index: 3, kind: input, shape index: {}]
  %s4 = inlined_call_operand.vmem [shape: f32[17,32], index: 4, kind: input, shape index: {}]
  %s5 = inlined_call_operand.vmem [shape: f32[2,128], index: 5, kind: input, shape index: {}]
  %s6 = inlined_call_operand.vmem [shape: f32[2,64], index: 6, kind: input, shape index: {}]
  %s7 = inlined_call_operand.vmem [shape: bf16[32,128], index: 7, kind: input, shape index: {}]
  %s8 = inlined_call_operand.vmem [shape: bf16[128,32], index: 8, kind: input, shape index: {}]
  %s9 = inlined_call_operand.vmem [shape: bf16[32,1536], index: 9, kind: input, shape index: {}]
  %s10 = inlined_call_operand.vmem [shape: bf16[512,32], index: 10, kind: input, shape index: {}]
  %s11 = inlined_call_operand.vmem [shape: bf16[32,512], index: 11, kind: input, shape index: {}]
  %s12 = inlined_call_operand.vmem [shape: bf16[32,1024], index: 12, kind: input, shape index: {}]
  %s13 = inlined_call_operand.vmem [shape: bf16[512,32], index: 13, kind: input, shape index: {}]
  %s14 = inlined_call_operand.vmem [shape: bf16[32,64], index: 14, kind: input, shape index: {}]
  %s15 = inlined_call_operand.vmem [shape: bf16[32,64], index: 15, kind: input, shape index: {}]
  %s16 = inlined_call_operand.vmem [shape: f32[31,64], index: 16, kind: input, shape index: {}]
  %s17 = inlined_call_operand.vmem [shape: bf16[64,32], index: 17, kind: input, shape index: {}]
  %s18 = inlined_call_operand.vmem [shape: bf16[32,128], index: 18, kind: input, shape index: {}]
  %s19 = inlined_call_operand.vmem [shape: bf16[128,32], index: 19, kind: input, shape index: {}]
  %s20 = inlined_call_operand.vmem [shape: f32[2,16,32], index: 20, kind: output, shape index: {}]
  %s21 = sld [smem:[#allocation0]]
  $region113: #{conformer_cross_attn_encoder.2} parent=0
    _
  %s23 = ssub.s32 1, %s21
  %s24 = scalar_select 0, %s23, %s21
  loop: start=0, step=1, limit=4
  $region2: #{conformer_cross_attn_encoder.2} parent=0 // loop_pre_header
    _
  $region3: #{conformer_cross_attn_encoder.2} parent=0 // loop_header
    %s26 = sphi 0, %s30
    %p27 = scmp.ge.s32.totalorder %s26, 4
    %s36 = sphi 0, %s38
    %s39 = sphi 0, %s36
    %s40 = sphi 0, %s39
    %s56 = sphi 0, %s40
    %s62 = sphi 0, %s64
    %s65 = sphi 0, %s62
    %s66 = sphi 0, %s65
    %s82 = sphi 0, %s66
    %s88 = sphi 0, %s90
    %s91 = sphi 0, %s88
    %s92 = sphi 0, %s91
    %s108 = sphi 0, %s92
    %s114 = sphi 0, %s116
    %s117 = sphi 0, %s114
    %s118 = sphi 0, %s117
    %s134 = sphi 0, %s118
    %s138 = sphi 0, %s138
    %s140 = sphi 0, %s138
    %s141 = sphi 0, %s140
    %s155 = sphi 0, %s141
    %s159 = sphi 0, %s159
    %s161 = sphi 0, %s159
    %s162 = sphi 0, %s161
    %s176 = sphi 0, %s162
    %s180 = sphi 0, %s180
    %s182 = sphi 0, %s180
    %s183 = sphi 0, %s182
    %s197 = sphi 0, %s183
    %s201 = sphi 0, %s201
    %s203 = sphi 0, %s201
    %s204 = sphi 0, %s203
    %s218 = sphi 0, %s204
    %s222 = sphi 0, %s222
    %s224 = sphi 0, %s222
    %s225 = sphi 0, %s224
    %s239 = sphi 0, %s225
    %s243 = sphi 0, %s243
    %s245 = sphi 0, %s243
    %s246 = sphi 0, %s245
    %s260 = sphi 0, %s246
    %s264 = sphi 0, %s264
    %s266 = sphi 0, %s264
    %s267 = sphi 0, %s266
    %s281 = sphi 0, %s267
    %s285 = sphi 0, %s285
    %s287 = sphi 0, %s285
    %s288 = sphi 0, %s287
    %s302 = sphi 0, %s288
    %s306 = sphi 0, %s306
    %s308 = sphi 0, %s306
    %s309 = sphi 0, %s308
    %s323 = sphi 0, %s309
    %s327 = sphi 0, %s327
    %s329 = sphi 0, %s327
    %s330 = sphi 0, %s329
    %s344 = sphi 0, %s330
    %s348 = sphi 0, %s348
    %s350 = sphi 0, %s348
    %s351 = sphi 0, %s350
    %s365 = sphi 0, %s351
    %s369 = sphi 0, %s369
    %s371 = sphi 0, %s369
    %s372 = sphi 0, %s371
    %s386 = sphi 0, %s372
    %s390 = sphi 0, %s390
    %s392 = sphi 0, %s390
    %s393 = sphi 0, %s392
    %s407 = sphi 0, %s393
    %s411 = sphi 0, %s411
    %s413 = sphi 0, %s411
    %s414 = sphi 0, %s413
    %s428 = sphi 0, %s414
    %s432 = sphi 0, %s432
    %s434 = sphi 0, %s432
    %s435 = sphi 0, %s434
    %s449 = sphi 0, %s435
    %s453 = sphi 0, %s453
    %s455 = sphi 0, %s453
    %s456 = sphi 0, %s455
    %s470 = sphi 0, %s456
    %s476 = sphi 0, %s478
    %s479 = sphi 0, %s476
    %s480 = sphi 0, %s479
    %s496 = sphi 0, %s480
  $region4: #{conformer_cross_attn_encoder.2} parent=0 // loop_header_branch
    %29 = sbr.rel (%p27) target = $region8
  $region5: #{conformer_cross_attn_encoder.2} parent=0 // loop_body
    %s31 = ssub.s32 %s26, 1
    %s32 = ssub.s32 %s26, 2
    %s33 = sadd.s32 %s26, 1
    %s34 = ssub.s32 %s26, %s33
    %p35 = scmp.eq.s32.totalorder %s34, 0
    %s37 = sadd.s32 %s36, 1
    %s38 = scalar_select %p35, %s36, %s37
    %p41 = pneg %p35
    %p42 = scmp.eq.s32.totalorder %s26, 1
    %p43 = por %p41, %p42
    %p44 = scmp.ne.s32.totalorder %s36, %s39
    %p45 = scmp.eq.s32.totalorder %s26, 0
    %p46 = por %p44, %p45
    %p47 = scmp.ne.s32.totalorder %s36, %s39
    %p48 = scmp.eq.s32.totalorder %s31, 1
    %p49 = por %p47, %p48
    %p50 = scmp.ne.s32.totalorder %s39, %s40
    %p51 = scmp.eq.s32.totalorder %s31, 0
    %p52 = por %p50, %p51
    %p53 = scmp.ne.s32.totalorder %s39, %s40
    %p54 = scmp.eq.s32.totalorder %s32, 1
    %p55 = por %p53, %p54
    %p57 = scmp.ne.s32.totalorder %s40, %s56
    %p58 = scmp.eq.s32.totalorder %s32, 0
    %p59 = por %p57, %p58
    %s60 = ssub.s32 %s26, %s33
    %p61 = scmp.eq.s32.totalorder %s60, 0
    %s63 = sadd.s32 %s62, 1
    %s64 = scalar_select %p61, %s62, %s63
    %p67 = pneg %p61
    %p68 = scmp.eq.s32.totalorder %s26, 1
    %p69 = por %p67, %p68
    %p70 = scmp.ne.s32.totalorder %s62, %s65
    %p71 = scmp.eq.s32.totalorder %s26, 0
    %p72 = por %p70, %p71
    %p73 = scmp.ne.s32.totalorder %s62, %s65
    %p74 = scmp.eq.s32.totalorder %s31, 1
    %p75 = por %p73, %p74
    %p76 = scmp.ne.s32.totalorder %s65, %s66
    %p77 = scmp.eq.s32.totalorder %s31, 0
    %p78 = por %p76, %p77
    %p79 = scmp.ne.s32.totalorder %s65, %s66
    %p80 = scmp.eq.s32.totalorder %s32, 1
    %p81 = por %p79, %p80
    %p83 = scmp.ne.s32.totalorder %s66, %s82
    %p84 = scmp.eq.s32.totalorder %s32, 0
    %p85 = por %p83, %p84
    %s86 = ssub.s32 %s26, %s33
    %p87 = scmp.eq.s32.totalorder %s86, 0
    %s89 = sadd.s32 %s88, 1
    %s90 = scalar_select %p87, %s88, %s89
    %p93 = pneg %p87
    %p94 = scmp.eq.s32.totalorder %s26, 1
    %p95 = por %p93, %p94
    %p96 = scmp.ne.s32.totalorder %s88, %s91
    %p97 = scmp.eq.s32.totalorder %s26, 0
    %p98 = por %p96, %p97
    %p99 = scmp.ne.s32.totalorder %s88, %s91
    %p100 = scmp.eq.s32.totalorder %s31, 1
    %p101 = por %p99, %p100
    %p102 = scmp.ne.s32.totalorder %s91, %s92
    %p103 = scmp.eq.s32.totalorder %s31, 0
    %p104 = por %p102, %p103
    %p105 = scmp.ne.s32.totalorder %s91, %s92
    %p106 = scmp.eq.s32.totalorder %s32, 1
    %p107 = por %p105, %p106
    %p109 = scmp.ne.s32.totalorder %s92, %s108
    %p110 = scmp.eq.s32.totalorder %s32, 0
    %p111 = por %p109, %p110
    %s112 = ssub.s32 %s26, %s33
    %p113 = scmp.eq.s32.totalorder %s112, 0
    %s115 = sadd.s32 %s114, 1
    %s116 = scalar_select %p113, %s114, %s115
    %p119 = pneg %p113
    %p120 = scmp.eq.s32.totalorder %s26, 1
    %p121 = por %p119, %p120
    %p122 = scmp.ne.s32.totalorder %s114, %s117
    %p123 = scmp.eq.s32.totalorder %s26, 0
    %p124 = por %p122, %p123
    %p125 = scmp.ne.s32.totalorder %s114, %s117
    %p126 = scmp.eq.s32.totalorder %s31, 1
    %p127 = por %p125, %p126
    %p128 = scmp.ne.s32.totalorder %s117, %s118
    %p129 = scmp.eq.s32.totalorder %s31, 0
    %p130 = por %p128, %p129
    %p131 = scmp.ne.s32.totalorder %s117, %s118
    %p132 = scmp.eq.s32.totalorder %s32, 1
    %p133 = por %p131, %p132
    %p135 = scmp.ne.s32.totalorder %s118, %s134
    %p136 = scmp.eq.s32.totalorder %s32, 0
    %p137 = por %p135, %p136
    %s139 = sadd.s32 %s138, 1
    %p142 = scmp.eq.s32.totalorder %s26, 1
    %p143 = scmp.ne.s32.totalorder %s138, %s140
    %p144 = scmp.eq.s32.totalorder %s26, 0
    %p145 = por %p143, %p144
    %p146 = scmp.ne.s32.totalorder %s138, %s140
    %p147 = scmp.eq.s32.totalorder %s31, 1
    %p148 = por %p146, %p147
    %p149 = scmp.ne.s32.totalorder %s140, %s141
    %p150 = scmp.eq.s32.totalorder %s31, 0
    %p151 = por %p149, %p150
    %p152 = scmp.ne.s32.totalorder %s140, %s141
    %p153 = scmp.eq.s32.totalorder %s32, 1
    %p154 = por %p152, %p153
    %p156 = scmp.ne.s32.totalorder %s141, %s155
    %p157 = scmp.eq.s32.totalorder %s32, 0
    %p158 = por %p156, %p157
    %s160 = sadd.s32 %s159, 1
    %p163 = scmp.eq.s32.totalorder %s26, 1
    %p164 = scmp.ne.s32.totalorder %s159, %s161
    %p165 = scmp.eq.s32.totalorder %s26, 0
    %p166 = por %p164, %p165
    %p167 = scmp.ne.s32.totalorder %s159, %s161
    %p168 = scmp.eq.s32.totalorder %s31, 1
    %p169 = por %p167, %p168
    %p170 = scmp.ne.s32.totalorder %s161, %s162
    %p171 = scmp.eq.s32.totalorder %s31, 0
    %p172 = por %p170, %p171
    %p173 = scmp.ne.s32.totalorder %s161, %s162
    %p174 = scmp.eq.s32.totalorder %s32, 1
    %p175 = por %p173, %p174
    %p177 = scmp.ne.s32.totalorder %s162, %s176
    %p178 = scmp.eq.s32.totalorder %s32, 0
    %p179 = por %p177, %p178
    %s181 = sadd.s32 %s180, 1
    %p184 = scmp.eq.s32.totalorder %s26, 1
    %p185 = scmp.ne.s32.totalorder %s180, %s182
    %p186 = scmp.eq.s32.totalorder %s26, 0
    %p187 = por %p185, %p186
    %p188 = scmp.ne.s32.totalorder %s180, %s182
    %p189 = scmp.eq.s32.totalorder %s31, 1
    %p190 = por %p188, %p189
    %p191 = scmp.ne.s32.totalorder %s182, %s183
    %p192 = scmp.eq.s32.totalorder %s31, 0
    %p193 = por %p191, %p192
    %p194 = scmp.ne.s32.totalorder %s182, %s183
    %p195 = scmp.eq.s32.totalorder %s32, 1
    %p196 = por %p194, %p195
    %p198 = scmp.ne.s32.totalorder %s183, %s197
    %p199 = scmp.eq.s32.totalorder %s32, 0
    %p200 = por %p198, %p199
    %s202 = sadd.s32 %s201, 1
    %p205 = scmp.eq.s32.totalorder %s26, 1
    %p206 = scmp.ne.s32.totalorder %s201, %s203
    %p207 = scmp.eq.s32.totalorder %s26, 0
    %p208 = por %p206, %p207
    %p209 = scmp.ne.s32.totalorder %s201, %s203
    %p210 = scmp.eq.s32.totalorder %s31, 1
    %p211 = por %p209, %p210
    %p212 = scmp.ne.s32.totalorder %s203, %s204
    %p213 = scmp.eq.s32.totalorder %s31, 0
    %p214 = por %p212, %p213
    %p215 = scmp.ne.s32.totalorder %s203, %s204
    %p216 = scmp.eq.s32.totalorder %s32, 1
    %p217 = por %p215, %p216
    %p219 = scmp.ne.s32.totalorder %s204, %s218
    %p220 = scmp.eq.s32.totalorder %s32, 0
    %p221 = por %p219, %p220
    %s223 = sadd.s32 %s222, 1
    %p226 = scmp.eq.s32.totalorder %s26, 1
    %p227 = scmp.ne.s32.totalorder %s222, %s224
    %p228 = scmp.eq.s32.totalorder %s26, 0
    %p229 = por %p227, %p228
    %p230 = scmp.ne.s32.totalorder %s222, %s224
    %p231 = scmp.eq.s32.totalorder %s31, 1
    %p232 = por %p230, %p231
    %p233 = scmp.ne.s32.totalorder %s224, %s225
    %p234 = scmp.eq.s32.totalorder %s31, 0
    %p235 = por %p233, %p234
    %p236 = scmp.ne.s32.totalorder %s224, %s225
    %p237 = scmp.eq.s32.totalorder %s32, 1
    %p238 = por %p236, %p237
    %p240 = scmp.ne.s32.totalorder %s225, %s239
    %p241 = scmp.eq.s32.totalorder %s32, 0
    %p242 = por %p240, %p241
    %s244 = sadd.s32 %s243, 1
    %p247 = scmp.eq.s32.totalorder %s26, 1
    %p248 = scmp.ne.s32.totalorder %s243, %s245
    %p249 = scmp.eq.s32.totalorder %s26, 0
    %p250 = por %p248, %p249
    %p251 = scmp.ne.s32.totalorder %s243, %s245
    %p252 = scmp.eq.s32.totalorder %s31, 1
    %p253 = por %p251, %p252
    %p254 = scmp.ne.s32.totalorder %s245, %s246
    %p255 = scmp.eq.s32.totalorder %s31, 0
    %p256 = por %p254, %p255
    %p257 = scmp.ne.s32.totalorder %s245, %s246
    %p258 = scmp.eq.s32.totalorder %s32, 1
    %p259 = por %p257, %p258
    %p261 = scmp.ne.s32.totalorder %s246, %s260
    %p262 = scmp.eq.s32.totalorder %s32, 0
    %p263 = por %p261, %p262
    %s265 = sadd.s32 %s264, 1
    %p268 = scmp.eq.s32.totalorder %s26, 1
    %p269 = scmp.ne.s32.totalorder %s264, %s266
    %p270 = scmp.eq.s32.totalorder %s26, 0
    %p271 = por %p269, %p270
    %p272 = scmp.ne.s32.totalorder %s264, %s266
    %p273 = scmp.eq.s32.totalorder %s31, 1
    %p274 = por %p272, %p273
    %p275 = scmp.ne.s32.totalorder %s266, %s267
    %p276 = scmp.eq.s32.totalorder %s31, 0
    %p277 = por %p275, %p276
    %p278 = scmp.ne.s32.totalorder %s266, %s267
    %p279 = scmp.eq.s32.totalorder %s32, 1
    %p280 = por %p278, %p279
    %p282 = scmp.ne.s32.totalorder %s267, %s281
    %p283 = scmp.eq.s32.totalorder %s32, 0
    %p284 = por %p282, %p283
    %s286 = sadd.s32 %s285, 1
    %p289 = scmp.eq.s32.totalorder %s26, 1
    %p290 = scmp.ne.s32.totalorder %s285, %s287
    %p291 = scmp.eq.s32.totalorder %s26, 0
    %p292 = por %p290, %p291
    %p293 = scmp.ne.s32.totalorder %s285, %s287
    %p294 = scmp.eq.s32.totalorder %s31, 1
    %p295 = por %p293, %p294
    %p296 = scmp.ne.s32.totalorder %s287, %s288
    %p297 = scmp.eq.s32.totalorder %s31, 0
    %p298 = por %p296, %p297
    %p299 = scmp.ne.s32.totalorder %s287, %s288
    %p300 = scmp.eq.s32.totalorder %s32, 1
    %p301 = por %p299, %p300
    %p303 = scmp.ne.s32.totalorder %s288, %s302
    %p304 = scmp.eq.s32.totalorder %s32, 0
    %p305 = por %p303, %p304
    %s307 = sadd.s32 %s306, 1
    %p310 = scmp.eq.s32.totalorder %s26, 1
    %p311 = scmp.ne.s32.totalorder %s306, %s308
    %p312 = scmp.eq.s32.totalorder %s26, 0
    %p313 = por %p311, %p312
    %p314 = scmp.ne.s32.totalorder %s306, %s308
    %p315 = scmp.eq.s32.totalorder %s31, 1
    %p316 = por %p314, %p315
    %p317 = scmp.ne.s32.totalorder %s308, %s309
    %p318 = scmp.eq.s32.totalorder %s31, 0
    %p319 = por %p317, %p318
    %p320 = scmp.ne.s32.totalorder %s308, %s309
    %p321 = scmp.eq.s32.totalorder %s32, 1
    %p322 = por %p320, %p321
    %p324 = scmp.ne.s32.totalorder %s309, %s323
    %p325 = scmp.eq.s32.totalorder %s32, 0
    %p326 = por %p324, %p325
    %s328 = sadd.s32 %s327, 1
    %p331 = scmp.eq.s32.totalorder %s26, 1
    %p332 = scmp.ne.s32.totalorder %s327, %s329
    %p333 = scmp.eq.s32.totalorder %s26, 0
    %p334 = por %p332, %p333
    %p335 = scmp.ne.s32.totalorder %s327, %s329
    %p336 = scmp.eq.s32.totalorder %s31, 1
    %p337 = por %p335, %p336
    %p338 = scmp.ne.s32.totalorder %s329, %s330
    %p339 = scmp.eq.s32.totalorder %s31, 0
    %p340 = por %p338, %p339
    %p341 = scmp.ne.s32.totalorder %s329, %s330
    %p342 = scmp.eq.s32.totalorder %s32, 1
    %p343 = por %p341, %p342
    %p345 = scmp.ne.s32.totalorder %s330, %s344
    %p346 = scmp.eq.s32.totalorder %s32, 0
    %p347 = por %p345, %p346
    %s349 = sadd.s32 %s348, 1
    %p352 = scmp.eq.s32.totalorder %s26, 1
    %p353 = scmp.ne.s32.totalorder %s348, %s350
    %p354 = scmp.eq.s32.totalorder %s26, 0
    %p355 = por %p353, %p354
    %p356 = scmp.ne.s32.totalorder %s348, %s350
    %p357 = scmp.eq.s32.totalorder %s31, 1
    %p358 = por %p356, %p357
    %p359 = scmp.ne.s32.totalorder %s350, %s351
    %p360 = scmp.eq.s32.totalorder %s31, 0
    %p361 = por %p359, %p360
    %p362 = scmp.ne.s32.totalorder %s350, %s351
    %p363 = scmp.eq.s32.totalorder %s32, 1
    %p364 = por %p362, %p363
    %p366 = scmp.ne.s32.totalorder %s351, %s365
    %p367 = scmp.eq.s32.totalorder %s32, 0
    %p368 = por %p366, %p367
    %s370 = sadd.s32 %s369, 1
    %p373 = scmp.eq.s32.totalorder %s26, 1
    %p374 = scmp.ne.s32.totalorder %s369, %s371
    %p375 = scmp.eq.s32.totalorder %s26, 0
    %p376 = por %p374, %p375
    %p377 = scmp.ne.s32.totalorder %s369, %s371
    %p378 = scmp.eq.s32.totalorder %s31, 1
    %p379 = por %p377, %p378
    %p380 = scmp.ne.s32.totalorder %s371, %s372
    %p381 = scmp.eq.s32.totalorder %s31, 0
    %p382 = por %p380, %p381
    %p383 = scmp.ne.s32.totalorder %s371, %s372
    %p384 = scmp.eq.s32.totalorder %s32, 1
    %p385 = por %p383, %p384
    %p387 = scmp.ne.s32.totalorder %s372, %s386
    %p388 = scmp.eq.s32.totalorder %s32, 0
    %p389 = por %p387, %p388
    %s391 = sadd.s32 %s390, 1
    %p394 = scmp.eq.s32.totalorder %s26, 1
    %p395 = scmp.ne.s32.totalorder %s390, %s392
    %p396 = scmp.eq.s32.totalorder %s26, 0
    %p397 = por %p395, %p396
    %p398 = scmp.ne.s32.totalorder %s390, %s392
    %p399 = scmp.eq.s32.totalorder %s31, 1
    %p400 = por %p398, %p399
    %p401 = scmp.ne.s32.totalorder %s392, %s393
    %p402 = scmp.eq.s32.totalorder %s31, 0
    %p403 = por %p401, %p402
    %p404 = scmp.ne.s32.totalorder %s392, %s393
    %p405 = scmp.eq.s32.totalorder %s32, 1
    %p406 = por %p404, %p405
    %p408 = scmp.ne.s32.totalorder %s393, %s407
    %p409 = scmp.eq.s32.totalorder %s32, 0
    %p410 = por %p408, %p409
    %s412 = sadd.s32 %s411, 1
    %p415 = scmp.eq.s32.totalorder %s26, 1
    %p416 = scmp.ne.s32.totalorder %s411, %s413
    %p417 = scmp.eq.s32.totalorder %s26, 0
    %p418 = por %p416, %p417
    %p419 = scmp.ne.s32.totalorder %s411, %s413
    %p420 = scmp.eq.s32.totalorder %s31, 1
    %p421 = por %p419, %p420
    %p422 = scmp.ne.s32.totalorder %s413, %s414
    %p423 = scmp.eq.s32.totalorder %s31, 0
    %p424 = por %p422, %p423
    %p425 = scmp.ne.s32.totalorder %s413, %s414
    %p426 = scmp.eq.s32.totalorder %s32, 1
    %p427 = por %p425, %p426
    %p429 = scmp.ne.s32.totalorder %s414, %s428
    %p430 = scmp.eq.s32.totalorder %s32, 0
    %p431 = por %p429, %p430
    %s433 = sadd.s32 %s432, 1
    %p436 = scmp.eq.s32.totalorder %s26, 1
    %p437 = scmp.ne.s32.totalorder %s432, %s434
    %p438 = scmp.eq.s32.totalorder %s26, 0
    %p439 = por %p437, %p438
    %p440 = scmp.ne.s32.totalorder %s432, %s434
    %p441 = scmp.eq.s32.totalorder %s31, 1
    %p442 = por %p440, %p441
    %p443 = scmp.ne.s32.totalorder %s434, %s435
    %p444 = scmp.eq.s32.totalorder %s31, 0
    %p445 = por %p443, %p444
    %p446 = scmp.ne.s32.totalorder %s434, %s435
    %p447 = scmp.eq.s32.totalorder %s32, 1
    %p448 = por %p446, %p447
    %p450 = scmp.ne.s32.totalorder %s435, %s449
    %p451 = scmp.eq.s32.totalorder %s32, 0
    %p452 = por %p450, %p451
    %s454 = sadd.s32 %s453, 1
    %p457 = scmp.eq.s32.totalorder %s26, 1
    %p458 = scmp.ne.s32.totalorder %s453, %s455
    %p459 = scmp.eq.s32.totalorder %s26, 0
    %p460 = por %p458, %p459
    %p461 = scmp.ne.s32.totalorder %s453, %s455
    %p462 = scmp.eq.s32.totalorder %s31, 1
    %p463 = por %p461, %p462
    %p464 = scmp.ne.s32.totalorder %s455, %s456
    %p465 = scmp.eq.s32.totalorder %s31, 0
    %p466 = por %p464, %p465
    %p467 = scmp.ne.s32.totalorder %s455, %s456
    %p468 = scmp.eq.s32.totalorder %s32, 1
    %p469 = por %p467, %p468
    %p471 = scmp.ne.s32.totalorder %s456, %s470
    %p472 = scmp.eq.s32.totalorder %s32, 0
    %p473 = por %p471, %p472
    %s474 = ssub.s32 %s26, %s33
    %p475 = scmp.eq.s32.totalorder %s474, 0
    %s477 = sadd.s32 %s476, 1
    %s478 = scalar_select %p475, %s476, %s477
    %p481 = pneg %p475
    %p482 = scmp.eq.s32.totalorder %s26, 1
    %p483 = por %p481, %p482
    %p484 = scmp.ne.s32.totalorder %s476, %s479
    %p485 = scmp.eq.s32.totalorder %s26, 0
    %p486 = por %p484, %p485
    %p487 = scmp.ne.s32.totalorder %s476, %s479
    %p488 = scmp.eq.s32.totalorder %s31, 1
    %p489 = por %p487, %p488
    %p490 = scmp.ne.s32.totalorder %s479, %s480
    %p491 = scmp.eq.s32.totalorder %s31, 0
    %p492 = por %p490, %p491
    %p493 = scmp.ne.s32.totalorder %s479, %s480
    %p494 = scmp.eq.s32.totalorder %s32, 1
    %p495 = por %p493, %p494
    %p497 = scmp.ne.s32.totalorder %s480, %s496
    %p498 = scmp.eq.s32.totalorder %s32, 0
    %p499 = por %p497, %p498
    %p500 = scmp.le.s32.totalorder 1, %s26
    %p501 = scmp.lt.s32.totalorder %s26, 3
    %p502 = pnand %p500, %p501
    %p503 = pneg %p502
    // Predicated region
    $region9: #{conformer_cross_attn_encoder.2} parent=5 // pred_check
      _
    $region10: #{conformer_cross_attn_encoder.2} parent=5 // pred_check_branch
      %505 = sbr.rel (%p502) target = $region12
    $region11: #{conformer_cross_attn_encoder.2} parent=5 // pred_region
      %s506 = ssub.s32 %s26, 1
      // Predicated region
      $region13: #{conformer_cross_attn_encoder.2} parent=11 // pred_check
        %p507 = pneg %p151
      $region14: #{conformer_cross_attn_encoder.2} parent=11 // pred_check_branch
        %509 = sbr.rel (%p507) target = $region16
      $region15: #{conformer_cross_attn_encoder.2} parent=11 // pred_region
        _
      $region16: #{conformer_cross_attn_encoder.2} parent=11 // pred_fallthru
        _
      // Predicated region
      $region17: #{conformer_cross_attn_encoder.2} parent=11 // pred_check
        %p510 = pneg %p172
      $region18: #{conformer_cross_attn_encoder.2} parent=11 // pred_check_branch
        %512 = sbr.rel (%p510) target = $region20
      $region19: #{conformer_cross_attn_encoder.2} parent=11 // pred_region
        _
      $region20: #{conformer_cross_attn_encoder.2} parent=11 // pred_fallthru
        _
      // Predicated region
      $region21: #{conformer_cross_attn_encoder.2} parent=11 // pred_check
        %p513 = pneg %p193
      $region22: #{conformer_cross_attn_encoder.2} parent=11 // pred_check_branch
        %515 = sbr.rel (%p513) target = $region24
      $region23: #{conformer_cross_attn_encoder.2} parent=11 // pred_region
        _
      $region24: #{conformer_cross_attn_encoder.2} parent=11 // pred_fallthru
        _
      // Predicated region
      $region25: #{conformer_cross_attn_encoder.2} parent=11 // pred_check
        %p516 = pneg %p214
      $region26: #{conformer_cross_attn_encoder.2} parent=11 // pred_check_branch
        %518 = sbr.rel (%p516) target = $region28
      $region27: #{conformer_cross_attn_encoder.2} parent=11 // pred_region
        _
      $region28: #{conformer_cross_attn_encoder.2} parent=11 // pred_fallthru
        _
      // Predicated region
      $region29: #{conformer_cross_attn_encoder.2} parent=11 // pred_check
        %p519 = pneg %p235
      $region30: #{conformer_cross_attn_encoder.2} parent=11 // pred_check_branch
        %521 = sbr.rel (%p519) target = $region32
      $region31: #{conformer_cross_attn_encoder.2} parent=11 // pred_region
        _
      $region32: #{conformer_cross_attn_encoder.2} parent=11 // pred_fallthru
        _
      // Predicated region
      $region33: #{conformer_cross_attn_encoder.2} parent=11 // pred_check
        %p522 = pneg %p256
      $region34: #{conformer_cross_attn_encoder.2} parent=11 // pred_check_branch
        %524 = sbr.rel (%p522) target = $region36
      $region35: #{conformer_cross_attn_encoder.2} parent=11 // pred_region
        _
      $region36: #{conformer_cross_attn_encoder.2} parent=11 // pred_fallthru
        _
      // Predicated region
      $region37: #{conformer_cross_attn_encoder.2} parent=11 // pred_check
        %p525 = pneg %p277
      $region38: #{conformer_cross_attn_encoder.2} parent=11 // pred_check_branch
        %527 = sbr.rel (%p525) target = $region40
      $region39: #{conformer_cross_attn_encoder.2} parent=11 // pred_region
        _
      $region40: #{conformer_cross_attn_encoder.2} parent=11 // pred_fallthru
        _
      // Predicated region
      $region41: #{conformer_cross_attn_encoder.2} parent=11 // pred_check
        %p528 = pneg %p298
      $region42: #{conformer_cross_attn_encoder.2} parent=11 // pred_check_branch
        %530 = sbr.rel (%p528) target = $region44
      $region43: #{conformer_cross_attn_encoder.2} parent=11 // pred_region
        _
      $region44: #{conformer_cross_attn_encoder.2} parent=11 // pred_fallthru
        _
      // Predicated region
      $region45: #{conformer_cross_attn_encoder.2} parent=11 // pred_check
        %p531 = pneg %p319
      $region46: #{conformer_cross_attn_encoder.2} parent=11 // pred_check_branch
        %533 = sbr.rel (%p531) target = $region48
      $region47: #{conformer_cross_attn_encoder.2} parent=11 // pred_region
        _
      $region48: #{conformer_cross_attn_encoder.2} parent=11 // pred_fallthru
        _
      // Predicated region
      $region49: #{conformer_cross_attn_encoder.2} parent=11 // pred_check
        %p534 = pneg %p340
      $region50: #{conformer_cross_attn_encoder.2} parent=11 // pred_check_branch
        %536 = sbr.rel (%p534) target = $region52
      $region51: #{conformer_cross_attn_encoder.2} parent=11 // pred_region
        _
      $region52: #{conformer_cross_attn_encoder.2} parent=11 // pred_fallthru
        _
      // Predicated region
      $region53: #{conformer_cross_attn_encoder.2} parent=11 // pred_check
        %p537 = pneg %p361
      $region54: #{conformer_cross_attn_encoder.2} parent=11 // pred_check_branch
        %539 = sbr.rel (%p537) target = $region56
      $region55: #{conformer_cross_attn_encoder.2} parent=11 // pred_region
        _
      $region56: #{conformer_cross_attn_encoder.2} parent=11 // pred_fallthru
        _
      // Predicated region
      $region57: #{conformer_cross_attn_encoder.2} parent=11 // pred_check
        %p540 = pneg %p382
      $region58: #{conformer_cross_attn_encoder.2} parent=11 // pred_check_branch
        %542 = sbr.rel (%p540) target = $region60
      $region59: #{conformer_cross_attn_encoder.2} parent=11 // pred_region
        _
      $region60: #{conformer_cross_attn_encoder.2} parent=11 // pred_fallthru
        _
      // Predicated region
      $region61: #{conformer_cross_attn_encoder.2} parent=11 // pred_check
        %p543 = pneg %p403
      $region62: #{conformer_cross_attn_encoder.2} parent=11 // pred_check_branch
        %545 = sbr.rel (%p543) target = $region64
      $region63: #{conformer_cross_attn_encoder.2} parent=11 // pred_region
        _
      $region64: #{conformer_cross_attn_encoder.2} parent=11 // pred_fallthru
        _
      // Predicated region
      $region65: #{conformer_cross_attn_encoder.2} parent=11 // pred_check
        %p546 = pneg %p424
      $region66: #{conformer_cross_attn_encoder.2} parent=11 // pred_check_branch
        %548 = sbr.rel (%p546) target = $region68
      $region67: #{conformer_cross_attn_encoder.2} parent=11 // pred_region
        _
      $region68: #{conformer_cross_attn_encoder.2} parent=11 // pred_fallthru
        _
      // Predicated region
      $region69: #{conformer_cross_attn_encoder.2} parent=11 // pred_check
        %p549 = pneg %p445
      $region70: #{conformer_cross_attn_encoder.2} parent=11 // pred_check_branch
        %551 = sbr.rel (%p549) target = $region72
      $region71: #{conformer_cross_attn_encoder.2} parent=11 // pred_region
        _
      $region72: #{conformer_cross_attn_encoder.2} parent=11 // pred_fallthru
        _
      // Predicated region
      $region73: #{conformer_cross_attn_encoder.2} parent=11 // pred_check
        %p552 = pneg %p466
      $region74: #{conformer_cross_attn_encoder.2} parent=11 // pred_check_branch
        %554 = sbr.rel (%p552) target = $region76
      $region75: #{conformer_cross_attn_encoder.2} parent=11 // pred_region
        _
      $region76: #{conformer_cross_attn_encoder.2} parent=11 // pred_fallthru
        _
    $region12: #{conformer_cross_attn_encoder.2} parent=5 // pred_fallthru
      _
    %p555 = scmp.lt.s32.totalorder %s26, 2
    // Predicated region
    $region77: #{conformer_cross_attn_encoder.2} parent=5 // pred_check
      %p556 = pneg %p555
    $region78: #{conformer_cross_attn_encoder.2} parent=5 // pred_check_branch
      %558 = sbr.rel (%p556) target = $region80
    $region79: #{conformer_cross_attn_encoder.2} parent=5 // pred_region
      // Predicated region
      $region81: #{conformer_cross_attn_encoder.2} parent=79 // pred_check
        %p559 = pneg %p46
      $region82: #{conformer_cross_attn_encoder.2} parent=79 // pred_check_branch
        %561 = sbr.rel (%p559) target = $region84
      $region83: #{conformer_cross_attn_encoder.2} parent=79 // pred_region
        %p562 = scmp.lt.s32.totalorder %s26, 1
        %s563 = scalar_select %p562, %s26, 1
        %s564 = smul.addr %s563, 2
        %s565 = smul.addr %s564, 8
        %s566 = scalar_lea.vmem %s0, %s565
      $region84: #{conformer_cross_attn_encoder.2} parent=79 // pred_fallthru
        _
      // Predicated region
      $region85: #{conformer_cross_attn_encoder.2} parent=79 // pred_check
        %p567 = pneg %p72
      $region86: #{conformer_cross_attn_encoder.2} parent=79 // pred_check_branch
        %569 = sbr.rel (%p567) target = $region88
      $region87: #{conformer_cross_attn_encoder.2} parent=79 // pred_region
        %p570 = scmp.lt.s32.totalorder %s26, 1
        %s571 = scalar_select %p570, %s26, 1
        %s572 = smul.addr %s571, 8
        %s573 = scalar_lea.vmem %s1, %s572
      $region88: #{conformer_cross_attn_encoder.2} parent=79 // pred_fallthru
        _
      // Predicated region
      $region89: #{conformer_cross_attn_encoder.2} parent=79 // pred_check
        %p574 = pneg %p98
      $region90: #{conformer_cross_attn_encoder.2} parent=79 // pred_check_branch
        %576 = sbr.rel (%p574) target = $region92
      $region91: #{conformer_cross_attn_encoder.2} parent=79 // pred_region
        %p577 = scmp.lt.s32.totalorder %s26, 1
        %s578 = scalar_select %p577, %s26, 1
        %s579 = scalar_lea.vmem %s2, %s578
      $region92: #{conformer_cross_attn_encoder.2} parent=79 // pred_fallthru
        _
      // Predicated region
      $region93: #{conformer_cross_attn_encoder.2} parent=79 // pred_check
        %p580 = pneg %p124
      $region94: #{conformer_cross_attn_encoder.2} parent=79 // pred_check_branch
        %582 = sbr.rel (%p580) target = $region96
      $region95: #{conformer_cross_attn_encoder.2} parent=79 // pred_region
        %p583 = scmp.lt.s32.totalorder %s26, 1
        %s584 = scalar_select %p583, %s26, 1
        %s585 = scalar_lea.vmem %s3, %s584
      $region96: #{conformer_cross_attn_encoder.2} parent=79 // pred_fallthru
        _
    $region80: #{conformer_cross_attn_encoder.2} parent=5 // pred_fallthru
      _
    %p586 = scmp.le.s32.totalorder 1, %s26
    %p587 = scmp.lt.s32.totalorder %s26, 3
    %p588 = pnand %p586, %p587
    %p589 = pneg %p588
    // Predicated region
    $region97: #{conformer_cross_attn_encoder.2} parent=5 // pred_check
      _
    $region98: #{conformer_cross_attn_encoder.2} parent=5 // pred_check_branch
      %591 = sbr.rel (%p588) target = $region100
    $region99: #{conformer_cross_attn_encoder.2} parent=5 // pred_region
      %s592 = ssub.s32 %s26, 1
      %p593 = scmp.lt.s32.totalorder %s31, 1
      %s594 = scalar_select %p593, %s31, 1
      %s595 = smul.addr %s594, 2
      %s596 = smul.addr %s595, 8
      %s597 = scalar_lea.vmem %s0, %s596
      %p598 = pneg %p52
      %p599 = pneg %p49
      %p600 = scmp.lt.s32.totalorder %s31, 1
      %s601 = scalar_select %p600, %s31, 1
      %s602 = smul.addr %s601, 8
      %s603 = scalar_lea.vmem %s1, %s602
      %p604 = pneg %p78
      %p605 = pneg %p75
      %p606 = scmp.lt.s32.totalorder %s31, 1
      %s607 = scalar_select %p606, %s31, 1
      %s608 = scalar_lea.vmem %s2, %s607
      %p609 = pneg %p104
      %p610 = pneg %p101
      %p611 = scmp.lt.s32.totalorder %s31, 1
      %s612 = scalar_select %p611, %s31, 1
      %s613 = scalar_lea.vmem %s3, %s612
      %p614 = pneg %p130
      %p615 = pneg %p127
      %p616 = pneg %p151
      %p617 = pneg %p148
      %p618 = pneg %p172
      %p619 = pneg %p169
      %p620 = pneg %p193
      %p621 = pneg %p190
      %p622 = pneg %p214
      %p623 = pneg %p211
      %p624 = pneg %p235
      %p625 = pneg %p232
      %p626 = pneg %p256
      %p627 = pneg %p253
      %p628 = pneg %p277
      %p629 = pneg %p274
      %p630 = pneg %p298
      %p631 = pneg %p295
      %p632 = pneg %p319
      %p633 = pneg %p316
      %p634 = pneg %p340
      %p635 = pneg %p337
      %p636 = pneg %p361
      %p637 = pneg %p358
      %p638 = pneg %p382
      %p639 = pneg %p379
      %p640 = pneg %p403
      %p641 = pneg %p400
      %p642 = pneg %p424
      %p643 = pneg %p421
      %p644 = pneg %p445
      %p645 = pneg %p442
      %p646 = pneg %p466
      %p647 = pneg %p463
      %p648 = pneg %p492
      %p649 = pneg %p489
      %p650 = scmp.lt.s32.totalorder %s31, 1
      %s651 = scalar_select %p650, %s31, 1
      %s652 = smul.addr %s651, 2
      %s653 = smul.addr %s652, 8
      %s654 = scalar_lea.vmem %s20, %s653
      %p655 = scmp.lt.s32.totalorder %s31, 1
      %s656 = scalar_select %p655, %s31, 1
      %s657 = smul.addr %s656, 2
      %s658 = smul.addr %s657, 8
      %s659 = scalar_lea.vmem %s0, %s658
      %p660 = scmp.lt.s32.totalorder %s31, 1
      %s661 = scalar_select %p660, %s31, 1
      %s662 = smul.addr %s661, 8
      %s663 = scalar_lea.vmem %s1, %s662
      %p664 = scmp.lt.s32.totalorder %s31, 1
      %s665 = scalar_select %p664, %s31, 1
      %s666 = scalar_lea.vmem %s2, %s665
      %p667 = scmp.lt.s32.totalorder %s31, 1
      %s668 = scalar_select %p667, %s31, 1
      %s669 = scalar_lea.vmem %s3, %s668
      %p670 = scmp.lt.s32.totalorder %s31, 1
      %s671 = scalar_select %p670, %s31, 1
      %s672 = smul.addr %s671, 2
      %s673 = smul.addr %s672, 8
      %s674 = scalar_lea.vmem %s20, %s673
      %v676 = vld [vmem:[%s659] sm:$0xff]
      %v677 = vld [vmem:[%s659 + $0x8] sm:$0xff]
      %v678 = vld [vmem:[%s663] sm:$0xff]
      %v679 = vld [vmem:[%s666] sm:$0x1]
      %v680 = vld [vmem:[%s669] sm:$0x1]
      %vm681 = vcmask 261120
      %v682 = vsel %vm681, %v676, 0.0
      %683 = vadd.xlane.f32.xlu0 %v682
      %v684 = vpop.xlane.xlu0 %683
      %v685 = vsel %vm681, %v677, 0.0
      %686 = vadd.xlane.f32.xlu0 %v685
      %v687 = vpop.xlane.xlu0 %686
      %v688 = vrcp.pop 32.0
      %v689 = vmul.f32 %v684, %v688
      %v690 = vmul.f32 %v687, %v688
      %v691 = vsub.f32 %v676, %v689
      %v692 = vsub.f32 %v677, %v690
      %v693 = vmul.f32 %v691, %v691
      %v694 = vmul.f32 %v692, %v692
      %v695 = vsel %vm681, %v693, 0.0
      %696 = vadd.xlane.f32.xlu0 %v695
      %v697 = vpop.xlane.xlu0 %696
      %v698 = vsel %vm681, %v694, 0.0
      %699 = vadd.xlane.f32.xlu0 %v698
      %v700 = vpop.xlane.xlu0 %699
      %v701 = vmul.f32 %v697, %v688
      %v702 = vmul.f32 %v700, %v688
      %v703 = vadd.f32 %v701, 1e-05
      %v704 = vadd.f32 %v702, 1e-05
      %v705 = vrsqrt.pop %v703
      %v706 = vrsqrt.pop %v704
      %v707 = vmul.f32 %v691, %v705
      %v708 = vmul.f32 %v692, %v706
      %v709 = vld [vmem:[%s4] sm:$0x1]
      %v710 = vlaneseq
      %v711 = vshrl.u32 %v710, 7
      %v712 = vsub.s32 0, %v711
      %v713 = vrot.slane %v709, %v712
      %v714 = vmul.f32 %v707, %v713
      %v715 = vmul.f32 %v708, %v713
      %v716 = vld [vmem:[%s4 + $0x1] sm:$0x1]
      %v717 = vlaneseq
      %v718 = vshrl.u32 %v717, 7
      %v719 = vsub.s32 0, %v718
      %v720 = vrot.slane %v716, %v719
      %v721 = vadd.f32 %v714, %v720
      %v722 = vadd.f32 %v715, %v720
      %v723 = vld [vmem:[%s5] sm:$0x1]
      %v724 = vld [vmem:[%s4 + $0x2] sm:$0x1]
      %v725 = vpack.c.bf16 %v722, %v721
      %v726 = vld [vmem:[%s7] sm:$0xf]
      %v727 = vld [vmem:[%s7 + $0x4] sm:$0xf]
      %v728 = vld [vmem:[%s7 + $0x8] sm:$0xf]
      %v729 = vld [vmem:[%s7 + $0xc] sm:$0xf]
      %v730 = vlaneseq
      %v731 = vshrl.u32 %v730, 7
      %v732 = vsub.s32 0, %v731
      %v733 = vrot.slane %v723, %v732
      %v738 = vunpack.c.l.b16 %v726
      %v739 = vunpack.c.l.b16 %v727
      %v740 = vunpack.c.l.b16 %v728
      %v741 = vunpack.c.l.b16 %v729
      %v742 = vpack.c.b16 %v739, %v738
      %v743 = vpack.c.b16 %v741, %v740
      %v747 = vsel %vm681, %v725, 0
      %749 = vmatprep.subr.bf16.mxu0 0
      %750 = vmatpush1.bf16.msra.mxu0 %v742
      %751 = vmatprep.subr.bf16.mxu0 0
      %752 = vmatpush1.bf16.msra.mxu0 %v743
      %753 = vmatprep.subr.bf16.mxu0 0
      %754 = vmatpush1.bf16.msra.mxu0 0
      %755 = vmatprep.subr.bf16.mxu0 0
      %756 = vmatpush1.bf16.msra.mxu0 0
      %757 = vmatprep.subr.bf16.mxu0 0
      %758 = vmatpush1.bf16.msra.mxu0 0
      %759 = vmatprep.subr.bf16.mxu0 0
      %760 = vmatpush1.bf16.msra.mxu0 0
      %761 = vmatprep.subr.bf16.mxu0 0
      %762 = vmatpush1.bf16.msra.mxu0 0
      %763 = vmatprep.subr.bf16.mxu0 0
      %764 = vmatpush1.bf16.msra.mxu0 0
      %765 = vmatprep.subr.bf16.mxu0 0
      %766 = vmatpush1.bf16.msra.mxu0 0
      %767 = vmatprep.subr.bf16.mxu0 0
      %768 = vmatpush1.bf16.msra.mxu0 0
      %769 = vmatprep.subr.bf16.mxu0 0
      %770 = vmatpush1.bf16.msra.mxu0 0
      %771 = vmatprep.subr.bf16.mxu0 0
      %772 = vmatpush1.bf16.msra.mxu0 0
      %773 = vmatprep.subr.bf16.mxu0 0
      %774 = vmatpush1.bf16.msra.mxu0 0
      %775 = vmatprep.subr.bf16.mxu0 0
      %776 = vmatpush1.bf16.msra.mxu0 0
      %777 = vmatprep.subr.bf16.mxu0 0
      %778 = vmatpush1.bf16.msra.mxu0 0
      %779 = vmatprep.subr.bf16.mxu0 0
      %780 = vmatpush1.bf16.msra.mxu0 0
      %781 = vmatprep.mubr.bf16.mxu0 0
      %782 = vmatmul.mubr.bf16.gmra.mrb[0].mxu0 %v747
      %v783 = vpop.f32.mrb[0].mxu0
      %v784 = vadd.f32 %v733, %v783
      %v785 = vpop.f32.mrb[0].mxu0
      %v786 = vpop.f32.mrb[0].mxu0
      %v787 = vadd.f32 %v733, %v786
      %v788 = vpop.f32.mrb[0].mxu0
      %789 = vdwg.mxu0
      %v790 = vxor.u32 %v784, 2147483648
      %v791 = vxor.u32 %v787, 2147483648
      %v792 = vmul.f32 %v790, 1.442695
      %v793 = vpow.pop %v792
      %v794 = vmul.f32 %v791, 1.442695
      %v795 = vpow.pop %v794
      %v796 = vadd.f32 %v793, 1.0
      %v797 = vadd.f32 %v795, 1.0
      %v798 = vrcp.pop %v796
      %v799 = vmul.f32 1.0, %v798
      %v800 = vrcp.pop %v797
      %v801 = vmul.f32 1.0, %v800
      %v802 = vmul.f32 %v784, %v799
      %v803 = vmul.f32 %v787, %v801
      %v804 = vpack.c.bf16 %v803, %v802
      %v805 = vld [vmem:[%s8] sm:$0xf]
      %v806 = vld [vmem:[%s8 + $0x4] sm:$0xf]
      %v807 = vld [vmem:[%s8 + $0x8] sm:$0xf]
      %v808 = vld [vmem:[%s8 + $0xc] sm:$0xf]
      %v809 = vld [vmem:[%s8 + $0x10] sm:$0xf]
      %v810 = vld [vmem:[%s8 + $0x14] sm:$0xf]
      %v811 = vld [vmem:[%s8 + $0x18] sm:$0xf]
      %v812 = vld [vmem:[%s8 + $0x1c] sm:$0xf]
      %v813 = vld [vmem:[%s8 + $0x20] sm:$0xf]
      %v814 = vld [vmem:[%s8 + $0x24] sm:$0xf]
      %v815 = vld [vmem:[%s8 + $0x28] sm:$0xf]
      %v816 = vld [vmem:[%s8 + $0x2c] sm:$0xf]
      %v817 = vld [vmem:[%s8 + $0x30] sm:$0xf]
      %v818 = vld [vmem:[%s8 + $0x34] sm:$0xf]
      %v819 = vld [vmem:[%s8 + $0x38] sm:$0xf]
      %v820 = vld [vmem:[%s8 + $0x3c] sm:$0xf]
      %v821 = vlaneseq
      %v822 = vshrl.u32 %v821, 7
      %v823 = vsub.s32 0, %v822
      %v824 = vrot.slane %v724, %v823
      %v841 = vunpack.c.l.b16 %v805
      %v842 = vunpack.c.l.b16 %v806
      %v843 = vunpack.c.l.b16 %v807
      %v844 = vunpack.c.l.b16 %v808
      %v845 = vunpack.c.l.b16 %v809
      %v846 = vunpack.c.l.b16 %v810
      %v847 = vunpack.c.l.b16 %v811
      %v848 = vunpack.c.l.b16 %v812
      %v849 = vunpack.c.l.b16 %v813
      %v850 = vunpack.c.l.b16 %v814
      %v851 = vunpack.c.l.b16 %v815
      %v852 = vunpack.c.l.b16 %v816
      %v853 = vunpack.c.l.b16 %v817
      %v854 = vunpack.c.l.b16 %v818
      %v855 = vunpack.c.l.b16 %v819
      %v856 = vunpack.c.l.b16 %v820
      %v857 = vpack.c.b16 %v842, %v841
      %v858 = vpack.c.b16 %v844, %v843
      %v859 = vpack.c.b16 %v846, %v845
      %v860 = vpack.c.b16 %v848, %v847
      %v861 = vpack.c.b16 %v850, %v849
      %v862 = vpack.c.b16 %v852, %v851
      %v863 = vpack.c.b16 %v854, %v853
      %v864 = vpack.c.b16 %v856, %v855
      %873 = vmatprep.subr.bf16.mxu0 0
      %874 = vmatpush1.bf16.msra.mxu0 %v857
      %875 = vmatprep.subr.bf16.mxu0 0
      %876 = vmatpush1.bf16.msra.mxu0 %v858
      %877 = vmatprep.subr.bf16.mxu0 0
      %878 = vmatpush1.bf16.msra.mxu0 %v859
      %879 = vmatprep.subr.bf16.mxu0 0
      %880 = vmatpush1.bf16.msra.mxu0 %v860
      %881 = vmatprep.subr.bf16.mxu0 0
      %882 = vmatpush1.bf16.msra.mxu0 %v861
      %883 = vmatprep.subr.bf16.mxu0 0
      %884 = vmatpush1.bf16.msra.mxu0 %v862
      %885 = vmatprep.subr.bf16.mxu0 0
      %886 = vmatpush1.bf16.msra.mxu0 %v863
      %887 = vmatprep.subr.bf16.mxu0 0
      %888 = vmatpush1.bf16.msra.mxu0 %v864
      %889 = vmatprep.subr.bf16.mxu0 0
      %890 = vmatpush1.bf16.msra.mxu0 0
      %891 = vmatprep.subr.bf16.mxu0 0
      %892 = vmatpush1.bf16.msra.mxu0 0
      %893 = vmatprep.subr.bf16.mxu0 0
      %894 = vmatpush1.bf16.msra.mxu0 0
      %895 = vmatprep.subr.bf16.mxu0 0
      %896 = vmatpush1.bf16.msra.mxu0 0
      %897 = vmatprep.subr.bf16.mxu0 0
      %898 = vmatpush1.bf16.msra.mxu0 0
      %899 = vmatprep.subr.bf16.mxu0 0
      %900 = vmatpush1.bf16.msra.mxu0 0
      %901 = vmatprep.subr.bf16.mxu0 0
      %902 = vmatpush1.bf16.msra.mxu0 0
      %903 = vmatprep.subr.bf16.mxu0 0
      %904 = vmatpush1.bf16.msra.mxu0 0
      %905 = vmatprep.mubr.bf16.mxu0 0
      %906 = vmatmul.mubr.bf16.gmra.mrb[0].mxu0 %v804
      %v907 = vpop.f32.mrb[0].mxu0
      %v908 = vadd.f32 %v824, %v907
      %v909 = vpop.f32.mrb[0].mxu0
      %v910 = vpop.f32.mrb[0].mxu0
      %v911 = vadd.f32 %v824, %v910
      %v912 = vpop.f32.mrb[0].mxu0
      %913 = vdwg.mxu0
      %v914 = vmul.f32 %v908, 0.5
      %v915 = vmul.f32 %v911, 0.5
      %v916 = vadd.f32 %v676, %v914
      %v917 = vadd.f32 %v677, %v915
      %v918 = vsel %vm681, %v916, 0.0
      %919 = vadd.xlane.f32.xlu0 %v918
      %v920 = vpop.xlane.xlu0 %919
      %v921 = vsel %vm681, %v917, 0.0
      %922 = vadd.xlane.f32.xlu0 %v921
      %v923 = vpop.xlane.xlu0 %922
      %v924 = vmul.f32 %v920, %v688
      %v925 = vmul.f32 %v923, %v688
      %v926 = vsub.f32 %v916, %v924
      %v927 = vsub.f32 %v917, %v925
      %v928 = vmul.f32 %v926, %v926
      %v929 = vmul.f32 %v927, %v927
      %v930 = vsel %vm681, %v928, 0.0
      %931 = vadd.xlane.f32.xlu0 %v930
      %v932 = vpop.xlane.xlu0 %931
      %v933 = vsel %vm681, %v929, 0.0
      %934 = vadd.xlane.f32.xlu0 %v933
      %v935 = vpop.xlane.xlu0 %934
      %v936 = vmul.f32 %v932, %v688
      %v937 = vmul.f32 %v935, %v688
      %v938 = vadd.f32 %v936, 1e-05
      %v939 = vadd.f32 %v937, 1e-05
      %v940 = vrsqrt.pop %v938
      %v941 = vrsqrt.pop %v939
      %v942 = vmul.f32 %v926, %v940
      %v943 = vmul.f32 %v927, %v941
      %v944 = vld [vmem:[%s4 + $0x3] sm:$0x1]
      %v945 = vlaneseq
      %v946 = vshrl.u32 %v945, 7
      %v947 = vsub.s32 0, %v946
      %v948 = vrot.slane %v944, %v947
      %v949 = vmul.f32 %v942, %v948
      %v950 = vmul.f32 %v943, %v948
      %v951 = vld [vmem:[%s4 + $0x4] sm:$0x1]
      %v952 = vlaneseq
      %v953 = vshrl.u32 %v952, 7
      %v954 = vsub.s32 0, %v953
      %v955 = vrot.slane %v951, %v954
      %v956 = vadd.f32 %v949, %v955
      %v957 = vadd.f32 %v950, %v955
      %v958 = vpack.c.bf16 %v957, %v956
      %v959 = vld [vmem:[%s9] sm:$0xff]
      %v960 = vld [vmem:[%s9 + $0x8] sm:$0xff]
      %v961 = vld [vmem:[%s9 + $0x10] sm:$0xff]
      %v962 = vld [vmem:[%s9 + $0x18] sm:$0xff]
      %v963 = vld [vmem:[%s9 + $0x20] sm:$0xff]
      %v964 = vld [vmem:[%s9 + $0x28] sm:$0xff]
      %v965 = vld [vmem:[%s9 + $0x30] sm:$0xff]
      %v966 = vld [vmem:[%s9 + $0x38] sm:$0xff]
      %v967 = vld [vmem:[%s9 + $0x40] sm:$0xff]
      %v968 = vld [vmem:[%s9 + $0x48] sm:$0xff]
      %v969 = vld [vmem:[%s9 + $0x50] sm:$0xff]
      %v970 = vld [vmem:[%s9 + $0x58] sm:$0xff]
      %v971 = vld [vmem:[%s9 + $0x60] sm:$0xff]
      %v972 = vld [vmem:[%s9 + $0x68] sm:$0xff]
      %v973 = vld [vmem:[%s9 + $0x70] sm:$0xff]
      %v974 = vld [vmem:[%s9 + $0x78] sm:$0xff]
      %v975 = vld [vmem:[%s9 + $0x80] sm:$0xff]
      %v976 = vld [vmem:[%s9 + $0x88] sm:$0xff]
      %v977 = vld [vmem:[%s9 + $0x90] sm:$0xff]
      %v978 = vld [vmem:[%s9 + $0x98] sm:$0xff]
      %v979 = vld [vmem:[%s9 + $0xa0] sm:$0xff]
      %v980 = vld [vmem:[%s9 + $0xa8] sm:$0xff]
      %v981 = vld [vmem:[%s9 + $0xb0] sm:$0xff]
      %v982 = vld [vmem:[%s9 + $0xb8] sm:$0xff]
      %v1007 = vunpack.c.l.b16 %v959
      %v1008 = vunpack.c.h.b16 %v959
      %v1009 = vunpack.c.l.b16 %v960
      %v1010 = vunpack.c.h.b16 %v960
      %v1011 = vunpack.c.l.b16 %v961
      %v1012 = vunpack.c.h.b16 %v961
      %v1013 = vunpack.c.l.b16 %v962
      %v1014 = vunpack.c.h.b16 %v962
      %v1015 = vunpack.c.l.b16 %v963
      %v1016 = vunpack.c.h.b16 %v963
      %v1017 = vunpack.c.l.b16 %v964
      %v1018 = vunpack.c.h.b16 %v964
      %v1019 = vunpack.c.l.b16 %v965
      %v1020 = vunpack.c.h.b16 %v965
      %v1021 = vunpack.c.l.b16 %v966
      %v1022 = vunpack.c.h.b16 %v966
      %v1023 = vunpack.c.l.b16 %v967
      %v1024 = vunpack.c.h.b16 %v967
      %v1025 = vunpack.c.l.b16 %v968
      %v1026 = vunpack.c.h.b16 %v968
      %v1027 = vunpack.c.l.b16 %v969
      %v1028 = vunpack.c.h.b16 %v969
      %v1029 = vunpack.c.l.b16 %v970
      %v1030 = vunpack.c.h.b16 %v970
      %v1031 = vunpack.c.l.b16 %v971
      %v1032 = vunpack.c.h.b16 %v971
      %v1033 = vunpack.c.l.b16 %v972
      %v1034 = vunpack.c.h.b16 %v972
      %v1035 = vunpack.c.l.b16 %v973
      %v1036 = vunpack.c.h.b16 %v973
      %v1037 = vunpack.c.l.b16 %v974
      %v1038 = vunpack.c.h.b16 %v974
      %v1039 = vunpack.c.l.b16 %v975
      %v1040 = vunpack.c.h.b16 %v975
      %v1041 = vunpack.c.l.b16 %v976
      %v1042 = vunpack.c.h.b16 %v976
      %v1043 = vunpack.c.l.b16 %v977
      %v1044 = vunpack.c.h.b16 %v977
      %v1045 = vunpack.c.l.b16 %v978
      %v1046 = vunpack.c.h.b16 %v978
      %v1047 = vunpack.c.l.b16 %v979
      %v1048 = vunpack.c.h.b16 %v979
      %v1049 = vunpack.c.l.b16 %v980
      %v1050 = vunpack.c.h.b16 %v980
      %v1051 = vunpack.c.l.b16 %v981
      %v1052 = vunpack.c.h.b16 %v981
      %v1053 = vunpack.c.l.b16 %v982
      %v1054 = vunpack.c.h.b16 %v982
      %v1055 = vpack.c.b16 %v1019, %v1007
      %v1056 = vpack.c.b16 %v1020, %v1008
      %v1057 = vpack.c.b16 %v1021, %v1009
      %v1058 = vpack.c.b16 %v1022, %v1010
      %v1059 = vpack.c.b16 %v1023, %v1011
      %v1060 = vpack.c.b16 %v1024, %v1012
      %v1061 = vpack.c.b16 %v1025, %v1013
      %v1062 = vpack.c.b16 %v1026, %v1014
      %v1063 = vpack.c.b16 %v1027, %v1015
      %v1064 = vpack.c.b16 %v1028, %v1016
      %v1065 = vpack.c.b16 %v1029, %v1017
      %v1066 = vpack.c.b16 %v1030, %v1018
      %v1067 = vpack.c.b16 %v1043, %v1031
      %v1068 = vpack.c.b16 %v1044, %v1032
      %v1069 = vpack.c.b16 %v1045, %v1033
      %v1070 = vpack.c.b16 %v1046, %v1034
      %v1071 = vpack.c.b16 %v1047, %v1035
      %v1072 = vpack.c.b16 %v1048, %v1036
      %v1073 = vpack.c.b16 %v1049, %v1037
      %v1074 = vpack.c.b16 %v1050, %v1038
      %v1075 = vpack.c.b16 %v1051, %v1039
      %v1076 = vpack.c.b16 %v1052, %v1040
      %v1077 = vpack.c.b16 %v1053, %v1041
      %v1078 = vpack.c.b16 %v1054, %v1042
      %v1104 = vsel %vm681, %v958, 0
      %1106 = vmatprep.subr.bf16.mxu0 %v1056
      %1107 = vmatpush1.bf16.msra.mxu0 %v1055
      %1108 = vmatprep.subr.bf16.mxu0 %v1068
      %1109 = vmatpush1.bf16.msra.mxu0 %v1067
      %1110 = vmatprep.subr.bf16.mxu0 0
      %1111 = vmatpush1.bf16.msra.mxu0 0
      %1112 = vmatprep.subr.bf16.mxu0 0
      %1113 = vmatpush1.bf16.msra.mxu0 0
      %1114 = vmatprep.subr.bf16.mxu0 0
      %1115 = vmatpush1.bf16.msra.mxu0 0
      %1116 = vmatprep.subr.bf16.mxu0 0
      %1117 = vmatpush1.bf16.msra.mxu0 0
      %1118 = vmatprep.subr.bf16.mxu0 0
      %1119 = vmatpush1.bf16.msra.mxu0 0
      %1120 = vmatprep.subr.bf16.mxu0 0
      %1121 = vmatpush1.bf16.msra.mxu0 0
      %1122 = vmatprep.subr.bf16.mxu0 0
      %1123 = vmatpush1.bf16.msra.mxu0 0
      %1124 = vmatprep.subr.bf16.mxu0 0
      %1125 = vmatpush1.bf16.msra.mxu0 0
      %1126 = vmatprep.subr.bf16.mxu0 0
      %1127 = vmatpush1.bf16.msra.mxu0 0
      %1128 = vmatprep.subr.bf16.mxu0 0
      %1129 = vmatpush1.bf16.msra.mxu0 0
      %1130 = vmatprep.subr.bf16.mxu0 0
      %1131 = vmatpush1.bf16.msra.mxu0 0
      %1132 = vmatprep.subr.bf16.mxu0 0
      %1133 = vmatpush1.bf16.msra.mxu0 0
      %1134 = vmatprep.subr.bf16.mxu0 0
      %1135 = vmatpush1.bf16.msra.mxu0 0
      %1136 = vmatprep.subr.bf16.mxu0 0
      %1137 = vmatpush1.bf16.msra.mxu0 0
      %1138 = vmatprep.mubr.bf16.mxu0 0
      %1139 = vmatmul.mubr.bf16.gmra.mrb[0].mxu0 %v1104
      %v1140 = vpop.f32.mrb[0].mxu0
      %v1141 = vadd.f32 0.0, %v1140
      %v1142 = vpop.f32.mrb[0].mxu0
      %v1143 = vadd.f32 0.0, %v1142
      %v1144 = vpop.f32.mrb[0].mxu0
      %v1145 = vadd.f32 0.0, %v1144
      %v1146 = vpop.f32.mrb[0].mxu0
      %v1147 = vadd.f32 0.0, %v1146
      %1148 = vdwg.mxu0
      %1149 = vmatprep.subr.bf16.mxu0 %v1058
      %1150 = vmatpush1.bf16.msra.mxu0 %v1057
      %1151 = vmatprep.subr.bf16.mxu0 %v1070
      %1152 = vmatpush1.bf16.msra.mxu0 %v1069
      %1153 = vmatprep.subr.bf16.mxu0 0
      %1154 = vmatpush1.bf16.msra.mxu0 0
      %1155 = vmatprep.subr.bf16.mxu0 0
      %1156 = vmatpush1.bf16.msra.mxu0 0
      %1157 = vmatprep.subr.bf16.mxu0 0
      %1158 = vmatpush1.bf16.msra.mxu0 0
      %1159 = vmatprep.subr.bf16.mxu0 0
      %1160 = vmatpush1.bf16.msra.mxu0 0
      %1161 = vmatprep.subr.bf16.mxu0 0
      %1162 = vmatpush1.bf16.msra.mxu0 0
      %1163 = vmatprep.subr.bf16.mxu0 0
      %1164 = vmatpush1.bf16.msra.mxu0 0
      %1165 = vmatprep.subr.bf16.mxu0 0
      %1166 = vmatpush1.bf16.msra.mxu0 0
      %1167 = vmatprep.subr.bf16.mxu0 0
      %1168 = vmatpush1.bf16.msra.mxu0 0
      %1169 = vmatprep.subr.bf16.mxu0 0
      %1170 = vmatpush1.bf16.msra.mxu0 0
      %1171 = vmatprep.subr.bf16.mxu0 0
      %1172 = vmatpush1.bf16.msra.mxu0 0
      %1173 = vmatprep.subr.bf16.mxu0 0
      %1174 = vmatpush1.bf16.msra.mxu0 0
      %1175 = vmatprep.subr.bf16.mxu0 0
      %1176 = vmatpush1.bf16.msra.mxu0 0
      %1177 = vmatprep.subr.bf16.mxu0 0
      %1178 = vmatpush1.bf16.msra.mxu0 0
      %1179 = vmatprep.subr.bf16.mxu0 0
      %1180 = vmatpush1.bf16.msra.mxu0 0
      %1181 = vmatprep.mubr.bf16.mxu0 0
      %1182 = vmatmul.mubr.bf16.gmra.mrb[0].mxu0 %v1104
      %v1183 = vpop.f32.mrb[0].mxu0
      %v1184 = vadd.f32 0.0, %v1183
      %v1185 = vpop.f32.mrb[0].mxu0
      %v1186 = vadd.f32 0.0, %v1185
      %v1187 = vpop.f32.mrb[0].mxu0
      %v1188 = vadd.f32 0.0, %v1187
      %v1189 = vpop.f32.mrb[0].mxu0
      %v1190 = vadd.f32 0.0, %v1189
      %1191 = vdwg.mxu0
      %1192 = vmatprep.subr.bf16.mxu0 %v1060
      %1193 = vmatpush1.bf16.msra.mxu0 %v1059
      %1194 = vmatprep.subr.bf16.mxu0 %v1072
      %1195 = vmatpush1.bf16.msra.mxu0 %v1071
      %1196 = vmatprep.subr.bf16.mxu0 0
      %1197 = vmatpush1.bf16.msra.mxu0 0
      %1198 = vmatprep.subr.bf16.mxu0 0
      %1199 = vmatpush1.bf16.msra.mxu0 0
      %1200 = vmatprep.subr.bf16.mxu0 0
      %1201 = vmatpush1.bf16.msra.mxu0 0
      %1202 = vmatprep.subr.bf16.mxu0 0
      %1203 = vmatpush1.bf16.msra.mxu0 0
      %1204 = vmatprep.subr.bf16.mxu0 0
      %1205 = vmatpush1.bf16.msra.mxu0 0
      %1206 = vmatprep.subr.bf16.mxu0 0
      %1207 = vmatpush1.bf16.msra.mxu0 0
      %1208 = vmatprep.subr.bf16.mxu0 0
      %1209 = vmatpush1.bf16.msra.mxu0 0
      %1210 = vmatprep.subr.bf16.mxu0 0
      %1211 = vmatpush1.bf16.msra.mxu0 0
      %1212 = vmatprep.subr.bf16.mxu0 0
      %1213 = vmatpush1.bf16.msra.mxu0 0
      %1214 = vmatprep.subr.bf16.mxu0 0
      %1215 = vmatpush1.bf16.msra.mxu0 0
      %1216 = vmatprep.subr.bf16.mxu0 0
      %1217 = vmatpush1.bf16.msra.mxu0 0
      %1218 = vmatprep.subr.bf16.mxu0 0
      %1219 = vmatpush1.bf16.msra.mxu0 0
      %1220 = vmatprep.subr.bf16.mxu0 0
      %1221 = vmatpush1.bf16.msra.mxu0 0
      %1222 = vmatprep.subr.bf16.mxu0 0
      %1223 = vmatpush1.bf16.msra.mxu0 0
      %1224 = vmatprep.mubr.bf16.mxu0 0
      %1225 = vmatmul.mubr.bf16.gmra.mrb[0].mxu0 %v1104
      %v1226 = vpop.f32.mrb[0].mxu0
      %v1227 = vadd.f32 0.0, %v1226
      %v1228 = vpop.f32.mrb[0].mxu0
      %v1229 = vadd.f32 0.0, %v1228
      %v1230 = vpop.f32.mrb[0].mxu0
      %v1231 = vadd.f32 0.0, %v1230
      %v1232 = vpop.f32.mrb[0].mxu0
      %v1233 = vadd.f32 0.0, %v1232
      %1234 = vdwg.mxu0
      %1235 = vmatprep.subr.bf16.mxu0 %v1062
      %1236 = vmatpush1.bf16.msra.mxu0 %v1061
      %1237 = vmatprep.subr.bf16.mxu0 %v1074
      %1238 = vmatpush1.bf16.msra.mxu0 %v1073
      %1239 = vmatprep.subr.bf16.mxu0 0
      %1240 = vmatpush1.bf16.msra.mxu0 0
      %1241 = vmatprep.subr.bf16.mxu0 0
      %1242 = vmatpush1.bf16.msra.mxu0 0
      %1243 = vmatprep.subr.bf16.mxu0 0
      %1244 = vmatpush1.bf16.msra.mxu0 0
      %1245 = vmatprep.subr.bf16.mxu0 0
      %1246 = vmatpush1.bf16.msra.mxu0 0
      %1247 = vmatprep.subr.bf16.mxu0 0
      %1248 = vmatpush1.bf16.msra.mxu0 0
      %1249 = vmatprep.subr.bf16.mxu0 0
      %1250 = vmatpush1.bf16.msra.mxu0 0
      %1251 = vmatprep.subr.bf16.mxu0 0
      %1252 = vmatpush1.bf16.msra.mxu0 0
      %1253 = vmatprep.subr.bf16.mxu0 0
      %1254 = vmatpush1.bf16.msra.mxu0 0
      %1255 = vmatprep.subr.bf16.mxu0 0
      %1256 = vmatpush1.bf16.msra.mxu0 0
      %1257 = vmatprep.subr.bf16.mxu0 0
      %1258 = vmatpush1.bf16.msra.mxu0 0
      %1259 = vmatprep.subr.bf16.mxu0 0
      %1260 = vmatpush1.bf16.msra.mxu0 0
      %1261 = vmatprep.subr.bf16.mxu0 0
      %1262 = vmatpush1.bf16.msra.mxu0 0
      %1263 = vmatprep.subr.bf16.mxu0 0
      %1264 = vmatpush1.bf16.msra.mxu0 0
      %1265 = vmatprep.subr.bf16.mxu0 0
      %1266 = vmatpush1.bf16.msra.mxu0 0
      %1267 = vmatprep.mubr.bf16.mxu0 0
      %1268 = vmatmul.mubr.bf16.gmra.mrb[0].mxu0 %v1104
      %v1269 = vpop.f32.mrb[0].mxu0
      %v1270 = vadd.f32 0.0, %v1269
      %v1271 = vpop.f32.mrb[0].mxu0
      %v1272 = vadd.f32 0.0, %v1271
      %v1273 = vpop.f32.mrb[0].mxu0
      %v1274 = vadd.f32 0.0, %v1273
      %v1275 = vpop.f32.mrb[0].mxu0
      %v1276 = vadd.f32 0.0, %v1275
      %1277 = vdwg.mxu0
      %1278 = vmatprep.subr.bf16.mxu0 %v1064
      %1279 = vmatpush1.bf16.msra.mxu0 %v1063
      %1280 = vmatprep.subr.bf16.mxu0 %v1076
      %1281 = vmatpush1.bf16.msra.mxu0 %v1075
      %1282 = vmatprep.subr.bf16.mxu0 0
      %1283 = vmatpush1.bf16.msra.mxu0 0
      %1284 = vmatprep.subr.bf16.mxu0 0
      %1285 = vmatpush1.bf16.msra.mxu0 0
      %1286 = vmatprep.subr.bf16.mxu0 0
      %1287 = vmatpush1.bf16.msra.mxu0 0
      %1288 = vmatprep.subr.bf16.mxu0 0
      %1289 = vmatpush1.bf16.msra.mxu0 0
      %1290 = vmatprep.subr.bf16.mxu0 0
      %1291 = vmatpush1.bf16.msra.mxu0 0
      %1292 = vmatprep.subr.bf16.mxu0 0
      %1293 = vmatpush1.bf16.msra.mxu0 0
      %1294 = vmatprep.subr.bf16.mxu0 0
      %1295 = vmatpush1.bf16.msra.mxu0 0
      %1296 = vmatprep.subr.bf16.mxu0 0
      %1297 = vmatpush1.bf16.msra.mxu0 0
      %1298 = vmatprep.subr.bf16.mxu0 0
      %1299 = vmatpush1.bf16.msra.mxu0 0
      %1300 = vmatprep.subr.bf16.mxu0 0
      %1301 = vmatpush1.bf16.msra.mxu0 0
      %1302 = vmatprep.subr.bf16.mxu0 0
      %1303 = vmatpush1.bf16.msra.mxu0 0
      %1304 = vmatprep.subr.bf16.mxu0 0
      %1305 = vmatpush1.bf16.msra.mxu0 0
      %1306 = vmatprep.subr.bf16.mxu0 0
      %1307 = vmatpush1.bf16.msra.mxu0 0
      %1308 = vmatprep.subr.bf16.mxu0 0
      %1309 = vmatpush1.bf16.msra.mxu0 0
      %1310 = vmatprep.mubr.bf16.mxu0 0
      %1311 = vmatmul.mubr.bf16.gmra.mrb[0].mxu0 %v1104
      %v1312 = vpop.f32.mrb[0].mxu0
      %v1313 = vadd.f32 0.0, %v1312
      %v1314 = vpop.f32.mrb[0].mxu0
      %v1315 = vadd.f32 0.0, %v1314
      %v1316 = vpop.f32.mrb[0].mxu0
      %v1317 = vadd.f32 0.0, %v1316
      %v1318 = vpop.f32.mrb[0].mxu0
      %v1319 = vadd.f32 0.0, %v1318
      %1320 = vdwg.mxu0
      %1321 = vmatprep.subr.bf16.mxu0 %v1066
      %1322 = vmatpush1.bf16.msra.mxu0 %v1065
      %1323 = vmatprep.subr.bf16.mxu0 %v1078
      %1324 = vmatpush1.bf16.msra.mxu0 %v1077
      %1325 = vmatprep.subr.bf16.mxu0 0
      %1326 = vmatpush1.bf16.msra.mxu0 0
      %1327 = vmatprep.subr.bf16.mxu0 0
      %1328 = vmatpush1.bf16.msra.mxu0 0
      %1329 = vmatprep.subr.bf16.mxu0 0
      %1330 = vmatpush1.bf16.msra.mxu0 0
      %1331 = vmatprep.subr.bf16.mxu0 0
      %1332 = vmatpush1.bf16.msra.mxu0 0
      %1333 = vmatprep.subr.bf16.mxu0 0
      %1334 = vmatpush1.bf16.msra.mxu0 0
      %1335 = vmatprep.subr.bf16.mxu0 0
      %1336 = vmatpush1.bf16.msra.mxu0 0
      %1337 = vmatprep.subr.bf16.mxu0 0
      %1338 = vmatpush1.bf16.msra.mxu0 0
      %1339 = vmatprep.subr.bf16.mxu0 0
      %1340 = vmatpush1.bf16.msra.mxu0 0
      %1341 = vmatprep.subr.bf16.mxu0 0
      %1342 = vmatpush1.bf16.msra.mxu0 0
      %1343 = vmatprep.subr.bf16.mxu0 0
      %1344 = vmatpush1.bf16.msra.mxu0 0
      %1345 = vmatprep.subr.bf16.mxu0 0
      %1346 = vmatpush1.bf16.msra.mxu0 0
      %1347 = vmatprep.subr.bf16.mxu0 0
      %1348 = vmatpush1.bf16.msra.mxu0 0
      %1349 = vmatprep.subr.bf16.mxu0 0
      %1350 = vmatpush1.bf16.msra.mxu0 0
      %1351 = vmatprep.subr.bf16.mxu0 0
      %1352 = vmatpush1.bf16.msra.mxu0 0
      %1353 = vmatprep.mubr.bf16.mxu0 0
      %1354 = vmatmul.mubr.bf16.gmra.mrb[0].mxu0 %v1104
      %v1355 = vpop.f32.mrb[0].mxu0
      %v1356 = vadd.f32 0.0, %v1355
      %v1357 = vpop.f32.mrb[0].mxu0
      %v1358 = vadd.f32 0.0, %v1357
      %v1359 = vpop.f32.mrb[0].mxu0
      %v1360 = vadd.f32 0.0, %v1359
      %v1361 = vpop.f32.mrb[0].mxu0
      %v1362 = vadd.f32 0.0, %v1361
      %1363 = vdwg.mxu0
      %v1364 = vld [vmem:[%s4 + $0x5] sm:$0x1]
      %v1365 = vpack.c.bf16 %v1145, %v1141
      %v1366 = vpack.c.bf16 %v1231, %v1227
      %v1367 = vpack.c.bf16 %v1317, %v1313
      %v1369 = vlaneseq
      %v1370 = vshrl.u32 %v1369, 7
      %v1371 = vsub.s32 0, %v1370
      %v1372 = vrot.slane %v679, %v1371
      %vm1374 = vcmask 523264
      %v1376 = vsel %vm1374, %v1365, 0
      %v1379 = vsel %vm1374, %v1366, 0
      %1381 = vmatprep.subr.bf16.mxu0 0
      %1382 = vmatpush1.bf16.xpose.msra.mxu0 %v1379
      %1383 = vmatprep.subr.bf16.mxu0 0
      %1384 = vmatpush1.bf16.xpose.msra.mxu0 0
      %1385 = vmatprep.subr.bf16.mxu0 0
      %1386 = vmatpush1.bf16.xpose.msra.mxu0 0
      %1387 = vmatprep.subr.bf16.mxu0 0
      %1388 = vmatpush1.bf16.xpose.msra.mxu0 0
      %1389 = vmatprep.subr.bf16.mxu0 0
      %1390 = vmatpush1.bf16.xpose.msra.mxu0 0
      %1391 = vmatprep.subr.bf16.mxu0 0
      %1392 = vmatpush1.bf16.xpose.msra.mxu0 0
      %1393 = vmatprep.subr.bf16.mxu0 0
      %1394 = vmatpush1.bf16.xpose.msra.mxu0 0
      %1395 = vmatprep.subr.bf16.mxu0 0
      %1396 = vmatpush1.bf16.xpose.msra.mxu0 0
      %1397 = vmatprep.subr.bf16.mxu0 0
      %1398 = vmatpush1.bf16.xpose.msra.mxu0 0
      %1399 = vmatprep.subr.bf16.mxu0 0
      %1400 = vmatpush1.bf16.xpose.msra.mxu0 0
      %1401 = vmatprep.subr.bf16.mxu0 0
      %1402 = vmatpush1.bf16.xpose.msra.mxu0 0
      %1403 = vmatprep.subr.bf16.mxu0 0
      %1404 = vmatpush1.bf16.xpose.msra.mxu0 0
      %1405 = vmatprep.subr.bf16.mxu0 0
      %1406 = vmatpush1.bf16.xpose.msra.mxu0 0
      %1407 = vmatprep.subr.bf16.mxu0 0
      %1408 = vmatpush1.bf16.xpose.msra.mxu0 0
      %1409 = vmatprep.subr.bf16.mxu0 0
      %1410 = vmatpush1.bf16.xpose.msra.mxu0 0
      %1411 = vmatprep.subr.bf16.mxu0 0
      %1412 = vmatpush1.bf16.xpose.msra.mxu0 0
      %1413 = vmatprep.mubr.bf16.mxu0 0
      %1414 = vmatmul.mubr.bf16.gmra.mrb[0].mxu0 %v1376
      %v1415 = vpop.f32.mrb[0].mxu0
      %v1416 = vadd.f32 %v1372, %v1415
      %v1417 = vpop.f32.mrb[0].mxu0
      %v1418 = vpop.f32.mrb[0].mxu0
      %v1419 = vadd.f32 %v1372, %v1418
      %v1420 = vpop.f32.mrb[0].mxu0
      %1421 = vdwg.mxu0
      %vm1422 = vcmask 130048
      %v1423 = vsel %vm1422, %v1416, -inf
      %1424 = vmax.xlane.f32.xlu0 %v1423
      %v1425 = vpop.xlane.xlu0 %1424
      %v1426 = vsel %vm1422, %v1419, -inf
      %1427 = vmax.xlane.f32.xlu0 %v1426
      %v1428 = vpop.xlane.xlu0 %1427
      %v1429 = vsub.f32 %v1416, %v1425
      %v1430 = vsub.f32 %v1419, %v1428
      %v1431 = vmul.f32 %v1429, 1.442695
      %v1432 = vpow.pop %v1431
      %v1433 = vmul.f32 %v1430, 1.442695
      %v1434 = vpow.pop %v1433
      %v1435 = vsel %vm1422, %v1432, 0.0
      %1436 = vadd.xlane.f32.xlu0 %v1435
      %v1437 = vpop.xlane.xlu0 %1436
      %v1438 = vsel %vm1422, %v1434, 0.0
      %1439 = vadd.xlane.f32.xlu0 %v1438
      %v1440 = vpop.xlane.xlu0 %1439
      %v1441 = vrcp.pop %v1437
      %v1442 = vrcp.pop %v1440
      %v1443 = vmul.f32 %v1432, %v1441
      %v1444 = vmul.f32 %v1434, %v1442
      %v1445 = vpack.c.bf16 %v1444, %v1443
      %v1447 = vsel %vm1422, %v1445, 0
      %1449 = vmatprep.subr.bf16.mxu0 0
      %1450 = vmatpush1.bf16.msra.mxu0 %v1367
      %1451 = vmatprep.subr.bf16.mxu0 0
      %1452 = vmatpush1.bf16.msra.mxu0 0
      %1453 = vmatprep.subr.bf16.mxu0 0
      %1454 = vmatpush1.bf16.msra.mxu0 0
      %1455 = vmatprep.subr.bf16.mxu0 0
      %1456 = vmatpush1.bf16.msra.mxu0 0
      %1457 = vmatprep.subr.bf16.mxu0 0
      %1458 = vmatpush1.bf16.msra.mxu0 0
      %1459 = vmatprep.subr.bf16.mxu0 0
      %1460 = vmatpush1.bf16.msra.mxu0 0
      %1461 = vmatprep.subr.bf16.mxu0 0
      %1462 = vmatpush1.bf16.msra.mxu0 0
      %1463 = vmatprep.subr.bf16.mxu0 0
      %1464 = vmatpush1.bf16.msra.mxu0 0
      %1465 = vmatprep.subr.bf16.mxu0 0
      %1466 = vmatpush1.bf16.msra.mxu0 0
      %1467 = vmatprep.subr.bf16.mxu0 0
      %1468 = vmatpush1.bf16.msra.mxu0 0
      %1469 = vmatprep.subr.bf16.mxu0 0
      %1470 = vmatpush1.bf16.msra.mxu0 0
      %1471 = vmatprep.subr.bf16.mxu0 0
      %1472 = vmatpush1.bf16.msra.mxu0 0
      %1473 = vmatprep.subr.bf16.mxu0 0
      %1474 = vmatpush1.bf16.msra.mxu0 0
      %1475 = vmatprep.subr.bf16.mxu0 0
      %1476 = vmatpush1.bf16.msra.mxu0 0
      %1477 = vmatprep.subr.bf16.mxu0 0
      %1478 = vmatpush1.bf16.msra.mxu0 0
      %1479 = vmatprep.subr.bf16.mxu0 0
      %1480 = vmatpush1.bf16.msra.mxu0 0
      %1481 = vmatprep.mubr.bf16.mxu0 0
      %1482 = vmatmul.mubr.bf16.gmra.mrb[0].mxu0 %v1447
      %v1483 = vpop.f32.mrb[0].mxu0
      %v1484 = vadd.f32 0.0, %v1483
      %v1485 = vpop.f32.mrb[0].mxu0
      %v1486 = vpop.f32.mrb[0].mxu0
      %v1487 = vadd.f32 0.0, %v1486
      %v1488 = vpop.f32.mrb[0].mxu0
      %1489 = vdwg.mxu0
      %1491 = vrot.lane.b32.xlu0 %v1365, 64
      %v1492 = vpop.permute.xlu0 %1491
      %1494 = vrot.lane.b32.xlu0 %v1366, 64
      %v1495 = vpop.permute.xlu0 %1494
      %v1497 = vsel %vm1374, %v1492, 0
      %v1500 = vsel %vm1374, %v1495, 0
      %1502 = vmatprep.subr.bf16.mxu0 0
      %1503 = vmatpush1.bf16.xpose.msra.mxu0 %v1500
      %1504 = vmatprep.subr.bf16.mxu0 0
      %1505 = vmatpush1.bf16.xpose.msra.mxu0 0
      %1506 = vmatprep.subr.bf16.mxu0 0
      %1507 = vmatpush1.bf16.xpose.msra.mxu0 0
      %1508 = vmatprep.subr.bf16.mxu0 0
      %1509 = vmatpush1.bf16.xpose.msra.mxu0 0
      %1510 = vmatprep.subr.bf16.mxu0 0
      %1511 = vmatpush1.bf16.xpose.msra.mxu0 0
      %1512 = vmatprep.subr.bf16.mxu0 0
      %1513 = vmatpush1.bf16.xpose.msra.mxu0 0
      %1514 = vmatprep.subr.bf16.mxu0 0
      %1515 = vmatpush1.bf16.xpose.msra.mxu0 0
      %1516 = vmatprep.subr.bf16.mxu0 0
      %1517 = vmatpush1.bf16.xpose.msra.mxu0 0
      %1518 = vmatprep.subr.bf16.mxu0 0
      %1519 = vmatpush1.bf16.xpose.msra.mxu0 0
      %1520 = vmatprep.subr.bf16.mxu0 0
      %1521 = vmatpush1.bf16.xpose.msra.mxu0 0
      %1522 = vmatprep.subr.bf16.mxu0 0
      %1523 = vmatpush1.bf16.xpose.msra.mxu0 0
      %1524 = vmatprep.subr.bf16.mxu0 0
      %1525 = vmatpush1.bf16.xpose.msra.mxu0 0
      %1526 = vmatprep.subr.bf16.mxu0 0
      %1527 = vmatpush1.bf16.xpose.msra.mxu0 0
      %1528 = vmatprep.subr.bf16.mxu0 0
      %1529 = vmatpush1.bf16.xpose.msra.mxu0 0
      %1530 = vmatprep.subr.bf16.mxu0 0
      %1531 = vmatpush1.bf16.xpose.msra.mxu0 0
      %1532 = vmatprep.subr.bf16.mxu0 0
      %1533 = vmatpush1.bf16.xpose.msra.mxu0 0
      %1534 = vmatprep.mubr.bf16.mxu0 0
      %1535 = vmatmul.mubr.bf16.gmra.mrb[0].mxu0 %v1497
      %v1536 = vpop.f32.mrb[0].mxu0
      %v1537 = vadd.f32 %v1372, %v1536
      %v1538 = vpop.f32.mrb[0].mxu0
      %v1539 = vpop.f32.mrb[0].mxu0
      %v1540 = vadd.f32 %v1372, %v1539
      %v1541 = vpop.f32.mrb[0].mxu0
      %1542 = vdwg.mxu0
      %v1543 = vsel %vm1422, %v1537, -inf
      %1544 = vmax.xlane.f32.xlu0 %v1543
      %v1545 = vpop.xlane.xlu0 %1544
      %v1546 = vsel %vm1422, %v1540, -inf
      %1547 = vmax.xlane.f32.xlu0 %v1546
      %v1548 = vpop.xlane.xlu0 %1547
      %v1549 = vsub.f32 %v1537, %v1545
      %v1550 = vsub.f32 %v1540, %v1548
      %v1551 = vmul.f32 %v1549, 1.442695
      %v1552 = vpow.pop %v1551
      %v1553 = vmul.f32 %v1550, 1.442695
      %v1554 = vpow.pop %v1553
      %v1555 = vsel %vm1422, %v1552, 0.0
      %1556 = vadd.xlane.f32.xlu0 %v1555
      %v1557 = vpop.xlane.xlu0 %1556
      %v1558 = vsel %vm1422, %v1554, 0.0
      %1559 = vadd.xlane.f32.xlu0 %v1558
      %v1560 = vpop.xlane.xlu0 %1559
      %v1561 = vrcp.pop %v1557
      %v1562 = vrcp.pop %v1560
      %v1563 = vmul.f32 %v1552, %v1561
      %v1564 = vmul.f32 %v1554, %v1562
      %v1565 = vpack.c.bf16 %v1564, %v1563
      %1567 = vrot.lane.b32.xlu0 %v1367, 64
      %v1568 = vpop.permute.xlu0 %1567
      %v1571 = vsel %vm1422, %v1565, 0
      %1573 = vmatprep.subr.bf16.mxu0 0
      %1574 = vmatpush1.bf16.msra.mxu0 %v1568
      %1575 = vmatprep.subr.bf16.mxu0 0
      %1576 = vmatpush1.bf16.msra.mxu0 0
      %1577 = vmatprep.subr.bf16.mxu0 0
      %1578 = vmatpush1.bf16.msra.mxu0 0
      %1579 = vmatprep.subr.bf16.mxu0 0
      %1580 = vmatpush1.bf16.msra.mxu0 0
      %1581 = vmatprep.subr.bf16.mxu0 0
      %1582 = vmatpush1.bf16.msra.mxu0 0
      %1583 = vmatprep.subr.bf16.mxu0 0
      %1584 = vmatpush1.bf16.msra.mxu0 0
      %1585 = vmatprep.subr.bf16.mxu0 0
      %1586 = vmatpush1.bf16.msra.mxu0 0
      %1587 = vmatprep.subr.bf16.mxu0 0
      %1588 = vmatpush1.bf16.msra.mxu0 0
      %1589 = vmatprep.subr.bf16.mxu0 0
      %1590 = vmatpush1.bf16.msra.mxu0 0
      %1591 = vmatprep.subr.bf16.mxu0 0
      %1592 = vmatpush1.bf16.msra.mxu0 0
      %1593 = vmatprep.subr.bf16.mxu0 0
      %1594 = vmatpush1.bf16.msra.mxu0 0
      %1595 = vmatprep.subr.bf16.mxu0 0
      %1596 = vmatpush1.bf16.msra.mxu0 0
      %1597 = vmatprep.subr.bf16.mxu0 0
      %1598 = vmatpush1.bf16.msra.mxu0 0
      %1599 = vmatprep.subr.bf16.mxu0 0
      %1600 = vmatpush1.bf16.msra.mxu0 0
      %1601 = vmatprep.subr.bf16.mxu0 0
      %1602 = vmatpush1.bf16.msra.mxu0 0
      %1603 = vmatprep.subr.bf16.mxu0 0
      %1604 = vmatpush1.bf16.msra.mxu0 0
      %1605 = vmatprep.mubr.bf16.mxu0 0
      %1606 = vmatmul.mubr.bf16.gmra.mrb[0].mxu0 %v1571
      %v1607 = vpop.f32.mrb[0].mxu0
      %v1608 = vadd.f32 0.0, %v1607
      %v1609 = vpop.f32.mrb[0].mxu0
      %v1610 = vpop.f32.mrb[0].mxu0
      %v1611 = vadd.f32 0.0, %v1610
      %v1612 = vpop.f32.mrb[0].mxu0
      %1613 = vdwg.mxu0
      %1616 = vrot.lane.b32.xlu0 %v1608, 64
      %v1617 = vpop.permute.xlu0 %1616
      %1618 = vrot.lane.b32.xlu0 %v1611, 64
      %v1619 = vpop.permute.xlu0 %1618
      %v1622 = vsel %vm1374, %v1484, %v1617
      %v1623 = vsel %vm1374, %v1487, %v1619
      %v1624 = vpack.c.bf16 %v1623, %v1622
      %1625 = vst [vmem:[#allocation2] sm:$0xff] %v1624
      %v1626 = vpack.c.bf16 %v1147, %v1143
      %v1627 = vpack.c.bf16 %v1233, %v1229
      %v1628 = vpack.c.bf16 %v1319, %v1315
      %v1630 = vsel %vm1374, %v1626, 0
      %v1633 = vsel %vm1374, %v1627, 0
      %1635 = vmatprep.subr.bf16.mxu0 0
      %1636 = vmatpush1.bf16.xpose.msra.mxu0 %v1633
      %1637 = vmatprep.subr.bf16.mxu0 0
      %1638 = vmatpush1.bf16.xpose.msra.mxu0 0
      %1639 = vmatprep.subr.bf16.mxu0 0
      %1640 = vmatpush1.bf16.xpose.msra.mxu0 0
      %1641 = vmatprep.subr.bf16.mxu0 0
      %1642 = vmatpush1.bf16.xpose.msra.mxu0 0
      %1643 = vmatprep.subr.bf16.mxu0 0
      %1644 = vmatpush1.bf16.xpose.msra.mxu0 0
      %1645 = vmatprep.subr.bf16.mxu0 0
      %1646 = vmatpush1.bf16.xpose.msra.mxu0 0
      %1647 = vmatprep.subr.bf16.mxu0 0
      %1648 = vmatpush1.bf16.xpose.msra.mxu0 0
      %1649 = vmatprep.subr.bf16.mxu0 0
      %1650 = vmatpush1.bf16.xpose.msra.mxu0 0
      %1651 = vmatprep.subr.bf16.mxu0 0
      %1652 = vmatpush1.bf16.xpose.msra.mxu0 0
      %1653 = vmatprep.subr.bf16.mxu0 0
      %1654 = vmatpush1.bf16.xpose.msra.mxu0 0
      %1655 = vmatprep.subr.bf16.mxu0 0
      %1656 = vmatpush1.bf16.xpose.msra.mxu0 0
      %1657 = vmatprep.subr.bf16.mxu0 0
      %1658 = vmatpush1.bf16.xpose.msra.mxu0 0
      %1659 = vmatprep.subr.bf16.mxu0 0
      %1660 = vmatpush1.bf16.xpose.msra.mxu0 0
      %1661 = vmatprep.subr.bf16.mxu0 0
      %1662 = vmatpush1.bf16.xpose.msra.mxu0 0
      %1663 = vmatprep.subr.bf16.mxu0 0
      %1664 = vmatpush1.bf16.xpose.msra.mxu0 0
      %1665 = vmatprep.subr.bf16.mxu0 0
      %1666 = vmatpush1.bf16.xpose.msra.mxu0 0
      %1667 = vmatprep.mubr.bf16.mxu0 0
      %1668 = vmatmul.mubr.bf16.gmra.mrb[0].mxu0 %v1630
      %v1669 = vpop.f32.mrb[0].mxu0
      %v1670 = vadd.f32 %v1372, %v1669
      %v1671 = vpop.f32.mrb[0].mxu0
      %v1672 = vpop.f32.mrb[0].mxu0
      %v1673 = vadd.f32 %v1372, %v1672
      %v1674 = vpop.f32.mrb[0].mxu0
      %1675 = vdwg.mxu0
      %v1676 = vsel %vm1422, %v1670, -inf
      %1677 = vmax.xlane.f32.xlu0 %v1676
      %v1678 = vpop.xlane.xlu0 %1677
      %v1679 = vsel %vm1422, %v1673, -inf
      %1680 = vmax.xlane.f32.xlu0 %v1679
      %v1681 = vpop.xlane.xlu0 %1680
      %v1682 = vsub.f32 %v1670, %v1678
      %v1683 = vsub.f32 %v1673, %v1681
      %v1684 = vmul.f32 %v1682, 1.442695
      %v1685 = vpow.pop %v1684
      %v1686 = vmul.f32 %v1683, 1.442695
      %v1687 = vpow.pop %v1686
      %v1688 = vsel %vm1422, %v1685, 0.0
      %1689 = vadd.xlane.f32.xlu0 %v1688
      %v1690 = vpop.xlane.xlu0 %1689
      %v1691 = vsel %vm1422, %v1687, 0.0
      %1692 = vadd.xlane.f32.xlu0 %v1691
      %v1693 = vpop.xlane.xlu0 %1692
      %v1694 = vrcp.pop %v1690
      %v1695 = vrcp.pop %v1693
      %v1696 = vmul.f32 %v1685, %v1694
      %v1697 = vmul.f32 %v1687, %v1695
      %v1698 = vpack.c.bf16 %v1697, %v1696
      %v1700 = vsel %vm1422, %v1698, 0
      %1702 = vmatprep.subr.bf16.mxu0 0
      %1703 = vmatpush1.bf16.msra.mxu0 %v1628
      %1704 = vmatprep.subr.bf16.mxu0 0
      %1705 = vmatpush1.bf16.msra.mxu0 0
      %1706 = vmatprep.subr.bf16.mxu0 0
      %1707 = vmatpush1.bf16.msra.mxu0 0
      %1708 = vmatprep.subr.bf16.mxu0 0
      %1709 = vmatpush1.bf16.msra.mxu0 0
      %1710 = vmatprep.subr.bf16.mxu0 0
      %1711 = vmatpush1.bf16.msra.mxu0 0
      %1712 = vmatprep.subr.bf16.mxu0 0
      %1713 = vmatpush1.bf16.msra.mxu0 0
      %1714 = vmatprep.subr.bf16.mxu0 0
      %1715 = vmatpush1.bf16.msra.mxu0 0
      %1716 = vmatprep.subr.bf16.mxu0 0
      %1717 = vmatpush1.bf16.msra.mxu0 0
      %1718 = vmatprep.subr.bf16.mxu0 0
      %1719 = vmatpush1.bf16.msra.mxu0 0
      %1720 = vmatprep.subr.bf16.mxu0 0
      %1721 = vmatpush1.bf16.msra.mxu0 0
      %1722 = vmatprep.subr.bf16.mxu0 0
      %1723 = vmatpush1.bf16.msra.mxu0 0
      %1724 = vmatprep.subr.bf16.mxu0 0
      %1725 = vmatpush1.bf16.msra.mxu0 0
      %1726 = vmatprep.subr.bf16.mxu0 0
      %1727 = vmatpush1.bf16.msra.mxu0 0
      %1728 = vmatprep.subr.bf16.mxu0 0
      %1729 = vmatpush1.bf16.msra.mxu0 0
      %1730 = vmatprep.subr.bf16.mxu0 0
      %1731 = vmatpush1.bf16.msra.mxu0 0
      %1732 = vmatprep.subr.bf16.mxu0 0
      %1733 = vmatpush1.bf16.msra.mxu0 0
      %1734 = vmatprep.mubr.bf16.mxu0 0
      %1735 = vmatmul.mubr.bf16.gmra.mrb[0].mxu0 %v1700
      %v1736 = vpop.f32.mrb[0].mxu0
      %v1737 = vadd.f32 0.0, %v1736
      %v1738 = vpop.f32.mrb[0].mxu0
      %v1739 = vpop.f32.mrb[0].mxu0
      %v1740 = vadd.f32 0.0, %v1739
      %v1741 = vpop.f32.mrb[0].mxu0
      %1742 = vdwg.mxu0
      %1744 = vrot.lane.b32.xlu0 %v1626, 64
      %v1745 = vpop.permute.xlu0 %1744
      %1747 = vrot.lane.b32.xlu0 %v1627, 64
      %v1748 = vpop.permute.xlu0 %1747
      %v1750 = vsel %vm1374, %v1745, 0
      %v1753 = vsel %vm1374, %v1748, 0
      %1755 = vmatprep.subr.bf16.mxu0 0
      %1756 = vmatpush1.bf16.xpose.msra.mxu0 %v1753
      %1757 = vmatprep.subr.bf16.mxu0 0
      %1758 = vmatpush1.bf16.xpose.msra.mxu0 0
      %1759 = vmatprep.subr.bf16.mxu0 0
      %1760 = vmatpush1.bf16.xpose.msra.mxu0 0
      %1761 = vmatprep.subr.bf16.mxu0 0
      %1762 = vmatpush1.bf16.xpose.msra.mxu0 0
      %1763 = vmatprep.subr.bf16.mxu0 0
      %1764 = vmatpush1.bf16.xpose.msra.mxu0 0
      %1765 = vmatprep.subr.bf16.mxu0 0
      %1766 = vmatpush1.bf16.xpose.msra.mxu0 0
      %1767 = vmatprep.subr.bf16.mxu0 0
      %1768 = vmatpush1.bf16.xpose.msra.mxu0 0
      %1769 = vmatprep.subr.bf16.mxu0 0
      %1770 = vmatpush1.bf16.xpose.msra.mxu0 0
      %1771 = vmatprep.subr.bf16.mxu0 0
      %1772 = vmatpush1.bf16.xpose.msra.mxu0 0
      %1773 = vmatprep.subr.bf16.mxu0 0
      %1774 = vmatpush1.bf16.xpose.msra.mxu0 0
      %1775 = vmatprep.subr.bf16.mxu0 0
      %1776 = vmatpush1.bf16.xpose.msra.mxu0 0
      %1777 = vmatprep.subr.bf16.mxu0 0
      %1778 = vmatpush1.bf16.xpose.msra.mxu0 0
      %1779 = vmatprep.subr.bf16.mxu0 0
      %1780 = vmatpush1.bf16.xpose.msra.mxu0 0
      %1781 = vmatprep.subr.bf16.mxu0 0
      %1782 = vmatpush1.bf16.xpose.msra.mxu0 0
      %1783 = vmatprep.subr.bf16.mxu0 0
      %1784 = vmatpush1.bf16.xpose.msra.mxu0 0
      %1785 = vmatprep.subr.bf16.mxu0 0
      %1786 = vmatpush1.bf16.xpose.msra.mxu0 0
      %1787 = vmatprep.mubr.bf16.mxu0 0
      %1788 = vmatmul.mubr.bf16.gmra.mrb[0].mxu0 %v1750
      %v1789 = vpop.f32.mrb[0].mxu0
      %v1790 = vadd.f32 %v1372, %v1789
      %v1791 = vpop.f32.mrb[0].mxu0
      %v1792 = vpop.f32.mrb[0].mxu0
      %v1793 = vadd.f32 %v1372, %v1792
      %v1794 = vpop.f32.mrb[0].mxu0
      %1795 = vdwg.mxu0
      %v1796 = vsel %vm1422, %v1790, -inf
      %1797 = vmax.xlane.f32.xlu0 %v1796
      %v1798 = vpop.xlane.xlu0 %1797
      %v1799 = vsel %vm1422, %v1793, -inf
      %1800 = vmax.xlane.f32.xlu0 %v1799
      %v1801 = vpop.xlane.xlu0 %1800
      %v1802 = vsub.f32 %v1790, %v1798
      %v1803 = vsub.f32 %v1793, %v1801
      %v1804 = vmul.f32 %v1802, 1.442695
      %v1805 = vpow.pop %v1804
      %v1806 = vmul.f32 %v1803, 1.442695
      %v1807 = vpow.pop %v1806
      %v1808 = vsel %vm1422, %v1805, 0.0
      %1809 = vadd.xlane.f32.xlu0 %v1808
      %v1810 = vpop.xlane.xlu0 %1809
      %v1811 = vsel %vm1422, %v1807, 0.0
      %1812 = vadd.xlane.f32.xlu0 %v1811
      %v1813 = vpop.xlane.xlu0 %1812
      %v1814 = vrcp.pop %v1810
      %v1815 = vrcp.pop %v1813
      %v1816 = vmul.f32 %v1805, %v1814
      %v1817 = vmul.f32 %v1807, %v1815
      %v1818 = vpack.c.bf16 %v1817, %v1816
      %1820 = vrot.lane.b32.xlu0 %v1628, 64
      %v1821 = vpop.permute.xlu0 %1820
      %v1824 = vsel %vm1422, %v1818, 0
      %1826 = vmatprep.subr.bf16.mxu0 0
      %1827 = vmatpush1.bf16.msra.mxu0 %v1821
      %1828 = vmatprep.subr.bf16.mxu0 0
      %1829 = vmatpush1.bf16.msra.mxu0 0
      %1830 = vmatprep.subr.bf16.mxu0 0
      %1831 = vmatpush1.bf16.msra.mxu0 0
      %1832 = vmatprep.subr.bf16.mxu0 0
      %1833 = vmatpush1.bf16.msra.mxu0 0
      %1834 = vmatprep.subr.bf16.mxu0 0
      %1835 = vmatpush1.bf16.msra.mxu0 0
      %1836 = vmatprep.subr.bf16.mxu0 0
      %1837 = vmatpush1.bf16.msra.mxu0 0
      %1838 = vmatprep.subr.bf16.mxu0 0
      %1839 = vmatpush1.bf16.msra.mxu0 0
      %1840 = vmatprep.subr.bf16.mxu0 0
      %1841 = vmatpush1.bf16.msra.mxu0 0
      %1842 = vmatprep.subr.bf16.mxu0 0
      %1843 = vmatpush1.bf16.msra.mxu0 0
      %1844 = vmatprep.subr.bf16.mxu0 0
      %1845 = vmatpush1.bf16.msra.mxu0 0
      %1846 = vmatprep.subr.bf16.mxu0 0
      %1847 = vmatpush1.bf16.msra.mxu0 0
      %1848 = vmatprep.subr.bf16.mxu0 0
      %1849 = vmatpush1.bf16.msra.mxu0 0
      %1850 = vmatprep.subr.bf16.mxu0 0
      %1851 = vmatpush1.bf16.msra.mxu0 0
      %1852 = vmatprep.subr.bf16.mxu0 0
      %1853 = vmatpush1.bf16.msra.mxu0 0
      %1854 = vmatprep.subr.bf16.mxu0 0
      %1855 = vmatpush1.bf16.msra.mxu0 0
      %1856 = vmatprep.subr.bf16.mxu0 0
      %1857 = vmatpush1.bf16.msra.mxu0 0
      %1858 = vmatprep.mubr.bf16.mxu0 0
      %1859 = vmatmul.mubr.bf16.gmra.mrb[0].mxu0 %v1824
      %v1860 = vpop.f32.mrb[0].mxu0
      %v1861 = vadd.f32 0.0, %v1860
      %v1862 = vpop.f32.mrb[0].mxu0
      %v1863 = vpop.f32.mrb[0].mxu0
      %v1864 = vadd.f32 0.0, %v1863
      %v1865 = vpop.f32.mrb[0].mxu0
      %1866 = vdwg.mxu0
      %1869 = vrot.lane.b32.xlu0 %v1861, 64
      %v1870 = vpop.permute.xlu0 %1869
      %1871 = vrot.lane.b32.xlu0 %v1864, 64
      %v1872 = vpop.permute.xlu0 %1871
      %v1875 = vsel %vm1374, %v1737, %v1870
      %v1876 = vsel %vm1374, %v1740, %v1872
      %v1877 = vpack.c.bf16 %v1876, %v1875
      %1878 = vst [vmem:[#allocation2 + $0x8] sm:$0xff] %v1877
      %v1879 = vpack.c.bf16 %v1188, %v1184
      %v1880 = vpack.c.bf16 %v1274, %v1270
      %v1881 = vpack.c.bf16 %v1360, %v1356
      %v1883 = vsel %vm1374, %v1879, 0
      %v1886 = vsel %vm1374, %v1880, 0
      %1888 = vmatprep.subr.bf16.mxu0 0
      %1889 = vmatpush1.bf16.xpose.msra.mxu0 %v1886
      %1890 = vmatprep.subr.bf16.mxu0 0
      %1891 = vmatpush1.bf16.xpose.msra.mxu0 0
      %1892 = vmatprep.subr.bf16.mxu0 0
      %1893 = vmatpush1.bf16.xpose.msra.mxu0 0
      %1894 = vmatprep.subr.bf16.mxu0 0
      %1895 = vmatpush1.bf16.xpose.msra.mxu0 0
      %1896 = vmatprep.subr.bf16.mxu0 0
      %1897 = vmatpush1.bf16.xpose.msra.mxu0 0
      %1898 = vmatprep.subr.bf16.mxu0 0
      %1899 = vmatpush1.bf16.xpose.msra.mxu0 0
      %1900 = vmatprep.subr.bf16.mxu0 0
      %1901 = vmatpush1.bf16.xpose.msra.mxu0 0
      %1902 = vmatprep.subr.bf16.mxu0 0
      %1903 = vmatpush1.bf16.xpose.msra.mxu0 0
      %1904 = vmatprep.subr.bf16.mxu0 0
      %1905 = vmatpush1.bf16.xpose.msra.mxu0 0
      %1906 = vmatprep.subr.bf16.mxu0 0
      %1907 = vmatpush1.bf16.xpose.msra.mxu0 0
      %1908 = vmatprep.subr.bf16.mxu0 0
      %1909 = vmatpush1.bf16.xpose.msra.mxu0 0
      %1910 = vmatprep.subr.bf16.mxu0 0
      %1911 = vmatpush1.bf16.xpose.msra.mxu0 0
      %1912 = vmatprep.subr.bf16.mxu0 0
      %1913 = vmatpush1.bf16.xpose.msra.mxu0 0
      %1914 = vmatprep.subr.bf16.mxu0 0
      %1915 = vmatpush1.bf16.xpose.msra.mxu0 0
      %1916 = vmatprep.subr.bf16.mxu0 0
      %1917 = vmatpush1.bf16.xpose.msra.mxu0 0
      %1918 = vmatprep.subr.bf16.mxu0 0
      %1919 = vmatpush1.bf16.xpose.msra.mxu0 0
      %1920 = vmatprep.mubr.bf16.mxu0 0
      %1921 = vmatmul.mubr.bf16.gmra.mrb[0].mxu0 %v1883
      %v1922 = vpop.f32.mrb[0].mxu0
      %v1923 = vadd.f32 %v1372, %v1922
      %v1924 = vpop.f32.mrb[0].mxu0
      %v1925 = vpop.f32.mrb[0].mxu0
      %v1926 = vadd.f32 %v1372, %v1925
      %v1927 = vpop.f32.mrb[0].mxu0
      %1928 = vdwg.mxu0
      %v1929 = vsel %vm1422, %v1923, -inf
      %1930 = vmax.xlane.f32.xlu0 %v1929
      %v1931 = vpop.xlane.xlu0 %1930
      %v1932 = vsel %vm1422, %v1926, -inf
      %1933 = vmax.xlane.f32.xlu0 %v1932
      %v1934 = vpop.xlane.xlu0 %1933
      %v1935 = vsub.f32 %v1923, %v1931
      %v1936 = vsub.f32 %v1926, %v1934
      %v1937 = vmul.f32 %v1935, 1.442695
      %v1938 = vpow.pop %v1937
      %v1939 = vmul.f32 %v1936, 1.442695
      %v1940 = vpow.pop %v1939
      %v1941 = vsel %vm1422, %v1938, 0.0
      %1942 = vadd.xlane.f32.xlu0 %v1941
      %v1943 = vpop.xlane.xlu0 %1942
      %v1944 = vsel %vm1422, %v1940, 0.0
      %1945 = vadd.xlane.f32.xlu0 %v1944
      %v1946 = vpop.xlane.xlu0 %1945
      %v1947 = vrcp.pop %v1943
      %v1948 = vrcp.pop %v1946
      %v1949 = vmul.f32 %v1938, %v1947
      %v1950 = vmul.f32 %v1940, %v1948
      %v1951 = vpack.c.bf16 %v1950, %v1949
      %v1953 = vsel %vm1422, %v1951, 0
      %1955 = vmatprep.subr.bf16.mxu0 0
      %1956 = vmatpush1.bf16.msra.mxu0 %v1881
      %1957 = vmatprep.subr.bf16.mxu0 0
      %1958 = vmatpush1.bf16.msra.mxu0 0
      %1959 = vmatprep.subr.bf16.mxu0 0
      %1960 = vmatpush1.bf16.msra.mxu0 0
      %1961 = vmatprep.subr.bf16.mxu0 0
      %1962 = vmatpush1.bf16.msra.mxu0 0
      %1963 = vmatprep.subr.bf16.mxu0 0
      %1964 = vmatpush1.bf16.msra.mxu0 0
      %1965 = vmatprep.subr.bf16.mxu0 0
      %1966 = vmatpush1.bf16.msra.mxu0 0
      %1967 = vmatprep.subr.bf16.mxu0 0
      %1968 = vmatpush1.bf16.msra.mxu0 0
      %1969 = vmatprep.subr.bf16.mxu0 0
      %1970 = vmatpush1.bf16.msra.mxu0 0
      %1971 = vmatprep.subr.bf16.mxu0 0
      %1972 = vmatpush1.bf16.msra.mxu0 0
      %1973 = vmatprep.subr.bf16.mxu0 0
      %1974 = vmatpush1.bf16.msra.mxu0 0
      %1975 = vmatprep.subr.bf16.mxu0 0
      %1976 = vmatpush1.bf16.msra.mxu0 0
      %1977 = vmatprep.subr.bf16.mxu0 0
      %1978 = vmatpush1.bf16.msra.mxu0 0
      %1979 = vmatprep.subr.bf16.mxu0 0
      %1980 = vmatpush1.bf16.msra.mxu0 0
      %1981 = vmatprep.subr.bf16.mxu0 0
      %1982 = vmatpush1.bf16.msra.mxu0 0
      %1983 = vmatprep.subr.bf16.mxu0 0
      %1984 = vmatpush1.bf16.msra.mxu0 0
      %1985 = vmatprep.subr.bf16.mxu0 0
      %1986 = vmatpush1.bf16.msra.mxu0 0
      %1987 = vmatprep.mubr.bf16.mxu0 0
      %1988 = vmatmul.mubr.bf16.gmra.mrb[0].mxu0 %v1953
      %v1989 = vpop.f32.mrb[0].mxu0
      %v1990 = vadd.f32 0.0, %v1989
      %v1991 = vpop.f32.mrb[0].mxu0
      %v1992 = vpop.f32.mrb[0].mxu0
      %v1993 = vadd.f32 0.0, %v1992
      %v1994 = vpop.f32.mrb[0].mxu0
      %1995 = vdwg.mxu0
      %1997 = vrot.lane.b32.xlu0 %v1879, 64
      %v1998 = vpop.permute.xlu0 %1997
      %2000 = vrot.lane.b32.xlu0 %v1880, 64
      %v2001 = vpop.permute.xlu0 %2000
      %v2003 = vsel %vm1374, %v1998, 0
      %v2006 = vsel %vm1374, %v2001, 0
      %2008 = vmatprep.subr.bf16.mxu0 0
      %2009 = vmatpush1.bf16.xpose.msra.mxu0 %v2006
      %2010 = vmatprep.subr.bf16.mxu0 0
      %2011 = vmatpush1.bf16.xpose.msra.mxu0 0
      %2012 = vmatprep.subr.bf16.mxu0 0
      %2013 = vmatpush1.bf16.xpose.msra.mxu0 0
      %2014 = vmatprep.subr.bf16.mxu0 0
      %2015 = vmatpush1.bf16.xpose.msra.mxu0 0
      %2016 = vmatprep.subr.bf16.mxu0 0
      %2017 = vmatpush1.bf16.xpose.msra.mxu0 0
      %2018 = vmatprep.subr.bf16.mxu0 0
      %2019 = vmatpush1.bf16.xpose.msra.mxu0 0
      %2020 = vmatprep.subr.bf16.mxu0 0
      %2021 = vmatpush1.bf16.xpose.msra.mxu0 0
      %2022 = vmatprep.subr.bf16.mxu0 0
      %2023 = vmatpush1.bf16.xpose.msra.mxu0 0
      %2024 = vmatprep.subr.bf16.mxu0 0
      %2025 = vmatpush1.bf16.xpose.msra.mxu0 0
      %2026 = vmatprep.subr.bf16.mxu0 0
      %2027 = vmatpush1.bf16.xpose.msra.mxu0 0
      %2028 = vmatprep.subr.bf16.mxu0 0
      %2029 = vmatpush1.bf16.xpose.msra.mxu0 0
      %2030 = vmatprep.subr.bf16.mxu0 0
      %2031 = vmatpush1.bf16.xpose.msra.mxu0 0
      %2032 = vmatprep.subr.bf16.mxu0 0
      %2033 = vmatpush1.bf16.xpose.msra.mxu0 0
      %2034 = vmatprep.subr.bf16.mxu0 0
      %2035 = vmatpush1.bf16.xpose.msra.mxu0 0
      %2036 = vmatprep.subr.bf16.mxu0 0
      %2037 = vmatpush1.bf16.xpose.msra.mxu0 0
      %2038 = vmatprep.subr.bf16.mxu0 0
      %2039 = vmatpush1.bf16.xpose.msra.mxu0 0
      %2040 = vmatprep.mubr.bf16.mxu0 0
      %2041 = vmatmul.mubr.bf16.gmra.mrb[0].mxu0 %v2003
      %v2042 = vpop.f32.mrb[0].mxu0
      %v2043 = vadd.f32 %v1372, %v2042
      %v2044 = vpop.f32.mrb[0].mxu0
      %v2045 = vpop.f32.mrb[0].mxu0
      %v2046 = vadd.f32 %v1372, %v2045
      %v2047 = vpop.f32.mrb[0].mxu0
      %2048 = vdwg.mxu0
      %v2049 = vsel %vm1422, %v2043, -inf
      %2050 = vmax.xlane.f32.xlu0 %v2049
      %v2051 = vpop.xlane.xlu0 %2050
      %v2052 = vsel %vm1422, %v2046, -inf
      %2053 = vmax.xlane.f32.xlu0 %v2052
      %v2054 = vpop.xlane.xlu0 %2053
      %v2055 = vsub.f32 %v2043, %v2051
      %v2056 = vsub.f32 %v2046, %v2054
      %v2057 = vmul.f32 %v2055, 1.442695
      %v2058 = vpow.pop %v2057
      %v2059 = vmul.f32 %v2056, 1.442695
      %v2060 = vpow.pop %v2059
      %v2061 = vsel %vm1422, %v2058, 0.0
      %2062 = vadd.xlane.f32.xlu0 %v2061
      %v2063 = vpop.xlane.xlu0 %2062
      %v2064 = vsel %vm1422, %v2060, 0.0
      %2065 = vadd.xlane.f32.xlu0 %v2064
      %v2066 = vpop.xlane.xlu0 %2065
      %v2067 = vrcp.pop %v2063
      %v2068 = vrcp.pop %v2066
      %v2069 = vmul.f32 %v2058, %v2067
      %v2070 = vmul.f32 %v2060, %v2068
      %v2071 = vpack.c.bf16 %v2070, %v2069
      %2073 = vrot.lane.b32.xlu0 %v1881, 64
      %v2074 = vpop.permute.xlu0 %2073
      %v2077 = vsel %vm1422, %v2071, 0
      %2079 = vmatprep.subr.bf16.mxu0 0
      %2080 = vmatpush1.bf16.msra.mxu0 %v2074
      %2081 = vmatprep.subr.bf16.mxu0 0
      %2082 = vmatpush1.bf16.msra.mxu0 0
      %2083 = vmatprep.subr.bf16.mxu0 0
      %2084 = vmatpush1.bf16.msra.mxu0 0
      %2085 = vmatprep.subr.bf16.mxu0 0
      %2086 = vmatpush1.bf16.msra.mxu0 0
      %2087 = vmatprep.subr.bf16.mxu0 0
      %2088 = vmatpush1.bf16.msra.mxu0 0
      %2089 = vmatprep.subr.bf16.mxu0 0
      %2090 = vmatpush1.bf16.msra.mxu0 0
      %2091 = vmatprep.subr.bf16.mxu0 0
      %2092 = vmatpush1.bf16.msra.mxu0 0
      %2093 = vmatprep.subr.bf16.mxu0 0
      %2094 = vmatpush1.bf16.msra.mxu0 0
      %2095 = vmatprep.subr.bf16.mxu0 0
      %2096 = vmatpush1.bf16.msra.mxu0 0
      %2097 = vmatprep.subr.bf16.mxu0 0
      %2098 = vmatpush1.bf16.msra.mxu0 0
      %2099 = vmatprep.subr.bf16.mxu0 0
      %2100 = vmatpush1.bf16.msra.mxu0 0
      %2101 = vmatprep.subr.bf16.mxu0 0
      %2102 = vmatpush1.bf16.msra.mxu0 0
      %2103 = vmatprep.subr.bf16.mxu0 0
      %2104 = vmatpush1.bf16.msra.mxu0 0
      %2105 = vmatprep.subr.bf16.mxu0 0
      %2106 = vmatpush1.bf16.msra.mxu0 0
      %2107 = vmatprep.subr.bf16.mxu0 0
      %2108 = vmatpush1.bf16.msra.mxu0 0
      %2109 = vmatprep.subr.bf16.mxu0 0
      %2110 = vmatpush1.bf16.msra.mxu0 0
      %2111 = vmatprep.mubr.bf16.mxu0 0
      %2112 = vmatmul.mubr.bf16.gmra.mrb[0].mxu0 %v2077
      %v2113 = vpop.f32.mrb[0].mxu0
      %v2114 = vadd.f32 0.0, %v2113
      %v2115 = vpop.f32.mrb[0].mxu0
      %v2116 = vpop.f32.mrb[0].mxu0
      %v2117 = vadd.f32 0.0, %v2116
      %v2118 = vpop.f32.mrb[0].mxu0
      %2119 = vdwg.mxu0
      %2122 = vrot.lane.b32.xlu0 %v2114, 64
      %v2123 = vpop.permute.xlu0 %2122
      %2124 = vrot.lane.b32.xlu0 %v2117, 64
      %v2125 = vpop.permute.xlu0 %2124
      %v2128 = vsel %vm1374, %v1990, %v2123
      %v2129 = vsel %vm1374, %v1993, %v2125
      %v2130 = vpack.c.bf16 %v2129, %v2128
      %2131 = vst [vmem:[#allocation2 + $0x10] sm:$0xff] %v2130
      %v2132 = vpack.c.bf16 %v1190, %v1186
      %v2133 = vpack.c.bf16 %v1276, %v1272
      %v2134 = vpack.c.bf16 %v1362, %v1358
      %v2136 = vsel %vm1374, %v2132, 0
      %v2139 = vsel %vm1374, %v2133, 0
      %2141 = vmatprep.subr.bf16.mxu0 0
      %2142 = vmatpush1.bf16.xpose.msra.mxu0 %v2139
      %2143 = vmatprep.subr.bf16.mxu0 0
      %2144 = vmatpush1.bf16.xpose.msra.mxu0 0
      %2145 = vmatprep.subr.bf16.mxu0 0
      %2146 = vmatpush1.bf16.xpose.msra.mxu0 0
      %2147 = vmatprep.subr.bf16.mxu0 0
      %2148 = vmatpush1.bf16.xpose.msra.mxu0 0
      %2149 = vmatprep.subr.bf16.mxu0 0
      %2150 = vmatpush1.bf16.xpose.msra.mxu0 0
      %2151 = vmatprep.subr.bf16.mxu0 0
      %2152 = vmatpush1.bf16.xpose.msra.mxu0 0
      %2153 = vmatprep.subr.bf16.mxu0 0
      %2154 = vmatpush1.bf16.xpose.msra.mxu0 0
      %2155 = vmatprep.subr.bf16.mxu0 0
      %2156 = vmatpush1.bf16.xpose.msra.mxu0 0
      %2157 = vmatprep.subr.bf16.mxu0 0
      %2158 = vmatpush1.bf16.xpose.msra.mxu0 0
      %2159 = vmatprep.subr.bf16.mxu0 0
      %2160 = vmatpush1.bf16.xpose.msra.mxu0 0
      %2161 = vmatprep.subr.bf16.mxu0 0
      %2162 = vmatpush1.bf16.xpose.msra.mxu0 0
      %2163 = vmatprep.subr.bf16.mxu0 0
      %2164 = vmatpush1.bf16.xpose.msra.mxu0 0
      %2165 = vmatprep.subr.bf16.mxu0 0
      %2166 = vmatpush1.bf16.xpose.msra.mxu0 0
      %2167 = vmatprep.subr.bf16.mxu0 0
      %2168 = vmatpush1.bf16.xpose.msra.mxu0 0
      %2169 = vmatprep.subr.bf16.mxu0 0
      %2170 = vmatpush1.bf16.xpose.msra.mxu0 0
      %2171 = vmatprep.subr.bf16.mxu0 0
      %2172 = vmatpush1.bf16.xpose.msra.mxu0 0
      %2173 = vmatprep.mubr.bf16.mxu0 0
      %2174 = vmatmul.mubr.bf16.gmra.mrb[0].mxu0 %v2136
      %v2175 = vpop.f32.mrb[0].mxu0
      %v2176 = vadd.f32 %v1372, %v2175
      %v2177 = vpop.f32.mrb[0].mxu0
      %v2178 = vpop.f32.mrb[0].mxu0
      %v2179 = vadd.f32 %v1372, %v2178
      %v2180 = vpop.f32.mrb[0].mxu0
      %2181 = vdwg.mxu0
      %v2182 = vsel %vm1422, %v2176, -inf
      %2183 = vmax.xlane.f32.xlu0 %v2182
      %v2184 = vpop.xlane.xlu0 %2183
      %v2185 = vsel %vm1422, %v2179, -inf
      %2186 = vmax.xlane.f32.xlu0 %v2185
      %v2187 = vpop.xlane.xlu0 %2186
      %v2188 = vsub.f32 %v2176, %v2184
      %v2189 = vsub.f32 %v2179, %v2187
      %v2190 = vmul.f32 %v2188, 1.442695
      %v2191 = vpow.pop %v2190
      %v2192 = vmul.f32 %v2189, 1.442695
      %v2193 = vpow.pop %v2192
      %v2194 = vsel %vm1422, %v2191, 0.0
      %2195 = vadd.xlane.f32.xlu0 %v2194
      %v2196 = vpop.xlane.xlu0 %2195
      %v2197 = vsel %vm1422, %v2193, 0.0
      %2198 = vadd.xlane.f32.xlu0 %v2197
      %v2199 = vpop.xlane.xlu0 %2198
      %v2200 = vrcp.pop %v2196
      %v2201 = vrcp.pop %v2199
      %v2202 = vmul.f32 %v2191, %v2200
      %v2203 = vmul.f32 %v2193, %v2201
      %v2204 = vpack.c.bf16 %v2203, %v2202
      %v2206 = vsel %vm1422, %v2204, 0
      %2208 = vmatprep.subr.bf16.mxu0 0
      %2209 = vmatpush1.bf16.msra.mxu0 %v2134
      %2210 = vmatprep.subr.bf16.mxu0 0
      %2211 = vmatpush1.bf16.msra.mxu0 0
      %2212 = vmatprep.subr.bf16.mxu0 0
      %2213 = vmatpush1.bf16.msra.mxu0 0
      %2214 = vmatprep.subr.bf16.mxu0 0
      %2215 = vmatpush1.bf16.msra.mxu0 0
      %2216 = vmatprep.subr.bf16.mxu0 0
      %2217 = vmatpush1.bf16.msra.mxu0 0
      %2218 = vmatprep.subr.bf16.mxu0 0
      %2219 = vmatpush1.bf16.msra.mxu0 0
      %2220 = vmatprep.subr.bf16.mxu0 0
      %2221 = vmatpush1.bf16.msra.mxu0 0
      %2222 = vmatprep.subr.bf16.mxu0 0
      %2223 = vmatpush1.bf16.msra.mxu0 0
      %2224 = vmatprep.subr.bf16.mxu0 0
      %2225 = vmatpush1.bf16.msra.mxu0 0
      %2226 = vmatprep.subr.bf16.mxu0 0
      %2227 = vmatpush1.bf16.msra.mxu0 0
      %2228 = vmatprep.subr.bf16.mxu0 0
      %2229 = vmatpush1.bf16.msra.mxu0 0
      %2230 = vmatprep.subr.bf16.mxu0 0
      %2231 = vmatpush1.bf16.msra.mxu0 0
      %2232 = vmatprep.subr.bf16.mxu0 0
      %2233 = vmatpush1.bf16.msra.mxu0 0
      %2234 = vmatprep.subr.bf16.mxu0 0
      %2235 = vmatpush1.bf16.msra.mxu0 0
      %2236 = vmatprep.subr.bf16.mxu0 0
      %2237 = vmatpush1.bf16.msra.mxu0 0
      %2238 = vmatprep.subr.bf16.mxu0 0
      %2239 = vmatpush1.bf16.msra.mxu0 0
      %2240 = vmatprep.mubr.bf16.mxu0 0
      %2241 = vmatmul.mubr.bf16.gmra.mrb[0].mxu0 %v2206
      %v2242 = vpop.f32.mrb[0].mxu0
      %v2243 = vadd.f32 0.0, %v2242
      %v2244 = vpop.f32.mrb[0].mxu0
      %v2245 = vpop.f32.mrb[0].mxu0
      %v2246 = vadd.f32 0.0, %v2245
      %v2247 = vpop.f32.mrb[0].mxu0
      %2248 = vdwg.mxu0
      %2250 = vrot.lane.b32.xlu0 %v2132, 64
      %v2251 = vpop.permute.xlu0 %2250
      %2253 = vrot.lane.b32.xlu0 %v2133, 64
      %v2254 = vpop.permute.xlu0 %2253
      %v2256 = vsel %vm1374, %v2251, 0
      %v2259 = vsel %vm1374, %v2254, 0
      %2261 = vmatprep.subr.bf16.mxu0 0
      %2262 = vmatpush1.bf16.xpose.msra.mxu0 %v2259
      %2263 = vmatprep.subr.bf16.mxu0 0
      %2264 = vmatpush1.bf16.xpose.msra.mxu0 0
      %2265 = vmatprep.subr.bf16.mxu0 0
      %2266 = vmatpush1.bf16.xpose.msra.mxu0 0
      %2267 = vmatprep.subr.bf16.mxu0 0
      %2268 = vmatpush1.bf16.xpose.msra.mxu0 0
      %2269 = vmatprep.subr.bf16.mxu0 0
      %2270 = vmatpush1.bf16.xpose.msra.mxu0 0
      %2271 = vmatprep.subr.bf16.mxu0 0
      %2272 = vmatpush1.bf16.xpose.msra.mxu0 0
      %2273 = vmatprep.subr.bf16.mxu0 0
      %2274 = vmatpush1.bf16.xpose.msra.mxu0 0
      %2275 = vmatprep.subr.bf16.mxu0 0
      %2276 = vmatpush1.bf16.xpose.msra.mxu0 0
      %2277 = vmatprep.subr.bf16.mxu0 0
      %2278 = vmatpush1.bf16.xpose.msra.mxu0 0
      %2279 = vmatprep.subr.bf16.mxu0 0
      %2280 = vmatpush1.bf16.xpose.msra.mxu0 0
      %2281 = vmatprep.subr.bf16.mxu0 0
      %2282 = vmatpush1.bf16.xpose.msra.mxu0 0
      %2283 = vmatprep.subr.bf16.mxu0 0
      %2284 = vmatpush1.bf16.xpose.msra.mxu0 0
      %2285 = vmatprep.subr.bf16.mxu0 0
      %2286 = vmatpush1.bf16.xpose.msra.mxu0 0
      %2287 = vmatprep.subr.bf16.mxu0 0
      %2288 = vmatpush1.bf16.xpose.msra.mxu0 0
      %2289 = vmatprep.subr.bf16.mxu0 0
      %2290 = vmatpush1.bf16.xpose.msra.mxu0 0
      %2291 = vmatprep.subr.bf16.mxu0 0
      %2292 = vmatpush1.bf16.xpose.msra.mxu0 0
      %2293 = vmatprep.mubr.bf16.mxu0 0
      %2294 = vmatmul.mubr.bf16.gmra.mrb[0].mxu0 %v2256
      %v2295 = vpop.f32.mrb[0].mxu0
      %v2296 = vadd.f32 %v1372, %v2295
      %v2297 = vpop.f32.mrb[0].mxu0
      %v2298 = vpop.f32.mrb[0].mxu0
      %v2299 = vadd.f32 %v1372, %v2298
      %v2300 = vpop.f32.mrb[0].mxu0
      %2301 = vdwg.mxu0
      %v2302 = vsel %vm1422, %v2296, -inf
      %2303 = vmax.xlane.f32.xlu0 %v2302
      %v2304 = vpop.xlane.xlu0 %2303
      %v2305 = vsel %vm1422, %v2299, -inf
      %2306 = vmax.xlane.f32.xlu0 %v2305
      %v2307 = vpop.xlane.xlu0 %2306
      %v2308 = vsub.f32 %v2296, %v2304
      %v2309 = vsub.f32 %v2299, %v2307
      %v2310 = vmul.f32 %v2308, 1.442695
      %v2311 = vpow.pop %v2310
      %v2312 = vmul.f32 %v2309, 1.442695
      %v2313 = vpow.pop %v2312
      %v2314 = vsel %vm1422, %v2311, 0.0
      %2315 = vadd.xlane.f32.xlu0 %v2314
      %v2316 = vpop.xlane.xlu0 %2315
      %v2317 = vsel %vm1422, %v2313, 0.0
      %2318 = vadd.xlane.f32.xlu0 %v2317
      %v2319 = vpop.xlane.xlu0 %2318
      %v2320 = vrcp.pop %v2316
      %v2321 = vrcp.pop %v2319
      %v2322 = vmul.f32 %v2311, %v2320
      %v2323 = vmul.f32 %v2313, %v2321
      %v2324 = vpack.c.bf16 %v2323, %v2322
      %2326 = vrot.lane.b32.xlu0 %v2134, 64
      %v2327 = vpop.permute.xlu0 %2326
      %v2330 = vsel %vm1422, %v2324, 0
      %2332 = vmatprep.subr.bf16.mxu0 0
      %2333 = vmatpush1.bf16.msra.mxu0 %v2327
      %2334 = vmatprep.subr.bf16.mxu0 0
      %2335 = vmatpush1.bf16.msra.mxu0 0
      %2336 = vmatprep.subr.bf16.mxu0 0
      %2337 = vmatpush1.bf16.msra.mxu0 0
      %2338 = vmatprep.subr.bf16.mxu0 0
      %2339 = vmatpush1.bf16.msra.mxu0 0
      %2340 = vmatprep.subr.bf16.mxu0 0
      %2341 = vmatpush1.bf16.msra.mxu0 0
      %2342 = vmatprep.subr.bf16.mxu0 0
      %2343 = vmatpush1.bf16.msra.mxu0 0
      %2344 = vmatprep.subr.bf16.mxu0 0
      %2345 = vmatpush1.bf16.msra.mxu0 0
      %2346 = vmatprep.subr.bf16.mxu0 0
      %2347 = vmatpush1.bf16.msra.mxu0 0
      %2348 = vmatprep.subr.bf16.mxu0 0
      %2349 = vmatpush1.bf16.msra.mxu0 0
      %2350 = vmatprep.subr.bf16.mxu0 0
      %2351 = vmatpush1.bf16.msra.mxu0 0
      %2352 = vmatprep.subr.bf16.mxu0 0
      %2353 = vmatpush1.bf16.msra.mxu0 0
      %2354 = vmatprep.subr.bf16.mxu0 0
      %2355 = vmatpush1.bf16.msra.mxu0 0
      %2356 = vmatprep.subr.bf16.mxu0 0
      %2357 = vmatpush1.bf16.msra.mxu0 0
      %2358 = vmatprep.subr.bf16.mxu0 0
      %2359 = vmatpush1.bf16.msra.mxu0 0
      %2360 = vmatprep.subr.bf16.mxu0 0
      %2361 = vmatpush1.bf16.msra.mxu0 0
      %2362 = vmatprep.subr.bf16.mxu0 0
      %2363 = vmatpush1.bf16.msra.mxu0 0
      %2364 = vmatprep.mubr.bf16.mxu0 0
      %2365 = vmatmul.mubr.bf16.gmra.mrb[0].mxu0 %v2330
      %v2366 = vpop.f32.mrb[0].mxu0
      %v2367 = vadd.f32 0.0, %v2366
      %v2368 = vpop.f32.mrb[0].mxu0
      %v2369 = vpop.f32.mrb[0].mxu0
      %v2370 = vadd.f32 0.0, %v2369
      %v2371 = vpop.f32.mrb[0].mxu0
      %2372 = vdwg.mxu0
      %2375 = vrot.lane.b32.xlu0 %v2367, 64
      %v2376 = vpop.permute.xlu0 %2375
      %2377 = vrot.lane.b32.xlu0 %v2370, 64
      %v2378 = vpop.permute.xlu0 %2377
      %v2381 = vsel %vm1374, %v2243, %v2376
      %v2382 = vsel %vm1374, %v2246, %v2378
      %v2383 = vpack.c.bf16 %v2382, %v2381
      %2384 = vst [vmem:[#allocation2 + $0x18] sm:$0xff] %v2383
      %v2385 = vld [vmem:[#allocation2] sm:$0xff]
      %v2386 = vld [vmem:[#allocation2 + $0x8] sm:$0xff]
      %v2387 = vld [vmem:[#allocation2 + $0x10] sm:$0xff]
      %v2388 = vld [vmem:[#allocation2 + $0x18] sm:$0xff]
      %v2389 = vld [vmem:[%s10] sm:$0xf]
      %v2390 = vld [vmem:[%s10 + $0x4] sm:$0xf]
      %v2391 = vld [vmem:[%s10 + $0x8] sm:$0xf]
      %v2392 = vld [vmem:[%s10 + $0xc] sm:$0xf]
      %v2393 = vld [vmem:[%s10 + $0x10] sm:$0xf]
      %v2394 = vld [vmem:[%s10 + $0x14] sm:$0xf]
      %v2395 = vld [vmem:[%s10 + $0x18] sm:$0xf]
      %v2396 = vld [vmem:[%s10 + $0x1c] sm:$0xf]
      %v2397 = vld [vmem:[%s10 + $0x20] sm:$0xf]
      %v2398 = vld [vmem:[%s10 + $0x24] sm:$0xf]
      %v2399 = vld [vmem:[%s10 + $0x28] sm:$0xf]
      %v2400 = vld [vmem:[%s10 + $0x2c] sm:$0xf]
      %v2401 = vld [vmem:[%s10 + $0x30] sm:$0xf]
      %v2402 = vld [vmem:[%s10 + $0x34] sm:$0xf]
      %v2403 = vld [vmem:[%s10 + $0x38] sm:$0xf]
      %v2404 = vld [vmem:[%s10 + $0x3c] sm:$0xf]
      %v2405 = vld [vmem:[%s10 + $0x40] sm:$0xf]
      %v2406 = vld [vmem:[%s10 + $0x44] sm:$0xf]
      %v2407 = vld [vmem:[%s10 + $0x48] sm:$0xf]
      %v2408 = vld [vmem:[%s10 + $0x4c] sm:$0xf]
      %v2409 = vld [vmem:[%s10 + $0x50] sm:$0xf]
      %v2410 = vld [vmem:[%s10 + $0x54] sm:$0xf]
      %v2411 = vld [vmem:[%s10 + $0x58] sm:$0xf]
      %v2412 = vld [vmem:[%s10 + $0x5c] sm:$0xf]
      %v2413 = vld [vmem:[%s10 + $0x60] sm:$0xf]
      %v2414 = vld [vmem:[%s10 + $0x64] sm:$0xf]
      %v2415 = vld [vmem:[%s10 + $0x68] sm:$0xf]
      %v2416 = vld [vmem:[%s10 + $0x6c] sm:$0xf]
      %v2417 = vld [vmem:[%s10 + $0x70] sm:$0xf]
      %v2418 = vld [vmem:[%s10 + $0x74] sm:$0xf]
      %v2419 = vld [vmem:[%s10 + $0x78] sm:$0xf]
      %v2420 = vld [vmem:[%s10 + $0x7c] sm:$0xf]
      %v2421 = vld [vmem:[%s10 + $0x80] sm:$0xf]
      %v2422 = vld [vmem:[%s10 + $0x84] sm:$0xf]
      %v2423 = vld [vmem:[%s10 + $0x88] sm:$0xf]
      %v2424 = vld [vmem:[%s10 + $0x8c] sm:$0xf]
      %v2425 = vld [vmem:[%s10 + $0x90] sm:$0xf]
      %v2426 = vld [vmem:[%s10 + $0x94] sm:$0xf]
      %v2427 = vld [vmem:[%s10 + $0x98] sm:$0xf]
      %v2428 = vld [vmem:[%s10 + $0x9c] sm:$0xf]
      %v2429 = vld [vmem:[%s10 + $0xa0] sm:$0xf]
      %v2430 = vld [vmem:[%s10 + $0xa4] sm:$0xf]
      %v2431 = vld [vmem:[%s10 + $0xa8] sm:$0xf]
      %v2432 = vld [vmem:[%s10 + $0xac] sm:$0xf]
      %v2433 = vld [vmem:[%s10 + $0xb0] sm:$0xf]
      %v2434 = vld [vmem:[%s10 + $0xb4] sm:$0xf]
      %v2435 = vld [vmem:[%s10 + $0xb8] sm:$0xf]
      %v2436 = vld [vmem:[%s10 + $0xbc] sm:$0xf]
      %v2437 = vld [vmem:[%s10 + $0xc0] sm:$0xf]
      %v2438 = vld [vmem:[%s10 + $0xc4] sm:$0xf]
      %v2439 = vld [vmem:[%s10 + $0xc8] sm:$0xf]
      %v2440 = vld [vmem:[%s10 + $0xcc] sm:$0xf]
      %v2441 = vld [vmem:[%s10 + $0xd0] sm:$0xf]
      %v2442 = vld [vmem:[%s10 + $0xd4] sm:$0xf]
      %v2443 = vld [vmem:[%s10 + $0xd8] sm:$0xf]
      %v2444 = vld [vmem:[%s10 + $0xdc] sm:$0xf]
      %v2445 = vld [vmem:[%s10 + $0xe0] sm:$0xf]
      %v2446 = vld [vmem:[%s10 + $0xe4] sm:$0xf]
      %v2447 = vld [vmem:[%s10 + $0xe8] sm:$0xf]
      %v2448 = vld [vmem:[%s10 + $0xec] sm:$0xf]
      %v2449 = vld [vmem:[%s10 + $0xf0] sm:$0xf]
      %v2450 = vld [vmem:[%s10 + $0xf4] sm:$0xf]
      %v2451 = vld [vmem:[%s10 + $0xf8] sm:$0xf]
      %v2452 = vld [vmem:[%s10 + $0xfc] sm:$0xf]
      %v2453 = vlaneseq
      %v2454 = vshrl.u32 %v2453, 7
      %v2455 = vsub.s32 0, %v2454
      %v2456 = vrot.slane %v1364, %v2455
      %v2521 = vunpack.c.l.b16 %v2389
      %v2522 = vunpack.c.l.b16 %v2390
      %v2523 = vunpack.c.l.b16 %v2391
      %v2524 = vunpack.c.l.b16 %v2392
      %v2525 = vunpack.c.l.b16 %v2393
      %v2526 = vunpack.c.l.b16 %v2394
      %v2527 = vunpack.c.l.b16 %v2395
      %v2528 = vunpack.c.l.b16 %v2396
      %v2529 = vunpack.c.l.b16 %v2397
      %v2530 = vunpack.c.l.b16 %v2398
      %v2531 = vunpack.c.l.b16 %v2399
      %v2532 = vunpack.c.l.b16 %v2400
      %v2533 = vunpack.c.l.b16 %v2401
      %v2534 = vunpack.c.l.b16 %v2402
      %v2535 = vunpack.c.l.b16 %v2403
      %v2536 = vunpack.c.l.b16 %v2404
      %v2537 = vunpack.c.l.b16 %v2405
      %v2538 = vunpack.c.l.b16 %v2406
      %v2539 = vunpack.c.l.b16 %v2407
      %v2540 = vunpack.c.l.b16 %v2408
      %v2541 = vunpack.c.l.b16 %v2409
      %v2542 = vunpack.c.l.b16 %v2410
      %v2543 = vunpack.c.l.b16 %v2411
      %v2544 = vunpack.c.l.b16 %v2412
      %v2545 = vunpack.c.l.b16 %v2413
      %v2546 = vunpack.c.l.b16 %v2414
      %v2547 = vunpack.c.l.b16 %v2415
      %v2548 = vunpack.c.l.b16 %v2416
      %v2549 = vunpack.c.l.b16 %v2417
      %v2550 = vunpack.c.l.b16 %v2418
      %v2551 = vunpack.c.l.b16 %v2419
      %v2552 = vunpack.c.l.b16 %v2420
      %v2553 = vunpack.c.l.b16 %v2421
      %v2554 = vunpack.c.l.b16 %v2422
      %v2555 = vunpack.c.l.b16 %v2423
      %v2556 = vunpack.c.l.b16 %v2424
      %v2557 = vunpack.c.l.b16 %v2425
      %v2558 = vunpack.c.l.b16 %v2426
      %v2559 = vunpack.c.l.b16 %v2427
      %v2560 = vunpack.c.l.b16 %v2428
      %v2561 = vunpack.c.l.b16 %v2429
      %v2562 = vunpack.c.l.b16 %v2430
      %v2563 = vunpack.c.l.b16 %v2431
      %v2564 = vunpack.c.l.b16 %v2432
      %v2565 = vunpack.c.l.b16 %v2433
      %v2566 = vunpack.c.l.b16 %v2434
      %v2567 = vunpack.c.l.b16 %v2435
      %v2568 = vunpack.c.l.b16 %v2436
      %v2569 = vunpack.c.l.b16 %v2437
      %v2570 = vunpack.c.l.b16 %v2438
      %v2571 = vunpack.c.l.b16 %v2439
      %v2572 = vunpack.c.l.b16 %v2440
      %v2573 = vunpack.c.l.b16 %v2441
      %v2574 = vunpack.c.l.b16 %v2442
      %v2575 = vunpack.c.l.b16 %v2443
      %v2576 = vunpack.c.l.b16 %v2444
      %v2577 = vunpack.c.l.b16 %v2445
      %v2578 = vunpack.c.l.b16 %v2446
      %v2579 = vunpack.c.l.b16 %v2447
      %v2580 = vunpack.c.l.b16 %v2448
      %v2581 = vunpack.c.l.b16 %v2449
      %v2582 = vunpack.c.l.b16 %v2450
      %v2583 = vunpack.c.l.b16 %v2451
      %v2584 = vunpack.c.l.b16 %v2452
      %v2585 = vpack.c.b16 %v2522, %v2521
      %v2586 = vpack.c.b16 %v2524, %v2523
      %v2587 = vpack.c.b16 %v2526, %v2525
      %v2588 = vpack.c.b16 %v2528, %v2527
      %v2589 = vpack.c.b16 %v2530, %v2529
      %v2590 = vpack.c.b16 %v2532, %v2531
      %v2591 = vpack.c.b16 %v2534, %v2533
      %v2592 = vpack.c.b16 %v2536, %v2535
      %v2593 = vpack.c.b16 %v2538, %v2537
      %v2594 = vpack.c.b16 %v2540, %v2539
      %v2595 = vpack.c.b16 %v2542, %v2541
      %v2596 = vpack.c.b16 %v2544, %v2543
      %v2597 = vpack.c.b16 %v2546, %v2545
      %v2598 = vpack.c.b16 %v2548, %v2547
      %v2599 = vpack.c.b16 %v2550, %v2549
      %v2600 = vpack.c.b16 %v2552, %v2551
      %v2601 = vpack.c.b16 %v2554, %v2553
      %v2602 = vpack.c.b16 %v2556, %v2555
      %v2603 = vpack.c.b16 %v2558, %v2557
      %v2604 = vpack.c.b16 %v2560, %v2559
      %v2605 = vpack.c.b16 %v2562, %v2561
      %v2606 = vpack.c.b16 %v2564, %v2563
      %v2607 = vpack.c.b16 %v2566, %v2565
      %v2608 = vpack.c.b16 %v2568, %v2567
      %v2609 = vpack.c.b16 %v2570, %v2569
      %v2610 = vpack.c.b16 %v2572, %v2571
      %v2611 = vpack.c.b16 %v2574, %v2573
      %v2612 = vpack.c.b16 %v2576, %v2575
      %v2613 = vpack.c.b16 %v2578, %v2577
      %v2614 = vpack.c.b16 %v2580, %v2579
      %v2615 = vpack.c.b16 %v2582, %v2581
      %v2616 = vpack.c.b16 %v2584, %v2583
      %2649 = vmatprep.subr.bf16.mxu0 0
      %2650 = vmatpush1.bf16.msra.mxu0 %v2585
      %2651 = vmatprep.subr.bf16.mxu0 0
      %2652 = vmatpush1.bf16.msra.mxu0 %v2586
      %2653 = vmatprep.subr.bf16.mxu0 0
      %2654 = vmatpush1.bf16.msra.mxu0 %v2587
      %2655 = vmatprep.subr.bf16.mxu0 0
      %2656 = vmatpush1.bf16.msra.mxu0 %v2588
      %2657 = vmatprep.subr.bf16.mxu0 0
      %2658 = vmatpush1.bf16.msra.mxu0 %v2589
      %2659 = vmatprep.subr.bf16.mxu0 0
      %2660 = vmatpush1.bf16.msra.mxu0 %v2590
      %2661 = vmatprep.subr.bf16.mxu0 0
      %2662 = vmatpush1.bf16.msra.mxu0 %v2591
      %2663 = vmatprep.subr.bf16.mxu0 0
      %2664 = vmatpush1.bf16.msra.mxu0 %v2592
      %2665 = vmatprep.subr.bf16.mxu0 0
      %2666 = vmatpush1.bf16.msra.mxu0 %v2593
      %2667 = vmatprep.subr.bf16.mxu0 0
      %2668 = vmatpush1.bf16.msra.mxu0 %v2594
      %2669 = vmatprep.subr.bf16.mxu0 0
      %2670 = vmatpush1.bf16.msra.mxu0 %v2595
      %2671 = vmatprep.subr.bf16.mxu0 0
      %2672 = vmatpush1.bf16.msra.mxu0 %v2596
      %2673 = vmatprep.subr.bf16.mxu0 0
      %2674 = vmatpush1.bf16.msra.mxu0 %v2597
      %2675 = vmatprep.subr.bf16.mxu0 0
      %2676 = vmatpush1.bf16.msra.mxu0 %v2598
      %2677 = vmatprep.subr.bf16.mxu0 0
      %2678 = vmatpush1.bf16.msra.mxu0 %v2599
      %2679 = vmatprep.subr.bf16.mxu0 0
      %2680 = vmatpush1.bf16.msra.mxu0 %v2600
      %2681 = vmatprep.mubr.bf16.mxu0 %v2386
      %2682 = vmatmul.mubr.bf16.gmra.mrb[0].mxu0 %v2385
      %v2683 = vpop.f32.mrb[0].mxu0
      %v2684 = vadd.f32 %v2456, %v2683
      %v2685 = vpop.f32.mrb[0].mxu0
      %v2686 = vpop.f32.mrb[0].mxu0
      %v2687 = vadd.f32 %v2456, %v2686
      %v2688 = vpop.f32.mrb[0].mxu0
      %2689 = vdwg.mxu0
      %2690 = vmatprep.subr.bf16.mxu0 0
      %2691 = vmatpush1.bf16.msra.mxu0 %v2601
      %2692 = vmatprep.subr.bf16.mxu0 0
      %2693 = vmatpush1.bf16.msra.mxu0 %v2602
      %2694 = vmatprep.subr.bf16.mxu0 0
      %2695 = vmatpush1.bf16.msra.mxu0 %v2603
      %2696 = vmatprep.subr.bf16.mxu0 0
      %2697 = vmatpush1.bf16.msra.mxu0 %v2604
      %2698 = vmatprep.subr.bf16.mxu0 0
      %2699 = vmatpush1.bf16.msra.mxu0 %v2605
      %2700 = vmatprep.subr.bf16.mxu0 0
      %2701 = vmatpush1.bf16.msra.mxu0 %v2606
      %2702 = vmatprep.subr.bf16.mxu0 0
      %2703 = vmatpush1.bf16.msra.mxu0 %v2607
      %2704 = vmatprep.subr.bf16.mxu0 0
      %2705 = vmatpush1.bf16.msra.mxu0 %v2608
      %2706 = vmatprep.subr.bf16.mxu0 0
      %2707 = vmatpush1.bf16.msra.mxu0 %v2609
      %2708 = vmatprep.subr.bf16.mxu0 0
      %2709 = vmatpush1.bf16.msra.mxu0 %v2610
      %2710 = vmatprep.subr.bf16.mxu0 0
      %2711 = vmatpush1.bf16.msra.mxu0 %v2611
      %2712 = vmatprep.subr.bf16.mxu0 0
      %2713 = vmatpush1.bf16.msra.mxu0 %v2612
      %2714 = vmatprep.subr.bf16.mxu0 0
      %2715 = vmatpush1.bf16.msra.mxu0 %v2613
      %2716 = vmatprep.subr.bf16.mxu0 0
      %2717 = vmatpush1.bf16.msra.mxu0 %v2614
      %2718 = vmatprep.subr.bf16.mxu0 0
      %2719 = vmatpush1.bf16.msra.mxu0 %v2615
      %2720 = vmatprep.subr.bf16.mxu0 0
      %2721 = vmatpush1.bf16.msra.mxu0 %v2616
      %2722 = vmatprep.mubr.bf16.mxu0 %v2388
      %2723 = vmatmul.mubr.bf16.gmra.mrb[0].mxu0 %v2387
      %v2724 = vpop.f32.mrb[0].mxu0
      %v2725 = vadd.f32 %v2684, %v2724
      %v2726 = vpop.f32.mrb[0].mxu0
      %v2727 = vpop.f32.mrb[0].mxu0
      %v2728 = vadd.f32 %v2687, %v2727
      %v2729 = vpop.f32.mrb[0].mxu0
      %2730 = vdwg.mxu0
      %v2731 = vadd.f32 %v916, %v2725
      %v2732 = vadd.f32 %v917, %v2728
      %v2733 = vsel %vm681, %v2731, 0.0
      %2734 = vadd.xlane.f32.xlu0 %v2733
      %v2735 = vpop.xlane.xlu0 %2734
      %v2736 = vsel %vm681, %v2732, 0.0
      %2737 = vadd.xlane.f32.xlu0 %v2736
      %v2738 = vpop.xlane.xlu0 %2737
      %v2739 = vmul.f32 %v2735, %v688
      %v2740 = vmul.f32 %v2738, %v688
      %v2741 = vsub.f32 %v2731, %v2739
      %v2742 = vsub.f32 %v2732, %v2740
      %v2743 = vmul.f32 %v2741, %v2741
      %v2744 = vmul.f32 %v2742, %v2742
      %v2745 = vsel %vm681, %v2743, 0.0
      %2746 = vadd.xlane.f32.xlu0 %v2745
      %v2747 = vpop.xlane.xlu0 %2746
      %v2748 = vsel %vm681, %v2744, 0.0
      %2749 = vadd.xlane.f32.xlu0 %v2748
      %v2750 = vpop.xlane.xlu0 %2749
      %v2751 = vmul.f32 %v2747, %v688
      %v2752 = vmul.f32 %v2750, %v688
      %v2753 = vadd.f32 %v2751, 1e-05
      %v2754 = vadd.f32 %v2752, 1e-05
      %v2755 = vrsqrt.pop %v2753
      %v2756 = vrsqrt.pop %v2754
      %v2757 = vmul.f32 %v2741, %v2755
      %v2758 = vmul.f32 %v2742, %v2756
      %v2759 = vld [vmem:[%s4 + $0x6] sm:$0x1]
      %v2760 = vlaneseq
      %v2761 = vshrl.u32 %v2760, 7
      %v2762 = vsub.s32 0, %v2761
      %v2763 = vrot.slane %v2759, %v2762
      %v2764 = vmul.f32 %v2757, %v2763
      %v2765 = vmul.f32 %v2758, %v2763
      %v2766 = vld [vmem:[%s4 + $0x7] sm:$0x1]
      %v2767 = vlaneseq
      %v2768 = vshrl.u32 %v2767, 7
      %v2769 = vsub.s32 0, %v2768
      %v2770 = vrot.slane %v2766, %v2769
      %v2771 = vadd.f32 %v2764, %v2770
      %v2772 = vadd.f32 %v2765, %v2770
      %v2773 = vpack.c.bf16 %v2772, %v2771
      %v2774 = vld [vmem:[%s11] sm:$0xff]
      %v2775 = vld [vmem:[%s11 + $0x8] sm:$0xff]
      %v2776 = vld [vmem:[%s11 + $0x10] sm:$0xff]
      %v2777 = vld [vmem:[%s11 + $0x18] sm:$0xff]
      %v2778 = vld [vmem:[%s11 + $0x20] sm:$0xff]
      %v2779 = vld [vmem:[%s11 + $0x28] sm:$0xff]
      %v2780 = vld [vmem:[%s11 + $0x30] sm:$0xff]
      %v2781 = vld [vmem:[%s11 + $0x38] sm:$0xff]
      %v2790 = vunpack.c.l.b16 %v2774
      %v2791 = vunpack.c.h.b16 %v2774
      %v2792 = vunpack.c.l.b16 %v2775
      %v2793 = vunpack.c.h.b16 %v2775
      %v2794 = vunpack.c.l.b16 %v2776
      %v2795 = vunpack.c.h.b16 %v2776
      %v2796 = vunpack.c.l.b16 %v2777
      %v2797 = vunpack.c.h.b16 %v2777
      %v2798 = vunpack.c.l.b16 %v2778
      %v2799 = vunpack.c.h.b16 %v2778
      %v2800 = vunpack.c.l.b16 %v2779
      %v2801 = vunpack.c.h.b16 %v2779
      %v2802 = vunpack.c.l.b16 %v2780
      %v2803 = vunpack.c.h.b16 %v2780
      %v2804 = vunpack.c.l.b16 %v2781
      %v2805 = vunpack.c.h.b16 %v2781
      %v2806 = vpack.c.b16 %v2794, %v2790
      %v2807 = vpack.c.b16 %v2795, %v2791
      %v2808 = vpack.c.b16 %v2796, %v2792
      %v2809 = vpack.c.b16 %v2797, %v2793
      %v2810 = vpack.c.b16 %v2802, %v2798
      %v2811 = vpack.c.b16 %v2803, %v2799
      %v2812 = vpack.c.b16 %v2804, %v2800
      %v2813 = vpack.c.b16 %v2805, %v2801
      %v2823 = vsel %vm681, %v2773, 0
      %2825 = vmatprep.subr.bf16.mxu0 %v2807
      %2826 = vmatpush1.bf16.msra.mxu0 %v2806
      %2827 = vmatprep.subr.bf16.mxu0 %v2811
      %2828 = vmatpush1.bf16.msra.mxu0 %v2810
      %2829 = vmatprep.subr.bf16.mxu0 0
      %2830 = vmatpush1.bf16.msra.mxu0 0
      %2831 = vmatprep.subr.bf16.mxu0 0
      %2832 = vmatpush1.bf16.msra.mxu0 0
      %2833 = vmatprep.subr.bf16.mxu0 0
      %2834 = vmatpush1.bf16.msra.mxu0 0
      %2835 = vmatprep.subr.bf16.mxu0 0
      %2836 = vmatpush1.bf16.msra.mxu0 0
      %2837 = vmatprep.subr.bf16.mxu0 0
      %2838 = vmatpush1.bf16.msra.mxu0 0
      %2839 = vmatprep.subr.bf16.mxu0 0
      %2840 = vmatpush1.bf16.msra.mxu0 0
      %2841 = vmatprep.subr.bf16.mxu0 0
      %2842 = vmatpush1.bf16.msra.mxu0 0
      %2843 = vmatprep.subr.bf16.mxu0 0
      %2844 = vmatpush1.bf16.msra.mxu0 0
      %2845 = vmatprep.subr.bf16.mxu0 0
      %2846 = vmatpush1.bf16.msra.mxu0 0
      %2847 = vmatprep.subr.bf16.mxu0 0
      %2848 = vmatpush1.bf16.msra.mxu0 0
      %2849 = vmatprep.subr.bf16.mxu0 0
      %2850 = vmatpush1.bf16.msra.mxu0 0
      %2851 = vmatprep.subr.bf16.mxu0 0
      %2852 = vmatpush1.bf16.msra.mxu0 0
      %2853 = vmatprep.subr.bf16.mxu0 0
      %2854 = vmatpush1.bf16.msra.mxu0 0
      %2855 = vmatprep.subr.bf16.mxu0 0
      %2856 = vmatpush1.bf16.msra.mxu0 0
      %2857 = vmatprep.mubr.bf16.mxu0 0
      %2858 = vmatmul.mubr.bf16.gmra.mrb[0].mxu0 %v2823
      %v2859 = vpop.f32.mrb[0].mxu0
      %v2860 = vadd.f32 0.0, %v2859
      %v2861 = vpop.f32.mrb[0].mxu0
      %v2862 = vadd.f32 0.0, %v2861
      %v2863 = vpop.f32.mrb[0].mxu0
      %v2864 = vadd.f32 0.0, %v2863
      %v2865 = vpop.f32.mrb[0].mxu0
      %v2866 = vadd.f32 0.0, %v2865
      %2867 = vdwg.mxu0
      %2868 = vmatprep.subr.bf16.mxu0 %v2809
      %2869 = vmatpush1.bf16.msra.mxu0 %v2808
      %2870 = vmatprep.subr.bf16.mxu0 %v2813
      %2871 = vmatpush1.bf16.msra.mxu0 %v2812
      %2872 = vmatprep.subr.bf16.mxu0 0
      %2873 = vmatpush1.bf16.msra.mxu0 0
      %2874 = vmatprep.subr.bf16.mxu0 0
      %2875 = vmatpush1.bf16.msra.mxu0 0
      %2876 = vmatprep.subr.bf16.mxu0 0
      %2877 = vmatpush1.bf16.msra.mxu0 0
      %2878 = vmatprep.subr.bf16.mxu0 0
      %2879 = vmatpush1.bf16.msra.mxu0 0
      %2880 = vmatprep.subr.bf16.mxu0 0
      %2881 = vmatpush1.bf16.msra.mxu0 0
      %2882 = vmatprep.subr.bf16.mxu0 0
      %2883 = vmatpush1.bf16.msra.mxu0 0
      %2884 = vmatprep.subr.bf16.mxu0 0
      %2885 = vmatpush1.bf16.msra.mxu0 0
      %2886 = vmatprep.subr.bf16.mxu0 0
      %2887 = vmatpush1.bf16.msra.mxu0 0
      %2888 = vmatprep.subr.bf16.mxu0 0
      %2889 = vmatpush1.bf16.msra.mxu0 0
      %2890 = vmatprep.subr.bf16.mxu0 0
      %2891 = vmatpush1.bf16.msra.mxu0 0
      %2892 = vmatprep.subr.bf16.mxu0 0
      %2893 = vmatpush1.bf16.msra.mxu0 0
      %2894 = vmatprep.subr.bf16.mxu0 0
      %2895 = vmatpush1.bf16.msra.mxu0 0
      %2896 = vmatprep.subr.bf16.mxu0 0
      %2897 = vmatpush1.bf16.msra.mxu0 0
      %2898 = vmatprep.subr.bf16.mxu0 0
      %2899 = vmatpush1.bf16.msra.mxu0 0
      %2900 = vmatprep.mubr.bf16.mxu0 0
      %2901 = vmatmul.mubr.bf16.gmra.mrb[0].mxu0 %v2823
      %v2902 = vpop.f32.mrb[0].mxu0
      %v2903 = vadd.f32 0.0, %v2902
      %v2904 = vpop.f32.mrb[0].mxu0
      %v2905 = vadd.f32 0.0, %v2904
      %v2906 = vpop.f32.mrb[0].mxu0
      %v2907 = vadd.f32 0.0, %v2906
      %v2908 = vpop.f32.mrb[0].mxu0
      %v2909 = vadd.f32 0.0, %v2908
      %2910 = vdwg.mxu0
      %v2911 = vpack.c.bf16 %v678, %v678
      %v2912 = vld [vmem:[%s12] sm:$0xff]
      %v2913 = vld [vmem:[%s12 + $0x8] sm:$0xff]
      %v2914 = vld [vmem:[%s12 + $0x10] sm:$0xff]
      %v2915 = vld [vmem:[%s12 + $0x18] sm:$0xff]
      %v2916 = vld [vmem:[%s12 + $0x20] sm:$0xff]
      %v2917 = vld [vmem:[%s12 + $0x28] sm:$0xff]
      %v2918 = vld [vmem:[%s12 + $0x30] sm:$0xff]
      %v2919 = vld [vmem:[%s12 + $0x38] sm:$0xff]
      %v2920 = vld [vmem:[%s12 + $0x40] sm:$0xff]
      %v2921 = vld [vmem:[%s12 + $0x48] sm:$0xff]
      %v2922 = vld [vmem:[%s12 + $0x50] sm:$0xff]
      %v2923 = vld [vmem:[%s12 + $0x58] sm:$0xff]
      %v2924 = vld [vmem:[%s12 + $0x60] sm:$0xff]
      %v2925 = vld [vmem:[%s12 + $0x68] sm:$0xff]
      %v2926 = vld [vmem:[%s12 + $0x70] sm:$0xff]
      %v2927 = vld [vmem:[%s12 + $0x78] sm:$0xff]
      %v2944 = vunpack.c.l.b16 %v2912
      %v2945 = vunpack.c.h.b16 %v2912
      %v2946 = vunpack.c.l.b16 %v2913
      %v2947 = vunpack.c.h.b16 %v2913
      %v2948 = vunpack.c.l.b16 %v2914
      %v2949 = vunpack.c.h.b16 %v2914
      %v2950 = vunpack.c.l.b16 %v2915
      %v2951 = vunpack.c.h.b16 %v2915
      %v2952 = vunpack.c.l.b16 %v2916
      %v2953 = vunpack.c.h.b16 %v2916
      %v2954 = vunpack.c.l.b16 %v2917
      %v2955 = vunpack.c.h.b16 %v2917
      %v2956 = vunpack.c.l.b16 %v2918
      %v2957 = vunpack.c.h.b16 %v2918
      %v2958 = vunpack.c.l.b16 %v2919
      %v2959 = vunpack.c.h.b16 %v2919
      %v2960 = vunpack.c.l.b16 %v2920
      %v2961 = vunpack.c.h.b16 %v2920
      %v2962 = vunpack.c.l.b16 %v2921
      %v2963 = vunpack.c.h.b16 %v2921
      %v2964 = vunpack.c.l.b16 %v2922
      %v2965 = vunpack.c.h.b16 %v2922
      %v2966 = vunpack.c.l.b16 %v2923
      %v2967 = vunpack.c.h.b16 %v2923
      %v2968 = vunpack.c.l.b16 %v2924
      %v2969 = vunpack.c.h.b16 %v2924
      %v2970 = vunpack.c.l.b16 %v2925
      %v2971 = vunpack.c.h.b16 %v2925
      %v2972 = vunpack.c.l.b16 %v2926
      %v2973 = vunpack.c.h.b16 %v2926
      %v2974 = vunpack.c.l.b16 %v2927
      %v2975 = vunpack.c.h.b16 %v2927
      %v2976 = vpack.c.b16 %v2952, %v2944
      %v2977 = vpack.c.b16 %v2953, %v2945
      %v2978 = vpack.c.b16 %v2954, %v2946
      %v2979 = vpack.c.b16 %v2955, %v2947
      %v2980 = vpack.c.b16 %v2956, %v2948
      %v2981 = vpack.c.b16 %v2957, %v2949
      %v2982 = vpack.c.b16 %v2958, %v2950
      %v2983 = vpack.c.b16 %v2959, %v2951
      %v2984 = vpack.c.b16 %v2968, %v2960
      %v2985 = vpack.c.b16 %v2969, %v2961
      %v2986 = vpack.c.b16 %v2970, %v2962
      %v2987 = vpack.c.b16 %v2971, %v2963
      %v2988 = vpack.c.b16 %v2972, %v2964
      %v2989 = vpack.c.b16 %v2973, %v2965
      %v2990 = vpack.c.b16 %v2974, %v2966
      %v2991 = vpack.c.b16 %v2975, %v2967
      %v3009 = vsel %vm681, %v2911, 0
      %3011 = vmatprep.subr.bf16.mxu0 %v2977
      %3012 = vmatpush1.bf16.msra.mxu0 %v2976
      %3013 = vmatprep.subr.bf16.mxu0 %v2985
      %3014 = vmatpush1.bf16.msra.mxu0 %v2984
      %3015 = vmatprep.subr.bf16.mxu0 0
      %3016 = vmatpush1.bf16.msra.mxu0 0
      %3017 = vmatprep.subr.bf16.mxu0 0
      %3018 = vmatpush1.bf16.msra.mxu0 0
      %3019 = vmatprep.subr.bf16.mxu0 0
      %3020 = vmatpush1.bf16.msra.mxu0 0
      %3021 = vmatprep.subr.bf16.mxu0 0
      %3022 = vmatpush1.bf16.msra.mxu0 0
      %3023 = vmatprep.subr.bf16.mxu0 0
      %3024 = vmatpush1.bf16.msra.mxu0 0
      %3025 = vmatprep.subr.bf16.mxu0 0
      %3026 = vmatpush1.bf16.msra.mxu0 0
      %3027 = vmatprep.subr.bf16.mxu0 0
      %3028 = vmatpush1.bf16.msra.mxu0 0
      %3029 = vmatprep.subr.bf16.mxu0 0
      %3030 = vmatpush1.bf16.msra.mxu0 0
      %3031 = vmatprep.subr.bf16.mxu0 0
      %3032 = vmatpush1.bf16.msra.mxu0 0
      %3033 = vmatprep.subr.bf16.mxu0 0
      %3034 = vmatpush1.bf16.msra.mxu0 0
      %3035 = vmatprep.subr.bf16.mxu0 0
      %3036 = vmatpush1.bf16.msra.mxu0 0
      %3037 = vmatprep.subr.bf16.mxu0 0
      %3038 = vmatpush1.bf16.msra.mxu0 0
      %3039 = vmatprep.subr.bf16.mxu0 0
      %3040 = vmatpush1.bf16.msra.mxu0 0
      %3041 = vmatprep.subr.bf16.mxu0 0
      %3042 = vmatpush1.bf16.msra.mxu0 0
      %3043 = vmatprep.mubr.bf16.mxu0 0
      %3044 = vmatmul.mubr.bf16.gmra.mrb[0].mxu0 %v3009
      %v3045 = vpop.f32.mrb[0].mxu0
      %v3046 = vadd.f32 0.0, %v3045
      %v3047 = vpop.f32.mrb[0].mxu0
      %v3048 = vadd.f32 0.0, %v3047
      %v3049 = vpop.f32.mrb[0].mxu0
      %v3050 = vpop.f32.mrb[0].mxu0
      %3051 = vdwg.mxu0
      %3052 = vmatprep.subr.bf16.mxu0 %v2979
      %3053 = vmatpush1.bf16.msra.mxu0 %v2978
      %3054 = vmatprep.subr.bf16.mxu0 %v2987
      %3055 = vmatpush1.bf16.msra.mxu0 %v2986
      %3056 = vmatprep.subr.bf16.mxu0 0
      %3057 = vmatpush1.bf16.msra.mxu0 0
      %3058 = vmatprep.subr.bf16.mxu0 0
      %3059 = vmatpush1.bf16.msra.mxu0 0
      %3060 = vmatprep.subr.bf16.mxu0 0
      %3061 = vmatpush1.bf16.msra.mxu0 0
      %3062 = vmatprep.subr.bf16.mxu0 0
      %3063 = vmatpush1.bf16.msra.mxu0 0
      %3064 = vmatprep.subr.bf16.mxu0 0
      %3065 = vmatpush1.bf16.msra.mxu0 0
      %3066 = vmatprep.subr.bf16.mxu0 0
      %3067 = vmatpush1.bf16.msra.mxu0 0
      %3068 = vmatprep.subr.bf16.mxu0 0
      %3069 = vmatpush1.bf16.msra.mxu0 0
      %3070 = vmatprep.subr.bf16.mxu0 0
      %3071 = vmatpush1.bf16.msra.mxu0 0
      %3072 = vmatprep.subr.bf16.mxu0 0
      %3073 = vmatpush1.bf16.msra.mxu0 0
      %3074 = vmatprep.subr.bf16.mxu0 0
      %3075 = vmatpush1.bf16.msra.mxu0 0
      %3076 = vmatprep.subr.bf16.mxu0 0
      %3077 = vmatpush1.bf16.msra.mxu0 0
      %3078 = vmatprep.subr.bf16.mxu0 0
      %3079 = vmatpush1.bf16.msra.mxu0 0
      %3080 = vmatprep.subr.bf16.mxu0 0
      %3081 = vmatpush1.bf16.msra.mxu0 0
      %3082 = vmatprep.subr.bf16.mxu0 0
      %3083 = vmatpush1.bf16.msra.mxu0 0
      %3084 = vmatprep.mubr.bf16.mxu0 0
      %3085 = vmatmul.mubr.bf16.gmra.mrb[0].mxu0 %v3009
      %v3086 = vpop.f32.mrb[0].mxu0
      %v3087 = vadd.f32 0.0, %v3086
      %v3088 = vpop.f32.mrb[0].mxu0
      %v3089 = vadd.f32 0.0, %v3088
      %v3090 = vpop.f32.mrb[0].mxu0
      %v3091 = vpop.f32.mrb[0].mxu0
      %3092 = vdwg.mxu0
      %3093 = vmatprep.subr.bf16.mxu0 %v2981
      %3094 = vmatpush1.bf16.msra.mxu0 %v2980
      %3095 = vmatprep.subr.bf16.mxu0 %v2989
      %3096 = vmatpush1.bf16.msra.mxu0 %v2988
      %3097 = vmatprep.subr.bf16.mxu0 0
      %3098 = vmatpush1.bf16.msra.mxu0 0
      %3099 = vmatprep.subr.bf16.mxu0 0
      %3100 = vmatpush1.bf16.msra.mxu0 0
      %3101 = vmatprep.subr.bf16.mxu0 0
      %3102 = vmatpush1.bf16.msra.mxu0 0
      %3103 = vmatprep.subr.bf16.mxu0 0
      %3104 = vmatpush1.bf16.msra.mxu0 0
      %3105 = vmatprep.subr.bf16.mxu0 0
      %3106 = vmatpush1.bf16.msra.mxu0 0
      %3107 = vmatprep.subr.bf16.mxu0 0
      %3108 = vmatpush1.bf16.msra.mxu0 0
      %3109 = vmatprep.subr.bf16.mxu0 0
      %3110 = vmatpush1.bf16.msra.mxu0 0
      %3111 = vmatprep.subr.bf16.mxu0 0
      %3112 = vmatpush1.bf16.msra.mxu0 0
      %3113 = vmatprep.subr.bf16.mxu0 0
      %3114 = vmatpush1.bf16.msra.mxu0 0
      %3115 = vmatprep.subr.bf16.mxu0 0
      %3116 = vmatpush1.bf16.msra.mxu0 0
      %3117 = vmatprep.subr.bf16.mxu0 0
      %3118 = vmatpush1.bf16.msra.mxu0 0
      %3119 = vmatprep.subr.bf16.mxu0 0
      %3120 = vmatpush1.bf16.msra.mxu0 0
      %3121 = vmatprep.subr.bf16.mxu0 0
      %3122 = vmatpush1.bf16.msra.mxu0 0
      %3123 = vmatprep.subr.bf16.mxu0 0
      %3124 = vmatpush1.bf16.msra.mxu0 0
      %3125 = vmatprep.mubr.bf16.mxu0 0
      %3126 = vmatmul.mubr.bf16.gmra.mrb[0].mxu0 %v3009
      %v3127 = vpop.f32.mrb[0].mxu0
      %v3128 = vadd.f32 0.0, %v3127
      %v3129 = vpop.f32.mrb[0].mxu0
      %v3130 = vadd.f32 0.0, %v3129
      %v3131 = vpop.f32.mrb[0].mxu0
      %v3132 = vpop.f32.mrb[0].mxu0
      %3133 = vdwg.mxu0
      %3134 = vmatprep.subr.bf16.mxu0 %v2983
      %3135 = vmatpush1.bf16.msra.mxu0 %v2982
      %3136 = vmatprep.subr.bf16.mxu0 %v2991
      %3137 = vmatpush1.bf16.msra.mxu0 %v2990
      %3138 = vmatprep.subr.bf16.mxu0 0
      %3139 = vmatpush1.bf16.msra.mxu0 0
      %3140 = vmatprep.subr.bf16.mxu0 0
      %3141 = vmatpush1.bf16.msra.mxu0 0
      %3142 = vmatprep.subr.bf16.mxu0 0
      %3143 = vmatpush1.bf16.msra.mxu0 0
      %3144 = vmatprep.subr.bf16.mxu0 0
      %3145 = vmatpush1.bf16.msra.mxu0 0
      %3146 = vmatprep.subr.bf16.mxu0 0
      %3147 = vmatpush1.bf16.msra.mxu0 0
      %3148 = vmatprep.subr.bf16.mxu0 0
      %3149 = vmatpush1.bf16.msra.mxu0 0
      %3150 = vmatprep.subr.bf16.mxu0 0
      %3151 = vmatpush1.bf16.msra.mxu0 0
      %3152 = vmatprep.subr.bf16.mxu0 0
      %3153 = vmatpush1.bf16.msra.mxu0 0
      %3154 = vmatprep.subr.bf16.mxu0 0
      %3155 = vmatpush1.bf16.msra.mxu0 0
      %3156 = vmatprep.subr.bf16.mxu0 0
      %3157 = vmatpush1.bf16.msra.mxu0 0
      %3158 = vmatprep.subr.bf16.mxu0 0
      %3159 = vmatpush1.bf16.msra.mxu0 0
      %3160 = vmatprep.subr.bf16.mxu0 0
      %3161 = vmatpush1.bf16.msra.mxu0 0
      %3162 = vmatprep.subr.bf16.mxu0 0
      %3163 = vmatpush1.bf16.msra.mxu0 0
      %3164 = vmatprep.subr.bf16.mxu0 0
      %3165 = vmatpush1.bf16.msra.mxu0 0
      %3166 = vmatprep.mubr.bf16.mxu0 0
      %3167 = vmatmul.mubr.bf16.gmra.mrb[0].mxu0 %v3009
      %v3168 = vpop.f32.mrb[0].mxu0
      %v3169 = vadd.f32 0.0, %v3168
      %v3170 = vpop.f32.mrb[0].mxu0
      %v3171 = vadd.f32 0.0, %v3170
      %v3172 = vpop.f32.mrb[0].mxu0
      %v3173 = vpop.f32.mrb[0].mxu0
      %3174 = vdwg.mxu0
      %v3175 = vld [vmem:[%s4 + $0x8] sm:$0x1]
      %v3176 = vpack.c.bf16 %v2864, %v2860
      %v3177 = vpack.c.bf16 %v3046, %v3046
      %v3178 = vpack.c.bf16 %v3128, %v3128
      %v3180 = vlaneseq
      %v3181 = vshrl.u32 %v3180, 7
      %v3182 = vsub.s32 0, %v3181
      %v3183 = vrot.slane %v680, %v3182
      %v3186 = vsel %vm1374, %v3176, 0
      %v3189 = vsel %vm1374, %v3177, 0
      %3191 = vmatprep.subr.bf16.mxu0 0
      %3192 = vmatpush1.bf16.xpose.msra.mxu0 %v3189
      %3193 = vmatprep.subr.bf16.mxu0 0
      %3194 = vmatpush1.bf16.xpose.msra.mxu0 0
      %3195 = vmatprep.subr.bf16.mxu0 0
      %3196 = vmatpush1.bf16.xpose.msra.mxu0 0
      %3197 = vmatprep.subr.bf16.mxu0 0
      %3198 = vmatpush1.bf16.xpose.msra.mxu0 0
      %3199 = vmatprep.subr.bf16.mxu0 0
      %3200 = vmatpush1.bf16.xpose.msra.mxu0 0
      %3201 = vmatprep.subr.bf16.mxu0 0
      %3202 = vmatpush1.bf16.xpose.msra.mxu0 0
      %3203 = vmatprep.subr.bf16.mxu0 0
      %3204 = vmatpush1.bf16.xpose.msra.mxu0 0
      %3205 = vmatprep.subr.bf16.mxu0 0
      %3206 = vmatpush1.bf16.xpose.msra.mxu0 0
      %3207 = vmatprep.subr.bf16.mxu0 0
      %3208 = vmatpush1.bf16.xpose.msra.mxu0 0
      %3209 = vmatprep.subr.bf16.mxu0 0
      %3210 = vmatpush1.bf16.xpose.msra.mxu0 0
      %3211 = vmatprep.subr.bf16.mxu0 0
      %3212 = vmatpush1.bf16.xpose.msra.mxu0 0
      %3213 = vmatprep.subr.bf16.mxu0 0
      %3214 = vmatpush1.bf16.xpose.msra.mxu0 0
      %3215 = vmatprep.subr.bf16.mxu0 0
      %3216 = vmatpush1.bf16.xpose.msra.mxu0 0
      %3217 = vmatprep.subr.bf16.mxu0 0
      %3218 = vmatpush1.bf16.xpose.msra.mxu0 0
      %3219 = vmatprep.subr.bf16.mxu0 0
      %3220 = vmatpush1.bf16.xpose.msra.mxu0 0
      %3221 = vmatprep.subr.bf16.mxu0 0
      %3222 = vmatpush1.bf16.xpose.msra.mxu0 0
      %3223 = vmatprep.mubr.bf16.mxu0 0
      %3224 = vmatmul.mubr.bf16.gmra.mrb[0].mxu0 %v3186
      %v3225 = vpop.f32.mrb[0].mxu0
      %v3226 = vadd.f32 %v3183, %v3225
      %v3227 = vpop.f32.mrb[0].mxu0
      %v3228 = vpop.f32.mrb[0].mxu0
      %v3229 = vadd.f32 %v3183, %v3228
      %v3230 = vpop.f32.mrb[0].mxu0
      %3231 = vdwg.mxu0
      %vm3232 = vcmask 64512
      %v3233 = vsel %vm3232, %v3226, -inf
      %3234 = vmax.xlane.f32.xlu0 %v3233
      %v3235 = vpop.xlane.xlu0 %3234
      %v3236 = vsel %vm3232, %v3229, -inf
      %3237 = vmax.xlane.f32.xlu0 %v3236
      %v3238 = vpop.xlane.xlu0 %3237
      %v3239 = vsub.f32 %v3226, %v3235
      %v3240 = vsub.f32 %v3229, %v3238
      %v3241 = vmul.f32 %v3239, 1.442695
      %v3242 = vpow.pop %v3241
      %v3243 = vmul.f32 %v3240, 1.442695
      %v3244 = vpow.pop %v3243
      %v3245 = vsel %vm3232, %v3242, 0.0
      %3246 = vadd.xlane.f32.xlu0 %v3245
      %v3247 = vpop.xlane.xlu0 %3246
      %v3248 = vsel %vm3232, %v3244, 0.0
      %3249 = vadd.xlane.f32.xlu0 %v3248
      %v3250 = vpop.xlane.xlu0 %3249
      %v3251 = vrcp.pop %v3247
      %v3252 = vrcp.pop %v3250
      %v3253 = vmul.f32 %v3242, %v3251
      %v3254 = vmul.f32 %v3244, %v3252
      %v3255 = vpack.c.bf16 %v3254, %v3253
      %v3257 = vsel %vm3232, %v3255, 0
      %vm3259 = vcmask 1043456
      %v3261 = vsel %vm3259, %v3178, 0
      %3263 = vmatprep.subr.bf16.mxu0 0
      %3264 = vmatpush1.bf16.msra.mxu0 %v3261
      %3265 = vmatprep.subr.bf16.mxu0 0
      %3266 = vmatpush1.bf16.msra.mxu0 0
      %3267 = vmatprep.subr.bf16.mxu0 0
      %3268 = vmatpush1.bf16.msra.mxu0 0
      %3269 = vmatprep.subr.bf16.mxu0 0
      %3270 = vmatpush1.bf16.msra.mxu0 0
      %3271 = vmatprep.subr.bf16.mxu0 0
      %3272 = vmatpush1.bf16.msra.mxu0 0
      %3273 = vmatprep.subr.bf16.mxu0 0
      %3274 = vmatpush1.bf16.msra.mxu0 0
      %3275 = vmatprep.subr.bf16.mxu0 0
      %3276 = vmatpush1.bf16.msra.mxu0 0
      %3277 = vmatprep.subr.bf16.mxu0 0
      %3278 = vmatpush1.bf16.msra.mxu0 0
      %3279 = vmatprep.subr.bf16.mxu0 0
      %3280 = vmatpush1.bf16.msra.mxu0 0
      %3281 = vmatprep.subr.bf16.mxu0 0
      %3282 = vmatpush1.bf16.msra.mxu0 0
      %3283 = vmatprep.subr.bf16.mxu0 0
      %3284 = vmatpush1.bf16.msra.mxu0 0
      %3285 = vmatprep.subr.bf16.mxu0 0
      %3286 = vmatpush1.bf16.msra.mxu0 0
      %3287 = vmatprep.subr.bf16.mxu0 0
      %3288 = vmatpush1.bf16.msra.mxu0 0
      %3289 = vmatprep.subr.bf16.mxu0 0
      %3290 = vmatpush1.bf16.msra.mxu0 0
      %3291 = vmatprep.subr.bf16.mxu0 0
      %3292 = vmatpush1.bf16.msra.mxu0 0
      %3293 = vmatprep.subr.bf16.mxu0 0
      %3294 = vmatpush1.bf16.msra.mxu0 0
      %3295 = vmatprep.mubr.bf16.mxu0 0
      %3296 = vmatmul.mubr.bf16.gmra.mrb[0].mxu0 %v3257
      %v3297 = vpop.f32.mrb[0].mxu0
      %v3298 = vadd.f32 0.0, %v3297
      %v3299 = vpop.f32.mrb[0].mxu0
      %v3300 = vpop.f32.mrb[0].mxu0
      %v3301 = vadd.f32 0.0, %v3300
      %v3302 = vpop.f32.mrb[0].mxu0
      %3303 = vdwg.mxu0
      %3305 = vrot.lane.b32.xlu0 %v3176, 64
      %v3306 = vpop.permute.xlu0 %3305
      %3308 = vrot.lane.b32.xlu0 %v3177, 64
      %v3309 = vpop.permute.xlu0 %3308
      %v3311 = vsel %vm1374, %v3306, 0
      %v3314 = vsel %vm1374, %v3309, 0
      %3316 = vmatprep.subr.bf16.mxu0 0
      %3317 = vmatpush1.bf16.xpose.msra.mxu0 %v3314
      %3318 = vmatprep.subr.bf16.mxu0 0
      %3319 = vmatpush1.bf16.xpose.msra.mxu0 0
      %3320 = vmatprep.subr.bf16.mxu0 0
      %3321 = vmatpush1.bf16.xpose.msra.mxu0 0
      %3322 = vmatprep.subr.bf16.mxu0 0
      %3323 = vmatpush1.bf16.xpose.msra.mxu0 0
      %3324 = vmatprep.subr.bf16.mxu0 0
      %3325 = vmatpush1.bf16.xpose.msra.mxu0 0
      %3326 = vmatprep.subr.bf16.mxu0 0
      %3327 = vmatpush1.bf16.xpose.msra.mxu0 0
      %3328 = vmatprep.subr.bf16.mxu0 0
      %3329 = vmatpush1.bf16.xpose.msra.mxu0 0
      %3330 = vmatprep.subr.bf16.mxu0 0
      %3331 = vmatpush1.bf16.xpose.msra.mxu0 0
      %3332 = vmatprep.subr.bf16.mxu0 0
      %3333 = vmatpush1.bf16.xpose.msra.mxu0 0
      %3334 = vmatprep.subr.bf16.mxu0 0
      %3335 = vmatpush1.bf16.xpose.msra.mxu0 0
      %3336 = vmatprep.subr.bf16.mxu0 0
      %3337 = vmatpush1.bf16.xpose.msra.mxu0 0
      %3338 = vmatprep.subr.bf16.mxu0 0
      %3339 = vmatpush1.bf16.xpose.msra.mxu0 0
      %3340 = vmatprep.subr.bf16.mxu0 0
      %3341 = vmatpush1.bf16.xpose.msra.mxu0 0
      %3342 = vmatprep.subr.bf16.mxu0 0
      %3343 = vmatpush1.bf16.xpose.msra.mxu0 0
      %3344 = vmatprep.subr.bf16.mxu0 0
      %3345 = vmatpush1.bf16.xpose.msra.mxu0 0
      %3346 = vmatprep.subr.bf16.mxu0 0
      %3347 = vmatpush1.bf16.xpose.msra.mxu0 0
      %3348 = vmatprep.mubr.bf16.mxu0 0
      %3349 = vmatmul.mubr.bf16.gmra.mrb[0].mxu0 %v3311
      %v3350 = vpop.f32.mrb[0].mxu0
      %v3351 = vadd.f32 %v3183, %v3350
      %v3352 = vpop.f32.mrb[0].mxu0
      %v3353 = vpop.f32.mrb[0].mxu0
      %v3354 = vadd.f32 %v3183, %v3353
      %v3355 = vpop.f32.mrb[0].mxu0
      %3356 = vdwg.mxu0
      %v3357 = vsel %vm3232, %v3351, -inf
      %3358 = vmax.xlane.f32.xlu0 %v3357
      %v3359 = vpop.xlane.xlu0 %3358
      %v3360 = vsel %vm3232, %v3354, -inf
      %3361 = vmax.xlane.f32.xlu0 %v3360
      %v3362 = vpop.xlane.xlu0 %3361
      %v3363 = vsub.f32 %v3351, %v3359
      %v3364 = vsub.f32 %v3354, %v3362
      %v3365 = vmul.f32 %v3363, 1.442695
      %v3366 = vpow.pop %v3365
      %v3367 = vmul.f32 %v3364, 1.442695
      %v3368 = vpow.pop %v3367
      %v3369 = vsel %vm3232, %v3366, 0.0
      %3370 = vadd.xlane.f32.xlu0 %v3369
      %v3371 = vpop.xlane.xlu0 %3370
      %v3372 = vsel %vm3232, %v3368, 0.0
      %3373 = vadd.xlane.f32.xlu0 %v3372
      %v3374 = vpop.xlane.xlu0 %3373
      %v3375 = vrcp.pop %v3371
      %v3376 = vrcp.pop %v3374
      %v3377 = vmul.f32 %v3366, %v3375
      %v3378 = vmul.f32 %v3368, %v3376
      %v3379 = vpack.c.bf16 %v3378, %v3377
      %3381 = vrot.lane.b32.xlu0 %v3178, 64
      %v3382 = vpop.permute.xlu0 %3381
      %v3384 = vsel %vm3232, %v3379, 0
      %v3387 = vsel %vm3259, %v3382, 0
      %3389 = vmatprep.subr.bf16.mxu0 0
      %3390 = vmatpush1.bf16.msra.mxu0 %v3387
      %3391 = vmatprep.subr.bf16.mxu0 0
      %3392 = vmatpush1.bf16.msra.mxu0 0
      %3393 = vmatprep.subr.bf16.mxu0 0
      %3394 = vmatpush1.bf16.msra.mxu0 0
      %3395 = vmatprep.subr.bf16.mxu0 0
      %3396 = vmatpush1.bf16.msra.mxu0 0
      %3397 = vmatprep.subr.bf16.mxu0 0
      %3398 = vmatpush1.bf16.msra.mxu0 0
      %3399 = vmatprep.subr.bf16.mxu0 0
      %3400 = vmatpush1.bf16.msra.mxu0 0
      %3401 = vmatprep.subr.bf16.mxu0 0
      %3402 = vmatpush1.bf16.msra.mxu0 0
      %3403 = vmatprep.subr.bf16.mxu0 0
      %3404 = vmatpush1.bf16.msra.mxu0 0
      %3405 = vmatprep.subr.bf16.mxu0 0
      %3406 = vmatpush1.bf16.msra.mxu0 0
      %3407 = vmatprep.subr.bf16.mxu0 0
      %3408 = vmatpush1.bf16.msra.mxu0 0
      %3409 = vmatprep.subr.bf16.mxu0 0
      %3410 = vmatpush1.bf16.msra.mxu0 0
      %3411 = vmatprep.subr.bf16.mxu0 0
      %3412 = vmatpush1.bf16.msra.mxu0 0
      %3413 = vmatprep.subr.bf16.mxu0 0
      %3414 = vmatpush1.bf16.msra.mxu0 0
      %3415 = vmatprep.subr.bf16.mxu0 0
      %3416 = vmatpush1.bf16.msra.mxu0 0
      %3417 = vmatprep.subr.bf16.mxu0 0
      %3418 = vmatpush1.bf16.msra.mxu0 0
      %3419 = vmatprep.subr.bf16.mxu0 0
      %3420 = vmatpush1.bf16.msra.mxu0 0
      %3421 = vmatprep.mubr.bf16.mxu0 0
      %3422 = vmatmul.mubr.bf16.gmra.mrb[0].mxu0 %v3384
      %v3423 = vpop.f32.mrb[0].mxu0
      %v3424 = vadd.f32 0.0, %v3423
      %v3425 = vpop.f32.mrb[0].mxu0
      %v3426 = vpop.f32.mrb[0].mxu0
      %v3427 = vadd.f32 0.0, %v3426
      %v3428 = vpop.f32.mrb[0].mxu0
      %3429 = vdwg.mxu0
      %3432 = vrot.lane.b32.xlu0 %v3424, 64
      %v3433 = vpop.permute.xlu0 %3432
      %3434 = vrot.lane.b32.xlu0 %v3427, 64
      %v3435 = vpop.permute.xlu0 %3434
      %v3438 = vsel %vm1374, %v3298, %v3433
      %v3439 = vsel %vm1374, %v3301, %v3435
      %v3440 = vpack.c.bf16 %v3439, %v3438
      %3441 = vst [vmem:[#allocation2] sm:$0xff] %v3440
      %v3442 = vpack.c.bf16 %v2866, %v2862
      %v3443 = vpack.c.bf16 %v3048, %v3048
      %v3444 = vpack.c.bf16 %v3130, %v3130
      %v3446 = vsel %vm1374, %v3442, 0
      %v3449 = vsel %vm1374, %v3443, 0
      %3451 = vmatprep.subr.bf16.mxu0 0
      %3452 = vmatpush1.bf16.xpose.msra.mxu0 %v3449
      %3453 = vmatprep.subr.bf16.mxu0 0
      %3454 = vmatpush1.bf16.xpose.msra.mxu0 0
      %3455 = vmatprep.subr.bf16.mxu0 0
      %3456 = vmatpush1.bf16.xpose.msra.mxu0 0
      %3457 = vmatprep.subr.bf16.mxu0 0
      %3458 = vmatpush1.bf16.xpose.msra.mxu0 0
      %3459 = vmatprep.subr.bf16.mxu0 0
      %3460 = vmatpush1.bf16.xpose.msra.mxu0 0
      %3461 = vmatprep.subr.bf16.mxu0 0
      %3462 = vmatpush1.bf16.xpose.msra.mxu0 0
      %3463 = vmatprep.subr.bf16.mxu0 0
      %3464 = vmatpush1.bf16.xpose.msra.mxu0 0
      %3465 = vmatprep.subr.bf16.mxu0 0
      %3466 = vmatpush1.bf16.xpose.msra.mxu0 0
      %3467 = vmatprep.subr.bf16.mxu0 0
      %3468 = vmatpush1.bf16.xpose.msra.mxu0 0
      %3469 = vmatprep.subr.bf16.mxu0 0
      %3470 = vmatpush1.bf16.xpose.msra.mxu0 0
      %3471 = vmatprep.subr.bf16.mxu0 0
      %3472 = vmatpush1.bf16.xpose.msra.mxu0 0
      %3473 = vmatprep.subr.bf16.mxu0 0
      %3474 = vmatpush1.bf16.xpose.msra.mxu0 0
      %3475 = vmatprep.subr.bf16.mxu0 0
      %3476 = vmatpush1.bf16.xpose.msra.mxu0 0
      %3477 = vmatprep.subr.bf16.mxu0 0
      %3478 = vmatpush1.bf16.xpose.msra.mxu0 0
      %3479 = vmatprep.subr.bf16.mxu0 0
      %3480 = vmatpush1.bf16.xpose.msra.mxu0 0
      %3481 = vmatprep.subr.bf16.mxu0 0
      %3482 = vmatpush1.bf16.xpose.msra.mxu0 0
      %3483 = vmatprep.mubr.bf16.mxu0 0
      %3484 = vmatmul.mubr.bf16.gmra.mrb[0].mxu0 %v3446
      %v3485 = vpop.f32.mrb[0].mxu0
      %v3486 = vadd.f32 %v3183, %v3485
      %v3487 = vpop.f32.mrb[0].mxu0
      %v3488 = vpop.f32.mrb[0].mxu0
      %v3489 = vadd.f32 %v3183, %v3488
      %v3490 = vpop.f32.mrb[0].mxu0
      %3491 = vdwg.mxu0
      %v3492 = vsel %vm3232, %v3486, -inf
      %3493 = vmax.xlane.f32.xlu0 %v3492
      %v3494 = vpop.xlane.xlu0 %3493
      %v3495 = vsel %vm3232, %v3489, -inf
      %3496 = vmax.xlane.f32.xlu0 %v3495
      %v3497 = vpop.xlane.xlu0 %3496
      %v3498 = vsub.f32 %v3486, %v3494
      %v3499 = vsub.f32 %v3489, %v3497
      %v3500 = vmul.f32 %v3498, 1.442695
      %v3501 = vpow.pop %v3500
      %v3502 = vmul.f32 %v3499, 1.442695
      %v3503 = vpow.pop %v3502
      %v3504 = vsel %vm3232, %v3501, 0.0
      %3505 = vadd.xlane.f32.xlu0 %v3504
      %v3506 = vpop.xlane.xlu0 %3505
      %v3507 = vsel %vm3232, %v3503, 0.0
      %3508 = vadd.xlane.f32.xlu0 %v3507
      %v3509 = vpop.xlane.xlu0 %3508
      %v3510 = vrcp.pop %v3506
      %v3511 = vrcp.pop %v3509
      %v3512 = vmul.f32 %v3501, %v3510
      %v3513 = vmul.f32 %v3503, %v3511
      %v3514 = vpack.c.bf16 %v3513, %v3512
      %v3516 = vsel %vm3232, %v3514, 0
      %v3519 = vsel %vm3259, %v3444, 0
      %3521 = vmatprep.subr.bf16.mxu0 0
      %3522 = vmatpush1.bf16.msra.mxu0 %v3519
      %3523 = vmatprep.subr.bf16.mxu0 0
      %3524 = vmatpush1.bf16.msra.mxu0 0
      %3525 = vmatprep.subr.bf16.mxu0 0
      %3526 = vmatpush1.bf16.msra.mxu0 0
      %3527 = vmatprep.subr.bf16.mxu0 0
      %3528 = vmatpush1.bf16.msra.mxu0 0
      %3529 = vmatprep.subr.bf16.mxu0 0
      %3530 = vmatpush1.bf16.msra.mxu0 0
      %3531 = vmatprep.subr.bf16.mxu0 0
      %3532 = vmatpush1.bf16.msra.mxu0 0
      %3533 = vmatprep.subr.bf16.mxu0 0
      %3534 = vmatpush1.bf16.msra.mxu0 0
      %3535 = vmatprep.subr.bf16.mxu0 0
      %3536 = vmatpush1.bf16.msra.mxu0 0
      %3537 = vmatprep.subr.bf16.mxu0 0
      %3538 = vmatpush1.bf16.msra.mxu0 0
      %3539 = vmatprep.subr.bf16.mxu0 0
      %3540 = vmatpush1.bf16.msra.mxu0 0
      %3541 = vmatprep.subr.bf16.mxu0 0
      %3542 = vmatpush1.bf16.msra.mxu0 0
      %3543 = vmatprep.subr.bf16.mxu0 0
      %3544 = vmatpush1.bf16.msra.mxu0 0
      %3545 = vmatprep.subr.bf16.mxu0 0
      %3546 = vmatpush1.bf16.msra.mxu0 0
      %3547 = vmatprep.subr.bf16.mxu0 0
      %3548 = vmatpush1.bf16.msra.mxu0 0
      %3549 = vmatprep.subr.bf16.mxu0 0
      %3550 = vmatpush1.bf16.msra.mxu0 0
      %3551 = vmatprep.subr.bf16.mxu0 0
      %3552 = vmatpush1.bf16.msra.mxu0 0
      %3553 = vmatprep.mubr.bf16.mxu0 0
      %3554 = vmatmul.mubr.bf16.gmra.mrb[0].mxu0 %v3516
      %v3555 = vpop.f32.mrb[0].mxu0
      %v3556 = vadd.f32 0.0, %v3555
      %v3557 = vpop.f32.mrb[0].mxu0
      %v3558 = vpop.f32.mrb[0].mxu0
      %v3559 = vadd.f32 0.0, %v3558
      %v3560 = vpop.f32.mrb[0].mxu0
      %3561 = vdwg.mxu0
      %3563 = vrot.lane.b32.xlu0 %v3442, 64
      %v3564 = vpop.permute.xlu0 %3563
      %3566 = vrot.lane.b32.xlu0 %v3443, 64
      %v3567 = vpop.permute.xlu0 %3566
      %v3569 = vsel %vm1374, %v3564, 0
      %v3572 = vsel %vm1374, %v3567, 0
      %3574 = vmatprep.subr.bf16.mxu0 0
      %3575 = vmatpush1.bf16.xpose.msra.mxu0 %v3572
      %3576 = vmatprep.subr.bf16.mxu0 0
      %3577 = vmatpush1.bf16.xpose.msra.mxu0 0
      %3578 = vmatprep.subr.bf16.mxu0 0
      %3579 = vmatpush1.bf16.xpose.msra.mxu0 0
      %3580 = vmatprep.subr.bf16.mxu0 0
      %3581 = vmatpush1.bf16.xpose.msra.mxu0 0
      %3582 = vmatprep.subr.bf16.mxu0 0
      %3583 = vmatpush1.bf16.xpose.msra.mxu0 0
      %3584 = vmatprep.subr.bf16.mxu0 0
      %3585 = vmatpush1.bf16.xpose.msra.mxu0 0
      %3586 = vmatprep.subr.bf16.mxu0 0
      %3587 = vmatpush1.bf16.xpose.msra.mxu0 0
      %3588 = vmatprep.subr.bf16.mxu0 0
      %3589 = vmatpush1.bf16.xpose.msra.mxu0 0
      %3590 = vmatprep.subr.bf16.mxu0 0
      %3591 = vmatpush1.bf16.xpose.msra.mxu0 0
      %3592 = vmatprep.subr.bf16.mxu0 0
      %3593 = vmatpush1.bf16.xpose.msra.mxu0 0
      %3594 = vmatprep.subr.bf16.mxu0 0
      %3595 = vmatpush1.bf16.xpose.msra.mxu0 0
      %3596 = vmatprep.subr.bf16.mxu0 0
      %3597 = vmatpush1.bf16.xpose.msra.mxu0 0
      %3598 = vmatprep.subr.bf16.mxu0 0
      %3599 = vmatpush1.bf16.xpose.msra.mxu0 0
      %3600 = vmatprep.subr.bf16.mxu0 0
      %3601 = vmatpush1.bf16.xpose.msra.mxu0 0
      %3602 = vmatprep.subr.bf16.mxu0 0
      %3603 = vmatpush1.bf16.xpose.msra.mxu0 0
      %3604 = vmatprep.subr.bf16.mxu0 0
      %3605 = vmatpush1.bf16.xpose.msra.mxu0 0
      %3606 = vmatprep.mubr.bf16.mxu0 0
      %3607 = vmatmul.mubr.bf16.gmra.mrb[0].mxu0 %v3569
      %v3608 = vpop.f32.mrb[0].mxu0
      %v3609 = vadd.f32 %v3183, %v3608
      %v3610 = vpop.f32.mrb[0].mxu0
      %v3611 = vpop.f32.mrb[0].mxu0
      %v3612 = vadd.f32 %v3183, %v3611
      %v3613 = vpop.f32.mrb[0].mxu0
      %3614 = vdwg.mxu0
      %v3615 = vsel %vm3232, %v3609, -inf
      %3616 = vmax.xlane.f32.xlu0 %v3615
      %v3617 = vpop.xlane.xlu0 %3616
      %v3618 = vsel %vm3232, %v3612, -inf
      %3619 = vmax.xlane.f32.xlu0 %v3618
      %v3620 = vpop.xlane.xlu0 %3619
      %v3621 = vsub.f32 %v3609, %v3617
      %v3622 = vsub.f32 %v3612, %v3620
      %v3623 = vmul.f32 %v3621, 1.442695
      %v3624 = vpow.pop %v3623
      %v3625 = vmul.f32 %v3622, 1.442695
      %v3626 = vpow.pop %v3625
      %v3627 = vsel %vm3232, %v3624, 0.0
      %3628 = vadd.xlane.f32.xlu0 %v3627
      %v3629 = vpop.xlane.xlu0 %3628
      %v3630 = vsel %vm3232, %v3626, 0.0
      %3631 = vadd.xlane.f32.xlu0 %v3630
      %v3632 = vpop.xlane.xlu0 %3631
      %v3633 = vrcp.pop %v3629
      %v3634 = vrcp.pop %v3632
      %v3635 = vmul.f32 %v3624, %v3633
      %v3636 = vmul.f32 %v3626, %v3634
      %v3637 = vpack.c.bf16 %v3636, %v3635
      %3639 = vrot.lane.b32.xlu0 %v3444, 64
      %v3640 = vpop.permute.xlu0 %3639
      %v3642 = vsel %vm3232, %v3637, 0
      %v3645 = vsel %vm3259, %v3640, 0
      %3647 = vmatprep.subr.bf16.mxu0 0
      %3648 = vmatpush1.bf16.msra.mxu0 %v3645
      %3649 = vmatprep.subr.bf16.mxu0 0
      %3650 = vmatpush1.bf16.msra.mxu0 0
      %3651 = vmatprep.subr.bf16.mxu0 0
      %3652 = vmatpush1.bf16.msra.mxu0 0
      %3653 = vmatprep.subr.bf16.mxu0 0
      %3654 = vmatpush1.bf16.msra.mxu0 0
      %3655 = vmatprep.subr.bf16.mxu0 0
      %3656 = vmatpush1.bf16.msra.mxu0 0
      %3657 = vmatprep.subr.bf16.mxu0 0
      %3658 = vmatpush1.bf16.msra.mxu0 0
      %3659 = vmatprep.subr.bf16.mxu0 0
      %3660 = vmatpush1.bf16.msra.mxu0 0
      %3661 = vmatprep.subr.bf16.mxu0 0
      %3662 = vmatpush1.bf16.msra.mxu0 0
      %3663 = vmatprep.subr.bf16.mxu0 0
      %3664 = vmatpush1.bf16.msra.mxu0 0
      %3665 = vmatprep.subr.bf16.mxu0 0
      %3666 = vmatpush1.bf16.msra.mxu0 0
      %3667 = vmatprep.subr.bf16.mxu0 0
      %3668 = vmatpush1.bf16.msra.mxu0 0
      %3669 = vmatprep.subr.bf16.mxu0 0
      %3670 = vmatpush1.bf16.msra.mxu0 0
      %3671 = vmatprep.subr.bf16.mxu0 0
      %3672 = vmatpush1.bf16.msra.mxu0 0
      %3673 = vmatprep.subr.bf16.mxu0 0
      %3674 = vmatpush1.bf16.msra.mxu0 0
      %3675 = vmatprep.subr.bf16.mxu0 0
      %3676 = vmatpush1.bf16.msra.mxu0 0
      %3677 = vmatprep.subr.bf16.mxu0 0
      %3678 = vmatpush1.bf16.msra.mxu0 0
      %3679 = vmatprep.mubr.bf16.mxu0 0
      %3680 = vmatmul.mubr.bf16.gmra.mrb[0].mxu0 %v3642
      %v3681 = vpop.f32.mrb[0].mxu0
      %v3682 = vadd.f32 0.0, %v3681
      %v3683 = vpop.f32.mrb[0].mxu0
      %v3684 = vpop.f32.mrb[0].mxu0
      %v3685 = vadd.f32 0.0, %v3684
      %v3686 = vpop.f32.mrb[0].mxu0
      %3687 = vdwg.mxu0
      %3690 = vrot.lane.b32.xlu0 %v3682, 64
      %v3691 = vpop.permute.xlu0 %3690
      %3692 = vrot.lane.b32.xlu0 %v3685, 64
      %v3693 = vpop.permute.xlu0 %3692
      %v3696 = vsel %vm1374, %v3556, %v3691
      %v3697 = vsel %vm1374, %v3559, %v3693
      %v3698 = vpack.c.bf16 %v3697, %v3696
      %3699 = vst [vmem:[#allocation2 + $0x8] sm:$0xff] %v3698
      %v3700 = vpack.c.bf16 %v2907, %v2903
      %v3701 = vpack.c.bf16 %v3087, %v3087
      %v3702 = vpack.c.bf16 %v3169, %v3169
      %v3704 = vsel %vm1374, %v3700, 0
      %v3707 = vsel %vm1374, %v3701, 0
      %3709 = vmatprep.subr.bf16.mxu0 0
      %3710 = vmatpush1.bf16.xpose.msra.mxu0 %v3707
      %3711 = vmatprep.subr.bf16.mxu0 0
      %3712 = vmatpush1.bf16.xpose.msra.mxu0 0
      %3713 = vmatprep.subr.bf16.mxu0 0
      %3714 = vmatpush1.bf16.xpose.msra.mxu0 0
      %3715 = vmatprep.subr.bf16.mxu0 0
      %3716 = vmatpush1.bf16.xpose.msra.mxu0 0
      %3717 = vmatprep.subr.bf16.mxu0 0
      %3718 = vmatpush1.bf16.xpose.msra.mxu0 0
      %3719 = vmatprep.subr.bf16.mxu0 0
      %3720 = vmatpush1.bf16.xpose.msra.mxu0 0
      %3721 = vmatprep.subr.bf16.mxu0 0
      %3722 = vmatpush1.bf16.xpose.msra.mxu0 0
      %3723 = vmatprep.subr.bf16.mxu0 0
      %3724 = vmatpush1.bf16.xpose.msra.mxu0 0
      %3725 = vmatprep.subr.bf16.mxu0 0
      %3726 = vmatpush1.bf16.xpose.msra.mxu0 0
      %3727 = vmatprep.subr.bf16.mxu0 0
      %3728 = vmatpush1.bf16.xpose.msra.mxu0 0
      %3729 = vmatprep.subr.bf16.mxu0 0
      %3730 = vmatpush1.bf16.xpose.msra.mxu0 0
      %3731 = vmatprep.subr.bf16.mxu0 0
      %3732 = vmatpush1.bf16.xpose.msra.mxu0 0
      %3733 = vmatprep.subr.bf16.mxu0 0
      %3734 = vmatpush1.bf16.xpose.msra.mxu0 0
      %3735 = vmatprep.subr.bf16.mxu0 0
      %3736 = vmatpush1.bf16.xpose.msra.mxu0 0
      %3737 = vmatprep.subr.bf16.mxu0 0
      %3738 = vmatpush1.bf16.xpose.msra.mxu0 0
      %3739 = vmatprep.subr.bf16.mxu0 0
      %3740 = vmatpush1.bf16.xpose.msra.mxu0 0
      %3741 = vmatprep.mubr.bf16.mxu0 0
      %3742 = vmatmul.mubr.bf16.gmra.mrb[0].mxu0 %v3704
      %v3743 = vpop.f32.mrb[0].mxu0
      %v3744 = vadd.f32 %v3183, %v3743
      %v3745 = vpop.f32.mrb[0].mxu0
      %v3746 = vpop.f32.mrb[0].mxu0
      %v3747 = vadd.f32 %v3183, %v3746
      %v3748 = vpop.f32.mrb[0].mxu0
      %3749 = vdwg.mxu0
      %v3750 = vsel %vm3232, %v3744, -inf
      %3751 = vmax.xlane.f32.xlu0 %v3750
      %v3752 = vpop.xlane.xlu0 %3751
      %v3753 = vsel %vm3232, %v3747, -inf
      %3754 = vmax.xlane.f32.xlu0 %v3753
      %v3755 = vpop.xlane.xlu0 %3754
      %v3756 = vsub.f32 %v3744, %v3752
      %v3757 = vsub.f32 %v3747, %v3755
      %v3758 = vmul.f32 %v3756, 1.442695
      %v3759 = vpow.pop %v3758
      %v3760 = vmul.f32 %v3757, 1.442695
      %v3761 = vpow.pop %v3760
      %v3762 = vsel %vm3232, %v3759, 0.0
      %3763 = vadd.xlane.f32.xlu0 %v3762
      %v3764 = vpop.xlane.xlu0 %3763
      %v3765 = vsel %vm3232, %v3761, 0.0
      %3766 = vadd.xlane.f32.xlu0 %v3765
      %v3767 = vpop.xlane.xlu0 %3766
      %v3768 = vrcp.pop %v3764
      %v3769 = vrcp.pop %v3767
      %v3770 = vmul.f32 %v3759, %v3768
      %v3771 = vmul.f32 %v3761, %v3769
      %v3772 = vpack.c.bf16 %v3771, %v3770
      %v3774 = vsel %vm3232, %v3772, 0
      %v3777 = vsel %vm3259, %v3702, 0
      %3779 = vmatprep.subr.bf16.mxu0 0
      %3780 = vmatpush1.bf16.msra.mxu0 %v3777
      %3781 = vmatprep.subr.bf16.mxu0 0
      %3782 = vmatpush1.bf16.msra.mxu0 0
      %3783 = vmatprep.subr.bf16.mxu0 0
      %3784 = vmatpush1.bf16.msra.mxu0 0
      %3785 = vmatprep.subr.bf16.mxu0 0
      %3786 = vmatpush1.bf16.msra.mxu0 0
      %3787 = vmatprep.subr.bf16.mxu0 0
      %3788 = vmatpush1.bf16.msra.mxu0 0
      %3789 = vmatprep.subr.bf16.mxu0 0
      %3790 = vmatpush1.bf16.msra.mxu0 0
      %3791 = vmatprep.subr.bf16.mxu0 0
      %3792 = vmatpush1.bf16.msra.mxu0 0
      %3793 = vmatprep.subr.bf16.mxu0 0
      %3794 = vmatpush1.bf16.msra.mxu0 0
      %3795 = vmatprep.subr.bf16.mxu0 0
      %3796 = vmatpush1.bf16.msra.mxu0 0
      %3797 = vmatprep.subr.bf16.mxu0 0
      %3798 = vmatpush1.bf16.msra.mxu0 0
      %3799 = vmatprep.subr.bf16.mxu0 0
      %3800 = vmatpush1.bf16.msra.mxu0 0
      %3801 = vmatprep.subr.bf16.mxu0 0
      %3802 = vmatpush1.bf16.msra.mxu0 0
      %3803 = vmatprep.subr.bf16.mxu0 0
      %3804 = vmatpush1.bf16.msra.mxu0 0
      %3805 = vmatprep.subr.bf16.mxu0 0
      %3806 = vmatpush1.bf16.msra.mxu0 0
      %3807 = vmatprep.subr.bf16.mxu0 0
      %3808 = vmatpush1.bf16.msra.mxu0 0
      %3809 = vmatprep.subr.bf16.mxu0 0
      %3810 = vmatpush1.bf16.msra.mxu0 0
      %3811 = vmatprep.mubr.bf16.mxu0 0
      %3812 = vmatmul.mubr.bf16.gmra.mrb[0].mxu0 %v3774
      %v3813 = vpop.f32.mrb[0].mxu0
      %v3814 = vadd.f32 0.0, %v3813
      %v3815 = vpop.f32.mrb[0].mxu0
      %v3816 = vpop.f32.mrb[0].mxu0
      %v3817 = vadd.f32 0.0, %v3816
      %v3818 = vpop.f32.mrb[0].mxu0
      %3819 = vdwg.mxu0
      %3821 = vrot.lane.b32.xlu0 %v3700, 64
      %v3822 = vpop.permute.xlu0 %3821
      %3824 = vrot.lane.b32.xlu0 %v3701, 64
      %v3825 = vpop.permute.xlu0 %3824
      %v3827 = vsel %vm1374, %v3822, 0
      %v3830 = vsel %vm1374, %v3825, 0
      %3832 = vmatprep.subr.bf16.mxu0 0
      %3833 = vmatpush1.bf16.xpose.msra.mxu0 %v3830
      %3834 = vmatprep.subr.bf16.mxu0 0
      %3835 = vmatpush1.bf16.xpose.msra.mxu0 0
      %3836 = vmatprep.subr.bf16.mxu0 0
      %3837 = vmatpush1.bf16.xpose.msra.mxu0 0
      %3838 = vmatprep.subr.bf16.mxu0 0
      %3839 = vmatpush1.bf16.xpose.msra.mxu0 0
      %3840 = vmatprep.subr.bf16.mxu0 0
      %3841 = vmatpush1.bf16.xpose.msra.mxu0 0
      %3842 = vmatprep.subr.bf16.mxu0 0
      %3843 = vmatpush1.bf16.xpose.msra.mxu0 0
      %3844 = vmatprep.subr.bf16.mxu0 0
      %3845 = vmatpush1.bf16.xpose.msra.mxu0 0
      %3846 = vmatprep.subr.bf16.mxu0 0
      %3847 = vmatpush1.bf16.xpose.msra.mxu0 0
      %3848 = vmatprep.subr.bf16.mxu0 0
      %3849 = vmatpush1.bf16.xpose.msra.mxu0 0
      %3850 = vmatprep.subr.bf16.mxu0 0
      %3851 = vmatpush1.bf16.xpose.msra.mxu0 0
      %3852 = vmatprep.subr.bf16.mxu0 0
      %3853 = vmatpush1.bf16.xpose.msra.mxu0 0
      %3854 = vmatprep.subr.bf16.mxu0 0
      %3855 = vmatpush1.bf16.xpose.msra.mxu0 0
      %3856 = vmatprep.subr.bf16.mxu0 0
      %3857 = vmatpush1.bf16.xpose.msra.mxu0 0
      %3858 = vmatprep.subr.bf16.mxu0 0
      %3859 = vmatpush1.bf16.xpose.msra.mxu0 0
      %3860 = vmatprep.subr.bf16.mxu0 0
      %3861 = vmatpush1.bf16.xpose.msra.mxu0 0
      %3862 = vmatprep.subr.bf16.mxu0 0
      %3863 = vmatpush1.bf16.xpose.msra.mxu0 0
      %3864 = vmatprep.mubr.bf16.mxu0 0
      %3865 = vmatmul.mubr.bf16.gmra.mrb[0].mxu0 %v3827
      %v3866 = vpop.f32.mrb[0].mxu0
      %v3867 = vadd.f32 %v3183, %v3866
      %v3868 = vpop.f32.mrb[0].mxu0
      %v3869 = vpop.f32.mrb[0].mxu0
      %v3870 = vadd.f32 %v3183, %v3869
      %v3871 = vpop.f32.mrb[0].mxu0
      %3872 = vdwg.mxu0
      %v3873 = vsel %vm3232, %v3867, -inf
      %3874 = vmax.xlane.f32.xlu0 %v3873
      %v3875 = vpop.xlane.xlu0 %3874
      %v3876 = vsel %vm3232, %v3870, -inf
      %3877 = vmax.xlane.f32.xlu0 %v3876
      %v3878 = vpop.xlane.xlu0 %3877
      %v3879 = vsub.f32 %v3867, %v3875
      %v3880 = vsub.f32 %v3870, %v3878
      %v3881 = vmul.f32 %v3879, 1.442695
      %v3882 = vpow.pop %v3881
      %v3883 = vmul.f32 %v3880, 1.442695
      %v3884 = vpow.pop %v3883
      %v3885 = vsel %vm3232, %v3882, 0.0
      %3886 = vadd.xlane.f32.xlu0 %v3885
      %v3887 = vpop.xlane.xlu0 %3886
      %v3888 = vsel %vm3232, %v3884, 0.0
      %3889 = vadd.xlane.f32.xlu0 %v3888
      %v3890 = vpop.xlane.xlu0 %3889
      %v3891 = vrcp.pop %v3887
      %v3892 = vrcp.pop %v3890
      %v3893 = vmul.f32 %v3882, %v3891
      %v3894 = vmul.f32 %v3884, %v3892
      %v3895 = vpack.c.bf16 %v3894, %v3893
      %3897 = vrot.lane.b32.xlu0 %v3702, 64
      %v3898 = vpop.permute.xlu0 %3897
      %v3900 = vsel %vm3232, %v3895, 0
      %v3903 = vsel %vm3259, %v3898, 0
      %3905 = vmatprep.subr.bf16.mxu0 0
      %3906 = vmatpush1.bf16.msra.mxu0 %v3903
      %3907 = vmatprep.subr.bf16.mxu0 0
      %3908 = vmatpush1.bf16.msra.mxu0 0
      %3909 = vmatprep.subr.bf16.mxu0 0
      %3910 = vmatpush1.bf16.msra.mxu0 0
      %3911 = vmatprep.subr.bf16.mxu0 0
      %3912 = vmatpush1.bf16.msra.mxu0 0
      %3913 = vmatprep.subr.bf16.mxu0 0
      %3914 = vmatpush1.bf16.msra.mxu0 0
      %3915 = vmatprep.subr.bf16.mxu0 0
      %3916 = vmatpush1.bf16.msra.mxu0 0
      %3917 = vmatprep.subr.bf16.mxu0 0
      %3918 = vmatpush1.bf16.msra.mxu0 0
      %3919 = vmatprep.subr.bf16.mxu0 0
      %3920 = vmatpush1.bf16.msra.mxu0 0
      %3921 = vmatprep.subr.bf16.mxu0 0
      %3922 = vmatpush1.bf16.msra.mxu0 0
      %3923 = vmatprep.subr.bf16.mxu0 0
      %3924 = vmatpush1.bf16.msra.mxu0 0
      %3925 = vmatprep.subr.bf16.mxu0 0
      %3926 = vmatpush1.bf16.msra.mxu0 0
      %3927 = vmatprep.subr.bf16.mxu0 0
      %3928 = vmatpush1.bf16.msra.mxu0 0
      %3929 = vmatprep.subr.bf16.mxu0 0
      %3930 = vmatpush1.bf16.msra.mxu0 0
      %3931 = vmatprep.subr.bf16.mxu0 0
      %3932 = vmatpush1.bf16.msra.mxu0 0
      %3933 = vmatprep.subr.bf16.mxu0 0
      %3934 = vmatpush1.bf16.msra.mxu0 0
      %3935 = vmatprep.subr.bf16.mxu0 0
      %3936 = vmatpush1.bf16.msra.mxu0 0
      %3937 = vmatprep.mubr.bf16.mxu0 0
      %3938 = vmatmul.mubr.bf16.gmra.mrb[0].mxu0 %v3900
      %v3939 = vpop.f32.mrb[0].mxu0
      %v3940 = vadd.f32 0.0, %v3939
      %v3941 = vpop.f32.mrb[0].mxu0
      %v3942 = vpop.f32.mrb[0].mxu0
      %v3943 = vadd.f32 0.0, %v3942
      %v3944 = vpop.f32.mrb[0].mxu0
      %3945 = vdwg.mxu0
      %3948 = vrot.lane.b32.xlu0 %v3940, 64
      %v3949 = vpop.permute.xlu0 %3948
      %3950 = vrot.lane.b32.xlu0 %v3943, 64
      %v3951 = vpop.permute.xlu0 %3950
      %v3954 = vsel %vm1374, %v3814, %v3949
      %v3955 = vsel %vm1374, %v3817, %v3951
      %v3956 = vpack.c.bf16 %v3955, %v3954
      %3957 = vst [vmem:[#allocation2 + $0x10] sm:$0xff] %v3956
      %v3958 = vpack.c.bf16 %v2909, %v2905
      %v3959 = vpack.c.bf16 %v3089, %v3089
      %v3960 = vpack.c.bf16 %v3171, %v3171
      %v3962 = vsel %vm1374, %v3958, 0
      %v3965 = vsel %vm1374, %v3959, 0
      %3967 = vmatprep.subr.bf16.mxu0 0
      %3968 = vmatpush1.bf16.xpose.msra.mxu0 %v3965
      %3969 = vmatprep.subr.bf16.mxu0 0
      %3970 = vmatpush1.bf16.xpose.msra.mxu0 0
      %3971 = vmatprep.subr.bf16.mxu0 0
      %3972 = vmatpush1.bf16.xpose.msra.mxu0 0
      %3973 = vmatprep.subr.bf16.mxu0 0
      %3974 = vmatpush1.bf16.xpose.msra.mxu0 0
      %3975 = vmatprep.subr.bf16.mxu0 0
      %3976 = vmatpush1.bf16.xpose.msra.mxu0 0
      %3977 = vmatprep.subr.bf16.mxu0 0
      %3978 = vmatpush1.bf16.xpose.msra.mxu0 0
      %3979 = vmatprep.subr.bf16.mxu0 0
      %3980 = vmatpush1.bf16.xpose.msra.mxu0 0
      %3981 = vmatprep.subr.bf16.mxu0 0
      %3982 = vmatpush1.bf16.xpose.msra.mxu0 0
      %3983 = vmatprep.subr.bf16.mxu0 0
      %3984 = vmatpush1.bf16.xpose.msra.mxu0 0
      %3985 = vmatprep.subr.bf16.mxu0 0
      %3986 = vmatpush1.bf16.xpose.msra.mxu0 0
      %3987 = vmatprep.subr.bf16.mxu0 0
      %3988 = vmatpush1.bf16.xpose.msra.mxu0 0
      %3989 = vmatprep.subr.bf16.mxu0 0
      %3990 = vmatpush1.bf16.xpose.msra.mxu0 0
      %3991 = vmatprep.subr.bf16.mxu0 0
      %3992 = vmatpush1.bf16.xpose.msra.mxu0 0
      %3993 = vmatprep.subr.bf16.mxu0 0
      %3994 = vmatpush1.bf16.xpose.msra.mxu0 0
      %3995 = vmatprep.subr.bf16.mxu0 0
      %3996 = vmatpush1.bf16.xpose.msra.mxu0 0
      %3997 = vmatprep.subr.bf16.mxu0 0
      %3998 = vmatpush1.bf16.xpose.msra.mxu0 0
      %3999 = vmatprep.mubr.bf16.mxu0 0
      %4000 = vmatmul.mubr.bf16.gmra.mrb[0].mxu0 %v3962
      %v4001 = vpop.f32.mrb[0].mxu0
      %v4002 = vadd.f32 %v3183, %v4001
      %v4003 = vpop.f32.mrb[0].mxu0
      %v4004 = vpop.f32.mrb[0].mxu0
      %v4005 = vadd.f32 %v3183, %v4004
      %v4006 = vpop.f32.mrb[0].mxu0
      %4007 = vdwg.mxu0
      %v4008 = vsel %vm3232, %v4002, -inf
      %4009 = vmax.xlane.f32.xlu0 %v4008
      %v4010 = vpop.xlane.xlu0 %4009
      %v4011 = vsel %vm3232, %v4005, -inf
      %4012 = vmax.xlane.f32.xlu0 %v4011
      %v4013 = vpop.xlane.xlu0 %4012
      %v4014 = vsub.f32 %v4002, %v4010
      %v4015 = vsub.f32 %v4005, %v4013
      %v4016 = vmul.f32 %v4014, 1.442695
      %v4017 = vpow.pop %v4016
      %v4018 = vmul.f32 %v4015, 1.442695
      %v4019 = vpow.pop %v4018
      %v4020 = vsel %vm3232, %v4017, 0.0
      %4021 = vadd.xlane.f32.xlu0 %v4020
      %v4022 = vpop.xlane.xlu0 %4021
      %v4023 = vsel %vm3232, %v4019, 0.0
      %4024 = vadd.xlane.f32.xlu0 %v4023
      %v4025 = vpop.xlane.xlu0 %4024
      %v4026 = vrcp.pop %v4022
      %v4027 = vrcp.pop %v4025
      %v4028 = vmul.f32 %v4017, %v4026
      %v4029 = vmul.f32 %v4019, %v4027
      %v4030 = vpack.c.bf16 %v4029, %v4028
      %v4032 = vsel %vm3232, %v4030, 0
      %v4035 = vsel %vm3259, %v3960, 0
      %4037 = vmatprep.subr.bf16.mxu0 0
      %4038 = vmatpush1.bf16.msra.mxu0 %v4035
      %4039 = vmatprep.subr.bf16.mxu0 0
      %4040 = vmatpush1.bf16.msra.mxu0 0
      %4041 = vmatprep.subr.bf16.mxu0 0
      %4042 = vmatpush1.bf16.msra.mxu0 0
      %4043 = vmatprep.subr.bf16.mxu0 0
      %4044 = vmatpush1.bf16.msra.mxu0 0
      %4045 = vmatprep.subr.bf16.mxu0 0
      %4046 = vmatpush1.bf16.msra.mxu0 0
      %4047 = vmatprep.subr.bf16.mxu0 0
      %4048 = vmatpush1.bf16.msra.mxu0 0
      %4049 = vmatprep.subr.bf16.mxu0 0
      %4050 = vmatpush1.bf16.msra.mxu0 0
      %4051 = vmatprep.subr.bf16.mxu0 0
      %4052 = vmatpush1.bf16.msra.mxu0 0
      %4053 = vmatprep.subr.bf16.mxu0 0
      %4054 = vmatpush1.bf16.msra.mxu0 0
      %4055 = vmatprep.subr.bf16.mxu0 0
      %4056 = vmatpush1.bf16.msra.mxu0 0
      %4057 = vmatprep.subr.bf16.mxu0 0
      %4058 = vmatpush1.bf16.msra.mxu0 0
      %4059 = vmatprep.subr.bf16.mxu0 0
      %4060 = vmatpush1.bf16.msra.mxu0 0
      %4061 = vmatprep.subr.bf16.mxu0 0
      %4062 = vmatpush1.bf16.msra.mxu0 0
      %4063 = vmatprep.subr.bf16.mxu0 0
      %4064 = vmatpush1.bf16.msra.mxu0 0
      %4065 = vmatprep.subr.bf16.mxu0 0
      %4066 = vmatpush1.bf16.msra.mxu0 0
      %4067 = vmatprep.subr.bf16.mxu0 0
      %4068 = vmatpush1.bf16.msra.mxu0 0
      %4069 = vmatprep.mubr.bf16.mxu0 0
      %4070 = vmatmul.mubr.bf16.gmra.mrb[0].mxu0 %v4032
      %v4071 = vpop.f32.mrb[0].mxu0
      %v4072 = vadd.f32 0.0, %v4071
      %v4073 = vpop.f32.mrb[0].mxu0
      %v4074 = vpop.f32.mrb[0].mxu0
      %v4075 = vadd.f32 0.0, %v4074
      %v4076 = vpop.f32.mrb[0].mxu0
      %4077 = vdwg.mxu0
      %4079 = vrot.lane.b32.xlu0 %v3958, 64
      %v4080 = vpop.permute.xlu0 %4079
      %4082 = vrot.lane.b32.xlu0 %v3959, 64
      %v4083 = vpop.permute.xlu0 %4082
      %v4085 = vsel %vm1374, %v4080, 0
      %v4088 = vsel %vm1374, %v4083, 0
      %4090 = vmatprep.subr.bf16.mxu0 0
      %4091 = vmatpush1.bf16.xpose.msra.mxu0 %v4088
      %4092 = vmatprep.subr.bf16.mxu0 0
      %4093 = vmatpush1.bf16.xpose.msra.mxu0 0
      %4094 = vmatprep.subr.bf16.mxu0 0
      %4095 = vmatpush1.bf16.xpose.msra.mxu0 0
      %4096 = vmatprep.subr.bf16.mxu0 0
      %4097 = vmatpush1.bf16.xpose.msra.mxu0 0
      %4098 = vmatprep.subr.bf16.mxu0 0
      %4099 = vmatpush1.bf16.xpose.msra.mxu0 0
      %4100 = vmatprep.subr.bf16.mxu0 0
      %4101 = vmatpush1.bf16.xpose.msra.mxu0 0
      %4102 = vmatprep.subr.bf16.mxu0 0
      %4103 = vmatpush1.bf16.xpose.msra.mxu0 0
      %4104 = vmatprep.subr.bf16.mxu0 0
      %4105 = vmatpush1.bf16.xpose.msra.mxu0 0
      %4106 = vmatprep.subr.bf16.mxu0 0
      %4107 = vmatpush1.bf16.xpose.msra.mxu0 0
      %4108 = vmatprep.subr.bf16.mxu0 0
      %4109 = vmatpush1.bf16.xpose.msra.mxu0 0
      %4110 = vmatprep.subr.bf16.mxu0 0
      %4111 = vmatpush1.bf16.xpose.msra.mxu0 0
      %4112 = vmatprep.subr.bf16.mxu0 0
      %4113 = vmatpush1.bf16.xpose.msra.mxu0 0
      %4114 = vmatprep.subr.bf16.mxu0 0
      %4115 = vmatpush1.bf16.xpose.msra.mxu0 0
      %4116 = vmatprep.subr.bf16.mxu0 0
      %4117 = vmatpush1.bf16.xpose.msra.mxu0 0
      %4118 = vmatprep.subr.bf16.mxu0 0
      %4119 = vmatpush1.bf16.xpose.msra.mxu0 0
      %4120 = vmatprep.subr.bf16.mxu0 0
      %4121 = vmatpush1.bf16.xpose.msra.mxu0 0
      %4122 = vmatprep.mubr.bf16.mxu0 0
      %4123 = vmatmul.mubr.bf16.gmra.mrb[0].mxu0 %v4085
      %v4124 = vpop.f32.mrb[0].mxu0
      %v4125 = vadd.f32 %v3183, %v4124
      %v4126 = vpop.f32.mrb[0].mxu0
      %v4127 = vpop.f32.mrb[0].mxu0
      %v4128 = vadd.f32 %v3183, %v4127
      %v4129 = vpop.f32.mrb[0].mxu0
      %4130 = vdwg.mxu0
      %v4131 = vsel %vm3232, %v4125, -inf
      %4132 = vmax.xlane.f32.xlu0 %v4131
      %v4133 = vpop.xlane.xlu0 %4132
      %v4134 = vsel %vm3232, %v4128, -inf
      %4135 = vmax.xlane.f32.xlu0 %v4134
      %v4136 = vpop.xlane.xlu0 %4135
      %v4137 = vsub.f32 %v4125, %v4133
      %v4138 = vsub.f32 %v4128, %v4136
      %v4139 = vmul.f32 %v4137, 1.442695
      %v4140 = vpow.pop %v4139
      %v4141 = vmul.f32 %v4138, 1.442695
      %v4142 = vpow.pop %v4141
      %v4143 = vsel %vm3232, %v4140, 0.0
      %4144 = vadd.xlane.f32.xlu0 %v4143
      %v4145 = vpop.xlane.xlu0 %4144
      %v4146 = vsel %vm3232, %v4142, 0.0
      %4147 = vadd.xlane.f32.xlu0 %v4146
      %v4148 = vpop.xlane.xlu0 %4147
      %v4149 = vrcp.pop %v4145
      %v4150 = vrcp.pop %v4148
      %v4151 = vmul.f32 %v4140, %v4149
      %v4152 = vmul.f32 %v4142, %v4150
      %v4153 = vpack.c.bf16 %v4152, %v4151
      %4155 = vrot.lane.b32.xlu0 %v3960, 64
      %v4156 = vpop.permute.xlu0 %4155
      %v4158 = vsel %vm3232, %v4153, 0
      %v4161 = vsel %vm3259, %v4156, 0
      %4163 = vmatprep.subr.bf16.mxu0 0
      %4164 = vmatpush1.bf16.msra.mxu0 %v4161
      %4165 = vmatprep.subr.bf16.mxu0 0
      %4166 = vmatpush1.bf16.msra.mxu0 0
      %4167 = vmatprep.subr.bf16.mxu0 0
      %4168 = vmatpush1.bf16.msra.mxu0 0
      %4169 = vmatprep.subr.bf16.mxu0 0
      %4170 = vmatpush1.bf16.msra.mxu0 0
      %4171 = vmatprep.subr.bf16.mxu0 0
      %4172 = vmatpush1.bf16.msra.mxu0 0
      %4173 = vmatprep.subr.bf16.mxu0 0
      %4174 = vmatpush1.bf16.msra.mxu0 0
      %4175 = vmatprep.subr.bf16.mxu0 0
      %4176 = vmatpush1.bf16.msra.mxu0 0
      %4177 = vmatprep.subr.bf16.mxu0 0
      %4178 = vmatpush1.bf16.msra.mxu0 0
      %4179 = vmatprep.subr.bf16.mxu0 0
      %4180 = vmatpush1.bf16.msra.mxu0 0
      %4181 = vmatprep.subr.bf16.mxu0 0
      %4182 = vmatpush1.bf16.msra.mxu0 0
      %4183 = vmatprep.subr.bf16.mxu0 0
      %4184 = vmatpush1.bf16.msra.mxu0 0
      %4185 = vmatprep.subr.bf16.mxu0 0
      %4186 = vmatpush1.bf16.msra.mxu0 0
      %4187 = vmatprep.subr.bf16.mxu0 0
      %4188 = vmatpush1.bf16.msra.mxu0 0
      %4189 = vmatprep.subr.bf16.mxu0 0
      %4190 = vmatpush1.bf16.msra.mxu0 0
      %4191 = vmatprep.subr.bf16.mxu0 0
      %4192 = vmatpush1.bf16.msra.mxu0 0
      %4193 = vmatprep.subr.bf16.mxu0 0
      %4194 = vmatpush1.bf16.msra.mxu0 0
      %4195 = vmatprep.mubr.bf16.mxu0 0
      %4196 = vmatmul.mubr.bf16.gmra.mrb[0].mxu0 %v4158
      %v4197 = vpop.f32.mrb[0].mxu0
      %v4198 = vadd.f32 0.0, %v4197
      %v4199 = vpop.f32.mrb[0].mxu0
      %v4200 = vpop.f32.mrb[0].mxu0
      %v4201 = vadd.f32 0.0, %v4200
      %v4202 = vpop.f32.mrb[0].mxu0
      %4203 = vdwg.mxu0
      %4206 = vrot.lane.b32.xlu0 %v4198, 64
      %v4207 = vpop.permute.xlu0 %4206
      %4208 = vrot.lane.b32.xlu0 %v4201, 64
      %v4209 = vpop.permute.xlu0 %4208
      %v4212 = vsel %vm1374, %v4072, %v4207
      %v4213 = vsel %vm1374, %v4075, %v4209
      %v4214 = vpack.c.bf16 %v4213, %v4212
      %4215 = vst [vmem:[#allocation2 + $0x18] sm:$0xff] %v4214
      %v4216 = vld [vmem:[#allocation2] sm:$0xff]
      %v4217 = vld [vmem:[#allocation2 + $0x8] sm:$0xff]
      %v4218 = vld [vmem:[#allocation2 + $0x10] sm:$0xff]
      %v4219 = vld [vmem:[#allocation2 + $0x18] sm:$0xff]
      %v4220 = vld [vmem:[%s13] sm:$0xf]
      %v4221 = vld [vmem:[%s13 + $0x4] sm:$0xf]
      %v4222 = vld [vmem:[%s13 + $0x8] sm:$0xf]
      %v4223 = vld [vmem:[%s13 + $0xc] sm:$0xf]
      %v4224 = vld [vmem:[%s13 + $0x10] sm:$0xf]
      %v4225 = vld [vmem:[%s13 + $0x14] sm:$0xf]
      %v4226 = vld [vmem:[%s13 + $0x18] sm:$0xf]
      %v4227 = vld [vmem:[%s13 + $0x1c] sm:$0xf]
      %v4228 = vld [vmem:[%s13 + $0x20] sm:$0xf]
      %v4229 = vld [vmem:[%s13 + $0x24] sm:$0xf]
      %v4230 = vld [vmem:[%s13 + $0x28] sm:$0xf]
      %v4231 = vld [vmem:[%s13 + $0x2c] sm:$0xf]
      %v4232 = vld [vmem:[%s13 + $0x30] sm:$0xf]
      %v4233 = vld [vmem:[%s13 + $0x34] sm:$0xf]
      %v4234 = vld [vmem:[%s13 + $0x38] sm:$0xf]
      %v4235 = vld [vmem:[%s13 + $0x3c] sm:$0xf]
      %v4236 = vld [vmem:[%s13 + $0x40] sm:$0xf]
      %v4237 = vld [vmem:[%s13 + $0x44] sm:$0xf]
      %v4238 = vld [vmem:[%s13 + $0x48] sm:$0xf]
      %v4239 = vld [vmem:[%s13 + $0x4c] sm:$0xf]
      %v4240 = vld [vmem:[%s13 + $0x50] sm:$0xf]
      %v4241 = vld [vmem:[%s13 + $0x54] sm:$0xf]
      %v4242 = vld [vmem:[%s13 + $0x58] sm:$0xf]
      %v4243 = vld [vmem:[%s13 + $0x5c] sm:$0xf]
      %v4244 = vld [vmem:[%s13 + $0x60] sm:$0xf]
      %v4245 = vld [vmem:[%s13 + $0x64] sm:$0xf]
      %v4246 = vld [vmem:[%s13 + $0x68] sm:$0xf]
      %v4247 = vld [vmem:[%s13 + $0x6c] sm:$0xf]
      %v4248 = vld [vmem:[%s13 + $0x70] sm:$0xf]
      %v4249 = vld [vmem:[%s13 + $0x74] sm:$0xf]
      %v4250 = vld [vmem:[%s13 + $0x78] sm:$0xf]
      %v4251 = vld [vmem:[%s13 + $0x7c] sm:$0xf]
      %v4252 = vld [vmem:[%s13 + $0x80] sm:$0xf]
      %v4253 = vld [vmem:[%s13 + $0x84] sm:$0xf]
      %v4254 = vld [vmem:[%s13 + $0x88] sm:$0xf]
      %v4255 = vld [vmem:[%s13 + $0x8c] sm:$0xf]
      %v4256 = vld [vmem:[%s13 + $0x90] sm:$0xf]
      %v4257 = vld [vmem:[%s13 + $0x94] sm:$0xf]
      %v4258 = vld [vmem:[%s13 + $0x98] sm:$0xf]
      %v4259 = vld [vmem:[%s13 + $0x9c] sm:$0xf]
      %v4260 = vld [vmem:[%s13 + $0xa0] sm:$0xf]
      %v4261 = vld [vmem:[%s13 + $0xa4] sm:$0xf]
      %v4262 = vld [vmem:[%s13 + $0xa8] sm:$0xf]
      %v4263 = vld [vmem:[%s13 + $0xac] sm:$0xf]
      %v4264 = vld [vmem:[%s13 + $0xb0] sm:$0xf]
      %v4265 = vld [vmem:[%s13 + $0xb4] sm:$0xf]
      %v4266 = vld [vmem:[%s13 + $0xb8] sm:$0xf]
      %v4267 = vld [vmem:[%s13 + $0xbc] sm:$0xf]
      %v4268 = vld [vmem:[%s13 + $0xc0] sm:$0xf]
      %v4269 = vld [vmem:[%s13 + $0xc4] sm:$0xf]
      %v4270 = vld [vmem:[%s13 + $0xc8] sm:$0xf]
      %v4271 = vld [vmem:[%s13 + $0xcc] sm:$0xf]
      %v4272 = vld [vmem:[%s13 + $0xd0] sm:$0xf]
      %v4273 = vld [vmem:[%s13 + $0xd4] sm:$0xf]
      %v4274 = vld [vmem:[%s13 + $0xd8] sm:$0xf]
      %v4275 = vld [vmem:[%s13 + $0xdc] sm:$0xf]
      %v4276 = vld [vmem:[%s13 + $0xe0] sm:$0xf]
      %v4277 = vld [vmem:[%s13 + $0xe4] sm:$0xf]
      %v4278 = vld [vmem:[%s13 + $0xe8] sm:$0xf]
      %v4279 = vld [vmem:[%s13 + $0xec] sm:$0xf]
      %v4280 = vld [vmem:[%s13 + $0xf0] sm:$0xf]
      %v4281 = vld [vmem:[%s13 + $0xf4] sm:$0xf]
      %v4282 = vld [vmem:[%s13 + $0xf8] sm:$0xf]
      %v4283 = vld [vmem:[%s13 + $0xfc] sm:$0xf]
      %v4284 = vlaneseq
      %v4285 = vshrl.u32 %v4284, 7
      %v4286 = vsub.s32 0, %v4285
      %v4287 = vrot.slane %v3175, %v4286
      %v4352 = vunpack.c.l.b16 %v4220
      %v4353 = vunpack.c.l.b16 %v4221
      %v4354 = vunpack.c.l.b16 %v4222
      %v4355 = vunpack.c.l.b16 %v4223
      %v4356 = vunpack.c.l.b16 %v4224
      %v4357 = vunpack.c.l.b16 %v4225
      %v4358 = vunpack.c.l.b16 %v4226
      %v4359 = vunpack.c.l.b16 %v4227
      %v4360 = vunpack.c.l.b16 %v4228
      %v4361 = vunpack.c.l.b16 %v4229
      %v4362 = vunpack.c.l.b16 %v4230
      %v4363 = vunpack.c.l.b16 %v4231
      %v4364 = vunpack.c.l.b16 %v4232
      %v4365 = vunpack.c.l.b16 %v4233
      %v4366 = vunpack.c.l.b16 %v4234
      %v4367 = vunpack.c.l.b16 %v4235
      %v4368 = vunpack.c.l.b16 %v4236
      %v4369 = vunpack.c.l.b16 %v4237
      %v4370 = vunpack.c.l.b16 %v4238
      %v4371 = vunpack.c.l.b16 %v4239
      %v4372 = vunpack.c.l.b16 %v4240
      %v4373 = vunpack.c.l.b16 %v4241
      %v4374 = vunpack.c.l.b16 %v4242
      %v4375 = vunpack.c.l.b16 %v4243
      %v4376 = vunpack.c.l.b16 %v4244
      %v4377 = vunpack.c.l.b16 %v4245
      %v4378 = vunpack.c.l.b16 %v4246
      %v4379 = vunpack.c.l.b16 %v4247
      %v4380 = vunpack.c.l.b16 %v4248
      %v4381 = vunpack.c.l.b16 %v4249
      %v4382 = vunpack.c.l.b16 %v4250
      %v4383 = vunpack.c.l.b16 %v4251
      %v4384 = vunpack.c.l.b16 %v4252
      %v4385 = vunpack.c.l.b16 %v4253
      %v4386 = vunpack.c.l.b16 %v4254
      %v4387 = vunpack.c.l.b16 %v4255
      %v4388 = vunpack.c.l.b16 %v4256
      %v4389 = vunpack.c.l.b16 %v4257
      %v4390 = vunpack.c.l.b16 %v4258
      %v4391 = vunpack.c.l.b16 %v4259
      %v4392 = vunpack.c.l.b16 %v4260
      %v4393 = vunpack.c.l.b16 %v4261
      %v4394 = vunpack.c.l.b16 %v4262
      %v4395 = vunpack.c.l.b16 %v4263
      %v4396 = vunpack.c.l.b16 %v4264
      %v4397 = vunpack.c.l.b16 %v4265
      %v4398 = vunpack.c.l.b16 %v4266
      %v4399 = vunpack.c.l.b16 %v4267
      %v4400 = vunpack.c.l.b16 %v4268
      %v4401 = vunpack.c.l.b16 %v4269
      %v4402 = vunpack.c.l.b16 %v4270
      %v4403 = vunpack.c.l.b16 %v4271
      %v4404 = vunpack.c.l.b16 %v4272
      %v4405 = vunpack.c.l.b16 %v4273
      %v4406 = vunpack.c.l.b16 %v4274
      %v4407 = vunpack.c.l.b16 %v4275
      %v4408 = vunpack.c.l.b16 %v4276
      %v4409 = vunpack.c.l.b16 %v4277
      %v4410 = vunpack.c.l.b16 %v4278
      %v4411 = vunpack.c.l.b16 %v4279
      %v4412 = vunpack.c.l.b16 %v4280
      %v4413 = vunpack.c.l.b16 %v4281
      %v4414 = vunpack.c.l.b16 %v4282
      %v4415 = vunpack.c.l.b16 %v4283
      %v4416 = vpack.c.b16 %v4353, %v4352
      %v4417 = vpack.c.b16 %v4355, %v4354
      %v4418 = vpack.c.b16 %v4357, %v4356
      %v4419 = vpack.c.b16 %v4359, %v4358
      %v4420 = vpack.c.b16 %v4361, %v4360
      %v4421 = vpack.c.b16 %v4363, %v4362
      %v4422 = vpack.c.b16 %v4365, %v4364
      %v4423 = vpack.c.b16 %v4367, %v4366
      %v4424 = vpack.c.b16 %v4369, %v4368
      %v4425 = vpack.c.b16 %v4371, %v4370
      %v4426 = vpack.c.b16 %v4373, %v4372
      %v4427 = vpack.c.b16 %v4375, %v4374
      %v4428 = vpack.c.b16 %v4377, %v4376
      %v4429 = vpack.c.b16 %v4379, %v4378
      %v4430 = vpack.c.b16 %v4381, %v4380
      %v4431 = vpack.c.b16 %v4383, %v4382
      %v4432 = vpack.c.b16 %v4385, %v4384
      %v4433 = vpack.c.b16 %v4387, %v4386
      %v4434 = vpack.c.b16 %v4389, %v4388
      %v4435 = vpack.c.b16 %v4391, %v4390
      %v4436 = vpack.c.b16 %v4393, %v4392
      %v4437 = vpack.c.b16 %v4395, %v4394
      %v4438 = vpack.c.b16 %v4397, %v4396
      %v4439 = vpack.c.b16 %v4399, %v4398
      %v4440 = vpack.c.b16 %v4401, %v4400
      %v4441 = vpack.c.b16 %v4403, %v4402
      %v4442 = vpack.c.b16 %v4405, %v4404
      %v4443 = vpack.c.b16 %v4407, %v4406
      %v4444 = vpack.c.b16 %v4409, %v4408
      %v4445 = vpack.c.b16 %v4411, %v4410
      %v4446 = vpack.c.b16 %v4413, %v4412
      %v4447 = vpack.c.b16 %v4415, %v4414
      %4480 = vmatprep.subr.bf16.mxu0 0
      %4481 = vmatpush1.bf16.msra.mxu0 %v4416
      %4482 = vmatprep.subr.bf16.mxu0 0
      %4483 = vmatpush1.bf16.msra.mxu0 %v4417
      %4484 = vmatprep.subr.bf16.mxu0 0
      %4485 = vmatpush1.bf16.msra.mxu0 %v4418
      %4486 = vmatprep.subr.bf16.mxu0 0
      %4487 = vmatpush1.bf16.msra.mxu0 %v4419
      %4488 = vmatprep.subr.bf16.mxu0 0
      %4489 = vmatpush1.bf16.msra.mxu0 %v4420
      %4490 = vmatprep.subr.bf16.mxu0 0
      %4491 = vmatpush1.bf16.msra.mxu0 %v4421
      %4492 = vmatprep.subr.bf16.mxu0 0
      %4493 = vmatpush1.bf16.msra.mxu0 %v4422
      %4494 = vmatprep.subr.bf16.mxu0 0
      %4495 = vmatpush1.bf16.msra.mxu0 %v4423
      %4496 = vmatprep.subr.bf16.mxu0 0
      %4497 = vmatpush1.bf16.msra.mxu0 %v4424
      %4498 = vmatprep.subr.bf16.mxu0 0
      %4499 = vmatpush1.bf16.msra.mxu0 %v4425
      %4500 = vmatprep.subr.bf16.mxu0 0
      %4501 = vmatpush1.bf16.msra.mxu0 %v4426
      %4502 = vmatprep.subr.bf16.mxu0 0
      %4503 = vmatpush1.bf16.msra.mxu0 %v4427
      %4504 = vmatprep.subr.bf16.mxu0 0
      %4505 = vmatpush1.bf16.msra.mxu0 %v4428
      %4506 = vmatprep.subr.bf16.mxu0 0
      %4507 = vmatpush1.bf16.msra.mxu0 %v4429
      %4508 = vmatprep.subr.bf16.mxu0 0
      %4509 = vmatpush1.bf16.msra.mxu0 %v4430
      %4510 = vmatprep.subr.bf16.mxu0 0
      %4511 = vmatpush1.bf16.msra.mxu0 %v4431
      %4512 = vmatprep.mubr.bf16.mxu0 %v4217
      %4513 = vmatmul.mubr.bf16.gmra.mrb[0].mxu0 %v4216
      %v4514 = vpop.f32.mrb[0].mxu0
      %v4515 = vadd.f32 %v4287, %v4514
      %v4516 = vpop.f32.mrb[0].mxu0
      %v4517 = vpop.f32.mrb[0].mxu0
      %v4518 = vadd.f32 %v4287, %v4517
      %v4519 = vpop.f32.mrb[0].mxu0
      %4520 = vdwg.mxu0
      %4521 = vmatprep.subr.bf16.mxu0 0
      %4522 = vmatpush1.bf16.msra.mxu0 %v4432
      %4523 = vmatprep.subr.bf16.mxu0 0
      %4524 = vmatpush1.bf16.msra.mxu0 %v4433
      %4525 = vmatprep.subr.bf16.mxu0 0
      %4526 = vmatpush1.bf16.msra.mxu0 %v4434
      %4527 = vmatprep.subr.bf16.mxu0 0
      %4528 = vmatpush1.bf16.msra.mxu0 %v4435
      %4529 = vmatprep.subr.bf16.mxu0 0
      %4530 = vmatpush1.bf16.msra.mxu0 %v4436
      %4531 = vmatprep.subr.bf16.mxu0 0
      %4532 = vmatpush1.bf16.msra.mxu0 %v4437
      %4533 = vmatprep.subr.bf16.mxu0 0
      %4534 = vmatpush1.bf16.msra.mxu0 %v4438
      %4535 = vmatprep.subr.bf16.mxu0 0
      %4536 = vmatpush1.bf16.msra.mxu0 %v4439
      %4537 = vmatprep.subr.bf16.mxu0 0
      %4538 = vmatpush1.bf16.msra.mxu0 %v4440
      %4539 = vmatprep.subr.bf16.mxu0 0
      %4540 = vmatpush1.bf16.msra.mxu0 %v4441
      %4541 = vmatprep.subr.bf16.mxu0 0
      %4542 = vmatpush1.bf16.msra.mxu0 %v4442
      %4543 = vmatprep.subr.bf16.mxu0 0
      %4544 = vmatpush1.bf16.msra.mxu0 %v4443
      %4545 = vmatprep.subr.bf16.mxu0 0
      %4546 = vmatpush1.bf16.msra.mxu0 %v4444
      %4547 = vmatprep.subr.bf16.mxu0 0
      %4548 = vmatpush1.bf16.msra.mxu0 %v4445
      %4549 = vmatprep.subr.bf16.mxu0 0
      %4550 = vmatpush1.bf16.msra.mxu0 %v4446
      %4551 = vmatprep.subr.bf16.mxu0 0
      %4552 = vmatpush1.bf16.msra.mxu0 %v4447
      %4553 = vmatprep.mubr.bf16.mxu0 %v4219
      %4554 = vmatmul.mubr.bf16.gmra.mrb[0].mxu0 %v4218
      %v4555 = vpop.f32.mrb[0].mxu0
      %v4556 = vadd.f32 %v4515, %v4555
      %v4557 = vpop.f32.mrb[0].mxu0
      %v4558 = vpop.f32.mrb[0].mxu0
      %v4559 = vadd.f32 %v4518, %v4558
      %v4560 = vpop.f32.mrb[0].mxu0
      %4561 = vdwg.mxu0
      %v4562 = vadd.f32 %v2731, %v4556
      %v4563 = vadd.f32 %v2732, %v4559
      %v4564 = vsel %vm681, %v4562, 0.0
      %4565 = vadd.xlane.f32.xlu0 %v4564
      %v4566 = vpop.xlane.xlu0 %4565
      %v4567 = vsel %vm681, %v4563, 0.0
      %4568 = vadd.xlane.f32.xlu0 %v4567
      %v4569 = vpop.xlane.xlu0 %4568
      %v4570 = vmul.f32 %v4566, %v688
      %v4571 = vmul.f32 %v4569, %v688
      %v4572 = vsub.f32 %v4562, %v4570
      %v4573 = vsub.f32 %v4563, %v4571
      %v4574 = vmul.f32 %v4572, %v4572
      %v4575 = vmul.f32 %v4573, %v4573
      %v4576 = vsel %vm681, %v4574, 0.0
      %4577 = vadd.xlane.f32.xlu0 %v4576
      %v4578 = vpop.xlane.xlu0 %4577
      %v4579 = vsel %vm681, %v4575, 0.0
      %4580 = vadd.xlane.f32.xlu0 %v4579
      %v4581 = vpop.xlane.xlu0 %4580
      %v4582 = vmul.f32 %v4578, %v688
      %v4583 = vmul.f32 %v4581, %v688
      %v4584 = vadd.f32 %v4582, 1e-05
      %v4585 = vadd.f32 %v4583, 1e-05
      %v4586 = vrsqrt.pop %v4584
      %v4587 = vrsqrt.pop %v4585
      %v4588 = vmul.f32 %v4572, %v4586
      %v4589 = vmul.f32 %v4573, %v4587
      %v4590 = vld [vmem:[%s4 + $0x9] sm:$0x1]
      %v4591 = vlaneseq
      %v4592 = vshrl.u32 %v4591, 7
      %v4593 = vsub.s32 0, %v4592
      %v4594 = vrot.slane %v4590, %v4593
      %v4595 = vmul.f32 %v4588, %v4594
      %v4596 = vmul.f32 %v4589, %v4594
      %v4597 = vld [vmem:[%s4 + $0xa] sm:$0x1]
      %v4598 = vlaneseq
      %v4599 = vshrl.u32 %v4598, 7
      %v4600 = vsub.s32 0, %v4599
      %v4601 = vrot.slane %v4597, %v4600
      %v4602 = vadd.f32 %v4595, %v4601
      %v4603 = vadd.f32 %v4596, %v4601
      %v4604 = vpack.c.bf16 %v4603, %v4602
      %v4605 = vld [vmem:[%s14] sm:$0xf]
      %v4606 = vld [vmem:[%s14 + $0x4] sm:$0xf]
      %v4607 = vld [vmem:[%s14 + $0x8] sm:$0xf]
      %v4608 = vld [vmem:[%s14 + $0xc] sm:$0xf]
      %v4609 = vld [vmem:[%s6] sm:$0x1]
      %v4610 = vlaneseq
      %v4611 = vshrl.u32 %v4610, 7
      %v4612 = vsub.s32 0, %v4611
      %v4613 = vrot.slane %v4609, %v4612
      %v4618 = vunpack.c.l.b16 %v4605
      %v4619 = vunpack.c.l.b16 %v4606
      %v4620 = vunpack.c.l.b16 %v4607
      %v4621 = vunpack.c.l.b16 %v4608
      %v4622 = vpack.c.b16 %v4619, %v4618
      %v4623 = vpack.c.b16 %v4621, %v4620
      %v4627 = vsel %vm681, %v4604, 0
      %4629 = vmatprep.subr.bf16.mxu0 0
      %4630 = vmatpush1.bf16.msra.mxu0 %v4622
      %4631 = vmatprep.subr.bf16.mxu0 0
      %4632 = vmatpush1.bf16.msra.mxu0 %v4623
      %4633 = vmatprep.subr.bf16.mxu0 0
      %4634 = vmatpush1.bf16.msra.mxu0 0
      %4635 = vmatprep.subr.bf16.mxu0 0
      %4636 = vmatpush1.bf16.msra.mxu0 0
      %4637 = vmatprep.subr.bf16.mxu0 0
      %4638 = vmatpush1.bf16.msra.mxu0 0
      %4639 = vmatprep.subr.bf16.mxu0 0
      %4640 = vmatpush1.bf16.msra.mxu0 0
      %4641 = vmatprep.subr.bf16.mxu0 0
      %4642 = vmatpush1.bf16.msra.mxu0 0
      %4643 = vmatprep.subr.bf16.mxu0 0
      %4644 = vmatpush1.bf16.msra.mxu0 0
      %4645 = vmatprep.subr.bf16.mxu0 0
      %4646 = vmatpush1.bf16.msra.mxu0 0
      %4647 = vmatprep.subr.bf16.mxu0 0
      %4648 = vmatpush1.bf16.msra.mxu0 0
      %4649 = vmatprep.subr.bf16.mxu0 0
      %4650 = vmatpush1.bf16.msra.mxu0 0
      %4651 = vmatprep.subr.bf16.mxu0 0
      %4652 = vmatpush1.bf16.msra.mxu0 0
      %4653 = vmatprep.subr.bf16.mxu0 0
      %4654 = vmatpush1.bf16.msra.mxu0 0
      %4655 = vmatprep.subr.bf16.mxu0 0
      %4656 = vmatpush1.bf16.msra.mxu0 0
      %4657 = vmatprep.subr.bf16.mxu0 0
      %4658 = vmatpush1.bf16.msra.mxu0 0
      %4659 = vmatprep.subr.bf16.mxu0 0
      %4660 = vmatpush1.bf16.msra.mxu0 0
      %4661 = vmatprep.mubr.bf16.mxu0 0
      %4662 = vmatmul.mubr.bf16.gmra.mrb[0].mxu0 %v4627
      %v4663 = vpop.f32.mrb[0].mxu0
      %v4664 = vadd.f32 %v4613, %v4663
      %v4665 = vpop.f32.mrb[0].mxu0
      %v4666 = vpop.f32.mrb[0].mxu0
      %v4667 = vadd.f32 %v4613, %v4666
      %v4668 = vpop.f32.mrb[0].mxu0
      %4669 = vdwg.mxu0
      %v4670 = vld [vmem:[%s15] sm:$0xf]
      %v4671 = vld [vmem:[%s15 + $0x4] sm:$0xf]
      %v4672 = vld [vmem:[%s15 + $0x8] sm:$0xf]
      %v4673 = vld [vmem:[%s15 + $0xc] sm:$0xf]
      %v4674 = vld [vmem:[%s6 + $0x1] sm:$0x1]
      %v4675 = vlaneseq
      %v4676 = vshrl.u32 %v4675, 7
      %v4677 = vsub.s32 0, %v4676
      %v4678 = vrot.slane %v4674, %v4677
      %v4683 = vunpack.c.l.b16 %v4670
      %v4684 = vunpack.c.l.b16 %v4671
      %v4685 = vunpack.c.l.b16 %v4672
      %v4686 = vunpack.c.l.b16 %v4673
      %v4687 = vpack.c.b16 %v4684, %v4683
      %v4688 = vpack.c.b16 %v4686, %v4685
      %4691 = vmatprep.subr.bf16.mxu0 0
      %4692 = vmatpush1.bf16.msra.mxu0 %v4687
      %4693 = vmatprep.subr.bf16.mxu0 0
      %4694 = vmatpush1.bf16.msra.mxu0 %v4688
      %4695 = vmatprep.subr.bf16.mxu0 0
      %4696 = vmatpush1.bf16.msra.mxu0 0
      %4697 = vmatprep.subr.bf16.mxu0 0
      %4698 = vmatpush1.bf16.msra.mxu0 0
      %4699 = vmatprep.subr.bf16.mxu0 0
      %4700 = vmatpush1.bf16.msra.mxu0 0
      %4701 = vmatprep.subr.bf16.mxu0 0
      %4702 = vmatpush1.bf16.msra.mxu0 0
      %4703 = vmatprep.subr.bf16.mxu0 0
      %4704 = vmatpush1.bf16.msra.mxu0 0
      %4705 = vmatprep.subr.bf16.mxu0 0
      %4706 = vmatpush1.bf16.msra.mxu0 0
      %4707 = vmatprep.subr.bf16.mxu0 0
      %4708 = vmatpush1.bf16.msra.mxu0 0
      %4709 = vmatprep.subr.bf16.mxu0 0
      %4710 = vmatpush1.bf16.msra.mxu0 0
      %4711 = vmatprep.subr.bf16.mxu0 0
      %4712 = vmatpush1.bf16.msra.mxu0 0
      %4713 = vmatprep.subr.bf16.mxu0 0
      %4714 = vmatpush1.bf16.msra.mxu0 0
      %4715 = vmatprep.subr.bf16.mxu0 0
      %4716 = vmatpush1.bf16.msra.mxu0 0
      %4717 = vmatprep.subr.bf16.mxu0 0
      %4718 = vmatpush1.bf16.msra.mxu0 0
      %4719 = vmatprep.subr.bf16.mxu0 0
      %4720 = vmatpush1.bf16.msra.mxu0 0
      %4721 = vmatprep.subr.bf16.mxu0 0
      %4722 = vmatpush1.bf16.msra.mxu0 0
      %4723 = vmatprep.mubr.bf16.mxu0 0
      %4724 = vmatmul.mubr.bf16.gmra.mrb[0].mxu0 %v4627
      %v4725 = vpop.f32.mrb[0].mxu0
      %v4726 = vadd.f32 %v4678, %v4725
      %v4727 = vpop.f32.mrb[0].mxu0
      %v4728 = vpop.f32.mrb[0].mxu0
      %v4729 = vadd.f32 %v4678, %v4728
      %v4730 = vpop.f32.mrb[0].mxu0
      %4731 = vdwg.mxu0
      %v4732 = vxor.u32 %v4726, 2147483648
      %v4733 = vxor.u32 %v4729, 2147483648
      %v4734 = vmul.f32 %v4732, 1.442695
      %v4735 = vpow.pop %v4734
      %v4736 = vmul.f32 %v4733, 1.442695
      %v4737 = vpow.pop %v4736
      %v4738 = vadd.f32 %v4735, 1.0
      %v4739 = vadd.f32 %v4737, 1.0
      %v4740 = vrcp.pop %v4738
      %v4741 = vmul.f32 1.0, %v4740
      %v4742 = vrcp.pop %v4739
      %v4743 = vmul.f32 1.0, %v4742
      %v4744 = vmul.f32 %v4664, %v4741
      %v4745 = vmul.f32 %v4667, %v4743
      %4746 = vst.msk [vmem:[#allocation3] sm:$0xff] %vm1374, 0.0
      %4747 = vst.msk [vmem:[#allocation3 + $0x8] sm:$0xff] %vm1374, 0.0
      %4748 = vst.msk [vmem:[#allocation3 + $0x20] sm:$0xff] %vm1374, 0.0
      %4749 = vst.msk [vmem:[#allocation3 + $0x28] sm:$0xff] %vm1374, 0.0
      %4750 = vst.msk [vmem:[#allocation3 + $0x10] sm:$0xff] %vm1374, %v4744
      %4751 = vst.msk [vmem:[#allocation3 + $0x18] sm:$0xff] %vm1374, %v4745
      %v4752 = vld [vmem:[#allocation3] sm:$0xff]
      %v4753 = vld [vmem:[#allocation3 + $0x8] sm:$0xff]
      %v4754 = vld [vmem:[#allocation3 + $0x10] sm:$0xff]
      %v4755 = vld [vmem:[#allocation3 + $0x18] sm:$0xff]
      %v4756 = vld [vmem:[#allocation3 + $0x20] sm:$0xff]
      %v4757 = vld [vmem:[#allocation3 + $0x28] sm:$0xff]
      %v4758 = vld [vmem:[%s16] sm:$0xff]
      %v4759 = vld [vmem:[%s16 + $0x8] sm:$0xff]
      %v4760 = vld [vmem:[%s16 + $0x10] sm:$0xff]
      %v4761 = vld [vmem:[%s16 + $0x18] sm:$0x7f]
      %v4762 = vrot.slane %v4752, 1
      %v4763 = vrot.slane %v4753, 1
      %v4764 = vrot.slane %v4754, 1
      %v4765 = vlaneseq
      %v4766 = vshrl.u32 %v4765, 7
      %vm4767 = vcmp.lt.s32.totalorder %v4766, 7
      %v4768 = vsel %vm4767, %v4763, %v4764
      %v4769 = vsel %vm4767, %v4762, %v4763
      %v4770 = vlaneseq
      %v4771 = vshrl.u32 %v4770, 7
      %v4772 = vsub.s32 0, %v4771
      %v4773 = vrot.slane %v4758, %v4772
      %v4774 = vmul.f32 %v4769, %v4773
      %v4775 = vmul.f32 %v4768, %v4773
      %v4776 = vadd.f32 %v4774, 0.0
      %v4777 = vadd.f32 %v4775, 0.0
      %v4778 = vrot.slane %v4752, 2
      %v4779 = vrot.slane %v4753, 2
      %v4780 = vrot.slane %v4754, 2
      %vm4781 = vcmp.lt.s32.totalorder %v4766, 6
      %v4782 = vsel %vm4781, %v4779, %v4780
      %v4783 = vsel %vm4781, %v4778, %v4779
      %v4784 = vlaneseq
      %v4785 = vshrl.u32 %v4784, 7
      %v4786 = vsub.s32 1, %v4785
      %v4787 = vrot.slane %v4758, %v4786
      %v4788 = vmul.f32 %v4783, %v4787
      %v4789 = vmul.f32 %v4782, %v4787
      %v4790 = vadd.f32 %v4776, %v4788
      %v4791 = vadd.f32 %v4777, %v4789
      %v4792 = vrot.slane %v4752, 3
      %v4793 = vrot.slane %v4753, 3
      %v4794 = vrot.slane %v4754, 3
      %vm4795 = vcmp.lt.s32.totalorder %v4766, 5
      %v4796 = vsel %vm4795, %v4793, %v4794
      %v4797 = vsel %vm4795, %v4792, %v4793
      %v4798 = vlaneseq
      %v4799 = vshrl.u32 %v4798, 7
      %v4800 = vsub.s32 2, %v4799
      %v4801 = vrot.slane %v4758, %v4800
      %v4802 = vmul.f32 %v4797, %v4801
      %v4803 = vmul.f32 %v4796, %v4801
      %v4804 = vadd.f32 %v4790, %v4802
      %v4805 = vadd.f32 %v4791, %v4803
      %v4806 = vrot.slane %v4752, 4
      %v4807 = vrot.slane %v4753, 4
      %v4808 = vrot.slane %v4754, 4
      %vm4809 = vcmp.lt.s32.totalorder %v4766, 4
      %v4810 = vsel %vm4809, %v4807, %v4808
      %v4811 = vsel %vm4809, %v4806, %v4807
      %v4812 = vlaneseq
      %v4813 = vshrl.u32 %v4812, 7
      %v4814 = vsub.s32 3, %v4813
      %v4815 = vrot.slane %v4758, %v4814
      %v4816 = vmul.f32 %v4811, %v4815
      %v4817 = vmul.f32 %v4810, %v4815
      %v4818 = vadd.f32 %v4804, %v4816
      %v4819 = vadd.f32 %v4805, %v4817
      %v4820 = vrot.slane %v4752, 5
      %v4821 = vrot.slane %v4753, 5
      %v4822 = vrot.slane %v4754, 5
      %vm4823 = vcmp.lt.s32.totalorder %v4766, 3
      %v4824 = vsel %vm4823, %v4821, %v4822
      %v4825 = vsel %vm4823, %v4820, %v4821
      %v4826 = vlaneseq
      %v4827 = vshrl.u32 %v4826, 7
      %v4828 = vsub.s32 4, %v4827
      %v4829 = vrot.slane %v4758, %v4828
      %v4830 = vmul.f32 %v4825, %v4829
      %v4831 = vmul.f32 %v4824, %v4829
      %v4832 = vadd.f32 %v4818, %v4830
      %v4833 = vadd.f32 %v4819, %v4831
      %v4834 = vrot.slane %v4752, 6
      %v4835 = vrot.slane %v4753, 6
      %v4836 = vrot.slane %v4754, 6
      %vm4837 = vcmp.lt.s32.totalorder %v4766, 2
      %v4838 = vsel %vm4837, %v4835, %v4836
      %v4839 = vsel %vm4837, %v4834, %v4835
      %v4840 = vlaneseq
      %v4841 = vshrl.u32 %v4840, 7
      %v4842 = vsub.s32 5, %v4841
      %v4843 = vrot.slane %v4758, %v4842
      %v4844 = vmul.f32 %v4839, %v4843
      %v4845 = vmul.f32 %v4838, %v4843
      %v4846 = vadd.f32 %v4832, %v4844
      %v4847 = vadd.f32 %v4833, %v4845
      %v4848 = vrot.slane %v4752, 7
      %v4849 = vrot.slane %v4753, 7
      %v4850 = vrot.slane %v4754, 7
      %vm4851 = vcmp.lt.s32.totalorder %v4766, 1
      %v4852 = vsel %vm4851, %v4849, %v4850
      %v4853 = vsel %vm4851, %v4848, %v4849
      %v4854 = vlaneseq
      %v4855 = vshrl.u32 %v4854, 7
      %v4856 = vsub.s32 6, %v4855
      %v4857 = vrot.slane %v4758, %v4856
      %v4858 = vmul.f32 %v4853, %v4857
      %v4859 = vmul.f32 %v4852, %v4857
      %v4860 = vadd.f32 %v4846, %v4858
      %v4861 = vadd.f32 %v4847, %v4859
      %v4862 = vlaneseq
      %v4863 = vshrl.u32 %v4862, 7
      %v4864 = vsub.s32 7, %v4863
      %v4865 = vrot.slane %v4758, %v4864
      %v4866 = vmul.f32 %v4753, %v4865
      %v4867 = vmul.f32 %v4754, %v4865
      %v4868 = vadd.f32 %v4860, %v4866
      %v4869 = vadd.f32 %v4861, %v4867
      %v4870 = vrot.slane %v4755, 1
      %v4871 = vsel %vm4767, %v4764, %v4870
      %v4872 = vlaneseq
      %v4873 = vshrl.u32 %v4872, 7
      %v4874 = vsub.s32 0, %v4873
      %v4875 = vrot.slane %v4759, %v4874
      %v4876 = vmul.f32 %v4768, %v4875
      %v4877 = vmul.f32 %v4871, %v4875
      %v4878 = vadd.f32 %v4868, %v4876
      %v4879 = vadd.f32 %v4869, %v4877
      %v4880 = vrot.slane %v4755, 2
      %v4881 = vsel %vm4781, %v4780, %v4880
      %v4882 = vlaneseq
      %v4883 = vshrl.u32 %v4882, 7
      %v4884 = vsub.s32 1, %v4883
      %v4885 = vrot.slane %v4759, %v4884
      %v4886 = vmul.f32 %v4782, %v4885
      %v4887 = vmul.f32 %v4881, %v4885
      %v4888 = vadd.f32 %v4878, %v4886
      %v4889 = vadd.f32 %v4879, %v4887
      %v4890 = vrot.slane %v4755, 3
      %v4891 = vsel %vm4795, %v4794, %v4890
      %v4892 = vlaneseq
      %v4893 = vshrl.u32 %v4892, 7
      %v4894 = vsub.s32 2, %v4893
      %v4895 = vrot.slane %v4759, %v4894
      %v4896 = vmul.f32 %v4796, %v4895
      %v4897 = vmul.f32 %v4891, %v4895
      %v4898 = vadd.f32 %v4888, %v4896
      %v4899 = vadd.f32 %v4889, %v4897
      %v4900 = vrot.slane %v4755, 4
      %v4901 = vsel %vm4809, %v4808, %v4900
      %v4902 = vlaneseq
      %v4903 = vshrl.u32 %v4902, 7
      %v4904 = vsub.s32 3, %v4903
      %v4905 = vrot.slane %v4759, %v4904
      %v4906 = vmul.f32 %v4810, %v4905
      %v4907 = vmul.f32 %v4901, %v4905
      %v4908 = vadd.f32 %v4898, %v4906
      %v4909 = vadd.f32 %v4899, %v4907
      %v4910 = vrot.slane %v4755, 5
      %v4911 = vsel %vm4823, %v4822, %v4910
      %v4912 = vlaneseq
      %v4913 = vshrl.u32 %v4912, 7
      %v4914 = vsub.s32 4, %v4913
      %v4915 = vrot.slane %v4759, %v4914
      %v4916 = vmul.f32 %v4824, %v4915
      %v4917 = vmul.f32 %v4911, %v4915
      %v4918 = vadd.f32 %v4908, %v4916
      %v4919 = vadd.f32 %v4909, %v4917
      %v4920 = vrot.slane %v4755, 6
      %v4921 = vsel %vm4837, %v4836, %v4920
      %v4922 = vlaneseq
      %v4923 = vshrl.u32 %v4922, 7
      %v4924 = vsub.s32 5, %v4923
      %v4925 = vrot.slane %v4759, %v4924
      %v4926 = vmul.f32 %v4838, %v4925
      %v4927 = vmul.f32 %v4921, %v4925
      %v4928 = vadd.f32 %v4918, %v4926
      %v4929 = vadd.f32 %v4919, %v4927
      %v4930 = vrot.slane %v4755, 7
      %v4931 = vsel %vm4851, %v4850, %v4930
      %v4932 = vlaneseq
      %v4933 = vshrl.u32 %v4932, 7
      %v4934 = vsub.s32 6, %v4933
      %v4935 = vrot.slane %v4759, %v4934
      %v4936 = vmul.f32 %v4852, %v4935
      %v4937 = vmul.f32 %v4931, %v4935
      %v4938 = vadd.f32 %v4928, %v4936
      %v4939 = vadd.f32 %v4929, %v4937
      %v4940 = vlaneseq
      %v4941 = vshrl.u32 %v4940, 7
      %v4942 = vsub.s32 7, %v4941
      %v4943 = vrot.slane %v4759, %v4942
      %v4944 = vmul.f32 %v4754, %v4943
      %v4945 = vmul.f32 %v4755, %v4943
      %v4946 = vadd.f32 %v4938, %v4944
      %v4947 = vadd.f32 %v4939, %v4945
      %v4948 = vrot.slane %v4756, 1
      %v4949 = vsel %vm4767, %v4870, %v4948
      %v4950 = vlaneseq
      %v4951 = vshrl.u32 %v4950, 7
      %v4952 = vsub.s32 0, %v4951
      %v4953 = vrot.slane %v4760, %v4952
      %v4954 = vmul.f32 %v4871, %v4953
      %v4955 = vmul.f32 %v4949, %v4953
      %v4956 = vadd.f32 %v4946, %v4954
      %v4957 = vadd.f32 %v4947, %v4955
      %v4958 = vrot.slane %v4756, 2
      %v4959 = vsel %vm4781, %v4880, %v4958
      %v4960 = vlaneseq
      %v4961 = vshrl.u32 %v4960, 7
      %v4962 = vsub.s32 1, %v4961
      %v4963 = vrot.slane %v4760, %v4962
      %v4964 = vmul.f32 %v4881, %v4963
      %v4965 = vmul.f32 %v4959, %v4963
      %v4966 = vadd.f32 %v4956, %v4964
      %v4967 = vadd.f32 %v4957, %v4965
      %v4968 = vrot.slane %v4756, 3
      %v4969 = vsel %vm4795, %v4890, %v4968
      %v4970 = vlaneseq
      %v4971 = vshrl.u32 %v4970, 7
      %v4972 = vsub.s32 2, %v4971
      %v4973 = vrot.slane %v4760, %v4972
      %v4974 = vmul.f32 %v4891, %v4973
      %v4975 = vmul.f32 %v4969, %v4973
      %v4976 = vadd.f32 %v4966, %v4974
      %v4977 = vadd.f32 %v4967, %v4975
      %v4978 = vrot.slane %v4756, 4
      %v4979 = vsel %vm4809, %v4900, %v4978
      %v4980 = vlaneseq
      %v4981 = vshrl.u32 %v4980, 7
      %v4982 = vsub.s32 3, %v4981
      %v4983 = vrot.slane %v4760, %v4982
      %v4984 = vmul.f32 %v4901, %v4983
      %v4985 = vmul.f32 %v4979, %v4983
      %v4986 = vadd.f32 %v4976, %v4984
      %v4987 = vadd.f32 %v4977, %v4985
      %v4988 = vrot.slane %v4756, 5
      %v4989 = vsel %vm4823, %v4910, %v4988
      %v4990 = vlaneseq
      %v4991 = vshrl.u32 %v4990, 7
      %v4992 = vsub.s32 4, %v4991
      %v4993 = vrot.slane %v4760, %v4992
      %v4994 = vmul.f32 %v4911, %v4993
      %v4995 = vmul.f32 %v4989, %v4993
      %v4996 = vadd.f32 %v4986, %v4994
      %v4997 = vadd.f32 %v4987, %v4995
      %v4998 = vrot.slane %v4756, 6
      %v4999 = vsel %vm4837, %v4920, %v4998
      %v5000 = vlaneseq
      %v5001 = vshrl.u32 %v5000, 7
      %v5002 = vsub.s32 5, %v5001
      %v5003 = vrot.slane %v4760, %v5002
      %v5004 = vmul.f32 %v4921, %v5003
      %v5005 = vmul.f32 %v4999, %v5003
      %v5006 = vadd.f32 %v4996, %v5004
      %v5007 = vadd.f32 %v4997, %v5005
      %v5008 = vrot.slane %v4756, 7
      %v5009 = vsel %vm4851, %v4930, %v5008
      %v5010 = vlaneseq
      %v5011 = vshrl.u32 %v5010, 7
      %v5012 = vsub.s32 6, %v5011
      %v5013 = vrot.slane %v4760, %v5012
      %v5014 = vmul.f32 %v4931, %v5013
      %v5015 = vmul.f32 %v5009, %v5013
      %v5016 = vadd.f32 %v5006, %v5014
      %v5017 = vadd.f32 %v5007, %v5015
      %v5018 = vlaneseq
      %v5019 = vshrl.u32 %v5018, 7
      %v5020 = vsub.s32 7, %v5019
      %v5021 = vrot.slane %v4760, %v5020
      %v5022 = vmul.f32 %v4755, %v5021
      %v5023 = vmul.f32 %v4756, %v5021
      %v5024 = vadd.f32 %v5016, %v5022
      %v5025 = vadd.f32 %v5017, %v5023
      %v5026 = vrot.slane %v4757, 1
      %v5027 = vsel %vm4767, %v4948, %v5026
      %v5028 = vlaneseq
      %v5029 = vshrl.u32 %v5028, 7
      %v5030 = vsub.s32 0, %v5029
      %v5031 = vrot.slane %v4761, %v5030
      %v5032 = vmul.f32 %v4949, %v5031
      %v5033 = vmul.f32 %v5027, %v5031
      %v5034 = vadd.f32 %v5024, %v5032
      %v5035 = vadd.f32 %v5025, %v5033
      %v5036 = vrot.slane %v4757, 2
      %v5037 = vsel %vm4781, %v4958, %v5036
      %v5038 = vlaneseq
      %v5039 = vshrl.u32 %v5038, 7
      %v5040 = vsub.s32 1, %v5039
      %v5041 = vrot.slane %v4761, %v5040
      %v5042 = vmul.f32 %v4959, %v5041
      %v5043 = vmul.f32 %v5037, %v5041
      %v5044 = vadd.f32 %v5034, %v5042
      %v5045 = vadd.f32 %v5035, %v5043
      %v5046 = vrot.slane %v4757, 3
      %v5047 = vsel %vm4795, %v4968, %v5046
      %v5048 = vlaneseq
      %v5049 = vshrl.u32 %v5048, 7
      %v5050 = vsub.s32 2, %v5049
      %v5051 = vrot.slane %v4761, %v5050
      %v5052 = vmul.f32 %v4969, %v5051
      %v5053 = vmul.f32 %v5047, %v5051
      %v5054 = vadd.f32 %v5044, %v5052
      %v5055 = vadd.f32 %v5045, %v5053
      %v5056 = vrot.slane %v4757, 4
      %v5057 = vsel %vm4809, %v4978, %v5056
      %v5058 = vlaneseq
      %v5059 = vshrl.u32 %v5058, 7
      %v5060 = vsub.s32 3, %v5059
      %v5061 = vrot.slane %v4761, %v5060
      %v5062 = vmul.f32 %v4979, %v5061
      %v5063 = vmul.f32 %v5057, %v5061
      %v5064 = vadd.f32 %v5054, %v5062
      %v5065 = vadd.f32 %v5055, %v5063
      %v5066 = vrot.slane %v4757, 5
      %v5067 = vsel %vm4823, %v4988, %v5066
      %v5068 = vlaneseq
      %v5069 = vshrl.u32 %v5068, 7
      %v5070 = vsub.s32 4, %v5069
      %v5071 = vrot.slane %v4761, %v5070
      %v5072 = vmul.f32 %v4989, %v5071
      %v5073 = vmul.f32 %v5067, %v5071
      %v5074 = vadd.f32 %v5064, %v5072
      %v5075 = vadd.f32 %v5065, %v5073
      %v5076 = vrot.slane %v4757, 6
      %v5077 = vsel %vm4837, %v4998, %v5076
      %v5078 = vlaneseq
      %v5079 = vshrl.u32 %v5078, 7
      %v5080 = vsub.s32 5, %v5079
      %v5081 = vrot.slane %v4761, %v5080
      %v5082 = vmul.f32 %v4999, %v5081
      %v5083 = vmul.f32 %v5077, %v5081
      %v5084 = vadd.f32 %v5074, %v5082
      %v5085 = vadd.f32 %v5075, %v5083
      %v5086 = vrot.slane %v4757, 7
      %v5087 = vsel %vm4851, %v5008, %v5086
      %v5088 = vlaneseq
      %v5089 = vshrl.u32 %v5088, 7
      %v5090 = vsub.s32 6, %v5089
      %v5091 = vrot.slane %v4761, %v5090
      %v5092 = vmul.f32 %v5009, %v5091
      %v5093 = vmul.f32 %v5087, %v5091
      %v5094 = vadd.f32 %v5084, %v5092
      %v5095 = vadd.f32 %v5085, %v5093
      %v5096 = vxor.u32 %v5094, 2147483648
      %v5097 = vxor.u32 %v5095, 2147483648
      %v5098 = vmul.f32 %v5096, 1.442695
      %v5099 = vpow.pop %v5098
      %v5100 = vmul.f32 %v5097, 1.442695
      %v5101 = vpow.pop %v5100
      %v5102 = vadd.f32 %v5099, 1.0
      %v5103 = vadd.f32 %v5101, 1.0
      %v5104 = vrcp.pop %v5102
      %v5105 = vmul.f32 1.0, %v5104
      %v5106 = vrcp.pop %v5103
      %v5107 = vmul.f32 1.0, %v5106
      %v5108 = vmul.f32 %v5094, %v5105
      %v5109 = vmul.f32 %v5095, %v5107
      %v5110 = vpack.c.bf16 %v5109, %v5108
      %v5111 = vld [vmem:[%s17] sm:$0xf]
      %v5112 = vld [vmem:[%s17 + $0x4] sm:$0xf]
      %v5113 = vld [vmem:[%s17 + $0x8] sm:$0xf]
      %v5114 = vld [vmem:[%s17 + $0xc] sm:$0xf]
      %v5115 = vld [vmem:[%s17 + $0x10] sm:$0xf]
      %v5116 = vld [vmem:[%s17 + $0x14] sm:$0xf]
      %v5117 = vld [vmem:[%s17 + $0x18] sm:$0xf]
      %v5118 = vld [vmem:[%s17 + $0x1c] sm:$0xf]
      %v5127 = vunpack.c.l.b16 %v5111
      %v5128 = vunpack.c.l.b16 %v5112
      %v5129 = vunpack.c.l.b16 %v5113
      %v5130 = vunpack.c.l.b16 %v5114
      %v5131 = vunpack.c.l.b16 %v5115
      %v5132 = vunpack.c.l.b16 %v5116
      %v5133 = vunpack.c.l.b16 %v5117
      %v5134 = vunpack.c.l.b16 %v5118
      %v5135 = vpack.c.b16 %v5128, %v5127
      %v5136 = vpack.c.b16 %v5130, %v5129
      %v5137 = vpack.c.b16 %v5132, %v5131
      %v5138 = vpack.c.b16 %v5134, %v5133
      %v5144 = vsel %vm1374, %v5110, 0
      %5146 = vmatprep.subr.bf16.mxu0 0
      %5147 = vmatpush1.bf16.msra.mxu0 %v5135
      %5148 = vmatprep.subr.bf16.mxu0 0
      %5149 = vmatpush1.bf16.msra.mxu0 %v5136
      %5150 = vmatprep.subr.bf16.mxu0 0
      %5151 = vmatpush1.bf16.msra.mxu0 %v5137
      %5152 = vmatprep.subr.bf16.mxu0 0
      %5153 = vmatpush1.bf16.msra.mxu0 %v5138
      %5154 = vmatprep.subr.bf16.mxu0 0
      %5155 = vmatpush1.bf16.msra.mxu0 0
      %5156 = vmatprep.subr.bf16.mxu0 0
      %5157 = vmatpush1.bf16.msra.mxu0 0
      %5158 = vmatprep.subr.bf16.mxu0 0
      %5159 = vmatpush1.bf16.msra.mxu0 0
      %5160 = vmatprep.subr.bf16.mxu0 0
      %5161 = vmatpush1.bf16.msra.mxu0 0
      %5162 = vmatprep.subr.bf16.mxu0 0
      %5163 = vmatpush1.bf16.msra.mxu0 0
      %5164 = vmatprep.subr.bf16.mxu0 0
      %5165 = vmatpush1.bf16.msra.mxu0 0
      %5166 = vmatprep.subr.bf16.mxu0 0
      %5167 = vmatpush1.bf16.msra.mxu0 0
      %5168 = vmatprep.subr.bf16.mxu0 0
      %5169 = vmatpush1.bf16.msra.mxu0 0
      %5170 = vmatprep.subr.bf16.mxu0 0
      %5171 = vmatpush1.bf16.msra.mxu0 0
      %5172 = vmatprep.subr.bf16.mxu0 0
      %5173 = vmatpush1.bf16.msra.mxu0 0
      %5174 = vmatprep.subr.bf16.mxu0 0
      %5175 = vmatpush1.bf16.msra.mxu0 0
      %5176 = vmatprep.subr.bf16.mxu0 0
      %5177 = vmatpush1.bf16.msra.mxu0 0
      %5178 = vmatprep.mubr.bf16.mxu0 0
      %5179 = vmatmul.mubr.bf16.gmra.mrb[0].mxu0 %v5144
      %v5180 = vpop.f32.mrb[0].mxu0
      %v5181 = vadd.f32 0.0, %v5180
      %v5182 = vpop.f32.mrb[0].mxu0
      %v5183 = vpop.f32.mrb[0].mxu0
      %v5184 = vadd.f32 0.0, %v5183
      %v5185 = vpop.f32.mrb[0].mxu0
      %5186 = vdwg.mxu0
      %v5187 = vadd.f32 %v4562, %v5181
      %v5188 = vadd.f32 %v4563, %v5184
      %v5189 = vld [vmem:[%s4 + $0xb] sm:$0x1]
      %v5190 = vlaneseq
      %v5191 = vshrl.u32 %v5190, 7
      %v5192 = vsub.s32 0, %v5191
      %v5193 = vrot.slane %v5189, %v5192
      %v5194 = vadd.f32 %v5187, %v5193
      %v5195 = vadd.f32 %v5188, %v5193
      %v5196 = vsel %vm681, %v5194, 0.0
      %5197 = vadd.xlane.f32.xlu0 %v5196
      %v5198 = vpop.xlane.xlu0 %5197
      %v5199 = vsel %vm681, %v5195, 0.0
      %5200 = vadd.xlane.f32.xlu0 %v5199
      %v5201 = vpop.xlane.xlu0 %5200
      %v5202 = vmul.f32 %v5198, %v688
      %v5203 = vmul.f32 %v5201, %v688
      %v5204 = vsub.f32 %v5194, %v5202
      %v5205 = vsub.f32 %v5195, %v5203
      %v5206 = vmul.f32 %v5204, %v5204
      %v5207 = vmul.f32 %v5205, %v5205
      %v5208 = vsel %vm681, %v5206, 0.0
      %5209 = vadd.xlane.f32.xlu0 %v5208
      %v5210 = vpop.xlane.xlu0 %5209
      %v5211 = vsel %vm681, %v5207, 0.0
      %5212 = vadd.xlane.f32.xlu0 %v5211
      %v5213 = vpop.xlane.xlu0 %5212
      %v5214 = vmul.f32 %v5210, %v688
      %v5215 = vmul.f32 %v5213, %v688
      %v5216 = vadd.f32 %v5214, 1e-05
      %v5217 = vadd.f32 %v5215, 1e-05
      %v5218 = vrsqrt.pop %v5216
      %v5219 = vrsqrt.pop %v5217
      %v5220 = vmul.f32 %v5204, %v5218
      %v5221 = vmul.f32 %v5205, %v5219
      %v5222 = vld [vmem:[%s4 + $0xc] sm:$0x1]
      %v5223 = vlaneseq
      %v5224 = vshrl.u32 %v5223, 7
      %v5225 = vsub.s32 0, %v5224
      %v5226 = vrot.slane %v5222, %v5225
      %v5227 = vmul.f32 %v5220, %v5226
      %v5228 = vmul.f32 %v5221, %v5226
      %v5229 = vld [vmem:[%s4 + $0xd] sm:$0x1]
      %v5230 = vlaneseq
      %v5231 = vshrl.u32 %v5230, 7
      %v5232 = vsub.s32 0, %v5231
      %v5233 = vrot.slane %v5229, %v5232
      %v5234 = vadd.f32 %v5227, %v5233
      %v5235 = vadd.f32 %v5228, %v5233
      %v5236 = vld [vmem:[%s5 + $0x1] sm:$0x1]
      %v5237 = vld [vmem:[%s4 + $0xe] sm:$0x1]
      %v5238 = vpack.c.bf16 %v5235, %v5234
      %v5239 = vld [vmem:[%s18] sm:$0xf]
      %v5240 = vld [vmem:[%s18 + $0x4] sm:$0xf]
      %v5241 = vld [vmem:[%s18 + $0x8] sm:$0xf]
      %v5242 = vld [vmem:[%s18 + $0xc] sm:$0xf]
      %v5243 = vlaneseq
      %v5244 = vshrl.u32 %v5243, 7
      %v5245 = vsub.s32 0, %v5244
      %v5246 = vrot.slane %v5236, %v5245
      %v5251 = vunpack.c.l.b16 %v5239
      %v5252 = vunpack.c.l.b16 %v5240
      %v5253 = vunpack.c.l.b16 %v5241
      %v5254 = vunpack.c.l.b16 %v5242
      %v5255 = vpack.c.b16 %v5252, %v5251
      %v5256 = vpack.c.b16 %v5254, %v5253
      %v5260 = vsel %vm681, %v5238, 0
      %5262 = vmatprep.subr.bf16.mxu0 0
      %5263 = vmatpush1.bf16.msra.mxu0 %v5255
      %5264 = vmatprep.subr.bf16.mxu0 0
      %5265 = vmatpush1.bf16.msra.mxu0 %v5256
      %5266 = vmatprep.subr.bf16.mxu0 0
      %5267 = vmatpush1.bf16.msra.mxu0 0
      %5268 = vmatprep.subr.bf16.mxu0 0
      %5269 = vmatpush1.bf16.msra.mxu0 0
      %5270 = vmatprep.subr.bf16.mxu0 0
      %5271 = vmatpush1.bf16.msra.mxu0 0
      %5272 = vmatprep.subr.bf16.mxu0 0
      %5273 = vmatpush1.bf16.msra.mxu0 0
      %5274 = vmatprep.subr.bf16.mxu0 0
      %5275 = vmatpush1.bf16.msra.mxu0 0
      %5276 = vmatprep.subr.bf16.mxu0 0
      %5277 = vmatpush1.bf16.msra.mxu0 0
      %5278 = vmatprep.subr.bf16.mxu0 0
      %5279 = vmatpush1.bf16.msra.mxu0 0
      %5280 = vmatprep.subr.bf16.mxu0 0
      %5281 = vmatpush1.bf16.msra.mxu0 0
      %5282 = vmatprep.subr.bf16.mxu0 0
      %5283 = vmatpush1.bf16.msra.mxu0 0
      %5284 = vmatprep.subr.bf16.mxu0 0
      %5285 = vmatpush1.bf16.msra.mxu0 0
      %5286 = vmatprep.subr.bf16.mxu0 0
      %5287 = vmatpush1.bf16.msra.mxu0 0
      %5288 = vmatprep.subr.bf16.mxu0 0
      %5289 = vmatpush1.bf16.msra.mxu0 0
      %5290 = vmatprep.subr.bf16.mxu0 0
      %5291 = vmatpush1.bf16.msra.mxu0 0
      %5292 = vmatprep.subr.bf16.mxu0 0
      %5293 = vmatpush1.bf16.msra.mxu0 0
      %5294 = vmatprep.mubr.bf16.mxu0 0
      %5295 = vmatmul.mubr.bf16.gmra.mrb[0].mxu0 %v5260
      %v5296 = vpop.f32.mrb[0].mxu0
      %v5297 = vadd.f32 %v5246, %v5296
      %v5298 = vpop.f32.mrb[0].mxu0
      %v5299 = vpop.f32.mrb[0].mxu0
      %v5300 = vadd.f32 %v5246, %v5299
      %v5301 = vpop.f32.mrb[0].mxu0
      %5302 = vdwg.mxu0
      %v5303 = vxor.u32 %v5297, 2147483648
      %v5304 = vxor.u32 %v5300, 2147483648
      %v5305 = vmul.f32 %v5303, 1.442695
      %v5306 = vpow.pop %v5305
      %v5307 = vmul.f32 %v5304, 1.442695
      %v5308 = vpow.pop %v5307
      %v5309 = vadd.f32 %v5306, 1.0
      %v5310 = vadd.f32 %v5308, 1.0
      %v5311 = vrcp.pop %v5309
      %v5312 = vmul.f32 1.0, %v5311
      %v5313 = vrcp.pop %v5310
      %v5314 = vmul.f32 1.0, %v5313
      %v5315 = vmul.f32 %v5297, %v5312
      %v5316 = vmul.f32 %v5300, %v5314
      %v5317 = vpack.c.bf16 %v5316, %v5315
      %v5318 = vld [vmem:[%s19] sm:$0xf]
      %v5319 = vld [vmem:[%s19 + $0x4] sm:$0xf]
      %v5320 = vld [vmem:[%s19 + $0x8] sm:$0xf]
      %v5321 = vld [vmem:[%s19 + $0xc] sm:$0xf]
      %v5322 = vld [vmem:[%s19 + $0x10] sm:$0xf]
      %v5323 = vld [vmem:[%s19 + $0x14] sm:$0xf]
      %v5324 = vld [vmem:[%s19 + $0x18] sm:$0xf]
      %v5325 = vld [vmem:[%s19 + $0x1c] sm:$0xf]
      %v5326 = vld [vmem:[%s19 + $0x20] sm:$0xf]
      %v5327 = vld [vmem:[%s19 + $0x24] sm:$0xf]
      %v5328 = vld [vmem:[%s19 + $0x28] sm:$0xf]
      %v5329 = vld [vmem:[%s19 + $0x2c] sm:$0xf]
      %v5330 = vld [vmem:[%s19 + $0x30] sm:$0xf]
      %v5331 = vld [vmem:[%s19 + $0x34] sm:$0xf]
      %v5332 = vld [vmem:[%s19 + $0x38] sm:$0xf]
      %v5333 = vld [vmem:[%s19 + $0x3c] sm:$0xf]
      %v5334 = vlaneseq
      %v5335 = vshrl.u32 %v5334, 7
      %v5336 = vsub.s32 0, %v5335
      %v5337 = vrot.slane %v5237, %v5336
      %v5354 = vunpack.c.l.b16 %v5318
      %v5355 = vunpack.c.l.b16 %v5319
      %v5356 = vunpack.c.l.b16 %v5320
      %v5357 = vunpack.c.l.b16 %v5321
      %v5358 = vunpack.c.l.b16 %v5322
      %v5359 = vunpack.c.l.b16 %v5323
      %v5360 = vunpack.c.l.b16 %v5324
      %v5361 = vunpack.c.l.b16 %v5325
      %v5362 = vunpack.c.l.b16 %v5326
      %v5363 = vunpack.c.l.b16 %v5327
      %v5364 = vunpack.c.l.b16 %v5328
      %v5365 = vunpack.c.l.b16 %v5329
      %v5366 = vunpack.c.l.b16 %v5330
      %v5367 = vunpack.c.l.b16 %v5331
      %v5368 = vunpack.c.l.b16 %v5332
      %v5369 = vunpack.c.l.b16 %v5333
      %v5370 = vpack.c.b16 %v5355, %v5354
      %v5371 = vpack.c.b16 %v5357, %v5356
      %v5372 = vpack.c.b16 %v5359, %v5358
      %v5373 = vpack.c.b16 %v5361, %v5360
      %v5374 = vpack.c.b16 %v5363, %v5362
      %v5375 = vpack.c.b16 %v5365, %v5364
      %v5376 = vpack.c.b16 %v5367, %v5366
      %v5377 = vpack.c.b16 %v5369, %v5368
      %5386 = vmatprep.subr.bf16.mxu0 0
      %5387 = vmatpush1.bf16.msra.mxu0 %v5370
      %5388 = vmatprep.subr.bf16.mxu0 0
      %5389 = vmatpush1.bf16.msra.mxu0 %v5371
      %5390 = vmatprep.subr.bf16.mxu0 0
      %5391 = vmatpush1.bf16.msra.mxu0 %v5372
      %5392 = vmatprep.subr.bf16.mxu0 0
      %5393 = vmatpush1.bf16.msra.mxu0 %v5373
      %5394 = vmatprep.subr.bf16.mxu0 0
      %5395 = vmatpush1.bf16.msra.mxu0 %v5374
      %5396 = vmatprep.subr.bf16.mxu0 0
      %5397 = vmatpush1.bf16.msra.mxu0 %v5375
      %5398 = vmatprep.subr.bf16.mxu0 0
      %5399 = vmatpush1.bf16.msra.mxu0 %v5376
      %5400 = vmatprep.subr.bf16.mxu0 0
      %5401 = vmatpush1.bf16.msra.mxu0 %v5377
      %5402 = vmatprep.subr.bf16.mxu0 0
      %5403 = vmatpush1.bf16.msra.mxu0 0
      %5404 = vmatprep.subr.bf16.mxu0 0
      %5405 = vmatpush1.bf16.msra.mxu0 0
      %5406 = vmatprep.subr.bf16.mxu0 0
      %5407 = vmatpush1.bf16.msra.mxu0 0
      %5408 = vmatprep.subr.bf16.mxu0 0
      %5409 = vmatpush1.bf16.msra.mxu0 0
      %5410 = vmatprep.subr.bf16.mxu0 0
      %5411 = vmatpush1.bf16.msra.mxu0 0
      %5412 = vmatprep.subr.bf16.mxu0 0
      %5413 = vmatpush1.bf16.msra.mxu0 0
      %5414 = vmatprep.subr.bf16.mxu0 0
      %5415 = vmatpush1.bf16.msra.mxu0 0
      %5416 = vmatprep.subr.bf16.mxu0 0
      %5417 = vmatpush1.bf16.msra.mxu0 0
      %5418 = vmatprep.mubr.bf16.mxu0 0
      %5419 = vmatmul.mubr.bf16.gmra.mrb[0].mxu0 %v5317
      %v5420 = vpop.f32.mrb[0].mxu0
      %v5421 = vadd.f32 %v5337, %v5420
      %v5422 = vpop.f32.mrb[0].mxu0
      %v5423 = vpop.f32.mrb[0].mxu0
      %v5424 = vadd.f32 %v5337, %v5423
      %v5425 = vpop.f32.mrb[0].mxu0
      %5426 = vdwg.mxu0
      %v5427 = vmul.f32 %v5421, 0.5
      %v5428 = vmul.f32 %v5424, 0.5
      %v5429 = vadd.f32 %v5194, %v5427
      %v5430 = vadd.f32 %v5195, %v5428
      %v5431 = vsel %vm681, %v5429, 0.0
      %5432 = vadd.xlane.f32.xlu0 %v5431
      %v5433 = vpop.xlane.xlu0 %5432
      %v5434 = vsel %vm681, %v5430, 0.0
      %5435 = vadd.xlane.f32.xlu0 %v5434
      %v5436 = vpop.xlane.xlu0 %5435
      %v5437 = vmul.f32 %v5433, %v688
      %v5438 = vmul.f32 %v5436, %v688
      %v5439 = vsub.f32 %v5429, %v5437
      %v5440 = vsub.f32 %v5430, %v5438
      %v5441 = vmul.f32 %v5439, %v5439
      %v5442 = vmul.f32 %v5440, %v5440
      %v5443 = vsel %vm681, %v5441, 0.0
      %5444 = vadd.xlane.f32.xlu0 %v5443
      %v5445 = vpop.xlane.xlu0 %5444
      %v5446 = vsel %vm681, %v5442, 0.0
      %5447 = vadd.xlane.f32.xlu0 %v5446
      %v5448 = vpop.xlane.xlu0 %5447
      %v5449 = vmul.f32 %v5445, %v688
      %v5450 = vmul.f32 %v5448, %v688
      %v5451 = vadd.f32 %v5449, 1e-05
      %v5452 = vadd.f32 %v5450, 1e-05
      %v5453 = vrsqrt.pop %v5451
      %v5454 = vrsqrt.pop %v5452
      %v5455 = vmul.f32 %v5439, %v5453
      %v5456 = vmul.f32 %v5440, %v5454
      %v5457 = vld [vmem:[%s4 + $0xf] sm:$0x1]
      %v5458 = vlaneseq
      %v5459 = vshrl.u32 %v5458, 7
      %v5460 = vsub.s32 0, %v5459
      %v5461 = vrot.slane %v5457, %v5460
      %v5462 = vmul.f32 %v5455, %v5461
      %v5463 = vmul.f32 %v5456, %v5461
      %v5464 = vld [vmem:[%s4 + $0x10] sm:$0x1]
      %v5465 = vlaneseq
      %v5466 = vshrl.u32 %v5465, 7
      %v5467 = vsub.s32 0, %v5466
      %v5468 = vrot.slane %v5464, %v5467
      %v5469 = vadd.f32 %v5462, %v5468
      %v5470 = vadd.f32 %v5463, %v5468
      %5471 = vst.msk [vmem:[%s674] sm:$0xff] %vm681, %v5469
      %5472 = vst.msk [vmem:[%s674 + $0x8] sm:$0xff] %vm681, %v5470
      %p5473 = scmp.lt.s32.totalorder %s31, 1
      %s5474 = scalar_select %p5473, %s31, 1
      %s5475 = smul.addr %s5474, 2
      %s5476 = smul.addr %s5475, 8
      %s5477 = scalar_lea.vmem %s20, %s5476
      // Predicated region
      $region101: #{conformer_cross_attn_encoder.2} parent=99 // pred_check
        %p5478 = pneg %p489
      $region102: #{conformer_cross_attn_encoder.2} parent=99 // pred_check_branch
        %5480 = sbr.rel (%p5478) target = $region104
      $region103: #{conformer_cross_attn_encoder.2} parent=99 // pred_region
        _
      $region104: #{conformer_cross_attn_encoder.2} parent=99 // pred_fallthru
        _
    $region100: #{conformer_cross_attn_encoder.2} parent=5 // pred_fallthru
      _
    %p5481 = scmp.le.s32.totalorder 2, %s26
    // Predicated region
    $region105: #{conformer_cross_attn_encoder.2} parent=5 // pred_check
      %p5482 = pneg %p5481
    $region106: #{conformer_cross_attn_encoder.2} parent=5 // pred_check_branch
      %5484 = sbr.rel (%p5482) target = $region108
    $region107: #{conformer_cross_attn_encoder.2} parent=5 // pred_region
      %s5485 = ssub.s32 %s26, 2
      // Predicated region
      $region109: #{conformer_cross_attn_encoder.2} parent=107 // pred_check
        %p5486 = pneg %p495
      $region110: #{conformer_cross_attn_encoder.2} parent=107 // pred_check_branch
        %5488 = sbr.rel (%p5486) target = $region112
      $region111: #{conformer_cross_attn_encoder.2} parent=107 // pred_region
        %p5489 = scmp.lt.s32.totalorder %s32, 1
        %s5490 = scalar_select %p5489, %s32, 1
        %s5491 = smul.addr %s5490, 2
        %s5492 = smul.addr %s5491, 8
        %s5493 = scalar_lea.vmem %s20, %s5492
      $region112: #{conformer_cross_attn_encoder.2} parent=107 // pred_fallthru
        _
    $region108: #{conformer_cross_attn_encoder.2} parent=5 // pred_fallthru
      _
  $region6: #{conformer_cross_attn_encoder.2} parent=0 // loop_footer
    %s30 = sadd.s32 1, %s26
  $region7: #{conformer_cross_attn_encoder.2} parent=0 // loop_footer_branch
    %25 = sbr.rel target = $region3
  $region8: #{conformer_cross_attn_encoder.2} parent=0 // loop_exit
    _

</llo_original>
